<compile_context>
chip_gen: v6e
topology: v6e:2x2x1
jax: 0.10.0
libtpu: 0.0.40
codegen_flags: <defaults>
</compile_context>

<pallas_src>
import numpy as np
import jax
import jax.numpy as jnp
from jax.experimental import pallas as pl
from jax.experimental.pallas import tpu as pltpu


# ---------------------------------------------------------------------------
# Kernels
# ---------------------------------------------------------------------------
def xw1_kernel(x_ref, w1_ref, out_ref):
    """conv1 feature transform, row-tiled: out_tile = X_tile @ W1 (bf16 out)."""
    out_ref[...] = jnp.dot(x_ref[...], w1_ref[...],
                           preferred_element_type=jnp.float32).astype(out_ref.dtype)


def conv1_kernel(ahat_ref, xw1_ref, b1_ref, w2h_ref, rxb_ref,
                 h1_ref, cw2_ref, acc_ref):
    """A_hat @ (X W1) with fused epilogue producing h1 and the conv2 input cw2.

    grid = (row tiles 'parallel', col tiles 'arbitrary'); acc_ref is the f32
    accumulator over the column/reduction axis.
    """
    k = pl.program_id(1)

    @pl.when(k == 0)
    def _():
        acc_ref[...] = jnp.zeros_like(acc_ref)

    acc_ref[...] += jnp.dot(ahat_ref[...], xw1_ref[...],
                            preferred_element_type=jnp.float32)

    @pl.when(k == pl.num_programs(1) - 1)
    def _():
        h1 = acc_ref[...] + b1_ref[...]                       # conv1 pre-relu out
        h1_ref[...] = h1.astype(h1_ref.dtype)
        # concat-free split-weight form of the conv2 input:
        #   relu(cat(h1, root1)) @ W2 == relu(h1) @ W2h + rx[batch]   (= rxb)
        cw2 = jnp.dot(jnp.maximum(h1, 0.0).astype(jnp.bfloat16), w2h_ref[...],
                      preferred_element_type=jnp.float32) + rxb_ref[...]
        cw2_ref[...] = cw2.astype(cw2_ref.dtype)


def conv2_kernel(ahat_ref, cw2_ref, b2_ref, p_ref, pooled_ref, acc_ref):
    """relu(A_hat @ cw2 + b2) with the mean-pool readout fused per row tile."""
    k = pl.program_id(1)

    @pl.when(k == 0)
    def _():
        acc_ref[...] = jnp.zeros_like(acc_ref)

    acc_ref[...] += jnp.dot(ahat_ref[...], cw2_ref[...],
                            preferred_element_type=jnp.float32)

    @pl.when(k == pl.num_programs(1) - 1)
    def _():
        h2 = jnp.maximum(acc_ref[...] + b2_ref[...], 0.0)     # relu(conv2) tile
        # fused scatter_mean partial: P_tile [B, tm] @ h2 [tm, O]  (P holds 1/count)
        pooled_ref[0, :, :] = jnp.dot(p_ref[...], h2,
                                      preferred_element_type=jnp.float32)


# ---------------------------------------------------------------------------
# Wrapper
# ---------------------------------------------------------------------------
def _vmem_cap_bytes():
    """Per-generation scoped-VMEM cap: 25% headroom off physical VMEM."""
    try:
        return int(pltpu.get_tpu_info().vmem_capacity_bytes) * 3 // 4
    except Exception:
        return 48 << 20   # safe on every generation (v7x physical is 64 MiB)


def _pick_tile(n, need_fn, cap):
    """Largest 128-multiple divisor of n whose VMEM need fits the cap."""
    for t in (512, 256, 128):
        if n % t == 0 and need_fn(t) <= cap:
            return t
    return n   # tiny-N fallback: single block (block dims == full array dims)


def tdrumor_forward(x, ahat_bf16, batch, root_idx, p, w1, b1, w2, b2):
    """x:[N,Fin] f32, ahat_bf16:[N,N] bf16 (pre-cast once), batch:[N] i32,
    root_idx:[B] i32, p:[B,N] f32 mean-pool, w1:[Fin,H], b1:[1,H],
    w2:[H+Fin,O], b2:[1,O]  ->  [B, O+H] f32."""
    N, fin = x.shape
    hid = w1.shape[1]
    out_f = w2.shape[1]
    B = p.shape[0]
    bf16 = jnp.bfloat16

    w2h = w2[:hid, :].astype(bf16)       # rows multiplying the conv1 output
    w2x = w2[hid:, :]                    # rows multiplying the root raw features

    # ---- tiny O(B·F) root path: index gathers, no one-hot matmuls ----------
    x_roots = x[root_idx]                                   # [B, Fin]
    rx = jnp.maximum(x_roots, 0.0) @ w2x                    # [B, O]
    rxb = jnp.take(rx, batch, axis=0).astype(jnp.float32)   # [N, O] root broadcast

    cap = _vmem_cap_bytes()
    margin = 4 << 20

    # ---- pass 0: xw1 = X @ W1  (row-tiled, bf16 output) --------------------
    def need_xw1(t):
        return 2 * (t * fin * 2 + t * hid * 2) + fin * hid * 2 + margin

    t0 = _pick_tile(N, need_xw1, cap)
    xw1 = pl.pallas_call(
        xw1_kernel,
        out_shape=jax.ShapeDtypeStruct((N, hid), bf16),
        grid_spec=pltpu.PrefetchScalarGridSpec(
            num_scalar_prefetch=0, grid=(N // t0,),
            in_specs=[pl.BlockSpec((t0, fin), lambda i: (i, 0)),
                      pl.BlockSpec((fin, hid), lambda i: (0, 0))],
            out_specs=pl.BlockSpec((t0, hid), lambda i: (i, 0))),
        compiler_params=pltpu.CompilerParams(
            dimension_semantics=("parallel",),
            vmem_limit_bytes=int(min(cap, max(need_xw1(t0), 32 << 20)))),
    )(x.astype(bf16), w1.astype(bf16))

    # ---- pass 1: h1 = A_hat @ xw1 + b1 ; cw2 = relu(h1)@W2h + rxb ----------
    def need_conv1(t):
        return (2 * (t * t * 2           # A_hat tile (bf16)
                     + t * hid * 2       # xw1 column tile
                     + t * out_f * 4     # rxb row tile
                     + t * hid * 4       # h1 out tile
                     + t * out_f * 2)    # cw2 out tile
                + t * hid * 4            # accumulator scratch
                + hid * 4 + hid * out_f * 2 + margin)

    t1 = _pick_tile(N, need_conv1, cap)
    n_rt1 = N // t1
    h1, cw2 = pl.pallas_call(
        conv1_kernel,
        out_shape=(jax.ShapeDtypeStruct((N, hid), jnp.float32),
                   jax.ShapeDtypeStruct((N, out_f), bf16)),
        grid_spec=pltpu.PrefetchScalarGridSpec(
            num_scalar_prefetch=0, grid=(n_rt1, n_rt1),
            in_specs=[pl.BlockSpec((t1, t1), lambda i, k: (i, k)),       # A_hat
                      pl.BlockSpec((t1, hid), lambda i, k: (k, 0)),      # xw1
                      pl.BlockSpec((1, hid), lambda i, k: (0, 0)),       # b1
                      pl.BlockSpec((hid, out_f), lambda i, k: (0, 0)),   # W2h
                      pl.BlockSpec((t1, out_f), lambda i, k: (i, 0))],   # rxb
            out_specs=[pl.BlockSpec((t1, hid), lambda i, k: (i, 0)),     # h1
                       pl.BlockSpec((t1, out_f), lambda i, k: (i, 0))],  # cw2
            scratch_shapes=[pltpu.VMEM((t1, hid), jnp.float32)]),
        compiler_params=pltpu.CompilerParams(
            dimension_semantics=("parallel", "arbitrary"),
            vmem_limit_bytes=int(min(cap, max(need_conv1(t1), 32 << 20)))),
    )(ahat_bf16, xw1, b1.astype(jnp.float32), w2h, rxb)

    # ---- pass 2: h2 = relu(A_hat @ cw2 + b2), fused mean-pool partials -----
    def need_conv2(t):
        return (2 * (t * t * 2           # A_hat tile
                     + t * out_f * 2     # cw2 column tile
                     + B * t * 4         # P row slab
                     + B * out_f * 4)    # pooled partial out
                + t * out_f * 4          # accumulator scratch
                + out_f * 4 + margin)

    t2 = _pick_tile(N, need_conv2, cap)
    n_rt2 = N // t2
    pooled_parts = pl.pallas_call(
        conv2_kernel,
        out_shape=jax.ShapeDtypeStruct((n_rt2, B, out_f), jnp.float32),
        grid_spec=pltpu.PrefetchScalarGridSpec(
            num_scalar_prefetch=0, grid=(n_rt2, n_rt2),
            in_specs=[pl.BlockSpec((t2, t2), lambda i, k: (i, k)),       # A_hat
                      pl.BlockSpec((t2, out_f), lambda i, k: (k, 0)),    # cw2
                      pl.BlockSpec((1, out_f), lambda i, k: (0, 0)),     # b2
                      pl.BlockSpec((B, t2), lambda i, k: (0, i))],       # P
            out_specs=pl.BlockSpec((1, B, out_f), lambda i, k: (i, 0, 0)),
            scratch_shapes=[pltpu.VMEM((t2, out_f), jnp.float32)]),
        compiler_params=pltpu.CompilerParams(
            dimension_semantics=("parallel", "arbitrary"),
            vmem_limit_bytes=int(min(cap, max(need_conv2(t2), 32 << 20)))),
    )(ahat_bf16, cw2, b2.astype(jnp.float32), p)

    # ---- lane-clean wrapper assembly ----------------------------------------
    pooled = jnp.sum(pooled_parts, axis=0)                  # [B, O] scatter_mean(h2)
    h1_roots = h1[root_idx]                                 # [B, H] == scatter_mean(root2)
    return jnp.concatenate([pooled, h1_roots], axis=1)      # [B, O+H]


# ---------------------------------------------------------------------------
# Glue: dense GCN normalization / mean-pool matrix (built once per graph).
# ---------------------------------------------------------------------------
def build_gcn_norm(edge_index, num_nodes):
    """D^-1/2 (A + I) D^-1/2 with PyG gcn_norm conventions (edges src->dst)."""
    src, dst = edge_index
    A = np.zeros((num_nodes, num_nodes), np.float32)
    A[dst, src] = 1.0
    A = A + np.eye(num_nodes, dtype=np.float32)
    deg = A.sum(axis=1)
    dinv = np.where(deg > 0, 1.0 / np.sqrt(deg), 0.0).astype(np.float32)
    return dinv[:, None] * A * dinv[None, :]


def build_mean_pool(batch, num_nodes):
    batch = np.asarray(batch)
    num_graphs = int(batch.max()) + 1
    P = np.zeros((num_graphs, num_nodes), np.float32)
    for b in range(num_graphs):
        idx = np.where(batch == b)[0]
        P[b, idx] = 1.0 / len(idx)
    return P


def reference_forward(x, ahat, batch, root_idx, p, w1, b1, w2, b2):
    """Direct f32 translation of the PyTorch module."""
    h1 = ahat @ (x @ w1) + b1
    root1 = x[root_idx][batch]
    cat1 = jnp.maximum(jnp.concatenate([h1, root1], axis=1), 0.0)
    h2 = jnp.maximum(ahat @ (cat1 @ w2) + b2, 0.0)
    root2 = h1[root_idx][batch]
    return p @ jnp.concatenate([h2, root2], axis=1)


if __name__ == "__main__":
    # 2 graphs of 512 nodes each (nodes contiguous per graph, root = first
    # node of each graph, matching the reference's x1[index][0]).  N=1024 so
    # the propagate kernels run a real 2x2 tile grid with 512-row tiles.
    nodes_per_graph, num_graphs = 512, 2
    N = nodes_per_graph * num_graphs
    in_feats, hid_feats, out_feats = 8, 16, 8

    batch_np = np.repeat(np.arange(num_graphs), nodes_per_graph).astype(np.int32)
    root_idx_np = np.array([g * nodes_per_graph for g in range(num_graphs)], np.int32)

    # Top-down tree edges (parent -> child) inside each graph.
    src_list, dst_list = [], []
    for g in range(num_graphs):
        base = g * nodes_per_graph
        for child in range(1, nodes_per_graph):
            src_list.append(base + (child - 1) // 2)
            dst_list.append(base + child)
    edge_index = np.array([src_list, dst_list], np.int32)

    key = jax.random.PRNGKey(0)
    kx, kw1, kb1, kw2, kb2 = jax.random.split(key, 5)
    x = jax.random.normal(kx, (N, in_feats), jnp.float32)
    w1 = jax.random.normal(kw1, (in_feats, hid_feats), jnp.float32) * 0.1
    b1 = jax.random.normal(kb1, (1, hid_feats), jnp.float32) * 0.1
    w2 = jax.random.normal(kw2, (hid_feats + in_feats, out_feats), jnp.float32) * 0.1
    b2 = jax.random.normal(kb2, (1, out_feats), jnp.float32) * 0.1

    ahat_f32 = build_gcn_norm(edge_index, N)
    # Static per-graph operand: build / cast to bf16 once, outside the forward.
    ahat_bf16 = jnp.asarray(ahat_f32, dtype=jnp.bfloat16)
    p = jnp.asarray(build_mean_pool(batch_np, N))
    batch = jnp.asarray(batch_np)
    root_idx = jnp.asarray(root_idx_np)

    out = jax.jit(tdrumor_forward)(x, ahat_bf16, batch, root_idx, p, w1, b1, w2, b2)
    out = jax.block_until_ready(out)

    ref = reference_forward(x, jnp.asarray(ahat_f32), batch, root_idx, p, w1, b1, w2, b2)
    assert out.shape == (num_graphs, out_feats + hid_feats)
    # bf16 MXU operands with f32 accumulation -> loosened tolerance vs f32 ref.
    np.testing.assert_allclose(np.asarray(out), np.asarray(ref), rtol=5e-2, atol=5e-2)
    print("KERNEL_OK")
</pallas_src>

<mosaic_0001>
module attributes {stable_mosaic.version = 11 : i64} {
  func.func @xw1_kernel(%arg0: i32, %arg1: memref<512x8xbf16, #tpu.memory_space<vmem>>, %arg2: memref<8x16xbf16, #tpu.memory_space<vmem>>, %arg3: memref<512x16xbf16, #tpu.memory_space<vmem>>) attributes {dimension_semantics = [#tpu.dimension_semantics<parallel>], iteration_bounds = array<i64: 2>, scalar_prefetch = 0 : i64, scratch_operands = 0 : i64, tpu.core_type = #tpu.core_type<tc>, window_params = [{transform_indices = @transform_0, window_bounds = array<i64: 512, 8>}, {pipeline_mode = #tpu.pipeline_mode<synchronous>, transform_indices = @transform_1, window_bounds = array<i64: 8, 16>}, {transform_indices = @transform_2, window_bounds = array<i64: 512, 16>}]} {
    %c0 = arith.constant 0 : index
    %c0_0 = arith.constant 0 : index
    %0 = vector.load %arg1[%c0, %c0_0] : memref<512x8xbf16, #tpu.memory_space<vmem>>, vector<512x8xbf16>
    %c0_1 = arith.constant 0 : index
    %c0_2 = arith.constant 0 : index
    %1 = vector.load %arg2[%c0_1, %c0_2] : memref<8x16xbf16, #tpu.memory_space<vmem>>, vector<8x16xbf16>
    %cst = arith.constant dense<0.000000e+00> : vector<512x16xf32>
    %2 = tpu.matmul %0, %1, %cst {dimension_numbers = #tpu.dot_dimension_numbers<[1], [0], [0], [1], [0, 0, 1, 1], [], []>} : vector<512x8xbf16>, vector<8x16xbf16>, vector<512x16xf32> -> vector<512x16xf32>
    %3 = arith.truncf %2 : vector<512x16xf32> to vector<512x16xbf16>
    %c0_3 = arith.constant 0 : index
    %c0_4 = arith.constant 0 : index
    %4 = vector.load %arg3[%c0_3, %c0_4] : memref<512x16xbf16, #tpu.memory_space<vmem>>, vector<512x16xbf16>
    tpu.vector_store %arg3[%c0_3, %c0_4], %3 {strides = array<i32>} : memref<512x16xbf16, #tpu.memory_space<vmem>>, vector<512x16xbf16>,
    return
  }
  func.func @transform_0(%arg0: i32) -> (i32, i32) {
    %c0_i32 = arith.constant 0 : i32
    %c0_i32_0 = arith.constant 0 : i32
    return %arg0, %c0_i32 : i32, i32
  }
  func.func @transform_1(%arg0: i32) -> (i32, i32) {
    %c0_i32 = arith.constant 0 : i32
    %c0_i32_0 = arith.constant 0 : i32
    %c0_i32_1 = arith.constant 0 : i32
    return %c0_i32, %c0_i32_0 : i32, i32
  }
  func.func @transform_2(%arg0: i32) -> (i32, i32) {
    %c0_i32 = arith.constant 0 : i32
    %c0_i32_0 = arith.constant 0 : i32
    return %arg0, %c0_i32 : i32, i32
  }
}

module attributes {stable_mosaic.version = 11 : i64} {
  func.func @conv1_kernel(%arg0: i32, %arg1: i32, %arg2: memref<512x512xbf16, #tpu.memory_space<vmem>>, %arg3: memref<512x16xbf16, #tpu.memory_space<vmem>>, %arg4: memref<1x16xf32, #tpu.memory_space<vmem>>, %arg5: memref<16x8xbf16, #tpu.memory_space<vmem>>, %arg6: memref<512x8xf32, #tpu.memory_space<vmem>>, %arg7: memref<512x16xf32, #tpu.memory_space<vmem>>, %arg8: memref<512x8xbf16, #tpu.memory_space<vmem>>, %arg9: memref<512x16xf32, #tpu.memory_space<vmem>>) attributes {dimension_semantics = [#tpu.dimension_semantics<parallel>, #tpu.dimension_semantics<arbitrary>], iteration_bounds = array<i64: 2, 2>, scalar_prefetch = 0 : i64, scratch_operands = 1 : i64, tpu.core_type = #tpu.core_type<tc>, window_params = [{transform_indices = @transform_0, window_bounds = array<i64: 512, 512>}, {transform_indices = @transform_1, window_bounds = array<i64: 512, 16>}, {pipeline_mode = #tpu.pipeline_mode<synchronous>, transform_indices = @transform_2, window_bounds = array<i64: 1, 16>}, {pipeline_mode = #tpu.pipeline_mode<synchronous>, transform_indices = @transform_3, window_bounds = array<i64: 16, 8>}, {transform_indices = @transform_4, window_bounds = array<i64: 512, 8>}, {transform_indices = @transform_5, window_bounds = array<i64: 512, 16>}, {transform_indices = @transform_6, window_bounds = array<i64: 512, 8>}]} {
    %c0_i32 = arith.constant 0 : i32
    %0 = arith.cmpi eq, %arg1, %c0_i32 : i32
    %1 = arith.extui %0 : i1 to i32
    %c0_i32_0 = arith.constant 0 : i32
    %2 = arith.cmpi ne, %1, %c0_i32_0 : i32
    scf.if %2 {
      %cst_9 = arith.constant 0.000000e+00 : f32
      %12 = vector.broadcast %cst_9 : f32 to vector<512x16xf32>
      %c0_10 = arith.constant 0 : index
      %c0_11 = arith.constant 0 : index
      %13 = vector.load %arg9[%c0_10, %c0_11] : memref<512x16xf32, #tpu.memory_space<vmem>>, vector<512x16xf32>
      tpu.vector_store %arg9[%c0_10, %c0_11], %12 {strides = array<i32>} : memref<512x16xf32, #tpu.memory_space<vmem>>, vector<512x16xf32>,
    } else {
    }
    %c0 = arith.constant 0 : index
    %c0_1 = arith.constant 0 : index
    %3 = vector.load %arg9[%c0, %c0_1] : memref<512x16xf32, #tpu.memory_space<vmem>>, vector<512x16xf32>
    %c0_2 = arith.constant 0 : index
    %c0_3 = arith.constant 0 : index
    %4 = vector.load %arg2[%c0_2, %c0_3] : memref<512x512xbf16, #tpu.memory_space<vmem>>, vector<512x512xbf16>
    %c0_4 = arith.constant 0 : index
    %c0_5 = arith.constant 0 : index
    %5 = vector.load %arg3[%c0_4, %c0_5] : memref<512x16xbf16, #tpu.memory_space<vmem>>, vector<512x16xbf16>
    %cst = arith.constant dense<0.000000e+00> : vector<512x16xf32>
    %6 = tpu.matmul %4, %5, %cst {dimension_numbers = #tpu.dot_dimension_numbers<[1], [0], [0], [1], [0, 0, 1, 1], [], []>} : vector<512x512xbf16>, vector<512x16xbf16>, vector<512x16xf32> -> vector<512x16xf32>
    %7 = arith.addf %3, %6 : vector<512x16xf32>
    %c0_6 = arith.constant 0 : index
    %c0_7 = arith.constant 0 : index
    %8 = vector.load %arg9[%c0_6, %c0_7] : memref<512x16xf32, #tpu.memory_space<vmem>>, vector<512x16xf32>
    tpu.vector_store %arg9[%c0_6, %c0_7], %7 {strides = array<i32>} : memref<512x16xf32, #tpu.memory_space<vmem>>, vector<512x16xf32>,
    %c1_i32 = arith.constant 1 : i32
    %9 = arith.cmpi eq, %arg1, %c1_i32 : i32
    %10 = arith.extui %9 : i1 to i32
    %c0_i32_8 = arith.constant 0 : i32
    %11 = arith.cmpi ne, %10, %c0_i32_8 : i32
    scf.if %11 {
      %c0_9 = arith.constant 0 : index
      %c0_10 = arith.constant 0 : index
      %12 = vector.load %arg9[%c0_9, %c0_10] : memref<512x16xf32, #tpu.memory_space<vmem>>, vector<512x16xf32>
      %c0_11 = arith.constant 0 : index
      %c0_12 = arith.constant 0 : index
      %13 = vector.load %arg4[%c0_11, %c0_12] : memref<1x16xf32, #tpu.memory_space<vmem>>, vector<1x16xf32>
      %14 = vector.broadcast %13 : vector<1x16xf32> to vector<512x16xf32>
      %15 = arith.addf %12, %14 : vector<512x16xf32>
      %c0_13 = arith.constant 0 : index
      %c0_14 = arith.constant 0 : index
      %16 = vector.load %arg7[%c0_13, %c0_14] : memref<512x16xf32, #tpu.memory_space<vmem>>, vector<512x16xf32>
      tpu.vector_store %arg7[%c0_13, %c0_14], %15 {strides = array<i32>} : memref<512x16xf32, #tpu.memory_space<vmem>>, vector<512x16xf32>,
      %cst_15 = arith.constant 0.000000e+00 : f32
      %17 = vector.broadcast %cst_15 : f32 to vector<512x16xf32>
      %18 = arith.maximumf %15, %17 : vector<512x16xf32>
      %19 = arith.truncf %18 : vector<512x16xf32> to vector<512x16xbf16>
      %c0_16 = arith.constant 0 : index
      %c0_17 = arith.constant 0 : index
      %20 = vector.load %arg5[%c0_16, %c0_17] : memref<16x8xbf16, #tpu.memory_space<vmem>>, vector<16x8xbf16>
      %cst_18 = arith.constant dense<0.000000e+00> : vector<512x8xf32>
      %21 = tpu.matmul %19, %20, %cst_18 {dimension_numbers = #tpu.dot_dimension_numbers<[1], [0], [0], [1], [0, 0, 1, 1], [], []>} : vector<512x16xbf16>, vector<16x8xbf16>, vector<512x8xf32> -> vector<512x8xf32>
      %c0_19 = arith.constant 0 : index
      %c0_20 = arith.constant 0 : index
      %22 = vector.load %arg6[%c0_19, %c0_20] : memref<512x8xf32, #tpu.memory_space<vmem>>, vector<512x8xf32>
      %23 = arith.addf %21, %22 : vector<512x8xf32>
      %24 = arith.truncf %23 : vector<512x8xf32> to vector<512x8xbf16>
      %c0_21 = arith.constant 0 : index
      %c0_22 = arith.constant 0 : index
      %25 = vector.load %arg8[%c0_21, %c0_22] : memref<512x8xbf16, #tpu.memory_space<vmem>>, vector<512x8xbf16>
      tpu.vector_store %arg8[%c0_21, %c0_22], %24 {strides = array<i32>} : memref<512x8xbf16, #tpu.memory_space<vmem>>, vector<512x8xbf16>,
    } else {
    }
    return
  }
  func.func @transform_0(%arg0: i32, %arg1: i32) -> (i32, i32) {
    %c0_i32 = arith.constant 0 : i32
    return %arg0, %arg1 : i32, i32
  }
  func.func @transform_1(%arg0: i32, %arg1: i32) -> (i32, i32) {
    %c0_i32 = arith.constant 0 : i32
    %c0_i32_0 = arith.constant 0 : i32
    return %arg1, %c0_i32 : i32, i32
  }
  func.func @transform_2(%arg0: i32, %arg1: i32) -> (i32, i32) {
    %c0_i32 = arith.constant 0 : i32
    %c0_i32_0 = arith.constant 0 : i32
    %c0_i32_1 = arith.constant 0 : i32
    return %c0_i32, %c0_i32_0 : i32, i32
  }
  func.func @transform_3(%arg0: i32, %arg1: i32) -> (i32, i32) {
    %c0_i32 = arith.constant 0 : i32
    %c0_i32_0 = arith.constant 0 : i32
    %c0_i32_1 = arith.constant 0 : i32
    return %c0_i32, %c0_i32_0 : i32, i32
  }
  func.func @transform_4(%arg0: i32, %arg1: i32) -> (i32, i32) {
    %c0_i32 = arith.constant 0 : i32
    %c0_i32_0 = arith.constant 0 : i32
    return %arg0, %c0_i32 : i32, i32
  }
  func.func @transform_5(%arg0: i32, %arg1: i32) -> (i32, i32) {
    %c0_i32 = arith.constant 0 : i32
    %c0_i32_0 = arith.constant 0 : i32
    return %arg0, %c0_i32 : i32, i32
  }
  func.func @transform_6(%arg0: i32, %arg1: i32) -> (i32, i32) {
    %c0_i32 = arith.constant 0 : i32
    %c0_i32_0 = arith.constant 0 : i32
    return %arg0, %c0_i32 : i32, i32
  }
}

module attributes {stable_mosaic.version = 11 : i64} {
  func.func @conv2_kernel(%arg0: i32, %arg1: i32, %arg2: memref<512x512xbf16, #tpu.memory_space<vmem>>, %arg3: memref<512x8xbf16, #tpu.memory_space<vmem>>, %arg4: memref<1x8xf32, #tpu.memory_space<vmem>>, %arg5: memref<2x512xf32, #tpu.memory_space<vmem>>, %arg6: memref<1x2x8xf32, #tpu.memory_space<vmem>>, %arg7: memref<512x8xf32, #tpu.memory_space<vmem>>) attributes {dimension_semantics = [#tpu.dimension_semantics<parallel>, #tpu.dimension_semantics<arbitrary>], iteration_bounds = array<i64: 2, 2>, scalar_prefetch = 0 : i64, scratch_operands = 1 : i64, tpu.core_type = #tpu.core_type<tc>, window_params = [{transform_indices = @transform_0, window_bounds = array<i64: 512, 512>}, {transform_indices = @transform_1, window_bounds = array<i64: 512, 8>}, {pipeline_mode = #tpu.pipeline_mode<synchronous>, transform_indices = @transform_2, window_bounds = array<i64: 1, 8>}, {transform_indices = @transform_3, window_bounds = array<i64: 2, 512>}, {transform_indices = @transform_4, window_bounds = array<i64: 1, 2, 8>}]} {
    %c0_i32 = arith.constant 0 : i32
    %0 = arith.cmpi eq, %arg1, %c0_i32 : i32
    %1 = arith.extui %0 : i1 to i32
    %c0_i32_0 = arith.constant 0 : i32
    %2 = arith.cmpi ne, %1, %c0_i32_0 : i32
    scf.if %2 {
      %cst_9 = arith.constant 0.000000e+00 : f32
      %12 = vector.broadcast %cst_9 : f32 to vector<512x8xf32>
      %c0_10 = arith.constant 0 : index
      %c0_11 = arith.constant 0 : index
      %13 = vector.load %arg7[%c0_10, %c0_11] : memref<512x8xf32, #tpu.memory_space<vmem>>, vector<512x8xf32>
      tpu.vector_store %arg7[%c0_10, %c0_11], %12 {strides = array<i32>} : memref<512x8xf32, #tpu.memory_space<vmem>>, vector<512x8xf32>,
    } else {
    }
    %c0 = arith.constant 0 : index
    %c0_1 = arith.constant 0 : index
    %3 = vector.load %arg7[%c0, %c0_1] : memref<512x8xf32, #tpu.memory_space<vmem>>, vector<512x8xf32>
    %c0_2 = arith.constant 0 : index
    %c0_3 = arith.constant 0 : index
    %4 = vector.load %arg2[%c0_2, %c0_3] : memref<512x512xbf16, #tpu.memory_space<vmem>>, vector<512x512xbf16>
    %c0_4 = arith.constant 0 : index
    %c0_5 = arith.constant 0 : index
    %5 = vector.load %arg3[%c0_4, %c0_5] : memref<512x8xbf16, #tpu.memory_space<vmem>>, vector<512x8xbf16>
    %cst = arith.constant dense<0.000000e+00> : vector<512x8xf32>
    %6 = tpu.matmul %4, %5, %cst {dimension_numbers = #tpu.dot_dimension_numbers<[1], [0], [0], [1], [0, 0, 1, 1], [], []>} : vector<512x512xbf16>, vector<512x8xbf16>, vector<512x8xf32> -> vector<512x8xf32>
    %7 = arith.addf %3, %6 : vector<512x8xf32>
    %c0_6 = arith.constant 0 : index
    %c0_7 = arith.constant 0 : index
    %8 = vector.load %arg7[%c0_6, %c0_7] : memref<512x8xf32, #tpu.memory_space<vmem>>, vector<512x8xf32>
    tpu.vector_store %arg7[%c0_6, %c0_7], %7 {strides = array<i32>} : memref<512x8xf32, #tpu.memory_space<vmem>>, vector<512x8xf32>,
    %c1_i32 = arith.constant 1 : i32
    %9 = arith.cmpi eq, %arg1, %c1_i32 : i32
    %10 = arith.extui %9 : i1 to i32
    %c0_i32_8 = arith.constant 0 : i32
    %11 = arith.cmpi ne, %10, %c0_i32_8 : i32
    scf.if %11 {
      %c0_9 = arith.constant 0 : index
      %c0_10 = arith.constant 0 : index
      %12 = vector.load %arg7[%c0_9, %c0_10] : memref<512x8xf32, #tpu.memory_space<vmem>>, vector<512x8xf32>
      %c0_11 = arith.constant 0 : index
      %c0_12 = arith.constant 0 : index
      %13 = vector.load %arg4[%c0_11, %c0_12] : memref<1x8xf32, #tpu.memory_space<vmem>>, vector<1x8xf32>
      %14 = vector.broadcast %13 : vector<1x8xf32> to vector<512x8xf32>
      %15 = arith.addf %12, %14 : vector<512x8xf32>
      %cst_13 = arith.constant 0.000000e+00 : f32
      %16 = vector.broadcast %cst_13 : f32 to vector<512x8xf32>
      %17 = arith.maximumf %15, %16 : vector<512x8xf32>
      %c0_14 = arith.constant 0 : index
      %c0_15 = arith.constant 0 : index
      %18 = vector.load %arg5[%c0_14, %c0_15] : memref<2x512xf32, #tpu.memory_space<vmem>>, vector<2x512xf32>
      %cst_16 = arith.constant dense<0.000000e+00> : vector<2x8xf32>
      %19 = tpu.matmul %18, %17, %cst_16 {dimension_numbers = #tpu.dot_dimension_numbers<[1], [0], [0], [1], [0, 0, 1, 1], [], []>} : vector<2x512xf32>, vector<512x8xf32>, vector<2x8xf32> -> vector<2x8xf32>
      %c0_17 = arith.constant 0 : index
      %c0_18 = arith.constant 0 : index
      %c0_19 = arith.constant 0 : index
      %20 = vector.load %arg6[%c0_17, %c0_18, %c0_19] : memref<1x2x8xf32, #tpu.memory_space<vmem>>, vector<1x2x8xf32>
      %21 = vector.shape_cast %20 : vector<1x2x8xf32> to vector<2x8xf32>
      %22 = vector.shape_cast %19 : vector<2x8xf32> to vector<1x2x8xf32>
      tpu.vector_store %arg6[%c0_17, %c0_18, %c0_19], %22 {strides = array<i32>} : memref<1x2x8xf32, #tpu.memory_space<vmem>>, vector<1x2x8xf32>,
    } else {
    }
    return
  }
  func.func @transform_0(%arg0: i32, %arg1: i32) -> (i32, i32) {
    %c0_i32 = arith.constant 0 : i32
    return %arg0, %arg1 : i32, i32
  }
  func.func @transform_1(%arg0: i32, %arg1: i32) -> (i32, i32) {
    %c0_i32 = arith.constant 0 : i32
    %c0_i32_0 = arith.constant 0 : i32
    return %arg1, %c0_i32 : i32, i32
  }
  func.func @transform_2(%arg0: i32, %arg1: i32) -> (i32, i32) {
    %c0_i32 = arith.constant 0 : i32
    %c0_i32_0 = arith.constant 0 : i32
    %c0_i32_1 = arith.constant 0 : i32
    return %c0_i32, %c0_i32_0 : i32, i32
  }
  func.func @transform_3(%arg0: i32, %arg1: i32) -> (i32, i32) {
    %c0_i32 = arith.constant 0 : i32
    %c0_i32_0 = arith.constant 0 : i32
    return %c0_i32, %arg0 : i32, i32
  }
  func.func @transform_4(%arg0: i32, %arg1: i32) -> (i32, i32, i32) {
    %c0_i32 = arith.constant 0 : i32
    %c0_i32_0 = arith.constant 0 : i32
    %c0_i32_1 = arith.constant 0 : i32
    return %arg0, %c0_i32, %c0_i32_0 : i32, i32, i32
  }
}

</mosaic_0001>

<llo_original>
// kernel: tdrumor_forward.3
$region0: #{tdrumor_forward.3}
  #allocation0 [shape = 'u32[]', space=smem, size = 0x4, offset = 0x4, fixed_abs, tag = 'smem constant byte address 0x4 - core index']
  #allocation1 [shape = 'u32[144,128]{1,0:T(1,128)}', space=vmem, size = 0x12000, scoped, tag = 'internal scratch']
  %s0 = inlined_call_operand.vmem [shape: bf16[1024,8], index: 0, kind: input, shape index: {}]
  %s1 = inlined_call_operand.vmem [shape: bf16[8,16], index: 1, kind: input, shape index: {}]
  %s2 = inlined_call_operand.vmem [shape: bf16[1024,16], index: 2, kind: output, shape index: {}]
  %s3 = sld [smem:[#allocation0]]
  $region41: #{tdrumor_forward.3} parent=0
    _
  %s5 = ssub.s32 1, %s3
  %s6 = scalar_select 0, %s5, %s3
  loop: start=0, step=1, limit=4
  $region2: #{tdrumor_forward.3} parent=0 // loop_pre_header
    _
  $region3: #{tdrumor_forward.3} parent=0 // loop_header
    %s8 = sphi 0, %s12
    %p9 = scmp.ge.s32.totalorder %s8, 4
    %s18 = sphi 0, %s20
    %s21 = sphi 0, %s18
    %s22 = sphi 0, %s21
    %s38 = sphi 0, %s22
    %s42 = sphi 0, %s42
    %s44 = sphi 0, %s42
    %s45 = sphi 0, %s44
    %s59 = sphi 0, %s45
    %s65 = sphi 0, %s67
    %s68 = sphi 0, %s65
    %s69 = sphi 0, %s68
    %s85 = sphi 0, %s69
  $region4: #{tdrumor_forward.3} parent=0 // loop_header_branch
    %11 = sbr.rel (%p9) target = $region8
  $region5: #{tdrumor_forward.3} parent=0 // loop_body
    %s13 = ssub.s32 %s8, 1
    %s14 = ssub.s32 %s8, 2
    %s15 = sadd.s32 %s8, 1
    %s16 = ssub.s32 %s8, %s15
    %p17 = scmp.eq.s32.totalorder %s16, 0
    %s19 = sadd.s32 %s18, 1
    %s20 = scalar_select %p17, %s18, %s19
    %p23 = pneg %p17
    %p24 = scmp.eq.s32.totalorder %s8, 1
    %p25 = por %p23, %p24
    %p26 = scmp.ne.s32.totalorder %s18, %s21
    %p27 = scmp.eq.s32.totalorder %s8, 0
    %p28 = por %p26, %p27
    %p29 = scmp.ne.s32.totalorder %s18, %s21
    %p30 = scmp.eq.s32.totalorder %s13, 1
    %p31 = por %p29, %p30
    %p32 = scmp.ne.s32.totalorder %s21, %s22
    %p33 = scmp.eq.s32.totalorder %s13, 0
    %p34 = por %p32, %p33
    %p35 = scmp.ne.s32.totalorder %s21, %s22
    %p36 = scmp.eq.s32.totalorder %s14, 1
    %p37 = por %p35, %p36
    %p39 = scmp.ne.s32.totalorder %s22, %s38
    %p40 = scmp.eq.s32.totalorder %s14, 0
    %p41 = por %p39, %p40
    %s43 = sadd.s32 %s42, 1
    %p46 = scmp.eq.s32.totalorder %s8, 1
    %p47 = scmp.ne.s32.totalorder %s42, %s44
    %p48 = scmp.eq.s32.totalorder %s8, 0
    %p49 = por %p47, %p48
    %p50 = scmp.ne.s32.totalorder %s42, %s44
    %p51 = scmp.eq.s32.totalorder %s13, 1
    %p52 = por %p50, %p51
    %p53 = scmp.ne.s32.totalorder %s44, %s45
    %p54 = scmp.eq.s32.totalorder %s13, 0
    %p55 = por %p53, %p54
    %p56 = scmp.ne.s32.totalorder %s44, %s45
    %p57 = scmp.eq.s32.totalorder %s14, 1
    %p58 = por %p56, %p57
    %p60 = scmp.ne.s32.totalorder %s45, %s59
    %p61 = scmp.eq.s32.totalorder %s14, 0
    %p62 = por %p60, %p61
    %s63 = ssub.s32 %s8, %s15
    %p64 = scmp.eq.s32.totalorder %s63, 0
    %s66 = sadd.s32 %s65, 1
    %s67 = scalar_select %p64, %s65, %s66
    %p70 = pneg %p64
    %p71 = scmp.eq.s32.totalorder %s8, 1
    %p72 = por %p70, %p71
    %p73 = scmp.ne.s32.totalorder %s65, %s68
    %p74 = scmp.eq.s32.totalorder %s8, 0
    %p75 = por %p73, %p74
    %p76 = scmp.ne.s32.totalorder %s65, %s68
    %p77 = scmp.eq.s32.totalorder %s13, 1
    %p78 = por %p76, %p77
    %p79 = scmp.ne.s32.totalorder %s68, %s69
    %p80 = scmp.eq.s32.totalorder %s13, 0
    %p81 = por %p79, %p80
    %p82 = scmp.ne.s32.totalorder %s68, %s69
    %p83 = scmp.eq.s32.totalorder %s14, 1
    %p84 = por %p82, %p83
    %p86 = scmp.ne.s32.totalorder %s69, %s85
    %p87 = scmp.eq.s32.totalorder %s14, 0
    %p88 = por %p86, %p87
    %p89 = scmp.le.s32.totalorder 1, %s8
    %p90 = scmp.lt.s32.totalorder %s8, 3
    %p91 = pnand %p89, %p90
    %p92 = pneg %p91
    // Predicated region
    $region9: #{tdrumor_forward.3} parent=5 // pred_check
      _
    $region10: #{tdrumor_forward.3} parent=5 // pred_check_branch
      %94 = sbr.rel (%p91) target = $region12
    $region11: #{tdrumor_forward.3} parent=5 // pred_region
      %s95 = ssub.s32 %s8, 1
      // Predicated region
      $region13: #{tdrumor_forward.3} parent=11 // pred_check
        %p96 = pneg %p55
      $region14: #{tdrumor_forward.3} parent=11 // pred_check_branch
        %98 = sbr.rel (%p96) target = $region16
      $region15: #{tdrumor_forward.3} parent=11 // pred_region
        _
      $region16: #{tdrumor_forward.3} parent=11 // pred_fallthru
        _
    $region12: #{tdrumor_forward.3} parent=5 // pred_fallthru
      _
    %p99 = scmp.lt.s32.totalorder %s8, 2
    // Predicated region
    $region17: #{tdrumor_forward.3} parent=5 // pred_check
      %p100 = pneg %p99
    $region18: #{tdrumor_forward.3} parent=5 // pred_check_branch
      %102 = sbr.rel (%p100) target = $region20
    $region19: #{tdrumor_forward.3} parent=5 // pred_region
      // Predicated region
      $region21: #{tdrumor_forward.3} parent=19 // pred_check
        %p103 = pneg %p28
      $region22: #{tdrumor_forward.3} parent=19 // pred_check_branch
        %105 = sbr.rel (%p103) target = $region24
      $region23: #{tdrumor_forward.3} parent=19 // pred_region
        %s106 = smul.u32 64, %s8
        %p107 = scmp.lt.s32.totalorder %s106, 127
        %s108 = scalar_select %p107, %s106, 127
        %s109 = smul.addr %s108, 4
        %s110 = scalar_lea.vmem %s0, %s109
        %s111 = smul.u32 64, %s8
      $region24: #{tdrumor_forward.3} parent=19 // pred_fallthru
        _
    $region20: #{tdrumor_forward.3} parent=5 // pred_fallthru
      _
    %p112 = scmp.le.s32.totalorder 1, %s8
    %p113 = scmp.lt.s32.totalorder %s8, 3
    %p114 = pnand %p112, %p113
    %p115 = pneg %p114
    // Predicated region
    $region25: #{tdrumor_forward.3} parent=5 // pred_check
      _
    $region26: #{tdrumor_forward.3} parent=5 // pred_check_branch
      %117 = sbr.rel (%p114) target = $region28
    $region27: #{tdrumor_forward.3} parent=5 // pred_region
      %s118 = ssub.s32 %s8, 1
      %s119 = smul.u32 64, %s13
      %p120 = scmp.lt.s32.totalorder %s119, 127
      %s121 = scalar_select %p120, %s119, 127
      %s122 = smul.addr %s121, 4
      %s123 = scalar_lea.vmem %s0, %s122
      %p124 = pneg %p34
      %p125 = pneg %p31
      %p126 = pneg %p55
      %p127 = pneg %p52
      %p128 = pneg %p81
      %p129 = pneg %p78
      %s130 = smul.u32 64, %s13
      %p131 = scmp.lt.s32.totalorder %s130, 127
      %s132 = scalar_select %p131, %s130, 127
      %s133 = smul.addr %s132, 4
      %s134 = scalar_lea.vmem %s2, %s133
      %s135 = smul.u32 64, %s13
      %p136 = scmp.lt.s32.totalorder %s135, 127
      %s137 = scalar_select %p136, %s135, 127
      %s138 = smul.addr %s137, 4
      %s139 = scalar_lea.vmem %s0, %s138
      %s140 = smul.u32 64, %s13
      %s141 = smul.u32 64, %s13
      %p142 = scmp.lt.s32.totalorder %s141, 127
      %s143 = scalar_select %p142, %s141, 127
      %s144 = smul.addr %s143, 4
      %s145 = scalar_lea.vmem %s2, %s144
      %s146 = smul.u32 64, %s13
      %v148 = vld [vmem:[%s139] sm:$0xf]
      %v149 = vld [vmem:[%s139 + $0x4] sm:$0xf]
      %v150 = vld [vmem:[%s139 + $0x8] sm:$0xf]
      %v151 = vld [vmem:[%s139 + $0xc] sm:$0xf]
      %v152 = vld [vmem:[%s139 + $0x10] sm:$0xf]
      %v153 = vld [vmem:[%s139 + $0x14] sm:$0xf]
      %v154 = vld [vmem:[%s139 + $0x18] sm:$0xf]
      %v155 = vld [vmem:[%s139 + $0x1c] sm:$0xf]
      %v156 = vld [vmem:[%s139 + $0x20] sm:$0xf]
      %v157 = vld [vmem:[%s139 + $0x24] sm:$0xf]
      %v158 = vld [vmem:[%s139 + $0x28] sm:$0xf]
      %v159 = vld [vmem:[%s139 + $0x2c] sm:$0xf]
      %v160 = vld [vmem:[%s139 + $0x30] sm:$0xf]
      %v161 = vld [vmem:[%s139 + $0x34] sm:$0xf]
      %v162 = vld [vmem:[%s139 + $0x38] sm:$0xf]
      %v163 = vld [vmem:[%s139 + $0x3c] sm:$0xf]
      %v164 = vld [vmem:[%s139 + $0x40] sm:$0xf]
      %v165 = vld [vmem:[%s139 + $0x44] sm:$0xf]
      %v166 = vld [vmem:[%s139 + $0x48] sm:$0xf]
      %v167 = vld [vmem:[%s139 + $0x4c] sm:$0xf]
      %v168 = vld [vmem:[%s139 + $0x50] sm:$0xf]
      %v169 = vld [vmem:[%s139 + $0x54] sm:$0xf]
      %v170 = vld [vmem:[%s139 + $0x58] sm:$0xf]
      %v171 = vld [vmem:[%s139 + $0x5c] sm:$0xf]
      %v172 = vld [vmem:[%s139 + $0x60] sm:$0xf]
      %v173 = vld [vmem:[%s139 + $0x64] sm:$0xf]
      %v174 = vld [vmem:[%s139 + $0x68] sm:$0xf]
      %v175 = vld [vmem:[%s139 + $0x6c] sm:$0xf]
      %v176 = vld [vmem:[%s139 + $0x70] sm:$0xf]
      %v177 = vld [vmem:[%s139 + $0x74] sm:$0xf]
      %v178 = vld [vmem:[%s139 + $0x78] sm:$0xf]
      %v179 = vld [vmem:[%s139 + $0x7c] sm:$0xf]
      %v180 = vld [vmem:[%s139 + $0x80] sm:$0xf]
      %v181 = vld [vmem:[%s139 + $0x84] sm:$0xf]
      %v182 = vld [vmem:[%s139 + $0x88] sm:$0xf]
      %v183 = vld [vmem:[%s139 + $0x8c] sm:$0xf]
      %v184 = vld [vmem:[%s139 + $0x90] sm:$0xf]
      %v185 = vld [vmem:[%s139 + $0x94] sm:$0xf]
      %v186 = vld [vmem:[%s139 + $0x98] sm:$0xf]
      %v187 = vld [vmem:[%s139 + $0x9c] sm:$0xf]
      %v188 = vld [vmem:[%s139 + $0xa0] sm:$0xf]
      %v189 = vld [vmem:[%s139 + $0xa4] sm:$0xf]
      %v190 = vld [vmem:[%s139 + $0xa8] sm:$0xf]
      %v191 = vld [vmem:[%s139 + $0xac] sm:$0xf]
      %v192 = vld [vmem:[%s139 + $0xb0] sm:$0xf]
      %v193 = vld [vmem:[%s139 + $0xb4] sm:$0xf]
      %v194 = vld [vmem:[%s139 + $0xb8] sm:$0xf]
      %v195 = vld [vmem:[%s139 + $0xbc] sm:$0xf]
      %v196 = vld [vmem:[%s139 + $0xc0] sm:$0xf]
      %v197 = vld [vmem:[%s139 + $0xc4] sm:$0xf]
      %v198 = vld [vmem:[%s139 + $0xc8] sm:$0xf]
      %v199 = vld [vmem:[%s139 + $0xcc] sm:$0xf]
      %v200 = vld [vmem:[%s139 + $0xd0] sm:$0xf]
      %v201 = vld [vmem:[%s139 + $0xd4] sm:$0xf]
      %v202 = vld [vmem:[%s139 + $0xd8] sm:$0xf]
      %v203 = vld [vmem:[%s139 + $0xdc] sm:$0xf]
      %v204 = vld [vmem:[%s139 + $0xe0] sm:$0xf]
      %v205 = vld [vmem:[%s139 + $0xe4] sm:$0xf]
      %v206 = vld [vmem:[%s139 + $0xe8] sm:$0xf]
      %v207 = vld [vmem:[%s139 + $0xec] sm:$0xf]
      %v208 = vld [vmem:[%s139 + $0xf0] sm:$0xf]
      %v209 = vld [vmem:[%s139 + $0xf4] sm:$0xf]
      %v210 = vld [vmem:[%s139 + $0xf8] sm:$0xf]
      %v211 = vld [vmem:[%s139 + $0xfc] sm:$0xf]
      %v212 = vld [vmem:[%s1] sm:$0xf]
      %v277 = vunpack.c.l.b16 %v148
      %v278 = vunpack.c.l.b16 %v149
      %v279 = vunpack.c.l.b16 %v150
      %v280 = vunpack.c.l.b16 %v151
      %v281 = vunpack.c.l.b16 %v152
      %v282 = vunpack.c.l.b16 %v153
      %v283 = vunpack.c.l.b16 %v154
      %v284 = vunpack.c.l.b16 %v155
      %v285 = vunpack.c.l.b16 %v156
      %v286 = vunpack.c.l.b16 %v157
      %v287 = vunpack.c.l.b16 %v158
      %v288 = vunpack.c.l.b16 %v159
      %v289 = vunpack.c.l.b16 %v160
      %v290 = vunpack.c.l.b16 %v161
      %v291 = vunpack.c.l.b16 %v162
      %v292 = vunpack.c.l.b16 %v163
      %v293 = vunpack.c.l.b16 %v164
      %v294 = vunpack.c.l.b16 %v165
      %v295 = vunpack.c.l.b16 %v166
      %v296 = vunpack.c.l.b16 %v167
      %v297 = vunpack.c.l.b16 %v168
      %v298 = vunpack.c.l.b16 %v169
      %v299 = vunpack.c.l.b16 %v170
      %v300 = vunpack.c.l.b16 %v171
      %v301 = vunpack.c.l.b16 %v172
      %v302 = vunpack.c.l.b16 %v173
      %v303 = vunpack.c.l.b16 %v174
      %v304 = vunpack.c.l.b16 %v175
      %v305 = vunpack.c.l.b16 %v176
      %v306 = vunpack.c.l.b16 %v177
      %v307 = vunpack.c.l.b16 %v178
      %v308 = vunpack.c.l.b16 %v179
      %v309 = vunpack.c.l.b16 %v180
      %v310 = vunpack.c.l.b16 %v181
      %v311 = vunpack.c.l.b16 %v182
      %v312 = vunpack.c.l.b16 %v183
      %v313 = vunpack.c.l.b16 %v184
      %v314 = vunpack.c.l.b16 %v185
      %v315 = vunpack.c.l.b16 %v186
      %v316 = vunpack.c.l.b16 %v187
      %v317 = vunpack.c.l.b16 %v188
      %v318 = vunpack.c.l.b16 %v189
      %v319 = vunpack.c.l.b16 %v190
      %v320 = vunpack.c.l.b16 %v191
      %v321 = vunpack.c.l.b16 %v192
      %v322 = vunpack.c.l.b16 %v193
      %v323 = vunpack.c.l.b16 %v194
      %v324 = vunpack.c.l.b16 %v195
      %v325 = vunpack.c.l.b16 %v196
      %v326 = vunpack.c.l.b16 %v197
      %v327 = vunpack.c.l.b16 %v198
      %v328 = vunpack.c.l.b16 %v199
      %v329 = vunpack.c.l.b16 %v200
      %v330 = vunpack.c.l.b16 %v201
      %v331 = vunpack.c.l.b16 %v202
      %v332 = vunpack.c.l.b16 %v203
      %v333 = vunpack.c.l.b16 %v204
      %v334 = vunpack.c.l.b16 %v205
      %v335 = vunpack.c.l.b16 %v206
      %v336 = vunpack.c.l.b16 %v207
      %v337 = vunpack.c.l.b16 %v208
      %v338 = vunpack.c.l.b16 %v209
      %v339 = vunpack.c.l.b16 %v210
      %v340 = vunpack.c.l.b16 %v211
      %v341 = vpack.c.b16 %v278, %v277
      %v342 = vpack.c.b16 %v280, %v279
      %v343 = vpack.c.b16 %v282, %v281
      %v344 = vpack.c.b16 %v284, %v283
      %v345 = vpack.c.b16 %v286, %v285
      %v346 = vpack.c.b16 %v288, %v287
      %v347 = vpack.c.b16 %v290, %v289
      %v348 = vpack.c.b16 %v292, %v291
      %v349 = vpack.c.b16 %v294, %v293
      %v350 = vpack.c.b16 %v296, %v295
      %v351 = vpack.c.b16 %v298, %v297
      %v352 = vpack.c.b16 %v300, %v299
      %v353 = vpack.c.b16 %v302, %v301
      %v354 = vpack.c.b16 %v304, %v303
      %v355 = vpack.c.b16 %v306, %v305
      %v356 = vpack.c.b16 %v308, %v307
      %v357 = vpack.c.b16 %v310, %v309
      %v358 = vpack.c.b16 %v312, %v311
      %v359 = vpack.c.b16 %v314, %v313
      %v360 = vpack.c.b16 %v316, %v315
      %v361 = vpack.c.b16 %v318, %v317
      %v362 = vpack.c.b16 %v320, %v319
      %v363 = vpack.c.b16 %v322, %v321
      %v364 = vpack.c.b16 %v324, %v323
      %v365 = vpack.c.b16 %v326, %v325
      %v366 = vpack.c.b16 %v328, %v327
      %v367 = vpack.c.b16 %v330, %v329
      %v368 = vpack.c.b16 %v332, %v331
      %v369 = vpack.c.b16 %v334, %v333
      %v370 = vpack.c.b16 %v336, %v335
      %v371 = vpack.c.b16 %v338, %v337
      %v372 = vpack.c.b16 %v340, %v339
      %vm373 = vcmask 64512
      %v375 = vsel %vm373, %v341, 0
      %v378 = vsel %vm373, %v342, 0
      %v381 = vsel %vm373, %v343, 0
      %v384 = vsel %vm373, %v344, 0
      %v387 = vsel %vm373, %v345, 0
      %v390 = vsel %vm373, %v346, 0
      %v393 = vsel %vm373, %v347, 0
      %v396 = vsel %vm373, %v348, 0
      %v399 = vsel %vm373, %v349, 0
      %v402 = vsel %vm373, %v350, 0
      %v405 = vsel %vm373, %v351, 0
      %v408 = vsel %vm373, %v352, 0
      %v411 = vsel %vm373, %v353, 0
      %v414 = vsel %vm373, %v354, 0
      %v417 = vsel %vm373, %v355, 0
      %v420 = vsel %vm373, %v356, 0
      %v423 = vsel %vm373, %v357, 0
      %v426 = vsel %vm373, %v358, 0
      %v429 = vsel %vm373, %v359, 0
      %v432 = vsel %vm373, %v360, 0
      %v435 = vsel %vm373, %v361, 0
      %v438 = vsel %vm373, %v362, 0
      %v441 = vsel %vm373, %v363, 0
      %v444 = vsel %vm373, %v364, 0
      %v447 = vsel %vm373, %v365, 0
      %v450 = vsel %vm373, %v366, 0
      %v453 = vsel %vm373, %v367, 0
      %v456 = vsel %vm373, %v368, 0
      %v459 = vsel %vm373, %v369, 0
      %v462 = vsel %vm373, %v370, 0
      %v465 = vsel %vm373, %v371, 0
      %v468 = vsel %vm373, %v372, 0
      %vm470 = vcmask 1043456
      %v472 = vsel %vm470, %v212, 0
      %474 = vmatprep.subr.bf16.mxu0 0
      %475 = vmatpush1.bf16.msra.mxu0 0
      %476 = vmatprep.subr.bf16.mxu0 0
      %477 = vmatpush1.bf16.msra.mxu0 0
      %478 = vmatprep.subr.bf16.mxu0 0
      %479 = vmatpush1.bf16.msra.mxu0 0
      %480 = vmatprep.subr.bf16.mxu0 0
      %481 = vmatpush1.bf16.msra.mxu0 0
      %482 = vmatprep.subr.bf16.mxu0 0
      %483 = vmatpush1.bf16.msra.mxu0 0
      %484 = vmatprep.subr.bf16.mxu0 0
      %485 = vmatpush1.bf16.msra.mxu0 0
      %486 = vmatprep.subr.bf16.mxu0 0
      %487 = vmatpush1.bf16.msra.mxu0 0
      %488 = vmatprep.subr.bf16.mxu0 0
      %489 = vmatpush1.bf16.msra.mxu0 %v472
      %490 = vmatprep.subr.bf16.mxu0 0
      %491 = vmatpush2.bf16.msra.mxu0 0
      %492 = vmatprep.subr.bf16.mxu0 0
      %493 = vmatpush2.bf16.msra.mxu0 0
      %494 = vmatprep.subr.bf16.mxu0 0
      %495 = vmatpush2.bf16.msra.mxu0 0
      %496 = vmatprep.subr.bf16.mxu0 0
      %497 = vmatpush2.bf16.msra.mxu0 0
      %498 = vmatprep.subr.bf16.mxu0 0
      %499 = vmatpush2.bf16.msra.mxu0 0
      %500 = vmatprep.subr.bf16.mxu0 0
      %501 = vmatpush2.bf16.msra.mxu0 0
      %502 = vmatprep.subr.bf16.mxu0 0
      %503 = vmatpush2.bf16.msra.mxu0 0
      %504 = vmatprep.subr.bf16.mxu0 0
      %505 = vmatpush2.bf16.msra.mxu0 0
      %506 = vmatprep.mubr.bf16.mxu0 0
      %507 = vmatmul.mubr.bf16.gmra.mxu0 %v375
      %v508 = vpop.f32.mrf.mxu0
      %v509 = vadd.f32 0.0, %v508
      %v510 = vpop.f32.mrf.mxu0
      %v511 = vpop.f32.mrf.mxu0
      %v512 = vadd.f32 0.0, %v511
      %v513 = vpop.f32.mrf.mxu0
      %514 = vmatprep.mubr.bf16.mxu0 0
      %515 = vmatmul.mubr.bf16.gmra.mxu0 %v378
      %v516 = vpop.f32.mrf.mxu0
      %v517 = vadd.f32 0.0, %v516
      %v518 = vpop.f32.mrf.mxu0
      %v519 = vpop.f32.mrf.mxu0
      %v520 = vadd.f32 0.0, %v519
      %v521 = vpop.f32.mrf.mxu0
      %522 = vmatprep.mubr.bf16.mxu0 0
      %523 = vmatmul.mubr.bf16.gmra.mxu0 %v381
      %v524 = vpop.f32.mrf.mxu0
      %v525 = vadd.f32 0.0, %v524
      %v526 = vpop.f32.mrf.mxu0
      %v527 = vpop.f32.mrf.mxu0
      %v528 = vadd.f32 0.0, %v527
      %v529 = vpop.f32.mrf.mxu0
      %530 = vmatprep.mubr.bf16.mxu0 0
      %531 = vmatmul.mubr.bf16.gmra.mxu0 %v384
      %v532 = vpop.f32.mrf.mxu0
      %v533 = vadd.f32 0.0, %v532
      %v534 = vpop.f32.mrf.mxu0
      %v535 = vpop.f32.mrf.mxu0
      %v536 = vadd.f32 0.0, %v535
      %v537 = vpop.f32.mrf.mxu0
      %538 = vmatprep.mubr.bf16.mxu0 0
      %539 = vmatmul.mubr.bf16.gmra.mxu0 %v387
      %v540 = vpop.f32.mrf.mxu0
      %v541 = vadd.f32 0.0, %v540
      %v542 = vpop.f32.mrf.mxu0
      %v543 = vpop.f32.mrf.mxu0
      %v544 = vadd.f32 0.0, %v543
      %v545 = vpop.f32.mrf.mxu0
      %546 = vmatprep.mubr.bf16.mxu0 0
      %547 = vmatmul.mubr.bf16.gmra.mxu0 %v390
      %v548 = vpop.f32.mrf.mxu0
      %v549 = vadd.f32 0.0, %v548
      %v550 = vpop.f32.mrf.mxu0
      %v551 = vpop.f32.mrf.mxu0
      %v552 = vadd.f32 0.0, %v551
      %v553 = vpop.f32.mrf.mxu0
      %554 = vmatprep.mubr.bf16.mxu0 0
      %555 = vmatmul.mubr.bf16.gmra.mxu0 %v393
      %v556 = vpop.f32.mrf.mxu0
      %v557 = vadd.f32 0.0, %v556
      %v558 = vpop.f32.mrf.mxu0
      %v559 = vpop.f32.mrf.mxu0
      %v560 = vadd.f32 0.0, %v559
      %v561 = vpop.f32.mrf.mxu0
      %562 = vmatprep.mubr.bf16.mxu0 0
      %563 = vmatmul.mubr.bf16.gmra.mxu0 %v396
      %v564 = vpop.f32.mrf.mxu0
      %v565 = vadd.f32 0.0, %v564
      %v566 = vpop.f32.mrf.mxu0
      %v567 = vpop.f32.mrf.mxu0
      %v568 = vadd.f32 0.0, %v567
      %v569 = vpop.f32.mrf.mxu0
      %570 = vmatprep.mubr.bf16.mxu0 0
      %571 = vmatmul.mubr.bf16.gmra.mxu0 %v399
      %v572 = vpop.f32.mrf.mxu0
      %v573 = vadd.f32 0.0, %v572
      %v574 = vpop.f32.mrf.mxu0
      %v575 = vpop.f32.mrf.mxu0
      %v576 = vadd.f32 0.0, %v575
      %v577 = vpop.f32.mrf.mxu0
      %578 = vmatprep.mubr.bf16.mxu0 0
      %579 = vmatmul.mubr.bf16.gmra.mxu0 %v402
      %v580 = vpop.f32.mrf.mxu0
      %v581 = vadd.f32 0.0, %v580
      %v582 = vpop.f32.mrf.mxu0
      %v583 = vpop.f32.mrf.mxu0
      %v584 = vadd.f32 0.0, %v583
      %v585 = vpop.f32.mrf.mxu0
      %586 = vmatprep.mubr.bf16.mxu0 0
      %587 = vmatmul.mubr.bf16.gmra.mxu0 %v405
      %v588 = vpop.f32.mrf.mxu0
      %v589 = vadd.f32 0.0, %v588
      %v590 = vpop.f32.mrf.mxu0
      %v591 = vpop.f32.mrf.mxu0
      %v592 = vadd.f32 0.0, %v591
      %v593 = vpop.f32.mrf.mxu0
      %594 = vmatprep.mubr.bf16.mxu0 0
      %595 = vmatmul.mubr.bf16.gmra.mxu0 %v408
      %v596 = vpop.f32.mrf.mxu0
      %v597 = vadd.f32 0.0, %v596
      %v598 = vpop.f32.mrf.mxu0
      %v599 = vpop.f32.mrf.mxu0
      %v600 = vadd.f32 0.0, %v599
      %v601 = vpop.f32.mrf.mxu0
      %602 = vmatprep.mubr.bf16.mxu0 0
      %603 = vmatmul.mubr.bf16.gmra.mxu0 %v411
      %v604 = vpop.f32.mrf.mxu0
      %v605 = vadd.f32 0.0, %v604
      %v606 = vpop.f32.mrf.mxu0
      %v607 = vpop.f32.mrf.mxu0
      %v608 = vadd.f32 0.0, %v607
      %v609 = vpop.f32.mrf.mxu0
      %610 = vmatprep.mubr.bf16.mxu0 0
      %611 = vmatmul.mubr.bf16.gmra.mxu0 %v414
      %v612 = vpop.f32.mrf.mxu0
      %v613 = vadd.f32 0.0, %v612
      %v614 = vpop.f32.mrf.mxu0
      %v615 = vpop.f32.mrf.mxu0
      %v616 = vadd.f32 0.0, %v615
      %v617 = vpop.f32.mrf.mxu0
      %618 = vmatprep.mubr.bf16.mxu0 0
      %619 = vmatmul.mubr.bf16.gmra.mxu0 %v417
      %v620 = vpop.f32.mrf.mxu0
      %v621 = vadd.f32 0.0, %v620
      %v622 = vpop.f32.mrf.mxu0
      %v623 = vpop.f32.mrf.mxu0
      %v624 = vadd.f32 0.0, %v623
      %v625 = vpop.f32.mrf.mxu0
      %626 = vmatprep.mubr.bf16.mxu0 0
      %627 = vmatmul.mubr.bf16.gmra.mxu0 %v420
      %v628 = vpop.f32.mrf.mxu0
      %v629 = vadd.f32 0.0, %v628
      %v630 = vpop.f32.mrf.mxu0
      %v631 = vpop.f32.mrf.mxu0
      %v632 = vadd.f32 0.0, %v631
      %v633 = vpop.f32.mrf.mxu0
      %634 = vmatprep.mubr.bf16.mxu0 0
      %635 = vmatmul.mubr.bf16.gmra.mxu0 %v423
      %v636 = vpop.f32.mrf.mxu0
      %v637 = vadd.f32 0.0, %v636
      %v638 = vpop.f32.mrf.mxu0
      %v639 = vpop.f32.mrf.mxu0
      %v640 = vadd.f32 0.0, %v639
      %v641 = vpop.f32.mrf.mxu0
      %642 = vmatprep.mubr.bf16.mxu0 0
      %643 = vmatmul.mubr.bf16.gmra.mxu0 %v426
      %v644 = vpop.f32.mrf.mxu0
      %v645 = vadd.f32 0.0, %v644
      %v646 = vpop.f32.mrf.mxu0
      %v647 = vpop.f32.mrf.mxu0
      %v648 = vadd.f32 0.0, %v647
      %v649 = vpop.f32.mrf.mxu0
      %650 = vmatprep.mubr.bf16.mxu0 0
      %651 = vmatmul.mubr.bf16.gmra.mxu0 %v429
      %v652 = vpop.f32.mrf.mxu0
      %v653 = vadd.f32 0.0, %v652
      %v654 = vpop.f32.mrf.mxu0
      %v655 = vpop.f32.mrf.mxu0
      %v656 = vadd.f32 0.0, %v655
      %v657 = vpop.f32.mrf.mxu0
      %658 = vmatprep.mubr.bf16.mxu0 0
      %659 = vmatmul.mubr.bf16.gmra.mxu0 %v432
      %v660 = vpop.f32.mrf.mxu0
      %v661 = vadd.f32 0.0, %v660
      %v662 = vpop.f32.mrf.mxu0
      %v663 = vpop.f32.mrf.mxu0
      %v664 = vadd.f32 0.0, %v663
      %v665 = vpop.f32.mrf.mxu0
      %666 = vmatprep.mubr.bf16.mxu0 0
      %667 = vmatmul.mubr.bf16.gmra.mxu0 %v435
      %v668 = vpop.f32.mrf.mxu0
      %v669 = vadd.f32 0.0, %v668
      %v670 = vpop.f32.mrf.mxu0
      %v671 = vpop.f32.mrf.mxu0
      %v672 = vadd.f32 0.0, %v671
      %v673 = vpop.f32.mrf.mxu0
      %674 = vmatprep.mubr.bf16.mxu0 0
      %675 = vmatmul.mubr.bf16.gmra.mxu0 %v438
      %v676 = vpop.f32.mrf.mxu0
      %v677 = vadd.f32 0.0, %v676
      %v678 = vpop.f32.mrf.mxu0
      %v679 = vpop.f32.mrf.mxu0
      %v680 = vadd.f32 0.0, %v679
      %v681 = vpop.f32.mrf.mxu0
      %682 = vmatprep.mubr.bf16.mxu0 0
      %683 = vmatmul.mubr.bf16.gmra.mxu0 %v441
      %v684 = vpop.f32.mrf.mxu0
      %v685 = vadd.f32 0.0, %v684
      %v686 = vpop.f32.mrf.mxu0
      %v687 = vpop.f32.mrf.mxu0
      %v688 = vadd.f32 0.0, %v687
      %v689 = vpop.f32.mrf.mxu0
      %690 = vmatprep.mubr.bf16.mxu0 0
      %691 = vmatmul.mubr.bf16.gmra.mxu0 %v444
      %v692 = vpop.f32.mrf.mxu0
      %v693 = vadd.f32 0.0, %v692
      %v694 = vpop.f32.mrf.mxu0
      %v695 = vpop.f32.mrf.mxu0
      %v696 = vadd.f32 0.0, %v695
      %v697 = vpop.f32.mrf.mxu0
      %698 = vmatprep.mubr.bf16.mxu0 0
      %699 = vmatmul.mubr.bf16.gmra.mxu0 %v447
      %v700 = vpop.f32.mrf.mxu0
      %v701 = vadd.f32 0.0, %v700
      %v702 = vpop.f32.mrf.mxu0
      %v703 = vpop.f32.mrf.mxu0
      %v704 = vadd.f32 0.0, %v703
      %v705 = vpop.f32.mrf.mxu0
      %706 = vmatprep.mubr.bf16.mxu0 0
      %707 = vmatmul.mubr.bf16.gmra.mxu0 %v450
      %v708 = vpop.f32.mrf.mxu0
      %v709 = vadd.f32 0.0, %v708
      %v710 = vpop.f32.mrf.mxu0
      %v711 = vpop.f32.mrf.mxu0
      %v712 = vadd.f32 0.0, %v711
      %v713 = vpop.f32.mrf.mxu0
      %714 = vmatprep.mubr.bf16.mxu0 0
      %715 = vmatmul.mubr.bf16.gmra.mxu0 %v453
      %v716 = vpop.f32.mrf.mxu0
      %v717 = vadd.f32 0.0, %v716
      %v718 = vpop.f32.mrf.mxu0
      %v719 = vpop.f32.mrf.mxu0
      %v720 = vadd.f32 0.0, %v719
      %v721 = vpop.f32.mrf.mxu0
      %722 = vmatprep.mubr.bf16.mxu0 0
      %723 = vmatmul.mubr.bf16.gmra.mxu0 %v456
      %v724 = vpop.f32.mrf.mxu0
      %v725 = vadd.f32 0.0, %v724
      %v726 = vpop.f32.mrf.mxu0
      %v727 = vpop.f32.mrf.mxu0
      %v728 = vadd.f32 0.0, %v727
      %v729 = vpop.f32.mrf.mxu0
      %730 = vmatprep.mubr.bf16.mxu0 0
      %731 = vmatmul.mubr.bf16.gmra.mxu0 %v459
      %v732 = vpop.f32.mrf.mxu0
      %v733 = vadd.f32 0.0, %v732
      %v734 = vpop.f32.mrf.mxu0
      %v735 = vpop.f32.mrf.mxu0
      %v736 = vadd.f32 0.0, %v735
      %v737 = vpop.f32.mrf.mxu0
      %738 = vmatprep.mubr.bf16.mxu0 0
      %739 = vmatmul.mubr.bf16.gmra.mxu0 %v462
      %v740 = vpop.f32.mrf.mxu0
      %v741 = vadd.f32 0.0, %v740
      %v742 = vpop.f32.mrf.mxu0
      %v743 = vpop.f32.mrf.mxu0
      %v744 = vadd.f32 0.0, %v743
      %v745 = vpop.f32.mrf.mxu0
      %746 = vmatprep.mubr.bf16.mxu0 0
      %747 = vmatmul.mubr.bf16.gmra.mxu0 %v465
      %v748 = vpop.f32.mrf.mxu0
      %v749 = vadd.f32 0.0, %v748
      %v750 = vpop.f32.mrf.mxu0
      %v751 = vpop.f32.mrf.mxu0
      %v752 = vadd.f32 0.0, %v751
      %v753 = vpop.f32.mrf.mxu0
      %754 = vmatprep.mubr.bf16.mxu0 0
      %755 = vmatmul.mubr.bf16.gmra.mxu0 %v468
      %v756 = vpop.f32.mrf.mxu0
      %v757 = vadd.f32 0.0, %v756
      %v758 = vpop.f32.mrf.mxu0
      %v759 = vpop.f32.mrf.mxu0
      %v760 = vadd.f32 0.0, %v759
      %v761 = vpop.f32.mrf.mxu0
      %762 = vdwg.mxu0
      %v763 = vpack.c.bf16 %v512, %v509
      %v764 = vpack.c.bf16 %v520, %v517
      %v765 = vpack.c.bf16 %v528, %v525
      %v766 = vpack.c.bf16 %v536, %v533
      %v767 = vpack.c.bf16 %v544, %v541
      %v768 = vpack.c.bf16 %v552, %v549
      %v769 = vpack.c.bf16 %v560, %v557
      %v770 = vpack.c.bf16 %v568, %v565
      %v771 = vpack.c.bf16 %v576, %v573
      %v772 = vpack.c.bf16 %v584, %v581
      %v773 = vpack.c.bf16 %v592, %v589
      %v774 = vpack.c.bf16 %v600, %v597
      %v775 = vpack.c.bf16 %v608, %v605
      %v776 = vpack.c.bf16 %v616, %v613
      %v777 = vpack.c.bf16 %v624, %v621
      %v778 = vpack.c.bf16 %v632, %v629
      %v779 = vpack.c.bf16 %v640, %v637
      %v780 = vpack.c.bf16 %v648, %v645
      %v781 = vpack.c.bf16 %v656, %v653
      %v782 = vpack.c.bf16 %v664, %v661
      %v783 = vpack.c.bf16 %v672, %v669
      %v784 = vpack.c.bf16 %v680, %v677
      %v785 = vpack.c.bf16 %v688, %v685
      %v786 = vpack.c.bf16 %v696, %v693
      %v787 = vpack.c.bf16 %v704, %v701
      %v788 = vpack.c.bf16 %v712, %v709
      %v789 = vpack.c.bf16 %v720, %v717
      %v790 = vpack.c.bf16 %v728, %v725
      %v791 = vpack.c.bf16 %v736, %v733
      %v792 = vpack.c.bf16 %v744, %v741
      %v793 = vpack.c.bf16 %v752, %v749
      %v794 = vpack.c.bf16 %v760, %v757
      %v827 = vunpack.c.l.b16 %v763
      %v828 = vunpack.c.h.b16 %v763
      %v829 = vunpack.c.l.b16 %v764
      %v830 = vunpack.c.h.b16 %v764
      %v831 = vunpack.c.l.b16 %v765
      %v832 = vunpack.c.h.b16 %v765
      %v833 = vunpack.c.l.b16 %v766
      %v834 = vunpack.c.h.b16 %v766
      %v835 = vunpack.c.l.b16 %v767
      %v836 = vunpack.c.h.b16 %v767
      %v837 = vunpack.c.l.b16 %v768
      %v838 = vunpack.c.h.b16 %v768
      %v839 = vunpack.c.l.b16 %v769
      %v840 = vunpack.c.h.b16 %v769
      %v841 = vunpack.c.l.b16 %v770
      %v842 = vunpack.c.h.b16 %v770
      %v843 = vunpack.c.l.b16 %v771
      %v844 = vunpack.c.h.b16 %v771
      %v845 = vunpack.c.l.b16 %v772
      %v846 = vunpack.c.h.b16 %v772
      %v847 = vunpack.c.l.b16 %v773
      %v848 = vunpack.c.h.b16 %v773
      %v849 = vunpack.c.l.b16 %v774
      %v850 = vunpack.c.h.b16 %v774
      %v851 = vunpack.c.l.b16 %v775
      %v852 = vunpack.c.h.b16 %v775
      %v853 = vunpack.c.l.b16 %v776
      %v854 = vunpack.c.h.b16 %v776
      %v855 = vunpack.c.l.b16 %v777
      %v856 = vunpack.c.h.b16 %v777
      %v857 = vunpack.c.l.b16 %v778
      %v858 = vunpack.c.h.b16 %v778
      %v859 = vunpack.c.l.b16 %v779
      %v860 = vunpack.c.h.b16 %v779
      %v861 = vunpack.c.l.b16 %v780
      %v862 = vunpack.c.h.b16 %v780
      %v863 = vunpack.c.l.b16 %v781
      %v864 = vunpack.c.h.b16 %v781
      %v865 = vunpack.c.l.b16 %v782
      %v866 = vunpack.c.h.b16 %v782
      %v867 = vunpack.c.l.b16 %v783
      %v868 = vunpack.c.h.b16 %v783
      %v869 = vunpack.c.l.b16 %v784
      %v870 = vunpack.c.h.b16 %v784
      %v871 = vunpack.c.l.b16 %v785
      %v872 = vunpack.c.h.b16 %v785
      %v873 = vunpack.c.l.b16 %v786
      %v874 = vunpack.c.h.b16 %v786
      %v875 = vunpack.c.l.b16 %v787
      %v876 = vunpack.c.h.b16 %v787
      %v877 = vunpack.c.l.b16 %v788
      %v878 = vunpack.c.h.b16 %v788
      %v879 = vunpack.c.l.b16 %v789
      %v880 = vunpack.c.h.b16 %v789
      %v881 = vunpack.c.l.b16 %v790
      %v882 = vunpack.c.h.b16 %v790
      %v883 = vunpack.c.l.b16 %v791
      %v884 = vunpack.c.h.b16 %v791
      %v885 = vunpack.c.l.b16 %v792
      %v886 = vunpack.c.h.b16 %v792
      %v887 = vunpack.c.l.b16 %v793
      %v888 = vunpack.c.h.b16 %v793
      %v889 = vunpack.c.l.b16 %v794
      %v890 = vunpack.c.h.b16 %v794
      %v891 = vpack.c.b16 %v827, %v827
      %v892 = vpack.c.b16 %v828, %v828
      %v893 = vpack.c.b16 %v829, %v829
      %v894 = vpack.c.b16 %v830, %v830
      %v895 = vpack.c.b16 %v831, %v831
      %v896 = vpack.c.b16 %v832, %v832
      %v897 = vpack.c.b16 %v833, %v833
      %v898 = vpack.c.b16 %v834, %v834
      %v899 = vpack.c.b16 %v835, %v835
      %v900 = vpack.c.b16 %v836, %v836
      %v901 = vpack.c.b16 %v837, %v837
      %v902 = vpack.c.b16 %v838, %v838
      %v903 = vpack.c.b16 %v839, %v839
      %v904 = vpack.c.b16 %v840, %v840
      %v905 = vpack.c.b16 %v841, %v841
      %v906 = vpack.c.b16 %v842, %v842
      %v907 = vpack.c.b16 %v843, %v843
      %v908 = vpack.c.b16 %v844, %v844
      %v909 = vpack.c.b16 %v845, %v845
      %v910 = vpack.c.b16 %v846, %v846
      %v911 = vpack.c.b16 %v847, %v847
      %v912 = vpack.c.b16 %v848, %v848
      %v913 = vpack.c.b16 %v849, %v849
      %v914 = vpack.c.b16 %v850, %v850
      %v915 = vpack.c.b16 %v851, %v851
      %v916 = vpack.c.b16 %v852, %v852
      %v917 = vpack.c.b16 %v853, %v853
      %v918 = vpack.c.b16 %v854, %v854
      %v919 = vpack.c.b16 %v855, %v855
      %v920 = vpack.c.b16 %v856, %v856
      %v921 = vpack.c.b16 %v857, %v857
      %v922 = vpack.c.b16 %v858, %v858
      %v923 = vpack.c.b16 %v859, %v859
      %v924 = vpack.c.b16 %v860, %v860
      %v925 = vpack.c.b16 %v861, %v861
      %v926 = vpack.c.b16 %v862, %v862
      %v927 = vpack.c.b16 %v863, %v863
      %v928 = vpack.c.b16 %v864, %v864
      %v929 = vpack.c.b16 %v865, %v865
      %v930 = vpack.c.b16 %v866, %v866
      %v931 = vpack.c.b16 %v867, %v867
      %v932 = vpack.c.b16 %v868, %v868
      %v933 = vpack.c.b16 %v869, %v869
      %v934 = vpack.c.b16 %v870, %v870
      %v935 = vpack.c.b16 %v871, %v871
      %v936 = vpack.c.b16 %v872, %v872
      %v937 = vpack.c.b16 %v873, %v873
      %v938 = vpack.c.b16 %v874, %v874
      %v939 = vpack.c.b16 %v875, %v875
      %v940 = vpack.c.b16 %v876, %v876
      %v941 = vpack.c.b16 %v877, %v877
      %v942 = vpack.c.b16 %v878, %v878
      %v943 = vpack.c.b16 %v879, %v879
      %v944 = vpack.c.b16 %v880, %v880
      %v945 = vpack.c.b16 %v881, %v881
      %v946 = vpack.c.b16 %v882, %v882
      %v947 = vpack.c.b16 %v883, %v883
      %v948 = vpack.c.b16 %v884, %v884
      %v949 = vpack.c.b16 %v885, %v885
      %v950 = vpack.c.b16 %v886, %v886
      %v951 = vpack.c.b16 %v887, %v887
      %v952 = vpack.c.b16 %v888, %v888
      %v953 = vpack.c.b16 %v889, %v889
      %v954 = vpack.c.b16 %v890, %v890
      %vm1019 = vcmask 125952
      %1020 = vst.msk [vmem:[%s145] sm:$0xf] %vm1019, %v891
      %1021 = vst.msk [vmem:[%s145 + $0x4] sm:$0xf] %vm1019, %v892
      %1022 = vst.msk [vmem:[%s145 + $0x8] sm:$0xf] %vm1019, %v893
      %1023 = vst.msk [vmem:[%s145 + $0xc] sm:$0xf] %vm1019, %v894
      %1024 = vst.msk [vmem:[%s145 + $0x10] sm:$0xf] %vm1019, %v895
      %1025 = vst.msk [vmem:[%s145 + $0x14] sm:$0xf] %vm1019, %v896
      %1026 = vst.msk [vmem:[%s145 + $0x18] sm:$0xf] %vm1019, %v897
      %1027 = vst.msk [vmem:[%s145 + $0x1c] sm:$0xf] %vm1019, %v898
      %1028 = vst.msk [vmem:[%s145 + $0x20] sm:$0xf] %vm1019, %v899
      %1029 = vst.msk [vmem:[%s145 + $0x24] sm:$0xf] %vm1019, %v900
      %1030 = vst.msk [vmem:[%s145 + $0x28] sm:$0xf] %vm1019, %v901
      %1031 = vst.msk [vmem:[%s145 + $0x2c] sm:$0xf] %vm1019, %v902
      %1032 = vst.msk [vmem:[%s145 + $0x30] sm:$0xf] %vm1019, %v903
      %1033 = vst.msk [vmem:[%s145 + $0x34] sm:$0xf] %vm1019, %v904
      %1034 = vst.msk [vmem:[%s145 + $0x38] sm:$0xf] %vm1019, %v905
      %1035 = vst.msk [vmem:[%s145 + $0x3c] sm:$0xf] %vm1019, %v906
      %1036 = vst.msk [vmem:[%s145 + $0x40] sm:$0xf] %vm1019, %v907
      %1037 = vst.msk [vmem:[%s145 + $0x44] sm:$0xf] %vm1019, %v908
      %1038 = vst.msk [vmem:[%s145 + $0x48] sm:$0xf] %vm1019, %v909
      %1039 = vst.msk [vmem:[%s145 + $0x4c] sm:$0xf] %vm1019, %v910
      %1040 = vst.msk [vmem:[%s145 + $0x50] sm:$0xf] %vm1019, %v911
      %1041 = vst.msk [vmem:[%s145 + $0x54] sm:$0xf] %vm1019, %v912
      %1042 = vst.msk [vmem:[%s145 + $0x58] sm:$0xf] %vm1019, %v913
      %1043 = vst.msk [vmem:[%s145 + $0x5c] sm:$0xf] %vm1019, %v914
      %1044 = vst.msk [vmem:[%s145 + $0x60] sm:$0xf] %vm1019, %v915
      %1045 = vst.msk [vmem:[%s145 + $0x64] sm:$0xf] %vm1019, %v916
      %1046 = vst.msk [vmem:[%s145 + $0x68] sm:$0xf] %vm1019, %v917
      %1047 = vst.msk [vmem:[%s145 + $0x6c] sm:$0xf] %vm1019, %v918
      %1048 = vst.msk [vmem:[%s145 + $0x70] sm:$0xf] %vm1019, %v919
      %1049 = vst.msk [vmem:[%s145 + $0x74] sm:$0xf] %vm1019, %v920
      %1050 = vst.msk [vmem:[%s145 + $0x78] sm:$0xf] %vm1019, %v921
      %1051 = vst.msk [vmem:[%s145 + $0x7c] sm:$0xf] %vm1019, %v922
      %1052 = vst.msk [vmem:[%s145 + $0x80] sm:$0xf] %vm1019, %v923
      %1053 = vst.msk [vmem:[%s145 + $0x84] sm:$0xf] %vm1019, %v924
      %1054 = vst.msk [vmem:[%s145 + $0x88] sm:$0xf] %vm1019, %v925
      %1055 = vst.msk [vmem:[%s145 + $0x8c] sm:$0xf] %vm1019, %v926
      %1056 = vst.msk [vmem:[%s145 + $0x90] sm:$0xf] %vm1019, %v927
      %1057 = vst.msk [vmem:[%s145 + $0x94] sm:$0xf] %vm1019, %v928
      %1058 = vst.msk [vmem:[%s145 + $0x98] sm:$0xf] %vm1019, %v929
      %1059 = vst.msk [vmem:[%s145 + $0x9c] sm:$0xf] %vm1019, %v930
      %1060 = vst.msk [vmem:[%s145 + $0xa0] sm:$0xf] %vm1019, %v931
      %1061 = vst.msk [vmem:[%s145 + $0xa4] sm:$0xf] %vm1019, %v932
      %1062 = vst.msk [vmem:[%s145 + $0xa8] sm:$0xf] %vm1019, %v933
      %1063 = vst.msk [vmem:[%s145 + $0xac] sm:$0xf] %vm1019, %v934
      %1064 = vst.msk [vmem:[%s145 + $0xb0] sm:$0xf] %vm1019, %v935
      %1065 = vst.msk [vmem:[%s145 + $0xb4] sm:$0xf] %vm1019, %v936
      %1066 = vst.msk [vmem:[%s145 + $0xb8] sm:$0xf] %vm1019, %v937
      %1067 = vst.msk [vmem:[%s145 + $0xbc] sm:$0xf] %vm1019, %v938
      %1068 = vst.msk [vmem:[%s145 + $0xc0] sm:$0xf] %vm1019, %v939
      %1069 = vst.msk [vmem:[%s145 + $0xc4] sm:$0xf] %vm1019, %v940
      %1070 = vst.msk [vmem:[%s145 + $0xc8] sm:$0xf] %vm1019, %v941
      %1071 = vst.msk [vmem:[%s145 + $0xcc] sm:$0xf] %vm1019, %v942
      %1072 = vst.msk [vmem:[%s145 + $0xd0] sm:$0xf] %vm1019, %v943
      %1073 = vst.msk [vmem:[%s145 + $0xd4] sm:$0xf] %vm1019, %v944
      %1074 = vst.msk [vmem:[%s145 + $0xd8] sm:$0xf] %vm1019, %v945
      %1075 = vst.msk [vmem:[%s145 + $0xdc] sm:$0xf] %vm1019, %v946
      %1076 = vst.msk [vmem:[%s145 + $0xe0] sm:$0xf] %vm1019, %v947
      %1077 = vst.msk [vmem:[%s145 + $0xe4] sm:$0xf] %vm1019, %v948
      %1078 = vst.msk [vmem:[%s145 + $0xe8] sm:$0xf] %vm1019, %v949
      %1079 = vst.msk [vmem:[%s145 + $0xec] sm:$0xf] %vm1019, %v950
      %1080 = vst.msk [vmem:[%s145 + $0xf0] sm:$0xf] %vm1019, %v951
      %1081 = vst.msk [vmem:[%s145 + $0xf4] sm:$0xf] %vm1019, %v952
      %1082 = vst.msk [vmem:[%s145 + $0xf8] sm:$0xf] %vm1019, %v953
      %1083 = vst.msk [vmem:[%s145 + $0xfc] sm:$0xf] %vm1019, %v954
      %s1084 = smul.u32 64, %s13
      %p1085 = scmp.lt.s32.totalorder %s1084, 127
      %s1086 = scalar_select %p1085, %s1084, 127
      %s1087 = smul.addr %s1086, 4
      %s1088 = scalar_lea.vmem %s2, %s1087
      // Predicated region
      $region29: #{tdrumor_forward.3} parent=27 // pred_check
        %p1089 = pneg %p78
      $region30: #{tdrumor_forward.3} parent=27 // pred_check_branch
        %1091 = sbr.rel (%p1089) target = $region32
      $region31: #{tdrumor_forward.3} parent=27 // pred_region
        %s1092 = smul.u32 64, %s13
      $region32: #{tdrumor_forward.3} parent=27 // pred_fallthru
        _
    $region28: #{tdrumor_forward.3} parent=5 // pred_fallthru
      _
    %p1093 = scmp.le.s32.totalorder 2, %s8
    // Predicated region
    $region33: #{tdrumor_forward.3} parent=5 // pred_check
      %p1094 = pneg %p1093
    $region34: #{tdrumor_forward.3} parent=5 // pred_check_branch
      %1096 = sbr.rel (%p1094) target = $region36
    $region35: #{tdrumor_forward.3} parent=5 // pred_region
      %s1097 = ssub.s32 %s8, 2
      // Predicated region
      $region37: #{tdrumor_forward.3} parent=35 // pred_check
        %p1098 = pneg %p84
      $region38: #{tdrumor_forward.3} parent=35 // pred_check_branch
        %1100 = sbr.rel (%p1098) target = $region40
      $region39: #{tdrumor_forward.3} parent=35 // pred_region
        %s1101 = smul.u32 64, %s14
        %p1102 = scmp.lt.s32.totalorder %s1101, 127
        %s1103 = scalar_select %p1102, %s1101, 127
        %s1104 = smul.addr %s1103, 4
        %s1105 = scalar_lea.vmem %s2, %s1104
      $region40: #{tdrumor_forward.3} parent=35 // pred_fallthru
        _
    $region36: #{tdrumor_forward.3} parent=5 // pred_fallthru
      _
  $region6: #{tdrumor_forward.3} parent=0 // loop_footer
    %s12 = sadd.s32 1, %s8
  $region7: #{tdrumor_forward.3} parent=0 // loop_footer_branch
    %7 = sbr.rel target = $region3
  $region8: #{tdrumor_forward.3} parent=0 // loop_exit
    _

// kernel: tdrumor_forward.5
$region0: #{tdrumor_forward.5}
  #allocation0 [shape = 'u32[]', space=smem, size = 0x4, offset = 0x4, fixed_abs, tag = 'smem constant byte address 0x4 - core index']
  #allocation1 [shape = 'u32[144,128]{1,0:T(1,128)}', space=vmem, size = 0x12000, scoped, tag = 'internal scratch']
  #allocation2 [shape = 'f32[512,8]{1,0:T(8,128)}', space=vmem, size = 0x40000, scoped, tag = 'scratch operand']
  %s0 = inlined_call_operand.vmem [shape: bf16[1024,1024], index: 0, kind: input, shape index: {}]
  %s1 = inlined_call_operand.vmem [shape: bf16[1024,8], index: 1, kind: input, shape index: {}]
  %s2 = inlined_call_operand.vmem [shape: f32[1,8], index: 2, kind: input, shape index: {}]
  %s3 = inlined_call_operand.vmem [shape: f32[2,1024], index: 3, kind: input, shape index: {}]
  %s4 = inlined_call_operand.vmem [shape: f32[2,2,8], index: 4, kind: output, shape index: {}]
  %s5 = sld [smem:[#allocation0]]
  $region80: #{tdrumor_forward.5} parent=0
    _
  %s7 = ssub.s32 1, %s5
  %s8 = scalar_select 0, %s7, %s5
  $region1: #{tdrumor_forward.5} parent=0
    #allocation3 [shape = 'u8[1048576]{0}', space=vmem, size = 0x100000, scoped, tag = 'input window, operand 0']
    loop: start=0, step=1, limit=6
    $region2: #{tdrumor_forward.5} parent=1 // loop_pre_header
      _
    $region3: #{tdrumor_forward.5} parent=1 // loop_header
      %s10 = sphi 0, %s14
      %p11 = scmp.ge.s32.totalorder %s10, 6
      %s17 = sphi 0, %s29
      %s18 = sphi 0, %s25
      %s19 = sphi 0, %s17
      %s20 = sphi 0, %s18
      %s21 = sphi 0, %s19
      %s22 = sphi 0, %s20
      %s34 = sphi 0, %s36
      %s37 = sphi 0, %s34
      %s38 = sphi 0, %s37
      %s54 = sphi 0, %s38
      %s60 = sphi 0, %s62
      %s63 = sphi 0, %s60
      %s64 = sphi 0, %s63
      %s80 = sphi 0, %s64
      %s84 = sphi 0, %s84
      %s86 = sphi 0, %s84
      %s87 = sphi 0, %s86
      %s101 = sphi 0, %s87
      %s107 = sphi 0, %s109
      %s110 = sphi 0, %s107
      %s111 = sphi 0, %s110
      %s127 = sphi 0, %s111
      %s133 = sphi 0, %s135
      %s136 = sphi 0, %s133
      %s137 = sphi 0, %s136
      %s153 = sphi 0, %s137
    $region4: #{tdrumor_forward.5} parent=1 // loop_header_branch
      %13 = sbr.rel (%p11) target = $region8
    $region5: #{tdrumor_forward.5} parent=1 // loop_body
      %s15 = ssub.s32 %s10, 1
      %s16 = ssub.s32 %s10, 2
      %s23 = sadd.s32 1, %s18
      %p24 = scmp.ge.s32.totalorder %s23, 2
      %s25 = scalar_select %p24, 0, %s23
      %s26 = sadd.s32 1, %s17
      %s27 = scalar_select %p24, %s26, %s17
      %p28 = scmp.ge.s32.totalorder %s27, 2
      %s29 = scalar_select %p28, 0, %s27
      %s30 = ssub.s32 %s17, %s29
      %s31 = ssub.s32 %s18, %s25
      %s32 = sor.u32 %s30, %s31
      %p33 = scmp.eq.s32.totalorder %s32, 0
      %s35 = sadd.s32 %s34, 1
      %s36 = scalar_select %p33, %s34, %s35
      %p39 = pneg %p33
      %p40 = scmp.eq.s32.totalorder %s10, 3
      %p41 = por %p39, %p40
      %p42 = scmp.ne.s32.totalorder %s34, %s37
      %p43 = scmp.eq.s32.totalorder %s10, 0
      %p44 = por %p42, %p43
      %p45 = scmp.ne.s32.totalorder %s34, %s37
      %p46 = scmp.eq.s32.totalorder %s15, 3
      %p47 = por %p45, %p46
      %p48 = scmp.ne.s32.totalorder %s37, %s38
      %p49 = scmp.eq.s32.totalorder %s15, 0
      %p50 = por %p48, %p49
      %p51 = scmp.ne.s32.totalorder %s37, %s38
      %p52 = scmp.eq.s32.totalorder %s16, 3
      %p53 = por %p51, %p52
      %p55 = scmp.ne.s32.totalorder %s38, %s54
      %p56 = scmp.eq.s32.totalorder %s16, 0
      %p57 = por %p55, %p56
      %s58 = ssub.s32 %s18, %s25
      %p59 = scmp.eq.s32.totalorder %s58, 0
      %s61 = sadd.s32 %s60, 1
      %s62 = scalar_select %p59, %s60, %s61
      %p65 = pneg %p59
      %p66 = scmp.eq.s32.totalorder %s10, 3
      %p67 = por %p65, %p66
      %p68 = scmp.ne.s32.totalorder %s60, %s63
      %p69 = scmp.eq.s32.totalorder %s10, 0
      %p70 = por %p68, %p69
      %p71 = scmp.ne.s32.totalorder %s60, %s63
      %p72 = scmp.eq.s32.totalorder %s15, 3
      %p73 = por %p71, %p72
      %p74 = scmp.ne.s32.totalorder %s63, %s64
      %p75 = scmp.eq.s32.totalorder %s15, 0
      %p76 = por %p74, %p75
      %p77 = scmp.ne.s32.totalorder %s63, %s64
      %p78 = scmp.eq.s32.totalorder %s16, 3
      %p79 = por %p77, %p78
      %p81 = scmp.ne.s32.totalorder %s64, %s80
      %p82 = scmp.eq.s32.totalorder %s16, 0
      %p83 = por %p81, %p82
      %s85 = sadd.s32 %s84, 1
      %p88 = scmp.eq.s32.totalorder %s10, 3
      %p89 = scmp.ne.s32.totalorder %s84, %s86
      %p90 = scmp.eq.s32.totalorder %s10, 0
      %p91 = por %p89, %p90
      %p92 = scmp.ne.s32.totalorder %s84, %s86
      %p93 = scmp.eq.s32.totalorder %s15, 3
      %p94 = por %p92, %p93
      %p95 = scmp.ne.s32.totalorder %s86, %s87
      %p96 = scmp.eq.s32.totalorder %s15, 0
      %p97 = por %p95, %p96
      %p98 = scmp.ne.s32.totalorder %s86, %s87
      %p99 = scmp.eq.s32.totalorder %s16, 3
      %p100 = por %p98, %p99
      %p102 = scmp.ne.s32.totalorder %s87, %s101
      %p103 = scmp.eq.s32.totalorder %s16, 0
      %p104 = por %p102, %p103
      %s105 = ssub.s32 %s17, %s29
      %p106 = scmp.eq.s32.totalorder %s105, 0
      %s108 = sadd.s32 %s107, 1
      %s109 = scalar_select %p106, %s107, %s108
      %p112 = pneg %p106
      %p113 = scmp.eq.s32.totalorder %s10, 3
      %p114 = por %p112, %p113
      %p115 = scmp.ne.s32.totalorder %s107, %s110
      %p116 = scmp.eq.s32.totalorder %s10, 0
      %p117 = por %p115, %p116
      %p118 = scmp.ne.s32.totalorder %s107, %s110
      %p119 = scmp.eq.s32.totalorder %s15, 3
      %p120 = por %p118, %p119
      %p121 = scmp.ne.s32.totalorder %s110, %s111
      %p122 = scmp.eq.s32.totalorder %s15, 0
      %p123 = por %p121, %p122
      %p124 = scmp.ne.s32.totalorder %s110, %s111
      %p125 = scmp.eq.s32.totalorder %s16, 3
      %p126 = por %p124, %p125
      %p128 = scmp.ne.s32.totalorder %s111, %s127
      %p129 = scmp.eq.s32.totalorder %s16, 0
      %p130 = por %p128, %p129
      %s131 = ssub.s32 %s17, %s29
      %p132 = scmp.eq.s32.totalorder %s131, 0
      %s134 = sadd.s32 %s133, 1
      %s135 = scalar_select %p132, %s133, %s134
      %p138 = pneg %p132
      %p139 = scmp.eq.s32.totalorder %s10, 3
      %p140 = por %p138, %p139
      %p141 = scmp.ne.s32.totalorder %s133, %s136
      %p142 = scmp.eq.s32.totalorder %s10, 0
      %p143 = por %p141, %p142
      %p144 = scmp.ne.s32.totalorder %s133, %s136
      %p145 = scmp.eq.s32.totalorder %s15, 3
      %p146 = por %p144, %p145
      %p147 = scmp.ne.s32.totalorder %s136, %s137
      %p148 = scmp.eq.s32.totalorder %s15, 0
      %p149 = por %p147, %p148
      %p150 = scmp.ne.s32.totalorder %s136, %s137
      %p151 = scmp.eq.s32.totalorder %s16, 3
      %p152 = por %p150, %p151
      %p154 = scmp.ne.s32.totalorder %s137, %s153
      %p155 = scmp.eq.s32.totalorder %s16, 0
      %p156 = por %p154, %p155
      %p157 = scmp.le.s32.totalorder 1, %s10
      %p158 = scmp.lt.s32.totalorder %s10, 5
      %p159 = pnand %p157, %p158
      %p160 = pneg %p159
      // Predicated region
      $region9: #{tdrumor_forward.5} parent=5 // pred_check
        _
      $region10: #{tdrumor_forward.5} parent=5 // pred_check_branch
        %162 = sbr.rel (%p159) target = $region12
      $region11: #{tdrumor_forward.5} parent=5 // pred_region
        %s163 = ssub.s32 %s10, 1
        // Predicated region
        $region13: #{tdrumor_forward.5} parent=11 // pred_check
          %p164 = pneg %p97
        $region14: #{tdrumor_forward.5} parent=11 // pred_check_branch
          %166 = sbr.rel (%p164) target = $region16
        $region15: #{tdrumor_forward.5} parent=11 // pred_region
          _
        $region16: #{tdrumor_forward.5} parent=11 // pred_fallthru
          _
      $region12: #{tdrumor_forward.5} parent=5 // pred_fallthru
        _
      %p167 = scmp.lt.s32.totalorder %s10, 4
      // Predicated region
      $region17: #{tdrumor_forward.5} parent=5 // pred_check
        %p168 = pneg %p167
      $region18: #{tdrumor_forward.5} parent=5 // pred_check_branch
        %170 = sbr.rel (%p168) target = $region20
      $region19: #{tdrumor_forward.5} parent=5 // pred_region
        // Predicated region
        $region21: #{tdrumor_forward.5} parent=19 // pred_check
          %p171 = pneg %p44
        $region22: #{tdrumor_forward.5} parent=19 // pred_check_branch
          %173 = sbr.rel (%p171) target = $region24
        $region23: #{tdrumor_forward.5} parent=19 // pred_region
          %s174 = sand.u32 %s34, 1
          %s175 = sand.u32 %s34, 1
          %s176 = smul.addr %s175, 1024
          %s177 = scalar_lea.vmem [#allocation3], %s176
          %s178 = smul.u32 64, %s17
          %s179 = smul.u32 4, %s18
          %s180 = smul.addr %s178, 8
          %s181 = sadd.s32 %s179, %s180
          %s182 = smul.addr %s181, 4
          %s183 = scalar_lea.vmem %s0, %s182
          // Predicated region
          $region25: #{tdrumor_forward.5} parent=23 // pred_check
            _
          $region26: #{tdrumor_forward.5} parent=23 // pred_check_branch
            %185 = sbr.rel (0) target = $region28
          $region27: #{tdrumor_forward.5} parent=23 // pred_region
            // Predicated region
            $region29: #{tdrumor_forward.5} parent=27 // pred_check
              _
            $region30: #{tdrumor_forward.5} parent=27 // pred_check_branch
              %187 = sbr.rel (0) target = $region32
            $region31: #{tdrumor_forward.5} parent=27 // pred_region
              loop: start=0, step=1, limit=1
              $region33: #{tdrumor_forward.5} parent=31 // loop_pre_header
                _
              $region34: #{tdrumor_forward.5} parent=31 // loop_header
                %s189 = sphi 0, %s193
                %p190 = scmp.ge.s32.totalorder %s189, 1
                %s194 = sphi %s183, %s183
                %s195 = sphi %s177, %s177
              $region35: #{tdrumor_forward.5} parent=31 // loop_header_branch
                %192 = sbr.rel (%p190) target = $region39
              $region36: #{tdrumor_forward.5} parent=31 // loop_body
                %v196 = vld [vmem:[%s194] sm:$0xff]
                %197 = vst [vmem:[%s195] sm:$0xff] %v196
                %v198 = vld [vmem:[%s194 + $0x8] sm:$0xff]
                %199 = vst [vmem:[%s195 + $0x8] sm:$0xff] %v198
                %v200 = vld [vmem:[%s194 + $0x20] sm:$0xff]
                %201 = vst [vmem:[%s195 + $0x10] sm:$0xff] %v200
                %v202 = vld [vmem:[%s194 + $0x28] sm:$0xff]
                %203 = vst [vmem:[%s195 + $0x18] sm:$0xff] %v202
                %v204 = vld [vmem:[%s194 + $0x40] sm:$0xff]
                %205 = vst [vmem:[%s195 + $0x20] sm:$0xff] %v204
                %v206 = vld [vmem:[%s194 + $0x48] sm:$0xff]
                %207 = vst [vmem:[%s195 + $0x28] sm:$0xff] %v206
                %v208 = vld [vmem:[%s194 + $0x60] sm:$0xff]
                %209 = vst [vmem:[%s195 + $0x30] sm:$0xff] %v208
                %v210 = vld [vmem:[%s194 + $0x68] sm:$0xff]
                %211 = vst [vmem:[%s195 + $0x38] sm:$0xff] %v210
                %v212 = vld [vmem:[%s194 + $0x80] sm:$0xff]
                %213 = vst [vmem:[%s195 + $0x40] sm:$0xff] %v212
                %v214 = vld [vmem:[%s194 + $0x88] sm:$0xff]
                %215 = vst [vmem:[%s195 + $0x48] sm:$0xff] %v214
                %v216 = vld [vmem:[%s194 + $0xa0] sm:$0xff]
                %217 = vst [vmem:[%s195 + $0x50] sm:$0xff] %v216
                %v218 = vld [vmem:[%s194 + $0xa8] sm:$0xff]
                %219 = vst [vmem:[%s195 + $0x58] sm:$0xff] %v218
                %v220 = vld [vmem:[%s194 + $0xc0] sm:$0xff]
                %221 = vst [vmem:[%s195 + $0x60] sm:$0xff] %v220
                %v222 = vld [vmem:[%s194 + $0xc8] sm:$0xff]
                %223 = vst [vmem:[%s195 + $0x68] sm:$0xff] %v222
                %v224 = vld [vmem:[%s194 + $0xe0] sm:$0xff]
                %225 = vst [vmem:[%s195 + $0x70] sm:$0xff] %v224
                %v226 = vld [vmem:[%s194 + $0xe8] sm:$0xff]
                %227 = vst [vmem:[%s195 + $0x78] sm:$0xff] %v226
                %v228 = vld [vmem:[%s194 + $0x100] sm:$0xff]
                %229 = vst [vmem:[%s195 + $0x80] sm:$0xff] %v228
                %v230 = vld [vmem:[%s194 + $0x108] sm:$0xff]
                %231 = vst [vmem:[%s195 + $0x88] sm:$0xff] %v230
                %v232 = vld [vmem:[%s194 + $0x120] sm:$0xff]
                %233 = vst [vmem:[%s195 + $0x90] sm:$0xff] %v232
                %v234 = vld [vmem:[%s194 + $0x128] sm:$0xff]
                %235 = vst [vmem:[%s195 + $0x98] sm:$0xff] %v234
                %v236 = vld [vmem:[%s194 + $0x140] sm:$0xff]
                %237 = vst [vmem:[%s195 + $0xa0] sm:$0xff] %v236
                %v238 = vld [vmem:[%s194 + $0x148] sm:$0xff]
                %239 = vst [vmem:[%s195 + $0xa8] sm:$0xff] %v238
                %v240 = vld [vmem:[%s194 + $0x160] sm:$0xff]
                %241 = vst [vmem:[%s195 + $0xb0] sm:$0xff] %v240
                %v242 = vld [vmem:[%s194 + $0x168] sm:$0xff]
                %243 = vst [vmem:[%s195 + $0xb8] sm:$0xff] %v242
                %v244 = vld [vmem:[%s194 + $0x180] sm:$0xff]
                %245 = vst [vmem:[%s195 + $0xc0] sm:$0xff] %v244
                %v246 = vld [vmem:[%s194 + $0x188] sm:$0xff]
                %247 = vst [vmem:[%s195 + $0xc8] sm:$0xff] %v246
                %v248 = vld [vmem:[%s194 + $0x1a0] sm:$0xff]
                %249 = vst [vmem:[%s195 + $0xd0] sm:$0xff] %v248
                %v250 = vld [vmem:[%s194 + $0x1a8] sm:$0xff]
                %251 = vst [vmem:[%s195 + $0xd8] sm:$0xff] %v250
                %v252 = vld [vmem:[%s194 + $0x1c0] sm:$0xff]
                %253 = vst [vmem:[%s195 + $0xe0] sm:$0xff] %v252
                %v254 = vld [vmem:[%s194 + $0x1c8] sm:$0xff]
                %255 = vst [vmem:[%s195 + $0xe8] sm:$0xff] %v254
                %v256 = vld [vmem:[%s194 + $0x1e0] sm:$0xff]
                %257 = vst [vmem:[%s195 + $0xf0] sm:$0xff] %v256
                %v258 = vld [vmem:[%s194 + $0x1e8] sm:$0xff]
                %259 = vst [vmem:[%s195 + $0xf8] sm:$0xff] %v258
                %v260 = vld [vmem:[%s194 + $0x200] sm:$0xff]
                %261 = vst [vmem:[%s195 + $0x100] sm:$0xff] %v260
                %v262 = vld [vmem:[%s194 + $0x208] sm:$0xff]
                %263 = vst [vmem:[%s195 + $0x108] sm:$0xff] %v262
                %v264 = vld [vmem:[%s194 + $0x220] sm:$0xff]
                %265 = vst [vmem:[%s195 + $0x110] sm:$0xff] %v264
                %v266 = vld [vmem:[%s194 + $0x228] sm:$0xff]
                %267 = vst [vmem:[%s195 + $0x118] sm:$0xff] %v266
                %v268 = vld [vmem:[%s194 + $0x240] sm:$0xff]
                %269 = vst [vmem:[%s195 + $0x120] sm:$0xff] %v268
                %v270 = vld [vmem:[%s194 + $0x248] sm:$0xff]
                %271 = vst [vmem:[%s195 + $0x128] sm:$0xff] %v270
                %v272 = vld [vmem:[%s194 + $0x260] sm:$0xff]
                %273 = vst [vmem:[%s195 + $0x130] sm:$0xff] %v272
                %v274 = vld [vmem:[%s194 + $0x268] sm:$0xff]
                %275 = vst [vmem:[%s195 + $0x138] sm:$0xff] %v274
                %v276 = vld [vmem:[%s194 + $0x280] sm:$0xff]
                %277 = vst [vmem:[%s195 + $0x140] sm:$0xff] %v276
                %v278 = vld [vmem:[%s194 + $0x288] sm:$0xff]
                %279 = vst [vmem:[%s195 + $0x148] sm:$0xff] %v278
                %v280 = vld [vmem:[%s194 + $0x2a0] sm:$0xff]
                %281 = vst [vmem:[%s195 + $0x150] sm:$0xff] %v280
                %v282 = vld [vmem:[%s194 + $0x2a8] sm:$0xff]
                %283 = vst [vmem:[%s195 + $0x158] sm:$0xff] %v282
                %v284 = vld [vmem:[%s194 + $0x2c0] sm:$0xff]
                %285 = vst [vmem:[%s195 + $0x160] sm:$0xff] %v284
                %v286 = vld [vmem:[%s194 + $0x2c8] sm:$0xff]
                %287 = vst [vmem:[%s195 + $0x168] sm:$0xff] %v286
                %v288 = vld [vmem:[%s194 + $0x2e0] sm:$0xff]
                %289 = vst [vmem:[%s195 + $0x170] sm:$0xff] %v288
                %v290 = vld [vmem:[%s194 + $0x2e8] sm:$0xff]
                %291 = vst [vmem:[%s195 + $0x178] sm:$0xff] %v290
                %v292 = vld [vmem:[%s194 + $0x300] sm:$0xff]
                %293 = vst [vmem:[%s195 + $0x180] sm:$0xff] %v292
                %v294 = vld [vmem:[%s194 + $0x308] sm:$0xff]
                %295 = vst [vmem:[%s195 + $0x188] sm:$0xff] %v294
                %v296 = vld [vmem:[%s194 + $0x320] sm:$0xff]
                %297 = vst [vmem:[%s195 + $0x190] sm:$0xff] %v296
                %v298 = vld [vmem:[%s194 + $0x328] sm:$0xff]
                %299 = vst [vmem:[%s195 + $0x198] sm:$0xff] %v298
                %v300 = vld [vmem:[%s194 + $0x340] sm:$0xff]
                %301 = vst [vmem:[%s195 + $0x1a0] sm:$0xff] %v300
                %v302 = vld [vmem:[%s194 + $0x348] sm:$0xff]
                %303 = vst [vmem:[%s195 + $0x1a8] sm:$0xff] %v302
                %v304 = vld [vmem:[%s194 + $0x360] sm:$0xff]
                %305 = vst [vmem:[%s195 + $0x1b0] sm:$0xff] %v304
                %v306 = vld [vmem:[%s194 + $0x368] sm:$0xff]
                %307 = vst [vmem:[%s195 + $0x1b8] sm:$0xff] %v306
                %v308 = vld [vmem:[%s194 + $0x380] sm:$0xff]
                %309 = vst [vmem:[%s195 + $0x1c0] sm:$0xff] %v308
                %v310 = vld [vmem:[%s194 + $0x388] sm:$0xff]
                %311 = vst [vmem:[%s195 + $0x1c8] sm:$0xff] %v310
                %v312 = vld [vmem:[%s194 + $0x3a0] sm:$0xff]
                %313 = vst [vmem:[%s195 + $0x1d0] sm:$0xff] %v312
                %v314 = vld [vmem:[%s194 + $0x3a8] sm:$0xff]
                %315 = vst [vmem:[%s195 + $0x1d8] sm:$0xff] %v314
                %v316 = vld [vmem:[%s194 + $0x3c0] sm:$0xff]
                %317 = vst [vmem:[%s195 + $0x1e0] sm:$0xff] %v316
                %v318 = vld [vmem:[%s194 + $0x3c8] sm:$0xff]
                %319 = vst [vmem:[%s195 + $0x1e8] sm:$0xff] %v318
                %v320 = vld [vmem:[%s194 + $0x3e0] sm:$0xff]
                %321 = vst [vmem:[%s195 + $0x1f0] sm:$0xff] %v320
                %v322 = vld [vmem:[%s194 + $0x3e8] sm:$0xff]
                %323 = vst [vmem:[%s195 + $0x1f8] sm:$0xff] %v322
                %v324 = vld [vmem:[%s194 + $0x400] sm:$0xff]
                %325 = vst [vmem:[%s195 + $0x200] sm:$0xff] %v324
                %v326 = vld [vmem:[%s194 + $0x408] sm:$0xff]
                %327 = vst [vmem:[%s195 + $0x208] sm:$0xff] %v326
                %v328 = vld [vmem:[%s194 + $0x420] sm:$0xff]
                %329 = vst [vmem:[%s195 + $0x210] sm:$0xff] %v328
                %v330 = vld [vmem:[%s194 + $0x428] sm:$0xff]
                %331 = vst [vmem:[%s195 + $0x218] sm:$0xff] %v330
                %v332 = vld [vmem:[%s194 + $0x440] sm:$0xff]
                %333 = vst [vmem:[%s195 + $0x220] sm:$0xff] %v332
                %v334 = vld [vmem:[%s194 + $0x448] sm:$0xff]
                %335 = vst [vmem:[%s195 + $0x228] sm:$0xff] %v334
                %v336 = vld [vmem:[%s194 + $0x460] sm:$0xff]
                %337 = vst [vmem:[%s195 + $0x230] sm:$0xff] %v336
                %v338 = vld [vmem:[%s194 + $0x468] sm:$0xff]
                %339 = vst [vmem:[%s195 + $0x238] sm:$0xff] %v338
                %v340 = vld [vmem:[%s194 + $0x480] sm:$0xff]
                %341 = vst [vmem:[%s195 + $0x240] sm:$0xff] %v340
                %v342 = vld [vmem:[%s194 + $0x488] sm:$0xff]
                %343 = vst [vmem:[%s195 + $0x248] sm:$0xff] %v342
                %v344 = vld [vmem:[%s194 + $0x4a0] sm:$0xff]
                %345 = vst [vmem:[%s195 + $0x250] sm:$0xff] %v344
                %v346 = vld [vmem:[%s194 + $0x4a8] sm:$0xff]
                %347 = vst [vmem:[%s195 + $0x258] sm:$0xff] %v346
                %v348 = vld [vmem:[%s194 + $0x4c0] sm:$0xff]
                %349 = vst [vmem:[%s195 + $0x260] sm:$0xff] %v348
                %v350 = vld [vmem:[%s194 + $0x4c8] sm:$0xff]
                %351 = vst [vmem:[%s195 + $0x268] sm:$0xff] %v350
                %v352 = vld [vmem:[%s194 + $0x4e0] sm:$0xff]
                %353 = vst [vmem:[%s195 + $0x270] sm:$0xff] %v352
                %v354 = vld [vmem:[%s194 + $0x4e8] sm:$0xff]
                %355 = vst [vmem:[%s195 + $0x278] sm:$0xff] %v354
                %v356 = vld [vmem:[%s194 + $0x500] sm:$0xff]
                %357 = vst [vmem:[%s195 + $0x280] sm:$0xff] %v356
                %v358 = vld [vmem:[%s194 + $0x508] sm:$0xff]
                %359 = vst [vmem:[%s195 + $0x288] sm:$0xff] %v358
                %v360 = vld [vmem:[%s194 + $0x520] sm:$0xff]
                %361 = vst [vmem:[%s195 + $0x290] sm:$0xff] %v360
                %v362 = vld [vmem:[%s194 + $0x528] sm:$0xff]
                %363 = vst [vmem:[%s195 + $0x298] sm:$0xff] %v362
                %v364 = vld [vmem:[%s194 + $0x540] sm:$0xff]
                %365 = vst [vmem:[%s195 + $0x2a0] sm:$0xff] %v364
                %v366 = vld [vmem:[%s194 + $0x548] sm:$0xff]
                %367 = vst [vmem:[%s195 + $0x2a8] sm:$0xff] %v366
                %v368 = vld [vmem:[%s194 + $0x560] sm:$0xff]
                %369 = vst [vmem:[%s195 + $0x2b0] sm:$0xff] %v368
                %v370 = vld [vmem:[%s194 + $0x568] sm:$0xff]
                %371 = vst [vmem:[%s195 + $0x2b8] sm:$0xff] %v370
                %v372 = vld [vmem:[%s194 + $0x580] sm:$0xff]
                %373 = vst [vmem:[%s195 + $0x2c0] sm:$0xff] %v372
                %v374 = vld [vmem:[%s194 + $0x588] sm:$0xff]
                %375 = vst [vmem:[%s195 + $0x2c8] sm:$0xff] %v374
                %v376 = vld [vmem:[%s194 + $0x5a0] sm:$0xff]
                %377 = vst [vmem:[%s195 + $0x2d0] sm:$0xff] %v376
                %v378 = vld [vmem:[%s194 + $0x5a8] sm:$0xff]
                %379 = vst [vmem:[%s195 + $0x2d8] sm:$0xff] %v378
                %v380 = vld [vmem:[%s194 + $0x5c0] sm:$0xff]
                %381 = vst [vmem:[%s195 + $0x2e0] sm:$0xff] %v380
                %v382 = vld [vmem:[%s194 + $0x5c8] sm:$0xff]
                %383 = vst [vmem:[%s195 + $0x2e8] sm:$0xff] %v382
                %v384 = vld [vmem:[%s194 + $0x5e0] sm:$0xff]
                %385 = vst [vmem:[%s195 + $0x2f0] sm:$0xff] %v384
                %v386 = vld [vmem:[%s194 + $0x5e8] sm:$0xff]
                %387 = vst [vmem:[%s195 + $0x2f8] sm:$0xff] %v386
                %v388 = vld [vmem:[%s194 + $0x600] sm:$0xff]
                %389 = vst [vmem:[%s195 + $0x300] sm:$0xff] %v388
                %v390 = vld [vmem:[%s194 + $0x608] sm:$0xff]
                %391 = vst [vmem:[%s195 + $0x308] sm:$0xff] %v390
                %v392 = vld [vmem:[%s194 + $0x620] sm:$0xff]
                %393 = vst [vmem:[%s195 + $0x310] sm:$0xff] %v392
                %v394 = vld [vmem:[%s194 + $0x628] sm:$0xff]
                %395 = vst [vmem:[%s195 + $0x318] sm:$0xff] %v394
                %v396 = vld [vmem:[%s194 + $0x640] sm:$0xff]
                %397 = vst [vmem:[%s195 + $0x320] sm:$0xff] %v396
                %v398 = vld [vmem:[%s194 + $0x648] sm:$0xff]
                %399 = vst [vmem:[%s195 + $0x328] sm:$0xff] %v398
                %v400 = vld [vmem:[%s194 + $0x660] sm:$0xff]
                %401 = vst [vmem:[%s195 + $0x330] sm:$0xff] %v400
                %v402 = vld [vmem:[%s194 + $0x668] sm:$0xff]
                %403 = vst [vmem:[%s195 + $0x338] sm:$0xff] %v402
                %v404 = vld [vmem:[%s194 + $0x680] sm:$0xff]
                %405 = vst [vmem:[%s195 + $0x340] sm:$0xff] %v404
                %v406 = vld [vmem:[%s194 + $0x688] sm:$0xff]
                %407 = vst [vmem:[%s195 + $0x348] sm:$0xff] %v406
                %v408 = vld [vmem:[%s194 + $0x6a0] sm:$0xff]
                %409 = vst [vmem:[%s195 + $0x350] sm:$0xff] %v408
                %v410 = vld [vmem:[%s194 + $0x6a8] sm:$0xff]
                %411 = vst [vmem:[%s195 + $0x358] sm:$0xff] %v410
                %v412 = vld [vmem:[%s194 + $0x6c0] sm:$0xff]
                %413 = vst [vmem:[%s195 + $0x360] sm:$0xff] %v412
                %v414 = vld [vmem:[%s194 + $0x6c8] sm:$0xff]
                %415 = vst [vmem:[%s195 + $0x368] sm:$0xff] %v414
                %v416 = vld [vmem:[%s194 + $0x6e0] sm:$0xff]
                %417 = vst [vmem:[%s195 + $0x370] sm:$0xff] %v416
                %v418 = vld [vmem:[%s194 + $0x6e8] sm:$0xff]
                %419 = vst [vmem:[%s195 + $0x378] sm:$0xff] %v418
                %v420 = vld [vmem:[%s194 + $0x700] sm:$0xff]
                %421 = vst [vmem:[%s195 + $0x380] sm:$0xff] %v420
                %v422 = vld [vmem:[%s194 + $0x708] sm:$0xff]
                %423 = vst [vmem:[%s195 + $0x388] sm:$0xff] %v422
                %v424 = vld [vmem:[%s194 + $0x720] sm:$0xff]
                %425 = vst [vmem:[%s195 + $0x390] sm:$0xff] %v424
                %v426 = vld [vmem:[%s194 + $0x728] sm:$0xff]
                %427 = vst [vmem:[%s195 + $0x398] sm:$0xff] %v426
                %v428 = vld [vmem:[%s194 + $0x740] sm:$0xff]
                %429 = vst [vmem:[%s195 + $0x3a0] sm:$0xff] %v428
                %v430 = vld [vmem:[%s194 + $0x748] sm:$0xff]
                %431 = vst [vmem:[%s195 + $0x3a8] sm:$0xff] %v430
                %v432 = vld [vmem:[%s194 + $0x760] sm:$0xff]
                %433 = vst [vmem:[%s195 + $0x3b0] sm:$0xff] %v432
                %v434 = vld [vmem:[%s194 + $0x768] sm:$0xff]
                %435 = vst [vmem:[%s195 + $0x3b8] sm:$0xff] %v434
                %v436 = vld [vmem:[%s194 + $0x780] sm:$0xff]
                %437 = vst [vmem:[%s195 + $0x3c0] sm:$0xff] %v436
                %v438 = vld [vmem:[%s194 + $0x788] sm:$0xff]
                %439 = vst [vmem:[%s195 + $0x3c8] sm:$0xff] %v438
                %v440 = vld [vmem:[%s194 + $0x7a0] sm:$0xff]
                %441 = vst [vmem:[%s195 + $0x3d0] sm:$0xff] %v440
                %v442 = vld [vmem:[%s194 + $0x7a8] sm:$0xff]
                %443 = vst [vmem:[%s195 + $0x3d8] sm:$0xff] %v442
                %v444 = vld [vmem:[%s194 + $0x7c0] sm:$0xff]
                %445 = vst [vmem:[%s195 + $0x3e0] sm:$0xff] %v444
                %v446 = vld [vmem:[%s194 + $0x7c8] sm:$0xff]
                %447 = vst [vmem:[%s195 + $0x3e8] sm:$0xff] %v446
                %v448 = vld [vmem:[%s194 + $0x7e0] sm:$0xff]
                %449 = vst [vmem:[%s195 + $0x3f0] sm:$0xff] %v448
                %v450 = vld [vmem:[%s194 + $0x7e8] sm:$0xff]
                %451 = vst [vmem:[%s195 + $0x3f8] sm:$0xff] %v450
              $region37: #{tdrumor_forward.5} parent=31 // loop_footer
                %s193 = sadd.s32 1, %s189
              $region38: #{tdrumor_forward.5} parent=31 // loop_footer_branch
                %188 = sbr.rel target = $region34
              $region39: #{tdrumor_forward.5} parent=31 // loop_exit
                _
            $region32: #{tdrumor_forward.5} parent=27 // pred_fallthru
              _
            // Predicated region
            $region40: #{tdrumor_forward.5} parent=27 // pred_check
              _
            $region41: #{tdrumor_forward.5} parent=27 // pred_check_branch
              %453 = sbr.rel target = $region43
            $region42: #{tdrumor_forward.5} parent=27 // pred_region
              _
            $region43: #{tdrumor_forward.5} parent=27 // pred_fallthru
              _
          $region28: #{tdrumor_forward.5} parent=23 // pred_fallthru
            _
          %454 = vnop
        $region24: #{tdrumor_forward.5} parent=19 // pred_fallthru
          _
        // Predicated region
        $region44: #{tdrumor_forward.5} parent=19 // pred_check
          %p455 = pneg %p70
        $region45: #{tdrumor_forward.5} parent=19 // pred_check_branch
          %457 = sbr.rel (%p455) target = $region47
        $region46: #{tdrumor_forward.5} parent=19 // pred_region
          %s458 = smul.u32 64, %s18
          %p459 = scmp.lt.s32.totalorder %s458, 127
          %s460 = scalar_select %p459, %s458, 127
          %s461 = smul.addr %s460, 4
          %s462 = scalar_lea.vmem %s1, %s461
          %s463 = smul.u32 64, %s18
        $region47: #{tdrumor_forward.5} parent=19 // pred_fallthru
          _
        // Predicated region
        $region48: #{tdrumor_forward.5} parent=19 // pred_check
          %p464 = pneg %p117
        $region49: #{tdrumor_forward.5} parent=19 // pred_check_branch
          %466 = sbr.rel (%p464) target = $region51
        $region50: #{tdrumor_forward.5} parent=19 // pred_region
          %s467 = smul.u32 4, %s17
          %p468 = scmp.lt.s32.totalorder %s467, 7
          %s469 = scalar_select %p468, %s467, 7
          %s470 = smul.addr %s469, 2
          %s471 = scalar_lea.vmem %s3, %s470
          %s472 = smul.u32 4, %s17
        $region51: #{tdrumor_forward.5} parent=19 // pred_fallthru
          _
      $region20: #{tdrumor_forward.5} parent=5 // pred_fallthru
        _
      %p473 = scmp.le.s32.totalorder 1, %s10
      %p474 = scmp.lt.s32.totalorder %s10, 5
      %p475 = pnand %p473, %p474
      %p476 = pneg %p475
      // Predicated region
      $region52: #{tdrumor_forward.5} parent=5 // pred_check
        _
      $region53: #{tdrumor_forward.5} parent=5 // pred_check_branch
        %478 = sbr.rel (%p475) target = $region55
      $region54: #{tdrumor_forward.5} parent=5 // pred_region
        %s479 = ssub.s32 %s10, 1
        %s480 = sand.u32 %s37, 1
        %s481 = sand.u32 %s37, 1
        %s482 = smul.addr %s481, 1024
        %s483 = scalar_lea.vmem [#allocation3], %s482
        // Predicated region
        $region56: #{tdrumor_forward.5} parent=54 // pred_check
          %p484 = pneg %p50
        $region57: #{tdrumor_forward.5} parent=54 // pred_check_branch
          %486 = sbr.rel (%p484) target = $region59
        $region58: #{tdrumor_forward.5} parent=54 // pred_region
          _
        $region59: #{tdrumor_forward.5} parent=54 // pred_fallthru
          _
        %s487 = sand.u32 %s37, 1
        %s488 = sand.u32 %s37, 1
        %s489 = smul.addr %s488, 1024
        %s490 = scalar_lea.vmem [#allocation3], %s489
        %p491 = pneg %p50
        %p492 = pneg %p47
        %s493 = smul.u32 64, %s20
        %p494 = scmp.lt.s32.totalorder %s493, 127
        %s495 = scalar_select %p494, %s493, 127
        %s496 = smul.addr %s495, 4
        %s497 = scalar_lea.vmem %s1, %s496
        %p498 = pneg %p76
        %p499 = pneg %p73
        %p500 = pneg %p97
        %p501 = pneg %p94
        %s502 = smul.u32 4, %s19
        %p503 = scmp.lt.s32.totalorder %s502, 7
        %s504 = scalar_select %p503, %s502, 7
        %s505 = smul.addr %s504, 2
        %s506 = scalar_lea.vmem %s3, %s505
        %p507 = pneg %p123
        %p508 = pneg %p120
        %p509 = pneg %p149
        %p510 = pneg %p146
        %p511 = scmp.lt.s32.totalorder %s19, 1
        %s512 = scalar_select %p511, %s19, 1
        %s513 = smul.addr %s512, 2
        %s514 = scalar_lea.vmem %s4, %s513
        %s515 = smul.u32 64, %s19
        %s516 = smul.u32 4, %s20
        %s517 = smul.u32 64, %s20
        %p518 = scmp.lt.s32.totalorder %s517, 127
        %s519 = scalar_select %p518, %s517, 127
        %s520 = smul.addr %s519, 4
        %s521 = scalar_lea.vmem %s1, %s520
        %s522 = smul.u32 64, %s20
        %s523 = smul.u32 4, %s19
        %p524 = scmp.lt.s32.totalorder %s523, 7
        %s525 = scalar_select %p524, %s523, 7
        %s526 = smul.addr %s525, 2
        %s527 = scalar_lea.vmem %s3, %s526
        %s528 = smul.u32 4, %s19
        %p529 = scmp.lt.s32.totalorder %s19, 1
        %s530 = scalar_select %p529, %s19, 1
        %s531 = smul.addr %s530, 2
        %s532 = scalar_lea.vmem %s4, %s531
        %p534 = scmp.eq.s32.totalorder %s20, 0
        // Predicated region
        $region60: #{tdrumor_forward.5} parent=54 // pred_check
          %p535 = pneg %p534
        $region61: #{tdrumor_forward.5} parent=54 // pred_check_branch
          %537 = sbr.rel (%p535) target = $region63
        $region62: #{tdrumor_forward.5} parent=54 // pred_region
          %vm538 = vcmask 64512
          %539 = vst.msk [vmem:[#allocation2] sm:$0xff] %vm538, 0.0
          %540 = vst.msk [vmem:[#allocation2 + $0x8] sm:$0xff] %vm538, 0.0
          %541 = vst.msk [vmem:[#allocation2 + $0x10] sm:$0xff] %vm538, 0.0
          %542 = vst.msk [vmem:[#allocation2 + $0x18] sm:$0xff] %vm538, 0.0
          %543 = vst.msk [vmem:[#allocation2 + $0x20] sm:$0xff] %vm538, 0.0
          %544 = vst.msk [vmem:[#allocation2 + $0x28] sm:$0xff] %vm538, 0.0
          %545 = vst.msk [vmem:[#allocation2 + $0x30] sm:$0xff] %vm538, 0.0
          %546 = vst.msk [vmem:[#allocation2 + $0x38] sm:$0xff] %vm538, 0.0
          %547 = vst.msk [vmem:[#allocation2 + $0x40] sm:$0xff] %vm538, 0.0
          %548 = vst.msk [vmem:[#allocation2 + $0x48] sm:$0xff] %vm538, 0.0
          %549 = vst.msk [vmem:[#allocation2 + $0x50] sm:$0xff] %vm538, 0.0
          %550 = vst.msk [vmem:[#allocation2 + $0x58] sm:$0xff] %vm538, 0.0
          %551 = vst.msk [vmem:[#allocation2 + $0x60] sm:$0xff] %vm538, 0.0
          %552 = vst.msk [vmem:[#allocation2 + $0x68] sm:$0xff] %vm538, 0.0
          %553 = vst.msk [vmem:[#allocation2 + $0x70] sm:$0xff] %vm538, 0.0
          %554 = vst.msk [vmem:[#allocation2 + $0x78] sm:$0xff] %vm538, 0.0
          %555 = vst.msk [vmem:[#allocation2 + $0x80] sm:$0xff] %vm538, 0.0
          %556 = vst.msk [vmem:[#allocation2 + $0x88] sm:$0xff] %vm538, 0.0
          %557 = vst.msk [vmem:[#allocation2 + $0x90] sm:$0xff] %vm538, 0.0
          %558 = vst.msk [vmem:[#allocation2 + $0x98] sm:$0xff] %vm538, 0.0
          %559 = vst.msk [vmem:[#allocation2 + $0xa0] sm:$0xff] %vm538, 0.0
          %560 = vst.msk [vmem:[#allocation2 + $0xa8] sm:$0xff] %vm538, 0.0
          %561 = vst.msk [vmem:[#allocation2 + $0xb0] sm:$0xff] %vm538, 0.0
          %562 = vst.msk [vmem:[#allocation2 + $0xb8] sm:$0xff] %vm538, 0.0
          %563 = vst.msk [vmem:[#allocation2 + $0xc0] sm:$0xff] %vm538, 0.0
          %564 = vst.msk [vmem:[#allocation2 + $0xc8] sm:$0xff] %vm538, 0.0
          %565 = vst.msk [vmem:[#allocation2 + $0xd0] sm:$0xff] %vm538, 0.0
          %566 = vst.msk [vmem:[#allocation2 + $0xd8] sm:$0xff] %vm538, 0.0
          %567 = vst.msk [vmem:[#allocation2 + $0xe0] sm:$0xff] %vm538, 0.0
          %568 = vst.msk [vmem:[#allocation2 + $0xe8] sm:$0xff] %vm538, 0.0
          %569 = vst.msk [vmem:[#allocation2 + $0xf0] sm:$0xff] %vm538, 0.0
          %570 = vst.msk [vmem:[#allocation2 + $0xf8] sm:$0xff] %vm538, 0.0
          %571 = vst.msk [vmem:[#allocation2 + $0x100] sm:$0xff] %vm538, 0.0
          %572 = vst.msk [vmem:[#allocation2 + $0x108] sm:$0xff] %vm538, 0.0
          %573 = vst.msk [vmem:[#allocation2 + $0x110] sm:$0xff] %vm538, 0.0
          %574 = vst.msk [vmem:[#allocation2 + $0x118] sm:$0xff] %vm538, 0.0
          %575 = vst.msk [vmem:[#allocation2 + $0x120] sm:$0xff] %vm538, 0.0
          %576 = vst.msk [vmem:[#allocation2 + $0x128] sm:$0xff] %vm538, 0.0
          %577 = vst.msk [vmem:[#allocation2 + $0x130] sm:$0xff] %vm538, 0.0
          %578 = vst.msk [vmem:[#allocation2 + $0x138] sm:$0xff] %vm538, 0.0
          %579 = vst.msk [vmem:[#allocation2 + $0x140] sm:$0xff] %vm538, 0.0
          %580 = vst.msk [vmem:[#allocation2 + $0x148] sm:$0xff] %vm538, 0.0
          %581 = vst.msk [vmem:[#allocation2 + $0x150] sm:$0xff] %vm538, 0.0
          %582 = vst.msk [vmem:[#allocation2 + $0x158] sm:$0xff] %vm538, 0.0
          %583 = vst.msk [vmem:[#allocation2 + $0x160] sm:$0xff] %vm538, 0.0
          %584 = vst.msk [vmem:[#allocation2 + $0x168] sm:$0xff] %vm538, 0.0
          %585 = vst.msk [vmem:[#allocation2 + $0x170] sm:$0xff] %vm538, 0.0
          %586 = vst.msk [vmem:[#allocation2 + $0x178] sm:$0xff] %vm538, 0.0
          %587 = vst.msk [vmem:[#allocation2 + $0x180] sm:$0xff] %vm538, 0.0
          %588 = vst.msk [vmem:[#allocation2 + $0x188] sm:$0xff] %vm538, 0.0
          %589 = vst.msk [vmem:[#allocation2 + $0x190] sm:$0xff] %vm538, 0.0
          %590 = vst.msk [vmem:[#allocation2 + $0x198] sm:$0xff] %vm538, 0.0
          %591 = vst.msk [vmem:[#allocation2 + $0x1a0] sm:$0xff] %vm538, 0.0
          %592 = vst.msk [vmem:[#allocation2 + $0x1a8] sm:$0xff] %vm538, 0.0
          %593 = vst.msk [vmem:[#allocation2 + $0x1b0] sm:$0xff] %vm538, 0.0
          %594 = vst.msk [vmem:[#allocation2 + $0x1b8] sm:$0xff] %vm538, 0.0
          %595 = vst.msk [vmem:[#allocation2 + $0x1c0] sm:$0xff] %vm538, 0.0
          %596 = vst.msk [vmem:[#allocation2 + $0x1c8] sm:$0xff] %vm538, 0.0
          %597 = vst.msk [vmem:[#allocation2 + $0x1d0] sm:$0xff] %vm538, 0.0
          %598 = vst.msk [vmem:[#allocation2 + $0x1d8] sm:$0xff] %vm538, 0.0
          %599 = vst.msk [vmem:[#allocation2 + $0x1e0] sm:$0xff] %vm538, 0.0
          %600 = vst.msk [vmem:[#allocation2 + $0x1e8] sm:$0xff] %vm538, 0.0
          %601 = vst.msk [vmem:[#allocation2 + $0x1f0] sm:$0xff] %vm538, 0.0
          %602 = vst.msk [vmem:[#allocation2 + $0x1f8] sm:$0xff] %vm538, 0.0
        $region63: #{tdrumor_forward.5} parent=54 // pred_fallthru
          _
        %v603 = vld [vmem:[#allocation2] sm:$0xff]
        %v604 = vld [vmem:[#allocation2 + $0x8] sm:$0xff]
        %v605 = vld [vmem:[#allocation2 + $0x10] sm:$0xff]
        %v606 = vld [vmem:[#allocation2 + $0x18] sm:$0xff]
        %v607 = vld [vmem:[#allocation2 + $0x20] sm:$0xff]
        %v608 = vld [vmem:[#allocation2 + $0x28] sm:$0xff]
        %v609 = vld [vmem:[#allocation2 + $0x30] sm:$0xff]
        %v610 = vld [vmem:[#allocation2 + $0x38] sm:$0xff]
        %v611 = vld [vmem:[#allocation2 + $0x40] sm:$0xff]
        %v612 = vld [vmem:[#allocation2 + $0x48] sm:$0xff]
        %v613 = vld [vmem:[#allocation2 + $0x50] sm:$0xff]
        %v614 = vld [vmem:[#allocation2 + $0x58] sm:$0xff]
        %v615 = vld [vmem:[#allocation2 + $0x60] sm:$0xff]
        %v616 = vld [vmem:[#allocation2 + $0x68] sm:$0xff]
        %v617 = vld [vmem:[#allocation2 + $0x70] sm:$0xff]
        %v618 = vld [vmem:[#allocation2 + $0x78] sm:$0xff]
        %v619 = vld [vmem:[#allocation2 + $0x80] sm:$0xff]
        %v620 = vld [vmem:[#allocation2 + $0x88] sm:$0xff]
        %v621 = vld [vmem:[#allocation2 + $0x90] sm:$0xff]
        %v622 = vld [vmem:[#allocation2 + $0x98] sm:$0xff]
        %v623 = vld [vmem:[#allocation2 + $0xa0] sm:$0xff]
        %v624 = vld [vmem:[#allocation2 + $0xa8] sm:$0xff]
        %v625 = vld [vmem:[#allocation2 + $0xb0] sm:$0xff]
        %v626 = vld [vmem:[#allocation2 + $0xb8] sm:$0xff]
        %v627 = vld [vmem:[#allocation2 + $0xc0] sm:$0xff]
        %v628 = vld [vmem:[#allocation2 + $0xc8] sm:$0xff]
        %v629 = vld [vmem:[#allocation2 + $0xd0] sm:$0xff]
        %v630 = vld [vmem:[#allocation2 + $0xd8] sm:$0xff]
        %v631 = vld [vmem:[#allocation2 + $0xe0] sm:$0xff]
        %v632 = vld [vmem:[#allocation2 + $0xe8] sm:$0xff]
        %v633 = vld [vmem:[#allocation2 + $0xf0] sm:$0xff]
        %v634 = vld [vmem:[#allocation2 + $0xf8] sm:$0xff]
        %v635 = vld [vmem:[#allocation2 + $0x100] sm:$0xff]
        %v636 = vld [vmem:[#allocation2 + $0x108] sm:$0xff]
        %v637 = vld [vmem:[#allocation2 + $0x110] sm:$0xff]
        %v638 = vld [vmem:[#allocation2 + $0x118] sm:$0xff]
        %v639 = vld [vmem:[#allocation2 + $0x120] sm:$0xff]
        %v640 = vld [vmem:[#allocation2 + $0x128] sm:$0xff]
        %v641 = vld [vmem:[#allocation2 + $0x130] sm:$0xff]
        %v642 = vld [vmem:[#allocation2 + $0x138] sm:$0xff]
        %v643 = vld [vmem:[#allocation2 + $0x140] sm:$0xff]
        %v644 = vld [vmem:[#allocation2 + $0x148] sm:$0xff]
        %v645 = vld [vmem:[#allocation2 + $0x150] sm:$0xff]
        %v646 = vld [vmem:[#allocation2 + $0x158] sm:$0xff]
        %v647 = vld [vmem:[#allocation2 + $0x160] sm:$0xff]
        %v648 = vld [vmem:[#allocation2 + $0x168] sm:$0xff]
        %v649 = vld [vmem:[#allocation2 + $0x170] sm:$0xff]
        %v650 = vld [vmem:[#allocation2 + $0x178] sm:$0xff]
        %v651 = vld [vmem:[#allocation2 + $0x180] sm:$0xff]
        %v652 = vld [vmem:[#allocation2 + $0x188] sm:$0xff]
        %v653 = vld [vmem:[#allocation2 + $0x190] sm:$0xff]
        %v654 = vld [vmem:[#allocation2 + $0x198] sm:$0xff]
        %v655 = vld [vmem:[#allocation2 + $0x1a0] sm:$0xff]
        %v656 = vld [vmem:[#allocation2 + $0x1a8] sm:$0xff]
        %v657 = vld [vmem:[#allocation2 + $0x1b0] sm:$0xff]
        %v658 = vld [vmem:[#allocation2 + $0x1b8] sm:$0xff]
        %v659 = vld [vmem:[#allocation2 + $0x1c0] sm:$0xff]
        %v660 = vld [vmem:[#allocation2 + $0x1c8] sm:$0xff]
        %v661 = vld [vmem:[#allocation2 + $0x1d0] sm:$0xff]
        %v662 = vld [vmem:[#allocation2 + $0x1d8] sm:$0xff]
        %v663 = vld [vmem:[#allocation2 + $0x1e0] sm:$0xff]
        %v664 = vld [vmem:[#allocation2 + $0x1e8] sm:$0xff]
        %v665 = vld [vmem:[#allocation2 + $0x1f0] sm:$0xff]
        %v666 = vld [vmem:[#allocation2 + $0x1f8] sm:$0xff]
        %v667 = vld [vmem:[%s483] sm:$0xff]
        %v668 = vld [vmem:[%s483 + $0x8] sm:$0xff]
        %v669 = vld [vmem:[%s483 + $0x10] sm:$0xff]
        %v670 = vld [vmem:[%s483 + $0x18] sm:$0xff]
        %v671 = vld [vmem:[%s483 + $0x20] sm:$0xff]
        %v672 = vld [vmem:[%s483 + $0x28] sm:$0xff]
        %v673 = vld [vmem:[%s483 + $0x30] sm:$0xff]
        %v674 = vld [vmem:[%s483 + $0x38] sm:$0xff]
        %v675 = vld [vmem:[%s483 + $0x40] sm:$0xff]
        %v676 = vld [vmem:[%s483 + $0x48] sm:$0xff]
        %v677 = vld [vmem:[%s483 + $0x50] sm:$0xff]
        %v678 = vld [vmem:[%s483 + $0x58] sm:$0xff]
        %v679 = vld [vmem:[%s483 + $0x60] sm:$0xff]
        %v680 = vld [vmem:[%s483 + $0x68] sm:$0xff]
        %v681 = vld [vmem:[%s483 + $0x70] sm:$0xff]
        %v682 = vld [vmem:[%s483 + $0x78] sm:$0xff]
        %v683 = vld [vmem:[%s483 + $0x80] sm:$0xff]
        %v684 = vld [vmem:[%s483 + $0x88] sm:$0xff]
        %v685 = vld [vmem:[%s483 + $0x90] sm:$0xff]
        %v686 = vld [vmem:[%s483 + $0x98] sm:$0xff]
        %v687 = vld [vmem:[%s483 + $0xa0] sm:$0xff]
        %v688 = vld [vmem:[%s483 + $0xa8] sm:$0xff]
        %v689 = vld [vmem:[%s483 + $0xb0] sm:$0xff]
        %v690 = vld [vmem:[%s483 + $0xb8] sm:$0xff]
        %v691 = vld [vmem:[%s483 + $0xc0] sm:$0xff]
        %v692 = vld [vmem:[%s483 + $0xc8] sm:$0xff]
        %v693 = vld [vmem:[%s483 + $0xd0] sm:$0xff]
        %v694 = vld [vmem:[%s483 + $0xd8] sm:$0xff]
        %v695 = vld [vmem:[%s483 + $0xe0] sm:$0xff]
        %v696 = vld [vmem:[%s483 + $0xe8] sm:$0xff]
        %v697 = vld [vmem:[%s483 + $0xf0] sm:$0xff]
        %v698 = vld [vmem:[%s483 + $0xf8] sm:$0xff]
        %v699 = vld [vmem:[%s483 + $0x100] sm:$0xff]
        %v700 = vld [vmem:[%s483 + $0x108] sm:$0xff]
        %v701 = vld [vmem:[%s483 + $0x110] sm:$0xff]
        %v702 = vld [vmem:[%s483 + $0x118] sm:$0xff]
        %v703 = vld [vmem:[%s483 + $0x120] sm:$0xff]
        %v704 = vld [vmem:[%s483 + $0x128] sm:$0xff]
        %v705 = vld [vmem:[%s483 + $0x130] sm:$0xff]
        %v706 = vld [vmem:[%s483 + $0x138] sm:$0xff]
        %v707 = vld [vmem:[%s483 + $0x140] sm:$0xff]
        %v708 = vld [vmem:[%s483 + $0x148] sm:$0xff]
        %v709 = vld [vmem:[%s483 + $0x150] sm:$0xff]
        %v710 = vld [vmem:[%s483 + $0x158] sm:$0xff]
        %v711 = vld [vmem:[%s483 + $0x160] sm:$0xff]
        %v712 = vld [vmem:[%s483 + $0x168] sm:$0xff]
        %v713 = vld [vmem:[%s483 + $0x170] sm:$0xff]
        %v714 = vld [vmem:[%s483 + $0x178] sm:$0xff]
        %v715 = vld [vmem:[%s483 + $0x180] sm:$0xff]
        %v716 = vld [vmem:[%s483 + $0x188] sm:$0xff]
        %v717 = vld [vmem:[%s483 + $0x190] sm:$0xff]
        %v718 = vld [vmem:[%s483 + $0x198] sm:$0xff]
        %v719 = vld [vmem:[%s483 + $0x1a0] sm:$0xff]
        %v720 = vld [vmem:[%s483 + $0x1a8] sm:$0xff]
        %v721 = vld [vmem:[%s483 + $0x1b0] sm:$0xff]
        %v722 = vld [vmem:[%s483 + $0x1b8] sm:$0xff]
        %v723 = vld [vmem:[%s483 + $0x1c0] sm:$0xff]
        %v724 = vld [vmem:[%s483 + $0x1c8] sm:$0xff]
        %v725 = vld [vmem:[%s483 + $0x1d0] sm:$0xff]
        %v726 = vld [vmem:[%s483 + $0x1d8] sm:$0xff]
        %v727 = vld [vmem:[%s483 + $0x1e0] sm:$0xff]
        %v728 = vld [vmem:[%s483 + $0x1e8] sm:$0xff]
        %v729 = vld [vmem:[%s483 + $0x1f0] sm:$0xff]
        %v730 = vld [vmem:[%s483 + $0x1f8] sm:$0xff]
        %v731 = vld [vmem:[%s483 + $0x200] sm:$0xff]
        %v732 = vld [vmem:[%s483 + $0x208] sm:$0xff]
        %v733 = vld [vmem:[%s483 + $0x210] sm:$0xff]
        %v734 = vld [vmem:[%s483 + $0x218] sm:$0xff]
        %v735 = vld [vmem:[%s483 + $0x220] sm:$0xff]
        %v736 = vld [vmem:[%s483 + $0x228] sm:$0xff]
        %v737 = vld [vmem:[%s483 + $0x230] sm:$0xff]
        %v738 = vld [vmem:[%s483 + $0x238] sm:$0xff]
        %v739 = vld [vmem:[%s483 + $0x240] sm:$0xff]
        %v740 = vld [vmem:[%s483 + $0x248] sm:$0xff]
        %v741 = vld [vmem:[%s483 + $0x250] sm:$0xff]
        %v742 = vld [vmem:[%s483 + $0x258] sm:$0xff]
        %v743 = vld [vmem:[%s483 + $0x260] sm:$0xff]
        %v744 = vld [vmem:[%s483 + $0x268] sm:$0xff]
        %v745 = vld [vmem:[%s483 + $0x270] sm:$0xff]
        %v746 = vld [vmem:[%s483 + $0x278] sm:$0xff]
        %v747 = vld [vmem:[%s483 + $0x280] sm:$0xff]
        %v748 = vld [vmem:[%s483 + $0x288] sm:$0xff]
        %v749 = vld [vmem:[%s483 + $0x290] sm:$0xff]
        %v750 = vld [vmem:[%s483 + $0x298] sm:$0xff]
        %v751 = vld [vmem:[%s483 + $0x2a0] sm:$0xff]
        %v752 = vld [vmem:[%s483 + $0x2a8] sm:$0xff]
        %v753 = vld [vmem:[%s483 + $0x2b0] sm:$0xff]
        %v754 = vld [vmem:[%s483 + $0x2b8] sm:$0xff]
        %v755 = vld [vmem:[%s483 + $0x2c0] sm:$0xff]
        %v756 = vld [vmem:[%s483 + $0x2c8] sm:$0xff]
        %v757 = vld [vmem:[%s483 + $0x2d0] sm:$0xff]
        %v758 = vld [vmem:[%s483 + $0x2d8] sm:$0xff]
        %v759 = vld [vmem:[%s483 + $0x2e0] sm:$0xff]
        %v760 = vld [vmem:[%s483 + $0x2e8] sm:$0xff]
        %v761 = vld [vmem:[%s483 + $0x2f0] sm:$0xff]
        %v762 = vld [vmem:[%s483 + $0x2f8] sm:$0xff]
        %v763 = vld [vmem:[%s483 + $0x300] sm:$0xff]
        %v764 = vld [vmem:[%s483 + $0x308] sm:$0xff]
        %v765 = vld [vmem:[%s483 + $0x310] sm:$0xff]
        %v766 = vld [vmem:[%s483 + $0x318] sm:$0xff]
        %v767 = vld [vmem:[%s483 + $0x320] sm:$0xff]
        %v768 = vld [vmem:[%s483 + $0x328] sm:$0xff]
        %v769 = vld [vmem:[%s483 + $0x330] sm:$0xff]
        %v770 = vld [vmem:[%s483 + $0x338] sm:$0xff]
        %v771 = vld [vmem:[%s483 + $0x340] sm:$0xff]
        %v772 = vld [vmem:[%s483 + $0x348] sm:$0xff]
        %v773 = vld [vmem:[%s483 + $0x350] sm:$0xff]
        %v774 = vld [vmem:[%s483 + $0x358] sm:$0xff]
        %v775 = vld [vmem:[%s483 + $0x360] sm:$0xff]
        %v776 = vld [vmem:[%s483 + $0x368] sm:$0xff]
        %v777 = vld [vmem:[%s483 + $0x370] sm:$0xff]
        %v778 = vld [vmem:[%s483 + $0x378] sm:$0xff]
        %v779 = vld [vmem:[%s483 + $0x380] sm:$0xff]
        %v780 = vld [vmem:[%s483 + $0x388] sm:$0xff]
        %v781 = vld [vmem:[%s483 + $0x390] sm:$0xff]
        %v782 = vld [vmem:[%s483 + $0x398] sm:$0xff]
        %v783 = vld [vmem:[%s483 + $0x3a0] sm:$0xff]
        %v784 = vld [vmem:[%s483 + $0x3a8] sm:$0xff]
        %v785 = vld [vmem:[%s483 + $0x3b0] sm:$0xff]
        %v786 = vld [vmem:[%s483 + $0x3b8] sm:$0xff]
        %v787 = vld [vmem:[%s483 + $0x3c0] sm:$0xff]
        %v788 = vld [vmem:[%s483 + $0x3c8] sm:$0xff]
        %v789 = vld [vmem:[%s483 + $0x3d0] sm:$0xff]
        %v790 = vld [vmem:[%s483 + $0x3d8] sm:$0xff]
        %v791 = vld [vmem:[%s483 + $0x3e0] sm:$0xff]
        %v792 = vld [vmem:[%s483 + $0x3e8] sm:$0xff]
        %v793 = vld [vmem:[%s483 + $0x3f0] sm:$0xff]
        %v794 = vld [vmem:[%s483 + $0x3f8] sm:$0xff]
        %v795 = vld [vmem:[%s521] sm:$0xf]
        %v796 = vld [vmem:[%s521 + $0x4] sm:$0xf]
        %v797 = vld [vmem:[%s521 + $0x8] sm:$0xf]
        %v798 = vld [vmem:[%s521 + $0xc] sm:$0xf]
        %v799 = vld [vmem:[%s521 + $0x10] sm:$0xf]
        %v800 = vld [vmem:[%s521 + $0x14] sm:$0xf]
        %v801 = vld [vmem:[%s521 + $0x18] sm:$0xf]
        %v802 = vld [vmem:[%s521 + $0x1c] sm:$0xf]
        %v803 = vld [vmem:[%s521 + $0x20] sm:$0xf]
        %v804 = vld [vmem:[%s521 + $0x24] sm:$0xf]
        %v805 = vld [vmem:[%s521 + $0x28] sm:$0xf]
        %v806 = vld [vmem:[%s521 + $0x2c] sm:$0xf]
        %v807 = vld [vmem:[%s521 + $0x30] sm:$0xf]
        %v808 = vld [vmem:[%s521 + $0x34] sm:$0xf]
        %v809 = vld [vmem:[%s521 + $0x38] sm:$0xf]
        %v810 = vld [vmem:[%s521 + $0x3c] sm:$0xf]
        %v811 = vld [vmem:[%s521 + $0x40] sm:$0xf]
        %v812 = vld [vmem:[%s521 + $0x44] sm:$0xf]
        %v813 = vld [vmem:[%s521 + $0x48] sm:$0xf]
        %v814 = vld [vmem:[%s521 + $0x4c] sm:$0xf]
        %v815 = vld [vmem:[%s521 + $0x50] sm:$0xf]
        %v816 = vld [vmem:[%s521 + $0x54] sm:$0xf]
        %v817 = vld [vmem:[%s521 + $0x58] sm:$0xf]
        %v818 = vld [vmem:[%s521 + $0x5c] sm:$0xf]
        %v819 = vld [vmem:[%s521 + $0x60] sm:$0xf]
        %v820 = vld [vmem:[%s521 + $0x64] sm:$0xf]
        %v821 = vld [vmem:[%s521 + $0x68] sm:$0xf]
        %v822 = vld [vmem:[%s521 + $0x6c] sm:$0xf]
        %v823 = vld [vmem:[%s521 + $0x70] sm:$0xf]
        %v824 = vld [vmem:[%s521 + $0x74] sm:$0xf]
        %v825 = vld [vmem:[%s521 + $0x78] sm:$0xf]
        %v826 = vld [vmem:[%s521 + $0x7c] sm:$0xf]
        %v827 = vld [vmem:[%s521 + $0x80] sm:$0xf]
        %v828 = vld [vmem:[%s521 + $0x84] sm:$0xf]
        %v829 = vld [vmem:[%s521 + $0x88] sm:$0xf]
        %v830 = vld [vmem:[%s521 + $0x8c] sm:$0xf]
        %v831 = vld [vmem:[%s521 + $0x90] sm:$0xf]
        %v832 = vld [vmem:[%s521 + $0x94] sm:$0xf]
        %v833 = vld [vmem:[%s521 + $0x98] sm:$0xf]
        %v834 = vld [vmem:[%s521 + $0x9c] sm:$0xf]
        %v835 = vld [vmem:[%s521 + $0xa0] sm:$0xf]
        %v836 = vld [vmem:[%s521 + $0xa4] sm:$0xf]
        %v837 = vld [vmem:[%s521 + $0xa8] sm:$0xf]
        %v838 = vld [vmem:[%s521 + $0xac] sm:$0xf]
        %v839 = vld [vmem:[%s521 + $0xb0] sm:$0xf]
        %v840 = vld [vmem:[%s521 + $0xb4] sm:$0xf]
        %v841 = vld [vmem:[%s521 + $0xb8] sm:$0xf]
        %v842 = vld [vmem:[%s521 + $0xbc] sm:$0xf]
        %v843 = vld [vmem:[%s521 + $0xc0] sm:$0xf]
        %v844 = vld [vmem:[%s521 + $0xc4] sm:$0xf]
        %v845 = vld [vmem:[%s521 + $0xc8] sm:$0xf]
        %v846 = vld [vmem:[%s521 + $0xcc] sm:$0xf]
        %v847 = vld [vmem:[%s521 + $0xd0] sm:$0xf]
        %v848 = vld [vmem:[%s521 + $0xd4] sm:$0xf]
        %v849 = vld [vmem:[%s521 + $0xd8] sm:$0xf]
        %v850 = vld [vmem:[%s521 + $0xdc] sm:$0xf]
        %v851 = vld [vmem:[%s521 + $0xe0] sm:$0xf]
        %v852 = vld [vmem:[%s521 + $0xe4] sm:$0xf]
        %v853 = vld [vmem:[%s521 + $0xe8] sm:$0xf]
        %v854 = vld [vmem:[%s521 + $0xec] sm:$0xf]
        %v855 = vld [vmem:[%s521 + $0xf0] sm:$0xf]
        %v856 = vld [vmem:[%s521 + $0xf4] sm:$0xf]
        %v857 = vld [vmem:[%s521 + $0xf8] sm:$0xf]
        %v858 = vld [vmem:[%s521 + $0xfc] sm:$0xf]
        %v987 = vunpack.c.l.b16 %v667
        %v988 = vunpack.c.h.b16 %v667
        %v989 = vunpack.c.l.b16 %v668
        %v990 = vunpack.c.h.b16 %v668
        %v991 = vunpack.c.l.b16 %v669
        %v992 = vunpack.c.h.b16 %v669
        %v993 = vunpack.c.l.b16 %v670
        %v994 = vunpack.c.h.b16 %v670
        %v995 = vunpack.c.l.b16 %v671
        %v996 = vunpack.c.h.b16 %v671
        %v997 = vunpack.c.l.b16 %v672
        %v998 = vunpack.c.h.b16 %v672
        %v999 = vunpack.c.l.b16 %v673
        %v1000 = vunpack.c.h.b16 %v673
        %v1001 = vunpack.c.l.b16 %v674
        %v1002 = vunpack.c.h.b16 %v674
        %v1003 = vunpack.c.l.b16 %v675
        %v1004 = vunpack.c.h.b16 %v675
        %v1005 = vunpack.c.l.b16 %v676
        %v1006 = vunpack.c.h.b16 %v676
        %v1007 = vunpack.c.l.b16 %v677
        %v1008 = vunpack.c.h.b16 %v677
        %v1009 = vunpack.c.l.b16 %v678
        %v1010 = vunpack.c.h.b16 %v678
        %v1011 = vunpack.c.l.b16 %v679
        %v1012 = vunpack.c.h.b16 %v679
        %v1013 = vunpack.c.l.b16 %v680
        %v1014 = vunpack.c.h.b16 %v680
        %v1015 = vunpack.c.l.b16 %v681
        %v1016 = vunpack.c.h.b16 %v681
        %v1017 = vunpack.c.l.b16 %v682
        %v1018 = vunpack.c.h.b16 %v682
        %v1019 = vunpack.c.l.b16 %v683
        %v1020 = vunpack.c.h.b16 %v683
        %v1021 = vunpack.c.l.b16 %v684
        %v1022 = vunpack.c.h.b16 %v684
        %v1023 = vunpack.c.l.b16 %v685
        %v1024 = vunpack.c.h.b16 %v685
        %v1025 = vunpack.c.l.b16 %v686
        %v1026 = vunpack.c.h.b16 %v686
        %v1027 = vunpack.c.l.b16 %v687
        %v1028 = vunpack.c.h.b16 %v687
        %v1029 = vunpack.c.l.b16 %v688
        %v1030 = vunpack.c.h.b16 %v688
        %v1031 = vunpack.c.l.b16 %v689
        %v1032 = vunpack.c.h.b16 %v689
        %v1033 = vunpack.c.l.b16 %v690
        %v1034 = vunpack.c.h.b16 %v690
        %v1035 = vunpack.c.l.b16 %v691
        %v1036 = vunpack.c.h.b16 %v691
        %v1037 = vunpack.c.l.b16 %v692
        %v1038 = vunpack.c.h.b16 %v692
        %v1039 = vunpack.c.l.b16 %v693
        %v1040 = vunpack.c.h.b16 %v693
        %v1041 = vunpack.c.l.b16 %v694
        %v1042 = vunpack.c.h.b16 %v694
        %v1043 = vunpack.c.l.b16 %v695
        %v1044 = vunpack.c.h.b16 %v695
        %v1045 = vunpack.c.l.b16 %v696
        %v1046 = vunpack.c.h.b16 %v696
        %v1047 = vunpack.c.l.b16 %v697
        %v1048 = vunpack.c.h.b16 %v697
        %v1049 = vunpack.c.l.b16 %v698
        %v1050 = vunpack.c.h.b16 %v698
        %v1051 = vunpack.c.l.b16 %v699
        %v1052 = vunpack.c.h.b16 %v699
        %v1053 = vunpack.c.l.b16 %v700
        %v1054 = vunpack.c.h.b16 %v700
        %v1055 = vunpack.c.l.b16 %v701
        %v1056 = vunpack.c.h.b16 %v701
        %v1057 = vunpack.c.l.b16 %v702
        %v1058 = vunpack.c.h.b16 %v702
        %v1059 = vunpack.c.l.b16 %v703
        %v1060 = vunpack.c.h.b16 %v703
        %v1061 = vunpack.c.l.b16 %v704
        %v1062 = vunpack.c.h.b16 %v704
        %v1063 = vunpack.c.l.b16 %v705
        %v1064 = vunpack.c.h.b16 %v705
        %v1065 = vunpack.c.l.b16 %v706
        %v1066 = vunpack.c.h.b16 %v706
        %v1067 = vunpack.c.l.b16 %v707
        %v1068 = vunpack.c.h.b16 %v707
        %v1069 = vunpack.c.l.b16 %v708
        %v1070 = vunpack.c.h.b16 %v708
        %v1071 = vunpack.c.l.b16 %v709
        %v1072 = vunpack.c.h.b16 %v709
        %v1073 = vunpack.c.l.b16 %v710
        %v1074 = vunpack.c.h.b16 %v710
        %v1075 = vunpack.c.l.b16 %v711
        %v1076 = vunpack.c.h.b16 %v711
        %v1077 = vunpack.c.l.b16 %v712
        %v1078 = vunpack.c.h.b16 %v712
        %v1079 = vunpack.c.l.b16 %v713
        %v1080 = vunpack.c.h.b16 %v713
        %v1081 = vunpack.c.l.b16 %v714
        %v1082 = vunpack.c.h.b16 %v714
        %v1083 = vunpack.c.l.b16 %v715
        %v1084 = vunpack.c.h.b16 %v715
        %v1085 = vunpack.c.l.b16 %v716
        %v1086 = vunpack.c.h.b16 %v716
        %v1087 = vunpack.c.l.b16 %v717
        %v1088 = vunpack.c.h.b16 %v717
        %v1089 = vunpack.c.l.b16 %v718
        %v1090 = vunpack.c.h.b16 %v718
        %v1091 = vunpack.c.l.b16 %v719
        %v1092 = vunpack.c.h.b16 %v719
        %v1093 = vunpack.c.l.b16 %v720
        %v1094 = vunpack.c.h.b16 %v720
        %v1095 = vunpack.c.l.b16 %v721
        %v1096 = vunpack.c.h.b16 %v721
        %v1097 = vunpack.c.l.b16 %v722
        %v1098 = vunpack.c.h.b16 %v722
        %v1099 = vunpack.c.l.b16 %v723
        %v1100 = vunpack.c.h.b16 %v723
        %v1101 = vunpack.c.l.b16 %v724
        %v1102 = vunpack.c.h.b16 %v724
        %v1103 = vunpack.c.l.b16 %v725
        %v1104 = vunpack.c.h.b16 %v725
        %v1105 = vunpack.c.l.b16 %v726
        %v1106 = vunpack.c.h.b16 %v726
        %v1107 = vunpack.c.l.b16 %v727
        %v1108 = vunpack.c.h.b16 %v727
        %v1109 = vunpack.c.l.b16 %v728
        %v1110 = vunpack.c.h.b16 %v728
        %v1111 = vunpack.c.l.b16 %v729
        %v1112 = vunpack.c.h.b16 %v729
        %v1113 = vunpack.c.l.b16 %v730
        %v1114 = vunpack.c.h.b16 %v730
        %v1115 = vunpack.c.l.b16 %v731
        %v1116 = vunpack.c.h.b16 %v731
        %v1117 = vunpack.c.l.b16 %v732
        %v1118 = vunpack.c.h.b16 %v732
        %v1119 = vunpack.c.l.b16 %v733
        %v1120 = vunpack.c.h.b16 %v733
        %v1121 = vunpack.c.l.b16 %v734
        %v1122 = vunpack.c.h.b16 %v734
        %v1123 = vunpack.c.l.b16 %v735
        %v1124 = vunpack.c.h.b16 %v735
        %v1125 = vunpack.c.l.b16 %v736
        %v1126 = vunpack.c.h.b16 %v736
        %v1127 = vunpack.c.l.b16 %v737
        %v1128 = vunpack.c.h.b16 %v737
        %v1129 = vunpack.c.l.b16 %v738
        %v1130 = vunpack.c.h.b16 %v738
        %v1131 = vunpack.c.l.b16 %v739
        %v1132 = vunpack.c.h.b16 %v739
        %v1133 = vunpack.c.l.b16 %v740
        %v1134 = vunpack.c.h.b16 %v740
        %v1135 = vunpack.c.l.b16 %v741
        %v1136 = vunpack.c.h.b16 %v741
        %v1137 = vunpack.c.l.b16 %v742
        %v1138 = vunpack.c.h.b16 %v742
        %v1139 = vunpack.c.l.b16 %v743
        %v1140 = vunpack.c.h.b16 %v743
        %v1141 = vunpack.c.l.b16 %v744
        %v1142 = vunpack.c.h.b16 %v744
        %v1143 = vunpack.c.l.b16 %v745
        %v1144 = vunpack.c.h.b16 %v745
        %v1145 = vunpack.c.l.b16 %v746
        %v1146 = vunpack.c.h.b16 %v746
        %v1147 = vunpack.c.l.b16 %v747
        %v1148 = vunpack.c.h.b16 %v747
        %v1149 = vunpack.c.l.b16 %v748
        %v1150 = vunpack.c.h.b16 %v748
        %v1151 = vunpack.c.l.b16 %v749
        %v1152 = vunpack.c.h.b16 %v749
        %v1153 = vunpack.c.l.b16 %v750
        %v1154 = vunpack.c.h.b16 %v750
        %v1155 = vunpack.c.l.b16 %v751
        %v1156 = vunpack.c.h.b16 %v751
        %v1157 = vunpack.c.l.b16 %v752
        %v1158 = vunpack.c.h.b16 %v752
        %v1159 = vunpack.c.l.b16 %v753
        %v1160 = vunpack.c.h.b16 %v753
        %v1161 = vunpack.c.l.b16 %v754
        %v1162 = vunpack.c.h.b16 %v754
        %v1163 = vunpack.c.l.b16 %v755
        %v1164 = vunpack.c.h.b16 %v755
        %v1165 = vunpack.c.l.b16 %v756
        %v1166 = vunpack.c.h.b16 %v756
        %v1167 = vunpack.c.l.b16 %v757
        %v1168 = vunpack.c.h.b16 %v757
        %v1169 = vunpack.c.l.b16 %v758
        %v1170 = vunpack.c.h.b16 %v758
        %v1171 = vunpack.c.l.b16 %v759
        %v1172 = vunpack.c.h.b16 %v759
        %v1173 = vunpack.c.l.b16 %v760
        %v1174 = vunpack.c.h.b16 %v760
        %v1175 = vunpack.c.l.b16 %v761
        %v1176 = vunpack.c.h.b16 %v761
        %v1177 = vunpack.c.l.b16 %v762
        %v1178 = vunpack.c.h.b16 %v762
        %v1179 = vunpack.c.l.b16 %v763
        %v1180 = vunpack.c.h.b16 %v763
        %v1181 = vunpack.c.l.b16 %v764
        %v1182 = vunpack.c.h.b16 %v764
        %v1183 = vunpack.c.l.b16 %v765
        %v1184 = vunpack.c.h.b16 %v765
        %v1185 = vunpack.c.l.b16 %v766
        %v1186 = vunpack.c.h.b16 %v766
        %v1187 = vunpack.c.l.b16 %v767
        %v1188 = vunpack.c.h.b16 %v767
        %v1189 = vunpack.c.l.b16 %v768
        %v1190 = vunpack.c.h.b16 %v768
        %v1191 = vunpack.c.l.b16 %v769
        %v1192 = vunpack.c.h.b16 %v769
        %v1193 = vunpack.c.l.b16 %v770
        %v1194 = vunpack.c.h.b16 %v770
        %v1195 = vunpack.c.l.b16 %v771
        %v1196 = vunpack.c.h.b16 %v771
        %v1197 = vunpack.c.l.b16 %v772
        %v1198 = vunpack.c.h.b16 %v772
        %v1199 = vunpack.c.l.b16 %v773
        %v1200 = vunpack.c.h.b16 %v773
        %v1201 = vunpack.c.l.b16 %v774
        %v1202 = vunpack.c.h.b16 %v774
        %v1203 = vunpack.c.l.b16 %v775
        %v1204 = vunpack.c.h.b16 %v775
        %v1205 = vunpack.c.l.b16 %v776
        %v1206 = vunpack.c.h.b16 %v776
        %v1207 = vunpack.c.l.b16 %v777
        %v1208 = vunpack.c.h.b16 %v777
        %v1209 = vunpack.c.l.b16 %v778
        %v1210 = vunpack.c.h.b16 %v778
        %v1211 = vunpack.c.l.b16 %v779
        %v1212 = vunpack.c.h.b16 %v779
        %v1213 = vunpack.c.l.b16 %v780
        %v1214 = vunpack.c.h.b16 %v780
        %v1215 = vunpack.c.l.b16 %v781
        %v1216 = vunpack.c.h.b16 %v781
        %v1217 = vunpack.c.l.b16 %v782
        %v1218 = vunpack.c.h.b16 %v782
        %v1219 = vunpack.c.l.b16 %v783
        %v1220 = vunpack.c.h.b16 %v783
        %v1221 = vunpack.c.l.b16 %v784
        %v1222 = vunpack.c.h.b16 %v784
        %v1223 = vunpack.c.l.b16 %v785
        %v1224 = vunpack.c.h.b16 %v785
        %v1225 = vunpack.c.l.b16 %v786
        %v1226 = vunpack.c.h.b16 %v786
        %v1227 = vunpack.c.l.b16 %v787
        %v1228 = vunpack.c.h.b16 %v787
        %v1229 = vunpack.c.l.b16 %v788
        %v1230 = vunpack.c.h.b16 %v788
        %v1231 = vunpack.c.l.b16 %v789
        %v1232 = vunpack.c.h.b16 %v789
        %v1233 = vunpack.c.l.b16 %v790
        %v1234 = vunpack.c.h.b16 %v790
        %v1235 = vunpack.c.l.b16 %v791
        %v1236 = vunpack.c.h.b16 %v791
        %v1237 = vunpack.c.l.b16 %v792
        %v1238 = vunpack.c.h.b16 %v792
        %v1239 = vunpack.c.l.b16 %v793
        %v1240 = vunpack.c.h.b16 %v793
        %v1241 = vunpack.c.l.b16 %v794
        %v1242 = vunpack.c.h.b16 %v794
        %v1243 = vpack.c.b16 %v991, %v987
        %v1244 = vpack.c.b16 %v992, %v988
        %v1245 = vpack.c.b16 %v993, %v989
        %v1246 = vpack.c.b16 %v994, %v990
        %v1247 = vpack.c.b16 %v999, %v995
        %v1248 = vpack.c.b16 %v1000, %v996
        %v1249 = vpack.c.b16 %v1001, %v997
        %v1250 = vpack.c.b16 %v1002, %v998
        %v1251 = vpack.c.b16 %v1007, %v1003
        %v1252 = vpack.c.b16 %v1008, %v1004
        %v1253 = vpack.c.b16 %v1009, %v1005
        %v1254 = vpack.c.b16 %v1010, %v1006
        %v1255 = vpack.c.b16 %v1015, %v1011
        %v1256 = vpack.c.b16 %v1016, %v1012
        %v1257 = vpack.c.b16 %v1017, %v1013
        %v1258 = vpack.c.b16 %v1018, %v1014
        %v1259 = vpack.c.b16 %v1023, %v1019
        %v1260 = vpack.c.b16 %v1024, %v1020
        %v1261 = vpack.c.b16 %v1025, %v1021
        %v1262 = vpack.c.b16 %v1026, %v1022
        %v1263 = vpack.c.b16 %v1031, %v1027
        %v1264 = vpack.c.b16 %v1032, %v1028
        %v1265 = vpack.c.b16 %v1033, %v1029
        %v1266 = vpack.c.b16 %v1034, %v1030
        %v1267 = vpack.c.b16 %v1039, %v1035
        %v1268 = vpack.c.b16 %v1040, %v1036
        %v1269 = vpack.c.b16 %v1041, %v1037
        %v1270 = vpack.c.b16 %v1042, %v1038
        %v1271 = vpack.c.b16 %v1047, %v1043
        %v1272 = vpack.c.b16 %v1048, %v1044
        %v1273 = vpack.c.b16 %v1049, %v1045
        %v1274 = vpack.c.b16 %v1050, %v1046
        %v1275 = vpack.c.b16 %v1055, %v1051
        %v1276 = vpack.c.b16 %v1056, %v1052
        %v1277 = vpack.c.b16 %v1057, %v1053
        %v1278 = vpack.c.b16 %v1058, %v1054
        %v1279 = vpack.c.b16 %v1063, %v1059
        %v1280 = vpack.c.b16 %v1064, %v1060
        %v1281 = vpack.c.b16 %v1065, %v1061
        %v1282 = vpack.c.b16 %v1066, %v1062
        %v1283 = vpack.c.b16 %v1071, %v1067
        %v1284 = vpack.c.b16 %v1072, %v1068
        %v1285 = vpack.c.b16 %v1073, %v1069
        %v1286 = vpack.c.b16 %v1074, %v1070
        %v1287 = vpack.c.b16 %v1079, %v1075
        %v1288 = vpack.c.b16 %v1080, %v1076
        %v1289 = vpack.c.b16 %v1081, %v1077
        %v1290 = vpack.c.b16 %v1082, %v1078
        %v1291 = vpack.c.b16 %v1087, %v1083
        %v1292 = vpack.c.b16 %v1088, %v1084
        %v1293 = vpack.c.b16 %v1089, %v1085
        %v1294 = vpack.c.b16 %v1090, %v1086
        %v1295 = vpack.c.b16 %v1095, %v1091
        %v1296 = vpack.c.b16 %v1096, %v1092
        %v1297 = vpack.c.b16 %v1097, %v1093
        %v1298 = vpack.c.b16 %v1098, %v1094
        %v1299 = vpack.c.b16 %v1103, %v1099
        %v1300 = vpack.c.b16 %v1104, %v1100
        %v1301 = vpack.c.b16 %v1105, %v1101
        %v1302 = vpack.c.b16 %v1106, %v1102
        %v1303 = vpack.c.b16 %v1111, %v1107
        %v1304 = vpack.c.b16 %v1112, %v1108
        %v1305 = vpack.c.b16 %v1113, %v1109
        %v1306 = vpack.c.b16 %v1114, %v1110
        %v1307 = vpack.c.b16 %v1119, %v1115
        %v1308 = vpack.c.b16 %v1120, %v1116
        %v1309 = vpack.c.b16 %v1121, %v1117
        %v1310 = vpack.c.b16 %v1122, %v1118
        %v1311 = vpack.c.b16 %v1127, %v1123
        %v1312 = vpack.c.b16 %v1128, %v1124
        %v1313 = vpack.c.b16 %v1129, %v1125
        %v1314 = vpack.c.b16 %v1130, %v1126
        %v1315 = vpack.c.b16 %v1135, %v1131
        %v1316 = vpack.c.b16 %v1136, %v1132
        %v1317 = vpack.c.b16 %v1137, %v1133
        %v1318 = vpack.c.b16 %v1138, %v1134
        %v1319 = vpack.c.b16 %v1143, %v1139
        %v1320 = vpack.c.b16 %v1144, %v1140
        %v1321 = vpack.c.b16 %v1145, %v1141
        %v1322 = vpack.c.b16 %v1146, %v1142
        %v1323 = vpack.c.b16 %v1151, %v1147
        %v1324 = vpack.c.b16 %v1152, %v1148
        %v1325 = vpack.c.b16 %v1153, %v1149
        %v1326 = vpack.c.b16 %v1154, %v1150
        %v1327 = vpack.c.b16 %v1159, %v1155
        %v1328 = vpack.c.b16 %v1160, %v1156
        %v1329 = vpack.c.b16 %v1161, %v1157
        %v1330 = vpack.c.b16 %v1162, %v1158
        %v1331 = vpack.c.b16 %v1167, %v1163
        %v1332 = vpack.c.b16 %v1168, %v1164
        %v1333 = vpack.c.b16 %v1169, %v1165
        %v1334 = vpack.c.b16 %v1170, %v1166
        %v1335 = vpack.c.b16 %v1175, %v1171
        %v1336 = vpack.c.b16 %v1176, %v1172
        %v1337 = vpack.c.b16 %v1177, %v1173
        %v1338 = vpack.c.b16 %v1178, %v1174
        %v1339 = vpack.c.b16 %v1183, %v1179
        %v1340 = vpack.c.b16 %v1184, %v1180
        %v1341 = vpack.c.b16 %v1185, %v1181
        %v1342 = vpack.c.b16 %v1186, %v1182
        %v1343 = vpack.c.b16 %v1191, %v1187
        %v1344 = vpack.c.b16 %v1192, %v1188
        %v1345 = vpack.c.b16 %v1193, %v1189
        %v1346 = vpack.c.b16 %v1194, %v1190
        %v1347 = vpack.c.b16 %v1199, %v1195
        %v1348 = vpack.c.b16 %v1200, %v1196
        %v1349 = vpack.c.b16 %v1201, %v1197
        %v1350 = vpack.c.b16 %v1202, %v1198
        %v1351 = vpack.c.b16 %v1207, %v1203
        %v1352 = vpack.c.b16 %v1208, %v1204
        %v1353 = vpack.c.b16 %v1209, %v1205
        %v1354 = vpack.c.b16 %v1210, %v1206
        %v1355 = vpack.c.b16 %v1215, %v1211
        %v1356 = vpack.c.b16 %v1216, %v1212
        %v1357 = vpack.c.b16 %v1217, %v1213
        %v1358 = vpack.c.b16 %v1218, %v1214
        %v1359 = vpack.c.b16 %v1223, %v1219
        %v1360 = vpack.c.b16 %v1224, %v1220
        %v1361 = vpack.c.b16 %v1225, %v1221
        %v1362 = vpack.c.b16 %v1226, %v1222
        %v1363 = vpack.c.b16 %v1231, %v1227
        %v1364 = vpack.c.b16 %v1232, %v1228
        %v1365 = vpack.c.b16 %v1233, %v1229
        %v1366 = vpack.c.b16 %v1234, %v1230
        %v1367 = vpack.c.b16 %v1239, %v1235
        %v1368 = vpack.c.b16 %v1240, %v1236
        %v1369 = vpack.c.b16 %v1241, %v1237
        %v1370 = vpack.c.b16 %v1242, %v1238
        %v1563 = vunpack.c.l.b16 %v795
        %v1564 = vunpack.c.l.b16 %v796
        %v1565 = vunpack.c.l.b16 %v797
        %v1566 = vunpack.c.l.b16 %v798
        %v1567 = vunpack.c.l.b16 %v799
        %v1568 = vunpack.c.l.b16 %v800
        %v1569 = vunpack.c.l.b16 %v801
        %v1570 = vunpack.c.l.b16 %v802
        %v1571 = vunpack.c.l.b16 %v803
        %v1572 = vunpack.c.l.b16 %v804
        %v1573 = vunpack.c.l.b16 %v805
        %v1574 = vunpack.c.l.b16 %v806
        %v1575 = vunpack.c.l.b16 %v807
        %v1576 = vunpack.c.l.b16 %v808
        %v1577 = vunpack.c.l.b16 %v809
        %v1578 = vunpack.c.l.b16 %v810
        %v1579 = vunpack.c.l.b16 %v811
        %v1580 = vunpack.c.l.b16 %v812
        %v1581 = vunpack.c.l.b16 %v813
        %v1582 = vunpack.c.l.b16 %v814
        %v1583 = vunpack.c.l.b16 %v815
        %v1584 = vunpack.c.l.b16 %v816
        %v1585 = vunpack.c.l.b16 %v817
        %v1586 = vunpack.c.l.b16 %v818
        %v1587 = vunpack.c.l.b16 %v819
        %v1588 = vunpack.c.l.b16 %v820
        %v1589 = vunpack.c.l.b16 %v821
        %v1590 = vunpack.c.l.b16 %v822
        %v1591 = vunpack.c.l.b16 %v823
        %v1592 = vunpack.c.l.b16 %v824
        %v1593 = vunpack.c.l.b16 %v825
        %v1594 = vunpack.c.l.b16 %v826
        %v1595 = vunpack.c.l.b16 %v827
        %v1596 = vunpack.c.l.b16 %v828
        %v1597 = vunpack.c.l.b16 %v829
        %v1598 = vunpack.c.l.b16 %v830
        %v1599 = vunpack.c.l.b16 %v831
        %v1600 = vunpack.c.l.b16 %v832
        %v1601 = vunpack.c.l.b16 %v833
        %v1602 = vunpack.c.l.b16 %v834
        %v1603 = vunpack.c.l.b16 %v835
        %v1604 = vunpack.c.l.b16 %v836
        %v1605 = vunpack.c.l.b16 %v837
        %v1606 = vunpack.c.l.b16 %v838
        %v1607 = vunpack.c.l.b16 %v839
        %v1608 = vunpack.c.l.b16 %v840
        %v1609 = vunpack.c.l.b16 %v841
        %v1610 = vunpack.c.l.b16 %v842
        %v1611 = vunpack.c.l.b16 %v843
        %v1612 = vunpack.c.l.b16 %v844
        %v1613 = vunpack.c.l.b16 %v845
        %v1614 = vunpack.c.l.b16 %v846
        %v1615 = vunpack.c.l.b16 %v847
        %v1616 = vunpack.c.l.b16 %v848
        %v1617 = vunpack.c.l.b16 %v849
        %v1618 = vunpack.c.l.b16 %v850
        %v1619 = vunpack.c.l.b16 %v851
        %v1620 = vunpack.c.l.b16 %v852
        %v1621 = vunpack.c.l.b16 %v853
        %v1622 = vunpack.c.l.b16 %v854
        %v1623 = vunpack.c.l.b16 %v855
        %v1624 = vunpack.c.l.b16 %v856
        %v1625 = vunpack.c.l.b16 %v857
        %v1626 = vunpack.c.l.b16 %v858
        %v1627 = vpack.c.b16 %v1564, %v1563
        %v1628 = vpack.c.b16 %v1566, %v1565
        %v1629 = vpack.c.b16 %v1568, %v1567
        %v1630 = vpack.c.b16 %v1570, %v1569
        %v1631 = vpack.c.b16 %v1572, %v1571
        %v1632 = vpack.c.b16 %v1574, %v1573
        %v1633 = vpack.c.b16 %v1576, %v1575
        %v1634 = vpack.c.b16 %v1578, %v1577
        %v1635 = vpack.c.b16 %v1580, %v1579
        %v1636 = vpack.c.b16 %v1582, %v1581
        %v1637 = vpack.c.b16 %v1584, %v1583
        %v1638 = vpack.c.b16 %v1586, %v1585
        %v1639 = vpack.c.b16 %v1588, %v1587
        %v1640 = vpack.c.b16 %v1590, %v1589
        %v1641 = vpack.c.b16 %v1592, %v1591
        %v1642 = vpack.c.b16 %v1594, %v1593
        %v1643 = vpack.c.b16 %v1596, %v1595
        %v1644 = vpack.c.b16 %v1598, %v1597
        %v1645 = vpack.c.b16 %v1600, %v1599
        %v1646 = vpack.c.b16 %v1602, %v1601
        %v1647 = vpack.c.b16 %v1604, %v1603
        %v1648 = vpack.c.b16 %v1606, %v1605
        %v1649 = vpack.c.b16 %v1608, %v1607
        %v1650 = vpack.c.b16 %v1610, %v1609
        %v1651 = vpack.c.b16 %v1612, %v1611
        %v1652 = vpack.c.b16 %v1614, %v1613
        %v1653 = vpack.c.b16 %v1616, %v1615
        %v1654 = vpack.c.b16 %v1618, %v1617
        %v1655 = vpack.c.b16 %v1620, %v1619
        %v1656 = vpack.c.b16 %v1622, %v1621
        %v1657 = vpack.c.b16 %v1624, %v1623
        %v1658 = vpack.c.b16 %v1626, %v1625
        %1691 = vmatprep.subr.bf16.mxu0 0
        %1692 = vmatpush1.bf16.msra.mxu0 %v1634
        %1693 = vmatprep.subr.bf16.mxu0 0
        %1694 = vmatpush1.bf16.msra.mxu0 %v1633
        %1695 = vmatprep.subr.bf16.mxu0 0
        %1696 = vmatpush1.bf16.msra.mxu0 %v1632
        %1697 = vmatprep.subr.bf16.mxu0 0
        %1698 = vmatpush1.bf16.msra.mxu0 %v1631
        %1699 = vmatprep.subr.bf16.mxu0 0
        %1700 = vmatpush1.bf16.msra.mxu0 %v1630
        %1701 = vmatprep.subr.bf16.mxu0 0
        %1702 = vmatpush1.bf16.msra.mxu0 %v1629
        %1703 = vmatprep.subr.bf16.mxu0 0
        %1704 = vmatpush1.bf16.msra.mxu0 %v1628
        %1705 = vmatprep.subr.bf16.mxu0 0
        %1706 = vmatpush1.bf16.msra.mxu0 %v1627
        %1707 = vmatprep.subr.bf16.mxu0 0
        %1708 = vmatpush2.bf16.msra.mxu0 %v1642
        %1709 = vmatprep.subr.bf16.mxu0 0
        %1710 = vmatpush2.bf16.msra.mxu0 %v1641
        %1711 = vmatprep.subr.bf16.mxu0 0
        %1712 = vmatpush2.bf16.msra.mxu0 %v1640
        %1713 = vmatprep.subr.bf16.mxu0 0
        %1714 = vmatpush2.bf16.msra.mxu0 %v1639
        %1715 = vmatprep.subr.bf16.mxu0 0
        %1716 = vmatpush2.bf16.msra.mxu0 %v1638
        %1717 = vmatprep.subr.bf16.mxu0 0
        %1718 = vmatpush2.bf16.msra.mxu0 %v1637
        %1719 = vmatprep.subr.bf16.mxu0 0
        %1720 = vmatpush2.bf16.msra.mxu0 %v1636
        %1721 = vmatprep.subr.bf16.mxu0 0
        %1722 = vmatpush2.bf16.msra.mxu0 %v1635
        %1723 = vmatprep.mubr.bf16.mxu0 %v1244
        %1724 = vmatmul.mubr.bf16.gmra.mxu0 %v1243
        %v1725 = vpop.f32.mrf.mxu0
        %v1726 = vadd.f32 0.0, %v1725
        %v1727 = vpop.f32.mrf.mxu0
        %v1728 = vpop.f32.mrf.mxu0
        %v1729 = vadd.f32 0.0, %v1728
        %v1730 = vpop.f32.mrf.mxu0
        %1731 = vmatprep.mubr.bf16.mxu0 %v1248
        %1732 = vmatmul.mubr.bf16.gmra.mxu0 %v1247
        %v1733 = vpop.f32.mrf.mxu0
        %v1734 = vadd.f32 0.0, %v1733
        %v1735 = vpop.f32.mrf.mxu0
        %v1736 = vpop.f32.mrf.mxu0
        %v1737 = vadd.f32 0.0, %v1736
        %v1738 = vpop.f32.mrf.mxu0
        %1739 = vmatprep.mubr.bf16.mxu0 %v1252
        %1740 = vmatmul.mubr.bf16.gmra.mxu0 %v1251
        %v1741 = vpop.f32.mrf.mxu0
        %v1742 = vadd.f32 0.0, %v1741
        %v1743 = vpop.f32.mrf.mxu0
        %v1744 = vpop.f32.mrf.mxu0
        %v1745 = vadd.f32 0.0, %v1744
        %v1746 = vpop.f32.mrf.mxu0
        %1747 = vmatprep.mubr.bf16.mxu0 %v1256
        %1748 = vmatmul.mubr.bf16.gmra.mxu0 %v1255
        %v1749 = vpop.f32.mrf.mxu0
        %v1750 = vadd.f32 0.0, %v1749
        %v1751 = vpop.f32.mrf.mxu0
        %v1752 = vpop.f32.mrf.mxu0
        %v1753 = vadd.f32 0.0, %v1752
        %v1754 = vpop.f32.mrf.mxu0
        %1755 = vmatprep.mubr.bf16.mxu0 %v1260
        %1756 = vmatmul.mubr.bf16.gmra.mxu0 %v1259
        %v1757 = vpop.f32.mrf.mxu0
        %v1758 = vadd.f32 0.0, %v1757
        %v1759 = vpop.f32.mrf.mxu0
        %v1760 = vpop.f32.mrf.mxu0
        %v1761 = vadd.f32 0.0, %v1760
        %v1762 = vpop.f32.mrf.mxu0
        %1763 = vmatprep.mubr.bf16.mxu0 %v1264
        %1764 = vmatmul.mubr.bf16.gmra.mxu0 %v1263
        %v1765 = vpop.f32.mrf.mxu0
        %v1766 = vadd.f32 0.0, %v1765
        %v1767 = vpop.f32.mrf.mxu0
        %v1768 = vpop.f32.mrf.mxu0
        %v1769 = vadd.f32 0.0, %v1768
        %v1770 = vpop.f32.mrf.mxu0
        %1771 = vmatprep.mubr.bf16.mxu0 %v1268
        %1772 = vmatmul.mubr.bf16.gmra.mxu0 %v1267
        %v1773 = vpop.f32.mrf.mxu0
        %v1774 = vadd.f32 0.0, %v1773
        %v1775 = vpop.f32.mrf.mxu0
        %v1776 = vpop.f32.mrf.mxu0
        %v1777 = vadd.f32 0.0, %v1776
        %v1778 = vpop.f32.mrf.mxu0
        %1779 = vmatprep.mubr.bf16.mxu0 %v1272
        %1780 = vmatmul.mubr.bf16.gmra.mxu0 %v1271
        %v1781 = vpop.f32.mrf.mxu0
        %v1782 = vadd.f32 0.0, %v1781
        %v1783 = vpop.f32.mrf.mxu0
        %v1784 = vpop.f32.mrf.mxu0
        %v1785 = vadd.f32 0.0, %v1784
        %v1786 = vpop.f32.mrf.mxu0
        %1787 = vmatprep.mubr.bf16.mxu0 %v1276
        %1788 = vmatmul.mubr.bf16.gmra.mxu0 %v1275
        %v1789 = vpop.f32.mrf.mxu0
        %v1790 = vadd.f32 0.0, %v1789
        %v1791 = vpop.f32.mrf.mxu0
        %v1792 = vpop.f32.mrf.mxu0
        %v1793 = vadd.f32 0.0, %v1792
        %v1794 = vpop.f32.mrf.mxu0
        %1795 = vmatprep.mubr.bf16.mxu0 %v1280
        %1796 = vmatmul.mubr.bf16.gmra.mxu0 %v1279
        %v1797 = vpop.f32.mrf.mxu0
        %v1798 = vadd.f32 0.0, %v1797
        %v1799 = vpop.f32.mrf.mxu0
        %v1800 = vpop.f32.mrf.mxu0
        %v1801 = vadd.f32 0.0, %v1800
        %v1802 = vpop.f32.mrf.mxu0
        %1803 = vmatprep.mubr.bf16.mxu0 %v1284
        %1804 = vmatmul.mubr.bf16.gmra.mxu0 %v1283
        %v1805 = vpop.f32.mrf.mxu0
        %v1806 = vadd.f32 0.0, %v1805
        %v1807 = vpop.f32.mrf.mxu0
        %v1808 = vpop.f32.mrf.mxu0
        %v1809 = vadd.f32 0.0, %v1808
        %v1810 = vpop.f32.mrf.mxu0
        %1811 = vmatprep.mubr.bf16.mxu0 %v1288
        %1812 = vmatmul.mubr.bf16.gmra.mxu0 %v1287
        %v1813 = vpop.f32.mrf.mxu0
        %v1814 = vadd.f32 0.0, %v1813
        %v1815 = vpop.f32.mrf.mxu0
        %v1816 = vpop.f32.mrf.mxu0
        %v1817 = vadd.f32 0.0, %v1816
        %v1818 = vpop.f32.mrf.mxu0
        %1819 = vmatprep.mubr.bf16.mxu0 %v1292
        %1820 = vmatmul.mubr.bf16.gmra.mxu0 %v1291
        %v1821 = vpop.f32.mrf.mxu0
        %v1822 = vadd.f32 0.0, %v1821
        %v1823 = vpop.f32.mrf.mxu0
        %v1824 = vpop.f32.mrf.mxu0
        %v1825 = vadd.f32 0.0, %v1824
        %v1826 = vpop.f32.mrf.mxu0
        %1827 = vmatprep.mubr.bf16.mxu0 %v1296
        %1828 = vmatmul.mubr.bf16.gmra.mxu0 %v1295
        %v1829 = vpop.f32.mrf.mxu0
        %v1830 = vadd.f32 0.0, %v1829
        %v1831 = vpop.f32.mrf.mxu0
        %v1832 = vpop.f32.mrf.mxu0
        %v1833 = vadd.f32 0.0, %v1832
        %v1834 = vpop.f32.mrf.mxu0
        %1835 = vmatprep.mubr.bf16.mxu0 %v1300
        %1836 = vmatmul.mubr.bf16.gmra.mxu0 %v1299
        %v1837 = vpop.f32.mrf.mxu0
        %v1838 = vadd.f32 0.0, %v1837
        %v1839 = vpop.f32.mrf.mxu0
        %v1840 = vpop.f32.mrf.mxu0
        %v1841 = vadd.f32 0.0, %v1840
        %v1842 = vpop.f32.mrf.mxu0
        %1843 = vmatprep.mubr.bf16.mxu0 %v1304
        %1844 = vmatmul.mubr.bf16.gmra.mxu0 %v1303
        %v1845 = vpop.f32.mrf.mxu0
        %v1846 = vadd.f32 0.0, %v1845
        %v1847 = vpop.f32.mrf.mxu0
        %v1848 = vpop.f32.mrf.mxu0
        %v1849 = vadd.f32 0.0, %v1848
        %v1850 = vpop.f32.mrf.mxu0
        %1851 = vmatprep.mubr.bf16.mxu0 %v1308
        %1852 = vmatmul.mubr.bf16.gmra.mxu0 %v1307
        %v1853 = vpop.f32.mrf.mxu0
        %v1854 = vadd.f32 0.0, %v1853
        %v1855 = vpop.f32.mrf.mxu0
        %v1856 = vpop.f32.mrf.mxu0
        %v1857 = vadd.f32 0.0, %v1856
        %v1858 = vpop.f32.mrf.mxu0
        %1859 = vmatprep.mubr.bf16.mxu0 %v1312
        %1860 = vmatmul.mubr.bf16.gmra.mxu0 %v1311
        %v1861 = vpop.f32.mrf.mxu0
        %v1862 = vadd.f32 0.0, %v1861
        %v1863 = vpop.f32.mrf.mxu0
        %v1864 = vpop.f32.mrf.mxu0
        %v1865 = vadd.f32 0.0, %v1864
        %v1866 = vpop.f32.mrf.mxu0
        %1867 = vmatprep.mubr.bf16.mxu0 %v1316
        %1868 = vmatmul.mubr.bf16.gmra.mxu0 %v1315
        %v1869 = vpop.f32.mrf.mxu0
        %v1870 = vadd.f32 0.0, %v1869
        %v1871 = vpop.f32.mrf.mxu0
        %v1872 = vpop.f32.mrf.mxu0
        %v1873 = vadd.f32 0.0, %v1872
        %v1874 = vpop.f32.mrf.mxu0
        %1875 = vmatprep.mubr.bf16.mxu0 %v1320
        %1876 = vmatmul.mubr.bf16.gmra.mxu0 %v1319
        %v1877 = vpop.f32.mrf.mxu0
        %v1878 = vadd.f32 0.0, %v1877
        %v1879 = vpop.f32.mrf.mxu0
        %v1880 = vpop.f32.mrf.mxu0
        %v1881 = vadd.f32 0.0, %v1880
        %v1882 = vpop.f32.mrf.mxu0
        %1883 = vmatprep.mubr.bf16.mxu0 %v1324
        %1884 = vmatmul.mubr.bf16.gmra.mxu0 %v1323
        %v1885 = vpop.f32.mrf.mxu0
        %v1886 = vadd.f32 0.0, %v1885
        %v1887 = vpop.f32.mrf.mxu0
        %v1888 = vpop.f32.mrf.mxu0
        %v1889 = vadd.f32 0.0, %v1888
        %v1890 = vpop.f32.mrf.mxu0
        %1891 = vmatprep.mubr.bf16.mxu0 %v1328
        %1892 = vmatmul.mubr.bf16.gmra.mxu0 %v1327
        %v1893 = vpop.f32.mrf.mxu0
        %v1894 = vadd.f32 0.0, %v1893
        %v1895 = vpop.f32.mrf.mxu0
        %v1896 = vpop.f32.mrf.mxu0
        %v1897 = vadd.f32 0.0, %v1896
        %v1898 = vpop.f32.mrf.mxu0
        %1899 = vmatprep.mubr.bf16.mxu0 %v1332
        %1900 = vmatmul.mubr.bf16.gmra.mxu0 %v1331
        %v1901 = vpop.f32.mrf.mxu0
        %v1902 = vadd.f32 0.0, %v1901
        %v1903 = vpop.f32.mrf.mxu0
        %v1904 = vpop.f32.mrf.mxu0
        %v1905 = vadd.f32 0.0, %v1904
        %v1906 = vpop.f32.mrf.mxu0
        %1907 = vmatprep.mubr.bf16.mxu0 %v1336
        %1908 = vmatmul.mubr.bf16.gmra.mxu0 %v1335
        %v1909 = vpop.f32.mrf.mxu0
        %v1910 = vadd.f32 0.0, %v1909
        %v1911 = vpop.f32.mrf.mxu0
        %v1912 = vpop.f32.mrf.mxu0
        %v1913 = vadd.f32 0.0, %v1912
        %v1914 = vpop.f32.mrf.mxu0
        %1915 = vmatprep.mubr.bf16.mxu0 %v1340
        %1916 = vmatmul.mubr.bf16.gmra.mxu0 %v1339
        %v1917 = vpop.f32.mrf.mxu0
        %v1918 = vadd.f32 0.0, %v1917
        %v1919 = vpop.f32.mrf.mxu0
        %v1920 = vpop.f32.mrf.mxu0
        %v1921 = vadd.f32 0.0, %v1920
        %v1922 = vpop.f32.mrf.mxu0
        %1923 = vmatprep.mubr.bf16.mxu0 %v1344
        %1924 = vmatmul.mubr.bf16.gmra.mxu0 %v1343
        %v1925 = vpop.f32.mrf.mxu0
        %v1926 = vadd.f32 0.0, %v1925
        %v1927 = vpop.f32.mrf.mxu0
        %v1928 = vpop.f32.mrf.mxu0
        %v1929 = vadd.f32 0.0, %v1928
        %v1930 = vpop.f32.mrf.mxu0
        %1931 = vmatprep.mubr.bf16.mxu0 %v1348
        %1932 = vmatmul.mubr.bf16.gmra.mxu0 %v1347
        %v1933 = vpop.f32.mrf.mxu0
        %v1934 = vadd.f32 0.0, %v1933
        %v1935 = vpop.f32.mrf.mxu0
        %v1936 = vpop.f32.mrf.mxu0
        %v1937 = vadd.f32 0.0, %v1936
        %v1938 = vpop.f32.mrf.mxu0
        %1939 = vmatprep.mubr.bf16.mxu0 %v1352
        %1940 = vmatmul.mubr.bf16.gmra.mxu0 %v1351
        %v1941 = vpop.f32.mrf.mxu0
        %v1942 = vadd.f32 0.0, %v1941
        %v1943 = vpop.f32.mrf.mxu0
        %v1944 = vpop.f32.mrf.mxu0
        %v1945 = vadd.f32 0.0, %v1944
        %v1946 = vpop.f32.mrf.mxu0
        %1947 = vmatprep.mubr.bf16.mxu0 %v1356
        %1948 = vmatmul.mubr.bf16.gmra.mxu0 %v1355
        %v1949 = vpop.f32.mrf.mxu0
        %v1950 = vadd.f32 0.0, %v1949
        %v1951 = vpop.f32.mrf.mxu0
        %v1952 = vpop.f32.mrf.mxu0
        %v1953 = vadd.f32 0.0, %v1952
        %v1954 = vpop.f32.mrf.mxu0
        %1955 = vmatprep.mubr.bf16.mxu0 %v1360
        %1956 = vmatmul.mubr.bf16.gmra.mxu0 %v1359
        %v1957 = vpop.f32.mrf.mxu0
        %v1958 = vadd.f32 0.0, %v1957
        %v1959 = vpop.f32.mrf.mxu0
        %v1960 = vpop.f32.mrf.mxu0
        %v1961 = vadd.f32 0.0, %v1960
        %v1962 = vpop.f32.mrf.mxu0
        %1963 = vmatprep.mubr.bf16.mxu0 %v1364
        %1964 = vmatmul.mubr.bf16.gmra.mxu0 %v1363
        %v1965 = vpop.f32.mrf.mxu0
        %v1966 = vadd.f32 0.0, %v1965
        %v1967 = vpop.f32.mrf.mxu0
        %v1968 = vpop.f32.mrf.mxu0
        %v1969 = vadd.f32 0.0, %v1968
        %v1970 = vpop.f32.mrf.mxu0
        %1971 = vmatprep.mubr.bf16.mxu0 %v1368
        %1972 = vmatmul.mubr.bf16.gmra.mxu0 %v1367
        %v1973 = vpop.f32.mrf.mxu0
        %v1974 = vadd.f32 0.0, %v1973
        %v1975 = vpop.f32.mrf.mxu0
        %v1976 = vpop.f32.mrf.mxu0
        %v1977 = vadd.f32 0.0, %v1976
        %v1978 = vpop.f32.mrf.mxu0
        %1979 = vdwg.mxu0
        %1980 = vmatprep.subr.bf16.mxu0 0
        %1981 = vmatpush1.bf16.msra.mxu0 %v1650
        %1982 = vmatprep.subr.bf16.mxu0 0
        %1983 = vmatpush1.bf16.msra.mxu0 %v1649
        %1984 = vmatprep.subr.bf16.mxu0 0
        %1985 = vmatpush1.bf16.msra.mxu0 %v1648
        %1986 = vmatprep.subr.bf16.mxu0 0
        %1987 = vmatpush1.bf16.msra.mxu0 %v1647
        %1988 = vmatprep.subr.bf16.mxu0 0
        %1989 = vmatpush1.bf16.msra.mxu0 %v1646
        %1990 = vmatprep.subr.bf16.mxu0 0
        %1991 = vmatpush1.bf16.msra.mxu0 %v1645
        %1992 = vmatprep.subr.bf16.mxu0 0
        %1993 = vmatpush1.bf16.msra.mxu0 %v1644
        %1994 = vmatprep.subr.bf16.mxu0 0
        %1995 = vmatpush1.bf16.msra.mxu0 %v1643
        %1996 = vmatprep.subr.bf16.mxu0 0
        %1997 = vmatpush2.bf16.msra.mxu0 %v1658
        %1998 = vmatprep.subr.bf16.mxu0 0
        %1999 = vmatpush2.bf16.msra.mxu0 %v1657
        %2000 = vmatprep.subr.bf16.mxu0 0
        %2001 = vmatpush2.bf16.msra.mxu0 %v1656
        %2002 = vmatprep.subr.bf16.mxu0 0
        %2003 = vmatpush2.bf16.msra.mxu0 %v1655
        %2004 = vmatprep.subr.bf16.mxu0 0
        %2005 = vmatpush2.bf16.msra.mxu0 %v1654
        %2006 = vmatprep.subr.bf16.mxu0 0
        %2007 = vmatpush2.bf16.msra.mxu0 %v1653
        %2008 = vmatprep.subr.bf16.mxu0 0
        %2009 = vmatpush2.bf16.msra.mxu0 %v1652
        %2010 = vmatprep.subr.bf16.mxu0 0
        %2011 = vmatpush2.bf16.msra.mxu0 %v1651
        %2012 = vmatprep.mubr.bf16.mxu0 %v1246
        %2013 = vmatmul.mubr.bf16.gmra.mxu0 %v1245
        %v2014 = vpop.f32.mrf.mxu0
        %v2015 = vadd.f32 %v1726, %v2014
        %v2016 = vpop.f32.mrf.mxu0
        %v2017 = vpop.f32.mrf.mxu0
        %v2018 = vadd.f32 %v1729, %v2017
        %v2019 = vpop.f32.mrf.mxu0
        %2020 = vmatprep.mubr.bf16.mxu0 %v1250
        %2021 = vmatmul.mubr.bf16.gmra.mxu0 %v1249
        %v2022 = vpop.f32.mrf.mxu0
        %v2023 = vadd.f32 %v1734, %v2022
        %v2024 = vpop.f32.mrf.mxu0
        %v2025 = vpop.f32.mrf.mxu0
        %v2026 = vadd.f32 %v1737, %v2025
        %v2027 = vpop.f32.mrf.mxu0
        %2028 = vmatprep.mubr.bf16.mxu0 %v1254
        %2029 = vmatmul.mubr.bf16.gmra.mxu0 %v1253
        %v2030 = vpop.f32.mrf.mxu0
        %v2031 = vadd.f32 %v1742, %v2030
        %v2032 = vpop.f32.mrf.mxu0
        %v2033 = vpop.f32.mrf.mxu0
        %v2034 = vadd.f32 %v1745, %v2033
        %v2035 = vpop.f32.mrf.mxu0
        %2036 = vmatprep.mubr.bf16.mxu0 %v1258
        %2037 = vmatmul.mubr.bf16.gmra.mxu0 %v1257
        %v2038 = vpop.f32.mrf.mxu0
        %v2039 = vadd.f32 %v1750, %v2038
        %v2040 = vpop.f32.mrf.mxu0
        %v2041 = vpop.f32.mrf.mxu0
        %v2042 = vadd.f32 %v1753, %v2041
        %v2043 = vpop.f32.mrf.mxu0
        %2044 = vmatprep.mubr.bf16.mxu0 %v1262
        %2045 = vmatmul.mubr.bf16.gmra.mxu0 %v1261
        %v2046 = vpop.f32.mrf.mxu0
        %v2047 = vadd.f32 %v1758, %v2046
        %v2048 = vpop.f32.mrf.mxu0
        %v2049 = vpop.f32.mrf.mxu0
        %v2050 = vadd.f32 %v1761, %v2049
        %v2051 = vpop.f32.mrf.mxu0
        %2052 = vmatprep.mubr.bf16.mxu0 %v1266
        %2053 = vmatmul.mubr.bf16.gmra.mxu0 %v1265
        %v2054 = vpop.f32.mrf.mxu0
        %v2055 = vadd.f32 %v1766, %v2054
        %v2056 = vpop.f32.mrf.mxu0
        %v2057 = vpop.f32.mrf.mxu0
        %v2058 = vadd.f32 %v1769, %v2057
        %v2059 = vpop.f32.mrf.mxu0
        %2060 = vmatprep.mubr.bf16.mxu0 %v1270
        %2061 = vmatmul.mubr.bf16.gmra.mxu0 %v1269
        %v2062 = vpop.f32.mrf.mxu0
        %v2063 = vadd.f32 %v1774, %v2062
        %v2064 = vpop.f32.mrf.mxu0
        %v2065 = vpop.f32.mrf.mxu0
        %v2066 = vadd.f32 %v1777, %v2065
        %v2067 = vpop.f32.mrf.mxu0
        %2068 = vmatprep.mubr.bf16.mxu0 %v1274
        %2069 = vmatmul.mubr.bf16.gmra.mxu0 %v1273
        %v2070 = vpop.f32.mrf.mxu0
        %v2071 = vadd.f32 %v1782, %v2070
        %v2072 = vpop.f32.mrf.mxu0
        %v2073 = vpop.f32.mrf.mxu0
        %v2074 = vadd.f32 %v1785, %v2073
        %v2075 = vpop.f32.mrf.mxu0
        %2076 = vmatprep.mubr.bf16.mxu0 %v1278
        %2077 = vmatmul.mubr.bf16.gmra.mxu0 %v1277
        %v2078 = vpop.f32.mrf.mxu0
        %v2079 = vadd.f32 %v1790, %v2078
        %v2080 = vpop.f32.mrf.mxu0
        %v2081 = vpop.f32.mrf.mxu0
        %v2082 = vadd.f32 %v1793, %v2081
        %v2083 = vpop.f32.mrf.mxu0
        %2084 = vmatprep.mubr.bf16.mxu0 %v1282
        %2085 = vmatmul.mubr.bf16.gmra.mxu0 %v1281
        %v2086 = vpop.f32.mrf.mxu0
        %v2087 = vadd.f32 %v1798, %v2086
        %v2088 = vpop.f32.mrf.mxu0
        %v2089 = vpop.f32.mrf.mxu0
        %v2090 = vadd.f32 %v1801, %v2089
        %v2091 = vpop.f32.mrf.mxu0
        %2092 = vmatprep.mubr.bf16.mxu0 %v1286
        %2093 = vmatmul.mubr.bf16.gmra.mxu0 %v1285
        %v2094 = vpop.f32.mrf.mxu0
        %v2095 = vadd.f32 %v1806, %v2094
        %v2096 = vpop.f32.mrf.mxu0
        %v2097 = vpop.f32.mrf.mxu0
        %v2098 = vadd.f32 %v1809, %v2097
        %v2099 = vpop.f32.mrf.mxu0
        %2100 = vmatprep.mubr.bf16.mxu0 %v1290
        %2101 = vmatmul.mubr.bf16.gmra.mxu0 %v1289
        %v2102 = vpop.f32.mrf.mxu0
        %v2103 = vadd.f32 %v1814, %v2102
        %v2104 = vpop.f32.mrf.mxu0
        %v2105 = vpop.f32.mrf.mxu0
        %v2106 = vadd.f32 %v1817, %v2105
        %v2107 = vpop.f32.mrf.mxu0
        %2108 = vmatprep.mubr.bf16.mxu0 %v1294
        %2109 = vmatmul.mubr.bf16.gmra.mxu0 %v1293
        %v2110 = vpop.f32.mrf.mxu0
        %v2111 = vadd.f32 %v1822, %v2110
        %v2112 = vpop.f32.mrf.mxu0
        %v2113 = vpop.f32.mrf.mxu0
        %v2114 = vadd.f32 %v1825, %v2113
        %v2115 = vpop.f32.mrf.mxu0
        %2116 = vmatprep.mubr.bf16.mxu0 %v1298
        %2117 = vmatmul.mubr.bf16.gmra.mxu0 %v1297
        %v2118 = vpop.f32.mrf.mxu0
        %v2119 = vadd.f32 %v1830, %v2118
        %v2120 = vpop.f32.mrf.mxu0
        %v2121 = vpop.f32.mrf.mxu0
        %v2122 = vadd.f32 %v1833, %v2121
        %v2123 = vpop.f32.mrf.mxu0
        %2124 = vmatprep.mubr.bf16.mxu0 %v1302
        %2125 = vmatmul.mubr.bf16.gmra.mxu0 %v1301
        %v2126 = vpop.f32.mrf.mxu0
        %v2127 = vadd.f32 %v1838, %v2126
        %v2128 = vpop.f32.mrf.mxu0
        %v2129 = vpop.f32.mrf.mxu0
        %v2130 = vadd.f32 %v1841, %v2129
        %v2131 = vpop.f32.mrf.mxu0
        %2132 = vmatprep.mubr.bf16.mxu0 %v1306
        %2133 = vmatmul.mubr.bf16.gmra.mxu0 %v1305
        %v2134 = vpop.f32.mrf.mxu0
        %v2135 = vadd.f32 %v1846, %v2134
        %v2136 = vpop.f32.mrf.mxu0
        %v2137 = vpop.f32.mrf.mxu0
        %v2138 = vadd.f32 %v1849, %v2137
        %v2139 = vpop.f32.mrf.mxu0
        %2140 = vmatprep.mubr.bf16.mxu0 %v1310
        %2141 = vmatmul.mubr.bf16.gmra.mxu0 %v1309
        %v2142 = vpop.f32.mrf.mxu0
        %v2143 = vadd.f32 %v1854, %v2142
        %v2144 = vpop.f32.mrf.mxu0
        %v2145 = vpop.f32.mrf.mxu0
        %v2146 = vadd.f32 %v1857, %v2145
        %v2147 = vpop.f32.mrf.mxu0
        %2148 = vmatprep.mubr.bf16.mxu0 %v1314
        %2149 = vmatmul.mubr.bf16.gmra.mxu0 %v1313
        %v2150 = vpop.f32.mrf.mxu0
        %v2151 = vadd.f32 %v1862, %v2150
        %v2152 = vpop.f32.mrf.mxu0
        %v2153 = vpop.f32.mrf.mxu0
        %v2154 = vadd.f32 %v1865, %v2153
        %v2155 = vpop.f32.mrf.mxu0
        %2156 = vmatprep.mubr.bf16.mxu0 %v1318
        %2157 = vmatmul.mubr.bf16.gmra.mxu0 %v1317
        %v2158 = vpop.f32.mrf.mxu0
        %v2159 = vadd.f32 %v1870, %v2158
        %v2160 = vpop.f32.mrf.mxu0
        %v2161 = vpop.f32.mrf.mxu0
        %v2162 = vadd.f32 %v1873, %v2161
        %v2163 = vpop.f32.mrf.mxu0
        %2164 = vmatprep.mubr.bf16.mxu0 %v1322
        %2165 = vmatmul.mubr.bf16.gmra.mxu0 %v1321
        %v2166 = vpop.f32.mrf.mxu0
        %v2167 = vadd.f32 %v1878, %v2166
        %v2168 = vpop.f32.mrf.mxu0
        %v2169 = vpop.f32.mrf.mxu0
        %v2170 = vadd.f32 %v1881, %v2169
        %v2171 = vpop.f32.mrf.mxu0
        %2172 = vmatprep.mubr.bf16.mxu0 %v1326
        %2173 = vmatmul.mubr.bf16.gmra.mxu0 %v1325
        %v2174 = vpop.f32.mrf.mxu0
        %v2175 = vadd.f32 %v1886, %v2174
        %v2176 = vpop.f32.mrf.mxu0
        %v2177 = vpop.f32.mrf.mxu0
        %v2178 = vadd.f32 %v1889, %v2177
        %v2179 = vpop.f32.mrf.mxu0
        %2180 = vmatprep.mubr.bf16.mxu0 %v1330
        %2181 = vmatmul.mubr.bf16.gmra.mxu0 %v1329
        %v2182 = vpop.f32.mrf.mxu0
        %v2183 = vadd.f32 %v1894, %v2182
        %v2184 = vpop.f32.mrf.mxu0
        %v2185 = vpop.f32.mrf.mxu0
        %v2186 = vadd.f32 %v1897, %v2185
        %v2187 = vpop.f32.mrf.mxu0
        %2188 = vmatprep.mubr.bf16.mxu0 %v1334
        %2189 = vmatmul.mubr.bf16.gmra.mxu0 %v1333
        %v2190 = vpop.f32.mrf.mxu0
        %v2191 = vadd.f32 %v1902, %v2190
        %v2192 = vpop.f32.mrf.mxu0
        %v2193 = vpop.f32.mrf.mxu0
        %v2194 = vadd.f32 %v1905, %v2193
        %v2195 = vpop.f32.mrf.mxu0
        %2196 = vmatprep.mubr.bf16.mxu0 %v1338
        %2197 = vmatmul.mubr.bf16.gmra.mxu0 %v1337
        %v2198 = vpop.f32.mrf.mxu0
        %v2199 = vadd.f32 %v1910, %v2198
        %v2200 = vpop.f32.mrf.mxu0
        %v2201 = vpop.f32.mrf.mxu0
        %v2202 = vadd.f32 %v1913, %v2201
        %v2203 = vpop.f32.mrf.mxu0
        %2204 = vmatprep.mubr.bf16.mxu0 %v1342
        %2205 = vmatmul.mubr.bf16.gmra.mxu0 %v1341
        %v2206 = vpop.f32.mrf.mxu0
        %v2207 = vadd.f32 %v1918, %v2206
        %v2208 = vpop.f32.mrf.mxu0
        %v2209 = vpop.f32.mrf.mxu0
        %v2210 = vadd.f32 %v1921, %v2209
        %v2211 = vpop.f32.mrf.mxu0
        %2212 = vmatprep.mubr.bf16.mxu0 %v1346
        %2213 = vmatmul.mubr.bf16.gmra.mxu0 %v1345
        %v2214 = vpop.f32.mrf.mxu0
        %v2215 = vadd.f32 %v1926, %v2214
        %v2216 = vpop.f32.mrf.mxu0
        %v2217 = vpop.f32.mrf.mxu0
        %v2218 = vadd.f32 %v1929, %v2217
        %v2219 = vpop.f32.mrf.mxu0
        %2220 = vmatprep.mubr.bf16.mxu0 %v1350
        %2221 = vmatmul.mubr.bf16.gmra.mxu0 %v1349
        %v2222 = vpop.f32.mrf.mxu0
        %v2223 = vadd.f32 %v1934, %v2222
        %v2224 = vpop.f32.mrf.mxu0
        %v2225 = vpop.f32.mrf.mxu0
        %v2226 = vadd.f32 %v1937, %v2225
        %v2227 = vpop.f32.mrf.mxu0
        %2228 = vmatprep.mubr.bf16.mxu0 %v1354
        %2229 = vmatmul.mubr.bf16.gmra.mxu0 %v1353
        %v2230 = vpop.f32.mrf.mxu0
        %v2231 = vadd.f32 %v1942, %v2230
        %v2232 = vpop.f32.mrf.mxu0
        %v2233 = vpop.f32.mrf.mxu0
        %v2234 = vadd.f32 %v1945, %v2233
        %v2235 = vpop.f32.mrf.mxu0
        %2236 = vmatprep.mubr.bf16.mxu0 %v1358
        %2237 = vmatmul.mubr.bf16.gmra.mxu0 %v1357
        %v2238 = vpop.f32.mrf.mxu0
        %v2239 = vadd.f32 %v1950, %v2238
        %v2240 = vpop.f32.mrf.mxu0
        %v2241 = vpop.f32.mrf.mxu0
        %v2242 = vadd.f32 %v1953, %v2241
        %v2243 = vpop.f32.mrf.mxu0
        %2244 = vmatprep.mubr.bf16.mxu0 %v1362
        %2245 = vmatmul.mubr.bf16.gmra.mxu0 %v1361
        %v2246 = vpop.f32.mrf.mxu0
        %v2247 = vadd.f32 %v1958, %v2246
        %v2248 = vpop.f32.mrf.mxu0
        %v2249 = vpop.f32.mrf.mxu0
        %v2250 = vadd.f32 %v1961, %v2249
        %v2251 = vpop.f32.mrf.mxu0
        %2252 = vmatprep.mubr.bf16.mxu0 %v1366
        %2253 = vmatmul.mubr.bf16.gmra.mxu0 %v1365
        %v2254 = vpop.f32.mrf.mxu0
        %v2255 = vadd.f32 %v1966, %v2254
        %v2256 = vpop.f32.mrf.mxu0
        %v2257 = vpop.f32.mrf.mxu0
        %v2258 = vadd.f32 %v1969, %v2257
        %v2259 = vpop.f32.mrf.mxu0
        %2260 = vmatprep.mubr.bf16.mxu0 %v1370
        %2261 = vmatmul.mubr.bf16.gmra.mxu0 %v1369
        %v2262 = vpop.f32.mrf.mxu0
        %v2263 = vadd.f32 %v1974, %v2262
        %v2264 = vpop.f32.mrf.mxu0
        %v2265 = vpop.f32.mrf.mxu0
        %v2266 = vadd.f32 %v1977, %v2265
        %v2267 = vpop.f32.mrf.mxu0
        %2268 = vdwg.mxu0
        %v2269 = vadd.f32 %v603, %v2015
        %v2270 = vadd.f32 %v604, %v2018
        %v2271 = vadd.f32 %v605, %v2023
        %v2272 = vadd.f32 %v606, %v2026
        %v2273 = vadd.f32 %v607, %v2031
        %v2274 = vadd.f32 %v608, %v2034
        %v2275 = vadd.f32 %v609, %v2039
        %v2276 = vadd.f32 %v610, %v2042
        %v2277 = vadd.f32 %v611, %v2047
        %v2278 = vadd.f32 %v612, %v2050
        %v2279 = vadd.f32 %v613, %v2055
        %v2280 = vadd.f32 %v614, %v2058
        %v2281 = vadd.f32 %v615, %v2063
        %v2282 = vadd.f32 %v616, %v2066
        %v2283 = vadd.f32 %v617, %v2071
        %v2284 = vadd.f32 %v618, %v2074
        %v2285 = vadd.f32 %v619, %v2079
        %v2286 = vadd.f32 %v620, %v2082
        %v2287 = vadd.f32 %v621, %v2087
        %v2288 = vadd.f32 %v622, %v2090
        %v2289 = vadd.f32 %v623, %v2095
        %v2290 = vadd.f32 %v624, %v2098
        %v2291 = vadd.f32 %v625, %v2103
        %v2292 = vadd.f32 %v626, %v2106
        %v2293 = vadd.f32 %v627, %v2111
        %v2294 = vadd.f32 %v628, %v2114
        %v2295 = vadd.f32 %v629, %v2119
        %v2296 = vadd.f32 %v630, %v2122
        %v2297 = vadd.f32 %v631, %v2127
        %v2298 = vadd.f32 %v632, %v2130
        %v2299 = vadd.f32 %v633, %v2135
        %v2300 = vadd.f32 %v634, %v2138
        %v2301 = vadd.f32 %v635, %v2143
        %v2302 = vadd.f32 %v636, %v2146
        %v2303 = vadd.f32 %v637, %v2151
        %v2304 = vadd.f32 %v638, %v2154
        %v2305 = vadd.f32 %v639, %v2159
        %v2306 = vadd.f32 %v640, %v2162
        %v2307 = vadd.f32 %v641, %v2167
        %v2308 = vadd.f32 %v642, %v2170
        %v2309 = vadd.f32 %v643, %v2175
        %v2310 = vadd.f32 %v644, %v2178
        %v2311 = vadd.f32 %v645, %v2183
        %v2312 = vadd.f32 %v646, %v2186
        %v2313 = vadd.f32 %v647, %v2191
        %v2314 = vadd.f32 %v648, %v2194
        %v2315 = vadd.f32 %v649, %v2199
        %v2316 = vadd.f32 %v650, %v2202
        %v2317 = vadd.f32 %v651, %v2207
        %v2318 = vadd.f32 %v652, %v2210
        %v2319 = vadd.f32 %v653, %v2215
        %v2320 = vadd.f32 %v654, %v2218
        %v2321 = vadd.f32 %v655, %v2223
        %v2322 = vadd.f32 %v656, %v2226
        %v2323 = vadd.f32 %v657, %v2231
        %v2324 = vadd.f32 %v658, %v2234
        %v2325 = vadd.f32 %v659, %v2239
        %v2326 = vadd.f32 %v660, %v2242
        %v2327 = vadd.f32 %v661, %v2247
        %v2328 = vadd.f32 %v662, %v2250
        %v2329 = vadd.f32 %v663, %v2255
        %v2330 = vadd.f32 %v664, %v2258
        %v2331 = vadd.f32 %v665, %v2263
        %v2332 = vadd.f32 %v666, %v2266
        %vm2333 = vcmask 64512
        %2334 = vst.msk [vmem:[#allocation2] sm:$0xff] %vm2333, %v2269
        %2335 = vst.msk [vmem:[#allocation2 + $0x8] sm:$0xff] %vm2333, %v2270
        %2336 = vst.msk [vmem:[#allocation2 + $0x10] sm:$0xff] %vm2333, %v2271
        %2337 = vst.msk [vmem:[#allocation2 + $0x18] sm:$0xff] %vm2333, %v2272
        %2338 = vst.msk [vmem:[#allocation2 + $0x20] sm:$0xff] %vm2333, %v2273
        %2339 = vst.msk [vmem:[#allocation2 + $0x28] sm:$0xff] %vm2333, %v2274
        %2340 = vst.msk [vmem:[#allocation2 + $0x30] sm:$0xff] %vm2333, %v2275
        %2341 = vst.msk [vmem:[#allocation2 + $0x38] sm:$0xff] %vm2333, %v2276
        %2342 = vst.msk [vmem:[#allocation2 + $0x40] sm:$0xff] %vm2333, %v2277
        %2343 = vst.msk [vmem:[#allocation2 + $0x48] sm:$0xff] %vm2333, %v2278
        %2344 = vst.msk [vmem:[#allocation2 + $0x50] sm:$0xff] %vm2333, %v2279
        %2345 = vst.msk [vmem:[#allocation2 + $0x58] sm:$0xff] %vm2333, %v2280
        %2346 = vst.msk [vmem:[#allocation2 + $0x60] sm:$0xff] %vm2333, %v2281
        %2347 = vst.msk [vmem:[#allocation2 + $0x68] sm:$0xff] %vm2333, %v2282
        %2348 = vst.msk [vmem:[#allocation2 + $0x70] sm:$0xff] %vm2333, %v2283
        %2349 = vst.msk [vmem:[#allocation2 + $0x78] sm:$0xff] %vm2333, %v2284
        %2350 = vst.msk [vmem:[#allocation2 + $0x80] sm:$0xff] %vm2333, %v2285
        %2351 = vst.msk [vmem:[#allocation2 + $0x88] sm:$0xff] %vm2333, %v2286
        %2352 = vst.msk [vmem:[#allocation2 + $0x90] sm:$0xff] %vm2333, %v2287
        %2353 = vst.msk [vmem:[#allocation2 + $0x98] sm:$0xff] %vm2333, %v2288
        %2354 = vst.msk [vmem:[#allocation2 + $0xa0] sm:$0xff] %vm2333, %v2289
        %2355 = vst.msk [vmem:[#allocation2 + $0xa8] sm:$0xff] %vm2333, %v2290
        %2356 = vst.msk [vmem:[#allocation2 + $0xb0] sm:$0xff] %vm2333, %v2291
        %2357 = vst.msk [vmem:[#allocation2 + $0xb8] sm:$0xff] %vm2333, %v2292
        %2358 = vst.msk [vmem:[#allocation2 + $0xc0] sm:$0xff] %vm2333, %v2293
        %2359 = vst.msk [vmem:[#allocation2 + $0xc8] sm:$0xff] %vm2333, %v2294
        %2360 = vst.msk [vmem:[#allocation2 + $0xd0] sm:$0xff] %vm2333, %v2295
        %2361 = vst.msk [vmem:[#allocation2 + $0xd8] sm:$0xff] %vm2333, %v2296
        %2362 = vst.msk [vmem:[#allocation2 + $0xe0] sm:$0xff] %vm2333, %v2297
        %2363 = vst.msk [vmem:[#allocation2 + $0xe8] sm:$0xff] %vm2333, %v2298
        %2364 = vst.msk [vmem:[#allocation2 + $0xf0] sm:$0xff] %vm2333, %v2299
        %2365 = vst.msk [vmem:[#allocation2 + $0xf8] sm:$0xff] %vm2333, %v2300
        %2366 = vst.msk [vmem:[#allocation2 + $0x100] sm:$0xff] %vm2333, %v2301
        %2367 = vst.msk [vmem:[#allocation2 + $0x108] sm:$0xff] %vm2333, %v2302
        %2368 = vst.msk [vmem:[#allocation2 + $0x110] sm:$0xff] %vm2333, %v2303
        %2369 = vst.msk [vmem:[#allocation2 + $0x118] sm:$0xff] %vm2333, %v2304
        %2370 = vst.msk [vmem:[#allocation2 + $0x120] sm:$0xff] %vm2333, %v2305
        %2371 = vst.msk [vmem:[#allocation2 + $0x128] sm:$0xff] %vm2333, %v2306
        %2372 = vst.msk [vmem:[#allocation2 + $0x130] sm:$0xff] %vm2333, %v2307
        %2373 = vst.msk [vmem:[#allocation2 + $0x138] sm:$0xff] %vm2333, %v2308
        %2374 = vst.msk [vmem:[#allocation2 + $0x140] sm:$0xff] %vm2333, %v2309
        %2375 = vst.msk [vmem:[#allocation2 + $0x148] sm:$0xff] %vm2333, %v2310
        %2376 = vst.msk [vmem:[#allocation2 + $0x150] sm:$0xff] %vm2333, %v2311
        %2377 = vst.msk [vmem:[#allocation2 + $0x158] sm:$0xff] %vm2333, %v2312
        %2378 = vst.msk [vmem:[#allocation2 + $0x160] sm:$0xff] %vm2333, %v2313
        %2379 = vst.msk [vmem:[#allocation2 + $0x168] sm:$0xff] %vm2333, %v2314
        %2380 = vst.msk [vmem:[#allocation2 + $0x170] sm:$0xff] %vm2333, %v2315
        %2381 = vst.msk [vmem:[#allocation2 + $0x178] sm:$0xff] %vm2333, %v2316
        %2382 = vst.msk [vmem:[#allocation2 + $0x180] sm:$0xff] %vm2333, %v2317
        %2383 = vst.msk [vmem:[#allocation2 + $0x188] sm:$0xff] %vm2333, %v2318
        %2384 = vst.msk [vmem:[#allocation2 + $0x190] sm:$0xff] %vm2333, %v2319
        %2385 = vst.msk [vmem:[#allocation2 + $0x198] sm:$0xff] %vm2333, %v2320
        %2386 = vst.msk [vmem:[#allocation2 + $0x1a0] sm:$0xff] %vm2333, %v2321
        %2387 = vst.msk [vmem:[#allocation2 + $0x1a8] sm:$0xff] %vm2333, %v2322
        %2388 = vst.msk [vmem:[#allocation2 + $0x1b0] sm:$0xff] %vm2333, %v2323
        %2389 = vst.msk [vmem:[#allocation2 + $0x1b8] sm:$0xff] %vm2333, %v2324
        %2390 = vst.msk [vmem:[#allocation2 + $0x1c0] sm:$0xff] %vm2333, %v2325
        %2391 = vst.msk [vmem:[#allocation2 + $0x1c8] sm:$0xff] %vm2333, %v2326
        %2392 = vst.msk [vmem:[#allocation2 + $0x1d0] sm:$0xff] %vm2333, %v2327
        %2393 = vst.msk [vmem:[#allocation2 + $0x1d8] sm:$0xff] %vm2333, %v2328
        %2394 = vst.msk [vmem:[#allocation2 + $0x1e0] sm:$0xff] %vm2333, %v2329
        %2395 = vst.msk [vmem:[#allocation2 + $0x1e8] sm:$0xff] %vm2333, %v2330
        %2396 = vst.msk [vmem:[#allocation2 + $0x1f0] sm:$0xff] %vm2333, %v2331
        %2397 = vst.msk [vmem:[#allocation2 + $0x1f8] sm:$0xff] %vm2333, %v2332
        %p2398 = scmp.eq.s32.totalorder %s20, 1
        // Predicated region
        $region64: #{tdrumor_forward.5} parent=54 // pred_check
          %p2399 = pneg %p2398
        $region65: #{tdrumor_forward.5} parent=54 // pred_check_branch
          %2401 = sbr.rel (%p2399) target = $region67
        $region66: #{tdrumor_forward.5} parent=54 // pred_region
          %v2402 = vld [vmem:[#allocation2] sm:$0xff]
          %v2403 = vld [vmem:[#allocation2 + $0x8] sm:$0xff]
          %v2404 = vld [vmem:[#allocation2 + $0x10] sm:$0xff]
          %v2405 = vld [vmem:[#allocation2 + $0x18] sm:$0xff]
          %v2406 = vld [vmem:[#allocation2 + $0x20] sm:$0xff]
          %v2407 = vld [vmem:[#allocation2 + $0x28] sm:$0xff]
          %v2408 = vld [vmem:[#allocation2 + $0x30] sm:$0xff]
          %v2409 = vld [vmem:[#allocation2 + $0x38] sm:$0xff]
          %v2410 = vld [vmem:[#allocation2 + $0x40] sm:$0xff]
          %v2411 = vld [vmem:[#allocation2 + $0x48] sm:$0xff]
          %v2412 = vld [vmem:[#allocation2 + $0x50] sm:$0xff]
          %v2413 = vld [vmem:[#allocation2 + $0x58] sm:$0xff]
          %v2414 = vld [vmem:[#allocation2 + $0x60] sm:$0xff]
          %v2415 = vld [vmem:[#allocation2 + $0x68] sm:$0xff]
          %v2416 = vld [vmem:[#allocation2 + $0x70] sm:$0xff]
          %v2417 = vld [vmem:[#allocation2 + $0x78] sm:$0xff]
          %v2418 = vld [vmem:[#allocation2 + $0x80] sm:$0xff]
          %v2419 = vld [vmem:[#allocation2 + $0x88] sm:$0xff]
          %v2420 = vld [vmem:[#allocation2 + $0x90] sm:$0xff]
          %v2421 = vld [vmem:[#allocation2 + $0x98] sm:$0xff]
          %v2422 = vld [vmem:[#allocation2 + $0xa0] sm:$0xff]
          %v2423 = vld [vmem:[#allocation2 + $0xa8] sm:$0xff]
          %v2424 = vld [vmem:[#allocation2 + $0xb0] sm:$0xff]
          %v2425 = vld [vmem:[#allocation2 + $0xb8] sm:$0xff]
          %v2426 = vld [vmem:[#allocation2 + $0xc0] sm:$0xff]
          %v2427 = vld [vmem:[#allocation2 + $0xc8] sm:$0xff]
          %v2428 = vld [vmem:[#allocation2 + $0xd0] sm:$0xff]
          %v2429 = vld [vmem:[#allocation2 + $0xd8] sm:$0xff]
          %v2430 = vld [vmem:[#allocation2 + $0xe0] sm:$0xff]
          %v2431 = vld [vmem:[#allocation2 + $0xe8] sm:$0xff]
          %v2432 = vld [vmem:[#allocation2 + $0xf0] sm:$0xff]
          %v2433 = vld [vmem:[#allocation2 + $0xf8] sm:$0xff]
          %v2434 = vld [vmem:[#allocation2 + $0x100] sm:$0xff]
          %v2435 = vld [vmem:[#allocation2 + $0x108] sm:$0xff]
          %v2436 = vld [vmem:[#allocation2 + $0x110] sm:$0xff]
          %v2437 = vld [vmem:[#allocation2 + $0x118] sm:$0xff]
          %v2438 = vld [vmem:[#allocation2 + $0x120] sm:$0xff]
          %v2439 = vld [vmem:[#allocation2 + $0x128] sm:$0xff]
          %v2440 = vld [vmem:[#allocation2 + $0x130] sm:$0xff]
          %v2441 = vld [vmem:[#allocation2 + $0x138] sm:$0xff]
          %v2442 = vld [vmem:[#allocation2 + $0x140] sm:$0xff]
          %v2443 = vld [vmem:[#allocation2 + $0x148] sm:$0xff]
          %v2444 = vld [vmem:[#allocation2 + $0x150] sm:$0xff]
          %v2445 = vld [vmem:[#allocation2 + $0x158] sm:$0xff]
          %v2446 = vld [vmem:[#allocation2 + $0x160] sm:$0xff]
          %v2447 = vld [vmem:[#allocation2 + $0x168] sm:$0xff]
          %v2448 = vld [vmem:[#allocation2 + $0x170] sm:$0xff]
          %v2449 = vld [vmem:[#allocation2 + $0x178] sm:$0xff]
          %v2450 = vld [vmem:[#allocation2 + $0x180] sm:$0xff]
          %v2451 = vld [vmem:[#allocation2 + $0x188] sm:$0xff]
          %v2452 = vld [vmem:[#allocation2 + $0x190] sm:$0xff]
          %v2453 = vld [vmem:[#allocation2 + $0x198] sm:$0xff]
          %v2454 = vld [vmem:[#allocation2 + $0x1a0] sm:$0xff]
          %v2455 = vld [vmem:[#allocation2 + $0x1a8] sm:$0xff]
          %v2456 = vld [vmem:[#allocation2 + $0x1b0] sm:$0xff]
          %v2457 = vld [vmem:[#allocation2 + $0x1b8] sm:$0xff]
          %v2458 = vld [vmem:[#allocation2 + $0x1c0] sm:$0xff]
          %v2459 = vld [vmem:[#allocation2 + $0x1c8] sm:$0xff]
          %v2460 = vld [vmem:[#allocation2 + $0x1d0] sm:$0xff]
          %v2461 = vld [vmem:[#allocation2 + $0x1d8] sm:$0xff]
          %v2462 = vld [vmem:[#allocation2 + $0x1e0] sm:$0xff]
          %v2463 = vld [vmem:[#allocation2 + $0x1e8] sm:$0xff]
          %v2464 = vld [vmem:[#allocation2 + $0x1f0] sm:$0xff]
          %v2465 = vld [vmem:[#allocation2 + $0x1f8] sm:$0xff]
          %v2466 = vld [vmem:[%s2] sm:$0x1]
          %v2468 = vlaneseq
          %v2469 = vshrl.u32 %v2468, 7
          %v2470 = vsub.s32 0, %v2469
          %v2471 = vrot.slane %v2466, %v2470
          %v2473 = vadd.f32 %v2402, %v2471
          %v2474 = vadd.f32 %v2403, %v2471
          %v2475 = vadd.f32 %v2404, %v2471
          %v2476 = vadd.f32 %v2405, %v2471
          %v2477 = vadd.f32 %v2406, %v2471
          %v2478 = vadd.f32 %v2407, %v2471
          %v2479 = vadd.f32 %v2408, %v2471
          %v2480 = vadd.f32 %v2409, %v2471
          %v2481 = vadd.f32 %v2410, %v2471
          %v2482 = vadd.f32 %v2411, %v2471
          %v2483 = vadd.f32 %v2412, %v2471
          %v2484 = vadd.f32 %v2413, %v2471
          %v2485 = vadd.f32 %v2414, %v2471
          %v2486 = vadd.f32 %v2415, %v2471
          %v2487 = vadd.f32 %v2416, %v2471
          %v2488 = vadd.f32 %v2417, %v2471
          %v2489 = vadd.f32 %v2418, %v2471
          %v2490 = vadd.f32 %v2419, %v2471
          %v2491 = vadd.f32 %v2420, %v2471
          %v2492 = vadd.f32 %v2421, %v2471
          %v2493 = vadd.f32 %v2422, %v2471
          %v2494 = vadd.f32 %v2423, %v2471
          %v2495 = vadd.f32 %v2424, %v2471
          %v2496 = vadd.f32 %v2425, %v2471
          %v2497 = vadd.f32 %v2426, %v2471
          %v2498 = vadd.f32 %v2427, %v2471
          %v2499 = vadd.f32 %v2428, %v2471
          %v2500 = vadd.f32 %v2429, %v2471
          %v2501 = vadd.f32 %v2430, %v2471
          %v2502 = vadd.f32 %v2431, %v2471
          %v2503 = vadd.f32 %v2432, %v2471
          %v2504 = vadd.f32 %v2433, %v2471
          %v2505 = vadd.f32 %v2434, %v2471
          %v2506 = vadd.f32 %v2435, %v2471
          %v2507 = vadd.f32 %v2436, %v2471
          %v2508 = vadd.f32 %v2437, %v2471
          %v2509 = vadd.f32 %v2438, %v2471
          %v2510 = vadd.f32 %v2439, %v2471
          %v2511 = vadd.f32 %v2440, %v2471
          %v2512 = vadd.f32 %v2441, %v2471
          %v2513 = vadd.f32 %v2442, %v2471
          %v2514 = vadd.f32 %v2443, %v2471
          %v2515 = vadd.f32 %v2444, %v2471
          %v2516 = vadd.f32 %v2445, %v2471
          %v2517 = vadd.f32 %v2446, %v2471
          %v2518 = vadd.f32 %v2447, %v2471
          %v2519 = vadd.f32 %v2448, %v2471
          %v2520 = vadd.f32 %v2449, %v2471
          %v2521 = vadd.f32 %v2450, %v2471
          %v2522 = vadd.f32 %v2451, %v2471
          %v2523 = vadd.f32 %v2452, %v2471
          %v2524 = vadd.f32 %v2453, %v2471
          %v2525 = vadd.f32 %v2454, %v2471
          %v2526 = vadd.f32 %v2455, %v2471
          %v2527 = vadd.f32 %v2456, %v2471
          %v2528 = vadd.f32 %v2457, %v2471
          %v2529 = vadd.f32 %v2458, %v2471
          %v2530 = vadd.f32 %v2459, %v2471
          %v2531 = vadd.f32 %v2460, %v2471
          %v2532 = vadd.f32 %v2461, %v2471
          %v2533 = vadd.f32 %v2462, %v2471
          %v2534 = vadd.f32 %v2463, %v2471
          %v2535 = vadd.f32 %v2464, %v2471
          %v2536 = vadd.f32 %v2465, %v2471
          %v2537 = vmax.f32 %v2473, 0.0
          %v2538 = vmax.f32 %v2474, 0.0
          %v2539 = vmax.f32 %v2475, 0.0
          %v2540 = vmax.f32 %v2476, 0.0
          %v2541 = vmax.f32 %v2477, 0.0
          %v2542 = vmax.f32 %v2478, 0.0
          %v2543 = vmax.f32 %v2479, 0.0
          %v2544 = vmax.f32 %v2480, 0.0
          %v2545 = vmax.f32 %v2481, 0.0
          %v2546 = vmax.f32 %v2482, 0.0
          %v2547 = vmax.f32 %v2483, 0.0
          %v2548 = vmax.f32 %v2484, 0.0
          %v2549 = vmax.f32 %v2485, 0.0
          %v2550 = vmax.f32 %v2486, 0.0
          %v2551 = vmax.f32 %v2487, 0.0
          %v2552 = vmax.f32 %v2488, 0.0
          %v2553 = vmax.f32 %v2489, 0.0
          %v2554 = vmax.f32 %v2490, 0.0
          %v2555 = vmax.f32 %v2491, 0.0
          %v2556 = vmax.f32 %v2492, 0.0
          %v2557 = vmax.f32 %v2493, 0.0
          %v2558 = vmax.f32 %v2494, 0.0
          %v2559 = vmax.f32 %v2495, 0.0
          %v2560 = vmax.f32 %v2496, 0.0
          %v2561 = vmax.f32 %v2497, 0.0
          %v2562 = vmax.f32 %v2498, 0.0
          %v2563 = vmax.f32 %v2499, 0.0
          %v2564 = vmax.f32 %v2500, 0.0
          %v2565 = vmax.f32 %v2501, 0.0
          %v2566 = vmax.f32 %v2502, 0.0
          %v2567 = vmax.f32 %v2503, 0.0
          %v2568 = vmax.f32 %v2504, 0.0
          %v2569 = vmax.f32 %v2505, 0.0
          %v2570 = vmax.f32 %v2506, 0.0
          %v2571 = vmax.f32 %v2507, 0.0
          %v2572 = vmax.f32 %v2508, 0.0
          %v2573 = vmax.f32 %v2509, 0.0
          %v2574 = vmax.f32 %v2510, 0.0
          %v2575 = vmax.f32 %v2511, 0.0
          %v2576 = vmax.f32 %v2512, 0.0
          %v2577 = vmax.f32 %v2513, 0.0
          %v2578 = vmax.f32 %v2514, 0.0
          %v2579 = vmax.f32 %v2515, 0.0
          %v2580 = vmax.f32 %v2516, 0.0
          %v2581 = vmax.f32 %v2517, 0.0
          %v2582 = vmax.f32 %v2518, 0.0
          %v2583 = vmax.f32 %v2519, 0.0
          %v2584 = vmax.f32 %v2520, 0.0
          %v2585 = vmax.f32 %v2521, 0.0
          %v2586 = vmax.f32 %v2522, 0.0
          %v2587 = vmax.f32 %v2523, 0.0
          %v2588 = vmax.f32 %v2524, 0.0
          %v2589 = vmax.f32 %v2525, 0.0
          %v2590 = vmax.f32 %v2526, 0.0
          %v2591 = vmax.f32 %v2527, 0.0
          %v2592 = vmax.f32 %v2528, 0.0
          %v2593 = vmax.f32 %v2529, 0.0
          %v2594 = vmax.f32 %v2530, 0.0
          %v2595 = vmax.f32 %v2531, 0.0
          %v2596 = vmax.f32 %v2532, 0.0
          %v2597 = vmax.f32 %v2533, 0.0
          %v2598 = vmax.f32 %v2534, 0.0
          %v2599 = vmax.f32 %v2535, 0.0
          %v2600 = vmax.f32 %v2536, 0.0
          %v2601 = vld [vmem:[%s527] sm:$0xff]
          %v2603 = vcombine.high %v2601, %v2601
          %v2605 = vunpack.c.l.s4 1983009808
          %v2606 = vunpack.c.0.s8 %v2605
          %v2607 = vlaneseq
          %v2608 = vshrl.u32 %v2607, 7
          %v2609 = vsub.s32 %v2606, %v2608
          %v2610 = vrot.slane %v2601, %v2609
          %v2612 = vunpack.c.l.s4 1983009808
          %v2613 = vunpack.c.0.s8 %v2612
          %v2614 = vlaneseq
          %v2615 = vshrl.u32 %v2614, 7
          %v2616 = vsub.s32 %v2613, %v2615
          %v2617 = vrot.slane %v2603, %v2616
          %v2618 = vcombine.high %v2610, %v2610
          %v2619 = vcombine.high %v2617, %v2617
          %2624 = vmatprep.subr.mxu0 0.0
          %2625 = vmatpush1.msra.mxu0 %v2552
          %2626 = vmatprep.subr.mxu0 0.0
          %2627 = vmatpush1.msra.mxu0 %v2551
          %2628 = vmatprep.subr.mxu0 0.0
          %2629 = vmatpush1.msra.mxu0 %v2550
          %2630 = vmatprep.subr.mxu0 0.0
          %2631 = vmatpush1.msra.mxu0 %v2549
          %2632 = vmatprep.subr.mxu0 0.0
          %2633 = vmatpush1.msra.mxu0 %v2548
          %2634 = vmatprep.subr.mxu0 0.0
          %2635 = vmatpush1.msra.mxu0 %v2547
          %2636 = vmatprep.subr.mxu0 0.0
          %2637 = vmatpush1.msra.mxu0 %v2546
          %2638 = vmatprep.subr.mxu0 0.0
          %2639 = vmatpush1.msra.mxu0 %v2545
          %2640 = vmatprep.subr.mxu0 0.0
          %2641 = vmatpush1.msra.mxu0 %v2544
          %2642 = vmatprep.subr.mxu0 0.0
          %2643 = vmatpush1.msra.mxu0 %v2543
          %2644 = vmatprep.subr.mxu0 0.0
          %2645 = vmatpush1.msra.mxu0 %v2542
          %2646 = vmatprep.subr.mxu0 0.0
          %2647 = vmatpush1.msra.mxu0 %v2541
          %2648 = vmatprep.subr.mxu0 0.0
          %2649 = vmatpush1.msra.mxu0 %v2540
          %2650 = vmatprep.subr.mxu0 0.0
          %2651 = vmatpush1.msra.mxu0 %v2539
          %2652 = vmatprep.subr.mxu0 0.0
          %2653 = vmatpush1.msra.mxu0 %v2538
          %2654 = vmatprep.subr.mxu0 0.0
          %2655 = vmatpush1.msra.mxu0 %v2537
          %2656 = vmatprep.subr.mxu0 0.0
          %2657 = vmatpush2.msra.mxu0 %v2568
          %2658 = vmatprep.subr.mxu0 0.0
          %2659 = vmatpush2.msra.mxu0 %v2567
          %2660 = vmatprep.subr.mxu0 0.0
          %2661 = vmatpush2.msra.mxu0 %v2566
          %2662 = vmatprep.subr.mxu0 0.0
          %2663 = vmatpush2.msra.mxu0 %v2565
          %2664 = vmatprep.subr.mxu0 0.0
          %2665 = vmatpush2.msra.mxu0 %v2564
          %2666 = vmatprep.subr.mxu0 0.0
          %2667 = vmatpush2.msra.mxu0 %v2563
          %2668 = vmatprep.subr.mxu0 0.0
          %2669 = vmatpush2.msra.mxu0 %v2562
          %2670 = vmatprep.subr.mxu0 0.0
          %2671 = vmatpush2.msra.mxu0 %v2561
          %2672 = vmatprep.subr.mxu0 0.0
          %2673 = vmatpush2.msra.mxu0 %v2560
          %2674 = vmatprep.subr.mxu0 0.0
          %2675 = vmatpush2.msra.mxu0 %v2559
          %2676 = vmatprep.subr.mxu0 0.0
          %2677 = vmatpush2.msra.mxu0 %v2558
          %2678 = vmatprep.subr.mxu0 0.0
          %2679 = vmatpush2.msra.mxu0 %v2557
          %2680 = vmatprep.subr.mxu0 0.0
          %2681 = vmatpush2.msra.mxu0 %v2556
          %2682 = vmatprep.subr.mxu0 0.0
          %2683 = vmatpush2.msra.mxu0 %v2555
          %2684 = vmatprep.subr.mxu0 0.0
          %2685 = vmatpush2.msra.mxu0 %v2554
          %2686 = vmatprep.subr.mxu0 0.0
          %2687 = vmatpush2.msra.mxu0 %v2553
          %2688 = vmatprep.mubr.f32.mxu0 %v2618
          %2689 = vmatmul.mubr.f32.gmra.mxu0 %v2610
          %v2690 = vpop.f32.mrf.mxu0
          %v2691 = vadd.f32 0.0, %v2690
          %v2692 = vpop.f32.mrf.mxu0
          %2693 = vdwg.mxu0
          %2694 = vmatprep.subr.mxu0 0.0
          %2695 = vmatpush1.msra.mxu0 %v2584
          %2696 = vmatprep.subr.mxu0 0.0
          %2697 = vmatpush1.msra.mxu0 %v2583
          %2698 = vmatprep.subr.mxu0 0.0
          %2699 = vmatpush1.msra.mxu0 %v2582
          %2700 = vmatprep.subr.mxu0 0.0
          %2701 = vmatpush1.msra.mxu0 %v2581
          %2702 = vmatprep.subr.mxu0 0.0
          %2703 = vmatpush1.msra.mxu0 %v2580
          %2704 = vmatprep.subr.mxu0 0.0
          %2705 = vmatpush1.msra.mxu0 %v2579
          %2706 = vmatprep.subr.mxu0 0.0
          %2707 = vmatpush1.msra.mxu0 %v2578
          %2708 = vmatprep.subr.mxu0 0.0
          %2709 = vmatpush1.msra.mxu0 %v2577
          %2710 = vmatprep.subr.mxu0 0.0
          %2711 = vmatpush1.msra.mxu0 %v2576
          %2712 = vmatprep.subr.mxu0 0.0
          %2713 = vmatpush1.msra.mxu0 %v2575
          %2714 = vmatprep.subr.mxu0 0.0
          %2715 = vmatpush1.msra.mxu0 %v2574
          %2716 = vmatprep.subr.mxu0 0.0
          %2717 = vmatpush1.msra.mxu0 %v2573
          %2718 = vmatprep.subr.mxu0 0.0
          %2719 = vmatpush1.msra.mxu0 %v2572
          %2720 = vmatprep.subr.mxu0 0.0
          %2721 = vmatpush1.msra.mxu0 %v2571
          %2722 = vmatprep.subr.mxu0 0.0
          %2723 = vmatpush1.msra.mxu0 %v2570
          %2724 = vmatprep.subr.mxu0 0.0
          %2725 = vmatpush1.msra.mxu0 %v2569
          %2726 = vmatprep.subr.mxu0 0.0
          %2727 = vmatpush2.msra.mxu0 %v2600
          %2728 = vmatprep.subr.mxu0 0.0
          %2729 = vmatpush2.msra.mxu0 %v2599
          %2730 = vmatprep.subr.mxu0 0.0
          %2731 = vmatpush2.msra.mxu0 %v2598
          %2732 = vmatprep.subr.mxu0 0.0
          %2733 = vmatpush2.msra.mxu0 %v2597
          %2734 = vmatprep.subr.mxu0 0.0
          %2735 = vmatpush2.msra.mxu0 %v2596
          %2736 = vmatprep.subr.mxu0 0.0
          %2737 = vmatpush2.msra.mxu0 %v2595
          %2738 = vmatprep.subr.mxu0 0.0
          %2739 = vmatpush2.msra.mxu0 %v2594
          %2740 = vmatprep.subr.mxu0 0.0
          %2741 = vmatpush2.msra.mxu0 %v2593
          %2742 = vmatprep.subr.mxu0 0.0
          %2743 = vmatpush2.msra.mxu0 %v2592
          %2744 = vmatprep.subr.mxu0 0.0
          %2745 = vmatpush2.msra.mxu0 %v2591
          %2746 = vmatprep.subr.mxu0 0.0
          %2747 = vmatpush2.msra.mxu0 %v2590
          %2748 = vmatprep.subr.mxu0 0.0
          %2749 = vmatpush2.msra.mxu0 %v2589
          %2750 = vmatprep.subr.mxu0 0.0
          %2751 = vmatpush2.msra.mxu0 %v2588
          %2752 = vmatprep.subr.mxu0 0.0
          %2753 = vmatpush2.msra.mxu0 %v2587
          %2754 = vmatprep.subr.mxu0 0.0
          %2755 = vmatpush2.msra.mxu0 %v2586
          %2756 = vmatprep.subr.mxu0 0.0
          %2757 = vmatpush2.msra.mxu0 %v2585
          %2758 = vmatprep.mubr.f32.mxu0 %v2619
          %2759 = vmatmul.mubr.f32.gmra.mxu0 %v2617
          %v2760 = vpop.f32.mrf.mxu0
          %v2761 = vadd.f32 %v2691, %v2760
          %v2762 = vpop.f32.mrf.mxu0
          %2763 = vdwg.mxu0
          %vm2764 = vcmask 58368
          %2765 = vst.msk [vmem:[%s532] sm:$0x3] %vm2764, %v2761
        $region67: #{tdrumor_forward.5} parent=54 // pred_fallthru
          _
        %p2766 = scmp.lt.s32.totalorder %s19, 1
        %s2767 = scalar_select %p2766, %s19, 1
        %s2768 = smul.addr %s2767, 2
        %s2769 = scalar_lea.vmem %s4, %s2768
        // Predicated region
        $region68: #{tdrumor_forward.5} parent=54 // pred_check
          %p2770 = pneg %p146
        $region69: #{tdrumor_forward.5} parent=54 // pred_check_branch
          %2772 = sbr.rel (%p2770) target = $region71
        $region70: #{tdrumor_forward.5} parent=54 // pred_region
          _
        $region71: #{tdrumor_forward.5} parent=54 // pred_fallthru
          _
      $region55: #{tdrumor_forward.5} parent=5 // pred_fallthru
        _
      %p2773 = scmp.le.s32.totalorder 2, %s10
      // Predicated region
      $region72: #{tdrumor_forward.5} parent=5 // pred_check
        %p2774 = pneg %p2773
      $region73: #{tdrumor_forward.5} parent=5 // pred_check_branch
        %2776 = sbr.rel (%p2774) target = $region75
      $region74: #{tdrumor_forward.5} parent=5 // pred_region
        %s2777 = ssub.s32 %s10, 2
        // Predicated region
        $region76: #{tdrumor_forward.5} parent=74 // pred_check
          %p2778 = pneg %p152
        $region77: #{tdrumor_forward.5} parent=74 // pred_check_branch
          %2780 = sbr.rel (%p2778) target = $region79
        $region78: #{tdrumor_forward.5} parent=74 // pred_region
          %p2781 = scmp.lt.s32.totalorder %s21, 1
          %s2782 = scalar_select %p2781, %s21, 1
          %s2783 = smul.addr %s2782, 2
          %s2784 = scalar_lea.vmem %s4, %s2783
        $region79: #{tdrumor_forward.5} parent=74 // pred_fallthru
          _
      $region75: #{tdrumor_forward.5} parent=5 // pred_fallthru
        _
    $region6: #{tdrumor_forward.5} parent=1 // loop_footer
      %s14 = sadd.s32 1, %s10
    $region7: #{tdrumor_forward.5} parent=1 // loop_footer_branch
      %9 = sbr.rel target = $region3
    $region8: #{tdrumor_forward.5} parent=1 // loop_exit
      _

// kernel: tdrumor_forward.4
$region0: #{tdrumor_forward.4}
  #allocation0 [shape = 'u32[]', space=smem, size = 0x4, offset = 0x4, fixed_abs, tag = 'smem constant byte address 0x4 - core index']
  #allocation1 [shape = 'u32[144,128]{1,0:T(1,128)}', space=vmem, size = 0x12000, scoped, tag = 'internal scratch']
  #allocation2 [shape = 'f32[512,16]{1,0:T(8,128)}', space=vmem, size = 0x40000, scoped, tag = 'scratch operand']
  %s0 = inlined_call_operand.vmem [shape: bf16[1024,1024], index: 0, kind: input, shape index: {}]
  %s1 = inlined_call_operand.vmem [shape: bf16[1024,16], index: 1, kind: input, shape index: {}]
  %s2 = inlined_call_operand.vmem [shape: f32[1,16], index: 2, kind: input, shape index: {}]
  %s3 = inlined_call_operand.vmem [shape: bf16[16,8], index: 3, kind: input, shape index: {}]
  %s4 = inlined_call_operand.vmem [shape: f32[1024,8], index: 4, kind: input, shape index: {}]
  %s5 = inlined_call_operand.vmem [shape: f32[1024,16], index: 5, kind: output, shape index: {0}]
  %s6 = inlined_call_operand.vmem [shape: bf16[1024,8], index: 6, kind: output, shape index: {1}]
  %7 = xla_tuple %s5, %s6
  %s8 = sld [smem:[#allocation0]]
  $region92: #{tdrumor_forward.4} parent=0
    _
  %s10 = ssub.s32 1, %s8
  %s11 = scalar_select 0, %s10, %s8
  $region1: #{tdrumor_forward.4} parent=0
    #allocation3 [shape = 'u8[1048576]{0}', space=vmem, size = 0x100000, scoped, tag = 'input window, operand 0']
    loop: start=0, step=1, limit=6
    $region2: #{tdrumor_forward.4} parent=1 // loop_pre_header
      _
    $region3: #{tdrumor_forward.4} parent=1 // loop_header
      %s13 = sphi 0, %s17
      %p14 = scmp.ge.s32.totalorder %s13, 6
      %s20 = sphi 0, %s32
      %s21 = sphi 0, %s28
      %s22 = sphi 0, %s20
      %s23 = sphi 0, %s21
      %s24 = sphi 0, %s22
      %s25 = sphi 0, %s23
      %s37 = sphi 0, %s39
      %s40 = sphi 0, %s37
      %s41 = sphi 0, %s40
      %s57 = sphi 0, %s41
      %s63 = sphi 0, %s65
      %s66 = sphi 0, %s63
      %s67 = sphi 0, %s66
      %s83 = sphi 0, %s67
      %s87 = sphi 0, %s87
      %s89 = sphi 0, %s87
      %s90 = sphi 0, %s89
      %s104 = sphi 0, %s90
      %s108 = sphi 0, %s108
      %s110 = sphi 0, %s108
      %s111 = sphi 0, %s110
      %s125 = sphi 0, %s111
      %s131 = sphi 0, %s133
      %s134 = sphi 0, %s131
      %s135 = sphi 0, %s134
      %s151 = sphi 0, %s135
      %s157 = sphi 0, %s159
      %s160 = sphi 0, %s157
      %s161 = sphi 0, %s160
      %s177 = sphi 0, %s161
      %s183 = sphi 0, %s185
      %s186 = sphi 0, %s183
      %s187 = sphi 0, %s186
      %s203 = sphi 0, %s187
    $region4: #{tdrumor_forward.4} parent=1 // loop_header_branch
      %16 = sbr.rel (%p14) target = $region8
    $region5: #{tdrumor_forward.4} parent=1 // loop_body
      %s18 = ssub.s32 %s13, 1
      %s19 = ssub.s32 %s13, 2
      %s26 = sadd.s32 1, %s21
      %p27 = scmp.ge.s32.totalorder %s26, 2
      %s28 = scalar_select %p27, 0, %s26
      %s29 = sadd.s32 1, %s20
      %s30 = scalar_select %p27, %s29, %s20
      %p31 = scmp.ge.s32.totalorder %s30, 2
      %s32 = scalar_select %p31, 0, %s30
      %s33 = ssub.s32 %s20, %s32
      %s34 = ssub.s32 %s21, %s28
      %s35 = sor.u32 %s33, %s34
      %p36 = scmp.eq.s32.totalorder %s35, 0
      %s38 = sadd.s32 %s37, 1
      %s39 = scalar_select %p36, %s37, %s38
      %p42 = pneg %p36
      %p43 = scmp.eq.s32.totalorder %s13, 3
      %p44 = por %p42, %p43
      %p45 = scmp.ne.s32.totalorder %s37, %s40
      %p46 = scmp.eq.s32.totalorder %s13, 0
      %p47 = por %p45, %p46
      %p48 = scmp.ne.s32.totalorder %s37, %s40
      %p49 = scmp.eq.s32.totalorder %s18, 3
      %p50 = por %p48, %p49
      %p51 = scmp.ne.s32.totalorder %s40, %s41
      %p52 = scmp.eq.s32.totalorder %s18, 0
      %p53 = por %p51, %p52
      %p54 = scmp.ne.s32.totalorder %s40, %s41
      %p55 = scmp.eq.s32.totalorder %s19, 3
      %p56 = por %p54, %p55
      %p58 = scmp.ne.s32.totalorder %s41, %s57
      %p59 = scmp.eq.s32.totalorder %s19, 0
      %p60 = por %p58, %p59
      %s61 = ssub.s32 %s21, %s28
      %p62 = scmp.eq.s32.totalorder %s61, 0
      %s64 = sadd.s32 %s63, 1
      %s65 = scalar_select %p62, %s63, %s64
      %p68 = pneg %p62
      %p69 = scmp.eq.s32.totalorder %s13, 3
      %p70 = por %p68, %p69
      %p71 = scmp.ne.s32.totalorder %s63, %s66
      %p72 = scmp.eq.s32.totalorder %s13, 0
      %p73 = por %p71, %p72
      %p74 = scmp.ne.s32.totalorder %s63, %s66
      %p75 = scmp.eq.s32.totalorder %s18, 3
      %p76 = por %p74, %p75
      %p77 = scmp.ne.s32.totalorder %s66, %s67
      %p78 = scmp.eq.s32.totalorder %s18, 0
      %p79 = por %p77, %p78
      %p80 = scmp.ne.s32.totalorder %s66, %s67
      %p81 = scmp.eq.s32.totalorder %s19, 3
      %p82 = por %p80, %p81
      %p84 = scmp.ne.s32.totalorder %s67, %s83
      %p85 = scmp.eq.s32.totalorder %s19, 0
      %p86 = por %p84, %p85
      %s88 = sadd.s32 %s87, 1
      %p91 = scmp.eq.s32.totalorder %s13, 3
      %p92 = scmp.ne.s32.totalorder %s87, %s89
      %p93 = scmp.eq.s32.totalorder %s13, 0
      %p94 = por %p92, %p93
      %p95 = scmp.ne.s32.totalorder %s87, %s89
      %p96 = scmp.eq.s32.totalorder %s18, 3
      %p97 = por %p95, %p96
      %p98 = scmp.ne.s32.totalorder %s89, %s90
      %p99 = scmp.eq.s32.totalorder %s18, 0
      %p100 = por %p98, %p99
      %p101 = scmp.ne.s32.totalorder %s89, %s90
      %p102 = scmp.eq.s32.totalorder %s19, 3
      %p103 = por %p101, %p102
      %p105 = scmp.ne.s32.totalorder %s90, %s104
      %p106 = scmp.eq.s32.totalorder %s19, 0
      %p107 = por %p105, %p106
      %s109 = sadd.s32 %s108, 1
      %p112 = scmp.eq.s32.totalorder %s13, 3
      %p113 = scmp.ne.s32.totalorder %s108, %s110
      %p114 = scmp.eq.s32.totalorder %s13, 0
      %p115 = por %p113, %p114
      %p116 = scmp.ne.s32.totalorder %s108, %s110
      %p117 = scmp.eq.s32.totalorder %s18, 3
      %p118 = por %p116, %p117
      %p119 = scmp.ne.s32.totalorder %s110, %s111
      %p120 = scmp.eq.s32.totalorder %s18, 0
      %p121 = por %p119, %p120
      %p122 = scmp.ne.s32.totalorder %s110, %s111
      %p123 = scmp.eq.s32.totalorder %s19, 3
      %p124 = por %p122, %p123
      %p126 = scmp.ne.s32.totalorder %s111, %s125
      %p127 = scmp.eq.s32.totalorder %s19, 0
      %p128 = por %p126, %p127
      %s129 = ssub.s32 %s20, %s32
      %p130 = scmp.eq.s32.totalorder %s129, 0
      %s132 = sadd.s32 %s131, 1
      %s133 = scalar_select %p130, %s131, %s132
      %p136 = pneg %p130
      %p137 = scmp.eq.s32.totalorder %s13, 3
      %p138 = por %p136, %p137
      %p139 = scmp.ne.s32.totalorder %s131, %s134
      %p140 = scmp.eq.s32.totalorder %s13, 0
      %p141 = por %p139, %p140
      %p142 = scmp.ne.s32.totalorder %s131, %s134
      %p143 = scmp.eq.s32.totalorder %s18, 3
      %p144 = por %p142, %p143
      %p145 = scmp.ne.s32.totalorder %s134, %s135
      %p146 = scmp.eq.s32.totalorder %s18, 0
      %p147 = por %p145, %p146
      %p148 = scmp.ne.s32.totalorder %s134, %s135
      %p149 = scmp.eq.s32.totalorder %s19, 3
      %p150 = por %p148, %p149
      %p152 = scmp.ne.s32.totalorder %s135, %s151
      %p153 = scmp.eq.s32.totalorder %s19, 0
      %p154 = por %p152, %p153
      %s155 = ssub.s32 %s20, %s32
      %p156 = scmp.eq.s32.totalorder %s155, 0
      %s158 = sadd.s32 %s157, 1
      %s159 = scalar_select %p156, %s157, %s158
      %p162 = pneg %p156
      %p163 = scmp.eq.s32.totalorder %s13, 3
      %p164 = por %p162, %p163
      %p165 = scmp.ne.s32.totalorder %s157, %s160
      %p166 = scmp.eq.s32.totalorder %s13, 0
      %p167 = por %p165, %p166
      %p168 = scmp.ne.s32.totalorder %s157, %s160
      %p169 = scmp.eq.s32.totalorder %s18, 3
      %p170 = por %p168, %p169
      %p171 = scmp.ne.s32.totalorder %s160, %s161
      %p172 = scmp.eq.s32.totalorder %s18, 0
      %p173 = por %p171, %p172
      %p174 = scmp.ne.s32.totalorder %s160, %s161
      %p175 = scmp.eq.s32.totalorder %s19, 3
      %p176 = por %p174, %p175
      %p178 = scmp.ne.s32.totalorder %s161, %s177
      %p179 = scmp.eq.s32.totalorder %s19, 0
      %p180 = por %p178, %p179
      %s181 = ssub.s32 %s20, %s32
      %p182 = scmp.eq.s32.totalorder %s181, 0
      %s184 = sadd.s32 %s183, 1
      %s185 = scalar_select %p182, %s183, %s184
      %p188 = pneg %p182
      %p189 = scmp.eq.s32.totalorder %s13, 3
      %p190 = por %p188, %p189
      %p191 = scmp.ne.s32.totalorder %s183, %s186
      %p192 = scmp.eq.s32.totalorder %s13, 0
      %p193 = por %p191, %p192
      %p194 = scmp.ne.s32.totalorder %s183, %s186
      %p195 = scmp.eq.s32.totalorder %s18, 3
      %p196 = por %p194, %p195
      %p197 = scmp.ne.s32.totalorder %s186, %s187
      %p198 = scmp.eq.s32.totalorder %s18, 0
      %p199 = por %p197, %p198
      %p200 = scmp.ne.s32.totalorder %s186, %s187
      %p201 = scmp.eq.s32.totalorder %s19, 3
      %p202 = por %p200, %p201
      %p204 = scmp.ne.s32.totalorder %s187, %s203
      %p205 = scmp.eq.s32.totalorder %s19, 0
      %p206 = por %p204, %p205
      %p207 = scmp.le.s32.totalorder 1, %s13
      %p208 = scmp.lt.s32.totalorder %s13, 5
      %p209 = pnand %p207, %p208
      %p210 = pneg %p209
      // Predicated region
      $region9: #{tdrumor_forward.4} parent=5 // pred_check
        _
      $region10: #{tdrumor_forward.4} parent=5 // pred_check_branch
        %212 = sbr.rel (%p209) target = $region12
      $region11: #{tdrumor_forward.4} parent=5 // pred_region
        %s213 = ssub.s32 %s13, 1
        // Predicated region
        $region13: #{tdrumor_forward.4} parent=11 // pred_check
          %p214 = pneg %p100
        $region14: #{tdrumor_forward.4} parent=11 // pred_check_branch
          %216 = sbr.rel (%p214) target = $region16
        $region15: #{tdrumor_forward.4} parent=11 // pred_region
          _
        $region16: #{tdrumor_forward.4} parent=11 // pred_fallthru
          _
        // Predicated region
        $region17: #{tdrumor_forward.4} parent=11 // pred_check
          %p217 = pneg %p121
        $region18: #{tdrumor_forward.4} parent=11 // pred_check_branch
          %219 = sbr.rel (%p217) target = $region20
        $region19: #{tdrumor_forward.4} parent=11 // pred_region
          _
        $region20: #{tdrumor_forward.4} parent=11 // pred_fallthru
          _
      $region12: #{tdrumor_forward.4} parent=5 // pred_fallthru
        _
      %p220 = scmp.lt.s32.totalorder %s13, 4
      // Predicated region
      $region21: #{tdrumor_forward.4} parent=5 // pred_check
        %p221 = pneg %p220
      $region22: #{tdrumor_forward.4} parent=5 // pred_check_branch
        %223 = sbr.rel (%p221) target = $region24
      $region23: #{tdrumor_forward.4} parent=5 // pred_region
        // Predicated region
        $region25: #{tdrumor_forward.4} parent=23 // pred_check
          %p224 = pneg %p47
        $region26: #{tdrumor_forward.4} parent=23 // pred_check_branch
          %226 = sbr.rel (%p224) target = $region28
        $region27: #{tdrumor_forward.4} parent=23 // pred_region
          %s227 = sand.u32 %s37, 1
          %s228 = sand.u32 %s37, 1
          %s229 = smul.addr %s228, 1024
          %s230 = scalar_lea.vmem [#allocation3], %s229
          %s231 = smul.u32 64, %s20
          %s232 = smul.u32 4, %s21
          %s233 = smul.addr %s231, 8
          %s234 = sadd.s32 %s232, %s233
          %s235 = smul.addr %s234, 4
          %s236 = scalar_lea.vmem %s0, %s235
          // Predicated region
          $region29: #{tdrumor_forward.4} parent=27 // pred_check
            _
          $region30: #{tdrumor_forward.4} parent=27 // pred_check_branch
            %238 = sbr.rel (0) target = $region32
          $region31: #{tdrumor_forward.4} parent=27 // pred_region
            // Predicated region
            $region33: #{tdrumor_forward.4} parent=31 // pred_check
              _
            $region34: #{tdrumor_forward.4} parent=31 // pred_check_branch
              %240 = sbr.rel (0) target = $region36
            $region35: #{tdrumor_forward.4} parent=31 // pred_region
              loop: start=0, step=1, limit=1
              $region37: #{tdrumor_forward.4} parent=35 // loop_pre_header
                _
              $region38: #{tdrumor_forward.4} parent=35 // loop_header
                %s242 = sphi 0, %s246
                %p243 = scmp.ge.s32.totalorder %s242, 1
                %s247 = sphi %s236, %s236
                %s248 = sphi %s230, %s230
              $region39: #{tdrumor_forward.4} parent=35 // loop_header_branch
                %245 = sbr.rel (%p243) target = $region43
              $region40: #{tdrumor_forward.4} parent=35 // loop_body
                %v249 = vld [vmem:[%s247] sm:$0xff]
                %250 = vst [vmem:[%s248] sm:$0xff] %v249
                %v251 = vld [vmem:[%s247 + $0x8] sm:$0xff]
                %252 = vst [vmem:[%s248 + $0x8] sm:$0xff] %v251
                %v253 = vld [vmem:[%s247 + $0x20] sm:$0xff]
                %254 = vst [vmem:[%s248 + $0x10] sm:$0xff] %v253
                %v255 = vld [vmem:[%s247 + $0x28] sm:$0xff]
                %256 = vst [vmem:[%s248 + $0x18] sm:$0xff] %v255
                %v257 = vld [vmem:[%s247 + $0x40] sm:$0xff]
                %258 = vst [vmem:[%s248 + $0x20] sm:$0xff] %v257
                %v259 = vld [vmem:[%s247 + $0x48] sm:$0xff]
                %260 = vst [vmem:[%s248 + $0x28] sm:$0xff] %v259
                %v261 = vld [vmem:[%s247 + $0x60] sm:$0xff]
                %262 = vst [vmem:[%s248 + $0x30] sm:$0xff] %v261
                %v263 = vld [vmem:[%s247 + $0x68] sm:$0xff]
                %264 = vst [vmem:[%s248 + $0x38] sm:$0xff] %v263
                %v265 = vld [vmem:[%s247 + $0x80] sm:$0xff]
                %266 = vst [vmem:[%s248 + $0x40] sm:$0xff] %v265
                %v267 = vld [vmem:[%s247 + $0x88] sm:$0xff]
                %268 = vst [vmem:[%s248 + $0x48] sm:$0xff] %v267
                %v269 = vld [vmem:[%s247 + $0xa0] sm:$0xff]
                %270 = vst [vmem:[%s248 + $0x50] sm:$0xff] %v269
                %v271 = vld [vmem:[%s247 + $0xa8] sm:$0xff]
                %272 = vst [vmem:[%s248 + $0x58] sm:$0xff] %v271
                %v273 = vld [vmem:[%s247 + $0xc0] sm:$0xff]
                %274 = vst [vmem:[%s248 + $0x60] sm:$0xff] %v273
                %v275 = vld [vmem:[%s247 + $0xc8] sm:$0xff]
                %276 = vst [vmem:[%s248 + $0x68] sm:$0xff] %v275
                %v277 = vld [vmem:[%s247 + $0xe0] sm:$0xff]
                %278 = vst [vmem:[%s248 + $0x70] sm:$0xff] %v277
                %v279 = vld [vmem:[%s247 + $0xe8] sm:$0xff]
                %280 = vst [vmem:[%s248 + $0x78] sm:$0xff] %v279
                %v281 = vld [vmem:[%s247 + $0x100] sm:$0xff]
                %282 = vst [vmem:[%s248 + $0x80] sm:$0xff] %v281
                %v283 = vld [vmem:[%s247 + $0x108] sm:$0xff]
                %284 = vst [vmem:[%s248 + $0x88] sm:$0xff] %v283
                %v285 = vld [vmem:[%s247 + $0x120] sm:$0xff]
                %286 = vst [vmem:[%s248 + $0x90] sm:$0xff] %v285
                %v287 = vld [vmem:[%s247 + $0x128] sm:$0xff]
                %288 = vst [vmem:[%s248 + $0x98] sm:$0xff] %v287
                %v289 = vld [vmem:[%s247 + $0x140] sm:$0xff]
                %290 = vst [vmem:[%s248 + $0xa0] sm:$0xff] %v289
                %v291 = vld [vmem:[%s247 + $0x148] sm:$0xff]
                %292 = vst [vmem:[%s248 + $0xa8] sm:$0xff] %v291
                %v293 = vld [vmem:[%s247 + $0x160] sm:$0xff]
                %294 = vst [vmem:[%s248 + $0xb0] sm:$0xff] %v293
                %v295 = vld [vmem:[%s247 + $0x168] sm:$0xff]
                %296 = vst [vmem:[%s248 + $0xb8] sm:$0xff] %v295
                %v297 = vld [vmem:[%s247 + $0x180] sm:$0xff]
                %298 = vst [vmem:[%s248 + $0xc0] sm:$0xff] %v297
                %v299 = vld [vmem:[%s247 + $0x188] sm:$0xff]
                %300 = vst [vmem:[%s248 + $0xc8] sm:$0xff] %v299
                %v301 = vld [vmem:[%s247 + $0x1a0] sm:$0xff]
                %302 = vst [vmem:[%s248 + $0xd0] sm:$0xff] %v301
                %v303 = vld [vmem:[%s247 + $0x1a8] sm:$0xff]
                %304 = vst [vmem:[%s248 + $0xd8] sm:$0xff] %v303
                %v305 = vld [vmem:[%s247 + $0x1c0] sm:$0xff]
                %306 = vst [vmem:[%s248 + $0xe0] sm:$0xff] %v305
                %v307 = vld [vmem:[%s247 + $0x1c8] sm:$0xff]
                %308 = vst [vmem:[%s248 + $0xe8] sm:$0xff] %v307
                %v309 = vld [vmem:[%s247 + $0x1e0] sm:$0xff]
                %310 = vst [vmem:[%s248 + $0xf0] sm:$0xff] %v309
                %v311 = vld [vmem:[%s247 + $0x1e8] sm:$0xff]
                %312 = vst [vmem:[%s248 + $0xf8] sm:$0xff] %v311
                %v313 = vld [vmem:[%s247 + $0x200] sm:$0xff]
                %314 = vst [vmem:[%s248 + $0x100] sm:$0xff] %v313
                %v315 = vld [vmem:[%s247 + $0x208] sm:$0xff]
                %316 = vst [vmem:[%s248 + $0x108] sm:$0xff] %v315
                %v317 = vld [vmem:[%s247 + $0x220] sm:$0xff]
                %318 = vst [vmem:[%s248 + $0x110] sm:$0xff] %v317
                %v319 = vld [vmem:[%s247 + $0x228] sm:$0xff]
                %320 = vst [vmem:[%s248 + $0x118] sm:$0xff] %v319
                %v321 = vld [vmem:[%s247 + $0x240] sm:$0xff]
                %322 = vst [vmem:[%s248 + $0x120] sm:$0xff] %v321
                %v323 = vld [vmem:[%s247 + $0x248] sm:$0xff]
                %324 = vst [vmem:[%s248 + $0x128] sm:$0xff] %v323
                %v325 = vld [vmem:[%s247 + $0x260] sm:$0xff]
                %326 = vst [vmem:[%s248 + $0x130] sm:$0xff] %v325
                %v327 = vld [vmem:[%s247 + $0x268] sm:$0xff]
                %328 = vst [vmem:[%s248 + $0x138] sm:$0xff] %v327
                %v329 = vld [vmem:[%s247 + $0x280] sm:$0xff]
                %330 = vst [vmem:[%s248 + $0x140] sm:$0xff] %v329
                %v331 = vld [vmem:[%s247 + $0x288] sm:$0xff]
                %332 = vst [vmem:[%s248 + $0x148] sm:$0xff] %v331
                %v333 = vld [vmem:[%s247 + $0x2a0] sm:$0xff]
                %334 = vst [vmem:[%s248 + $0x150] sm:$0xff] %v333
                %v335 = vld [vmem:[%s247 + $0x2a8] sm:$0xff]
                %336 = vst [vmem:[%s248 + $0x158] sm:$0xff] %v335
                %v337 = vld [vmem:[%s247 + $0x2c0] sm:$0xff]
                %338 = vst [vmem:[%s248 + $0x160] sm:$0xff] %v337
                %v339 = vld [vmem:[%s247 + $0x2c8] sm:$0xff]
                %340 = vst [vmem:[%s248 + $0x168] sm:$0xff] %v339
                %v341 = vld [vmem:[%s247 + $0x2e0] sm:$0xff]
                %342 = vst [vmem:[%s248 + $0x170] sm:$0xff] %v341
                %v343 = vld [vmem:[%s247 + $0x2e8] sm:$0xff]
                %344 = vst [vmem:[%s248 + $0x178] sm:$0xff] %v343
                %v345 = vld [vmem:[%s247 + $0x300] sm:$0xff]
                %346 = vst [vmem:[%s248 + $0x180] sm:$0xff] %v345
                %v347 = vld [vmem:[%s247 + $0x308] sm:$0xff]
                %348 = vst [vmem:[%s248 + $0x188] sm:$0xff] %v347
                %v349 = vld [vmem:[%s247 + $0x320] sm:$0xff]
                %350 = vst [vmem:[%s248 + $0x190] sm:$0xff] %v349
                %v351 = vld [vmem:[%s247 + $0x328] sm:$0xff]
                %352 = vst [vmem:[%s248 + $0x198] sm:$0xff] %v351
                %v353 = vld [vmem:[%s247 + $0x340] sm:$0xff]
                %354 = vst [vmem:[%s248 + $0x1a0] sm:$0xff] %v353
                %v355 = vld [vmem:[%s247 + $0x348] sm:$0xff]
                %356 = vst [vmem:[%s248 + $0x1a8] sm:$0xff] %v355
                %v357 = vld [vmem:[%s247 + $0x360] sm:$0xff]
                %358 = vst [vmem:[%s248 + $0x1b0] sm:$0xff] %v357
                %v359 = vld [vmem:[%s247 + $0x368] sm:$0xff]
                %360 = vst [vmem:[%s248 + $0x1b8] sm:$0xff] %v359
                %v361 = vld [vmem:[%s247 + $0x380] sm:$0xff]
                %362 = vst [vmem:[%s248 + $0x1c0] sm:$0xff] %v361
                %v363 = vld [vmem:[%s247 + $0x388] sm:$0xff]
                %364 = vst [vmem:[%s248 + $0x1c8] sm:$0xff] %v363
                %v365 = vld [vmem:[%s247 + $0x3a0] sm:$0xff]
                %366 = vst [vmem:[%s248 + $0x1d0] sm:$0xff] %v365
                %v367 = vld [vmem:[%s247 + $0x3a8] sm:$0xff]
                %368 = vst [vmem:[%s248 + $0x1d8] sm:$0xff] %v367
                %v369 = vld [vmem:[%s247 + $0x3c0] sm:$0xff]
                %370 = vst [vmem:[%s248 + $0x1e0] sm:$0xff] %v369
                %v371 = vld [vmem:[%s247 + $0x3c8] sm:$0xff]
                %372 = vst [vmem:[%s248 + $0x1e8] sm:$0xff] %v371
                %v373 = vld [vmem:[%s247 + $0x3e0] sm:$0xff]
                %374 = vst [vmem:[%s248 + $0x1f0] sm:$0xff] %v373
                %v375 = vld [vmem:[%s247 + $0x3e8] sm:$0xff]
                %376 = vst [vmem:[%s248 + $0x1f8] sm:$0xff] %v375
                %v377 = vld [vmem:[%s247 + $0x400] sm:$0xff]
                %378 = vst [vmem:[%s248 + $0x200] sm:$0xff] %v377
                %v379 = vld [vmem:[%s247 + $0x408] sm:$0xff]
                %380 = vst [vmem:[%s248 + $0x208] sm:$0xff] %v379
                %v381 = vld [vmem:[%s247 + $0x420] sm:$0xff]
                %382 = vst [vmem:[%s248 + $0x210] sm:$0xff] %v381
                %v383 = vld [vmem:[%s247 + $0x428] sm:$0xff]
                %384 = vst [vmem:[%s248 + $0x218] sm:$0xff] %v383
                %v385 = vld [vmem:[%s247 + $0x440] sm:$0xff]
                %386 = vst [vmem:[%s248 + $0x220] sm:$0xff] %v385
                %v387 = vld [vmem:[%s247 + $0x448] sm:$0xff]
                %388 = vst [vmem:[%s248 + $0x228] sm:$0xff] %v387
                %v389 = vld [vmem:[%s247 + $0x460] sm:$0xff]
                %390 = vst [vmem:[%s248 + $0x230] sm:$0xff] %v389
                %v391 = vld [vmem:[%s247 + $0x468] sm:$0xff]
                %392 = vst [vmem:[%s248 + $0x238] sm:$0xff] %v391
                %v393 = vld [vmem:[%s247 + $0x480] sm:$0xff]
                %394 = vst [vmem:[%s248 + $0x240] sm:$0xff] %v393
                %v395 = vld [vmem:[%s247 + $0x488] sm:$0xff]
                %396 = vst [vmem:[%s248 + $0x248] sm:$0xff] %v395
                %v397 = vld [vmem:[%s247 + $0x4a0] sm:$0xff]
                %398 = vst [vmem:[%s248 + $0x250] sm:$0xff] %v397
                %v399 = vld [vmem:[%s247 + $0x4a8] sm:$0xff]
                %400 = vst [vmem:[%s248 + $0x258] sm:$0xff] %v399
                %v401 = vld [vmem:[%s247 + $0x4c0] sm:$0xff]
                %402 = vst [vmem:[%s248 + $0x260] sm:$0xff] %v401
                %v403 = vld [vmem:[%s247 + $0x4c8] sm:$0xff]
                %404 = vst [vmem:[%s248 + $0x268] sm:$0xff] %v403
                %v405 = vld [vmem:[%s247 + $0x4e0] sm:$0xff]
                %406 = vst [vmem:[%s248 + $0x270] sm:$0xff] %v405
                %v407 = vld [vmem:[%s247 + $0x4e8] sm:$0xff]
                %408 = vst [vmem:[%s248 + $0x278] sm:$0xff] %v407
                %v409 = vld [vmem:[%s247 + $0x500] sm:$0xff]
                %410 = vst [vmem:[%s248 + $0x280] sm:$0xff] %v409
                %v411 = vld [vmem:[%s247 + $0x508] sm:$0xff]
                %412 = vst [vmem:[%s248 + $0x288] sm:$0xff] %v411
                %v413 = vld [vmem:[%s247 + $0x520] sm:$0xff]
                %414 = vst [vmem:[%s248 + $0x290] sm:$0xff] %v413
                %v415 = vld [vmem:[%s247 + $0x528] sm:$0xff]
                %416 = vst [vmem:[%s248 + $0x298] sm:$0xff] %v415
                %v417 = vld [vmem:[%s247 + $0x540] sm:$0xff]
                %418 = vst [vmem:[%s248 + $0x2a0] sm:$0xff] %v417
                %v419 = vld [vmem:[%s247 + $0x548] sm:$0xff]
                %420 = vst [vmem:[%s248 + $0x2a8] sm:$0xff] %v419
                %v421 = vld [vmem:[%s247 + $0x560] sm:$0xff]
                %422 = vst [vmem:[%s248 + $0x2b0] sm:$0xff] %v421
                %v423 = vld [vmem:[%s247 + $0x568] sm:$0xff]
                %424 = vst [vmem:[%s248 + $0x2b8] sm:$0xff] %v423
                %v425 = vld [vmem:[%s247 + $0x580] sm:$0xff]
                %426 = vst [vmem:[%s248 + $0x2c0] sm:$0xff] %v425
                %v427 = vld [vmem:[%s247 + $0x588] sm:$0xff]
                %428 = vst [vmem:[%s248 + $0x2c8] sm:$0xff] %v427
                %v429 = vld [vmem:[%s247 + $0x5a0] sm:$0xff]
                %430 = vst [vmem:[%s248 + $0x2d0] sm:$0xff] %v429
                %v431 = vld [vmem:[%s247 + $0x5a8] sm:$0xff]
                %432 = vst [vmem:[%s248 + $0x2d8] sm:$0xff] %v431
                %v433 = vld [vmem:[%s247 + $0x5c0] sm:$0xff]
                %434 = vst [vmem:[%s248 + $0x2e0] sm:$0xff] %v433
                %v435 = vld [vmem:[%s247 + $0x5c8] sm:$0xff]
                %436 = vst [vmem:[%s248 + $0x2e8] sm:$0xff] %v435
                %v437 = vld [vmem:[%s247 + $0x5e0] sm:$0xff]
                %438 = vst [vmem:[%s248 + $0x2f0] sm:$0xff] %v437
                %v439 = vld [vmem:[%s247 + $0x5e8] sm:$0xff]
                %440 = vst [vmem:[%s248 + $0x2f8] sm:$0xff] %v439
                %v441 = vld [vmem:[%s247 + $0x600] sm:$0xff]
                %442 = vst [vmem:[%s248 + $0x300] sm:$0xff] %v441
                %v443 = vld [vmem:[%s247 + $0x608] sm:$0xff]
                %444 = vst [vmem:[%s248 + $0x308] sm:$0xff] %v443
                %v445 = vld [vmem:[%s247 + $0x620] sm:$0xff]
                %446 = vst [vmem:[%s248 + $0x310] sm:$0xff] %v445
                %v447 = vld [vmem:[%s247 + $0x628] sm:$0xff]
                %448 = vst [vmem:[%s248 + $0x318] sm:$0xff] %v447
                %v449 = vld [vmem:[%s247 + $0x640] sm:$0xff]
                %450 = vst [vmem:[%s248 + $0x320] sm:$0xff] %v449
                %v451 = vld [vmem:[%s247 + $0x648] sm:$0xff]
                %452 = vst [vmem:[%s248 + $0x328] sm:$0xff] %v451
                %v453 = vld [vmem:[%s247 + $0x660] sm:$0xff]
                %454 = vst [vmem:[%s248 + $0x330] sm:$0xff] %v453
                %v455 = vld [vmem:[%s247 + $0x668] sm:$0xff]
                %456 = vst [vmem:[%s248 + $0x338] sm:$0xff] %v455
                %v457 = vld [vmem:[%s247 + $0x680] sm:$0xff]
                %458 = vst [vmem:[%s248 + $0x340] sm:$0xff] %v457
                %v459 = vld [vmem:[%s247 + $0x688] sm:$0xff]
                %460 = vst [vmem:[%s248 + $0x348] sm:$0xff] %v459
                %v461 = vld [vmem:[%s247 + $0x6a0] sm:$0xff]
                %462 = vst [vmem:[%s248 + $0x350] sm:$0xff] %v461
                %v463 = vld [vmem:[%s247 + $0x6a8] sm:$0xff]
                %464 = vst [vmem:[%s248 + $0x358] sm:$0xff] %v463
                %v465 = vld [vmem:[%s247 + $0x6c0] sm:$0xff]
                %466 = vst [vmem:[%s248 + $0x360] sm:$0xff] %v465
                %v467 = vld [vmem:[%s247 + $0x6c8] sm:$0xff]
                %468 = vst [vmem:[%s248 + $0x368] sm:$0xff] %v467
                %v469 = vld [vmem:[%s247 + $0x6e0] sm:$0xff]
                %470 = vst [vmem:[%s248 + $0x370] sm:$0xff] %v469
                %v471 = vld [vmem:[%s247 + $0x6e8] sm:$0xff]
                %472 = vst [vmem:[%s248 + $0x378] sm:$0xff] %v471
                %v473 = vld [vmem:[%s247 + $0x700] sm:$0xff]
                %474 = vst [vmem:[%s248 + $0x380] sm:$0xff] %v473
                %v475 = vld [vmem:[%s247 + $0x708] sm:$0xff]
                %476 = vst [vmem:[%s248 + $0x388] sm:$0xff] %v475
                %v477 = vld [vmem:[%s247 + $0x720] sm:$0xff]
                %478 = vst [vmem:[%s248 + $0x390] sm:$0xff] %v477
                %v479 = vld [vmem:[%s247 + $0x728] sm:$0xff]
                %480 = vst [vmem:[%s248 + $0x398] sm:$0xff] %v479
                %v481 = vld [vmem:[%s247 + $0x740] sm:$0xff]
                %482 = vst [vmem:[%s248 + $0x3a0] sm:$0xff] %v481
                %v483 = vld [vmem:[%s247 + $0x748] sm:$0xff]
                %484 = vst [vmem:[%s248 + $0x3a8] sm:$0xff] %v483
                %v485 = vld [vmem:[%s247 + $0x760] sm:$0xff]
                %486 = vst [vmem:[%s248 + $0x3b0] sm:$0xff] %v485
                %v487 = vld [vmem:[%s247 + $0x768] sm:$0xff]
                %488 = vst [vmem:[%s248 + $0x3b8] sm:$0xff] %v487
                %v489 = vld [vmem:[%s247 + $0x780] sm:$0xff]
                %490 = vst [vmem:[%s248 + $0x3c0] sm:$0xff] %v489
                %v491 = vld [vmem:[%s247 + $0x788] sm:$0xff]
                %492 = vst [vmem:[%s248 + $0x3c8] sm:$0xff] %v491
                %v493 = vld [vmem:[%s247 + $0x7a0] sm:$0xff]
                %494 = vst [vmem:[%s248 + $0x3d0] sm:$0xff] %v493
                %v495 = vld [vmem:[%s247 + $0x7a8] sm:$0xff]
                %496 = vst [vmem:[%s248 + $0x3d8] sm:$0xff] %v495
                %v497 = vld [vmem:[%s247 + $0x7c0] sm:$0xff]
                %498 = vst [vmem:[%s248 + $0x3e0] sm:$0xff] %v497
                %v499 = vld [vmem:[%s247 + $0x7c8] sm:$0xff]
                %500 = vst [vmem:[%s248 + $0x3e8] sm:$0xff] %v499
                %v501 = vld [vmem:[%s247 + $0x7e0] sm:$0xff]
                %502 = vst [vmem:[%s248 + $0x3f0] sm:$0xff] %v501
                %v503 = vld [vmem:[%s247 + $0x7e8] sm:$0xff]
                %504 = vst [vmem:[%s248 + $0x3f8] sm:$0xff] %v503
              $region41: #{tdrumor_forward.4} parent=35 // loop_footer
                %s246 = sadd.s32 1, %s242
              $region42: #{tdrumor_forward.4} parent=35 // loop_footer_branch
                %241 = sbr.rel target = $region38
              $region43: #{tdrumor_forward.4} parent=35 // loop_exit
                _
            $region36: #{tdrumor_forward.4} parent=31 // pred_fallthru
              _
            // Predicated region
            $region44: #{tdrumor_forward.4} parent=31 // pred_check
              _
            $region45: #{tdrumor_forward.4} parent=31 // pred_check_branch
              %506 = sbr.rel target = $region47
            $region46: #{tdrumor_forward.4} parent=31 // pred_region
              _
            $region47: #{tdrumor_forward.4} parent=31 // pred_fallthru
              _
          $region32: #{tdrumor_forward.4} parent=27 // pred_fallthru
            _
          %507 = vnop
        $region28: #{tdrumor_forward.4} parent=23 // pred_fallthru
          _
        // Predicated region
        $region48: #{tdrumor_forward.4} parent=23 // pred_check
          %p508 = pneg %p73
        $region49: #{tdrumor_forward.4} parent=23 // pred_check_branch
          %510 = sbr.rel (%p508) target = $region51
        $region50: #{tdrumor_forward.4} parent=23 // pred_region
          %s511 = smul.u32 64, %s21
          %p512 = scmp.lt.s32.totalorder %s511, 127
          %s513 = scalar_select %p512, %s511, 127
          %s514 = smul.addr %s513, 4
          %s515 = scalar_lea.vmem %s1, %s514
          %s516 = smul.u32 64, %s21
        $region51: #{tdrumor_forward.4} parent=23 // pred_fallthru
          _
        // Predicated region
        $region52: #{tdrumor_forward.4} parent=23 // pred_check
          %p517 = pneg %p141
        $region53: #{tdrumor_forward.4} parent=23 // pred_check_branch
          %519 = sbr.rel (%p517) target = $region55
        $region54: #{tdrumor_forward.4} parent=23 // pred_region
          %s520 = smul.u32 64, %s20
          %p521 = scmp.lt.s32.totalorder %s520, 127
          %s522 = scalar_select %p521, %s520, 127
          %s523 = smul.addr %s522, 8
          %s524 = scalar_lea.vmem %s4, %s523
          %s525 = smul.u32 64, %s20
        $region55: #{tdrumor_forward.4} parent=23 // pred_fallthru
          _
      $region24: #{tdrumor_forward.4} parent=5 // pred_fallthru
        _
      %p526 = scmp.le.s32.totalorder 1, %s13
      %p527 = scmp.lt.s32.totalorder %s13, 5
      %p528 = pnand %p526, %p527
      %p529 = pneg %p528
      // Predicated region
      $region56: #{tdrumor_forward.4} parent=5 // pred_check
        _
      $region57: #{tdrumor_forward.4} parent=5 // pred_check_branch
        %531 = sbr.rel (%p528) target = $region59
      $region58: #{tdrumor_forward.4} parent=5 // pred_region
        %s532 = ssub.s32 %s13, 1
        %s533 = sand.u32 %s40, 1
        %s534 = sand.u32 %s40, 1
        %s535 = smul.addr %s534, 1024
        %s536 = scalar_lea.vmem [#allocation3], %s535
        // Predicated region
        $region60: #{tdrumor_forward.4} parent=58 // pred_check
          %p537 = pneg %p53
        $region61: #{tdrumor_forward.4} parent=58 // pred_check_branch
          %539 = sbr.rel (%p537) target = $region63
        $region62: #{tdrumor_forward.4} parent=58 // pred_region
          _
        $region63: #{tdrumor_forward.4} parent=58 // pred_fallthru
          _
        %s540 = sand.u32 %s40, 1
        %s541 = sand.u32 %s40, 1
        %s542 = smul.addr %s541, 1024
        %s543 = scalar_lea.vmem [#allocation3], %s542
        %p544 = pneg %p53
        %p545 = pneg %p50
        %s546 = smul.u32 64, %s23
        %p547 = scmp.lt.s32.totalorder %s546, 127
        %s548 = scalar_select %p547, %s546, 127
        %s549 = smul.addr %s548, 4
        %s550 = scalar_lea.vmem %s1, %s549
        %p551 = pneg %p79
        %p552 = pneg %p76
        %p553 = pneg %p100
        %p554 = pneg %p97
        %p555 = pneg %p121
        %p556 = pneg %p118
        %s557 = smul.u32 64, %s22
        %p558 = scmp.lt.s32.totalorder %s557, 127
        %s559 = scalar_select %p558, %s557, 127
        %s560 = smul.addr %s559, 8
        %s561 = scalar_lea.vmem %s4, %s560
        %p562 = pneg %p147
        %p563 = pneg %p144
        %p564 = pneg %p173
        %p565 = pneg %p170
        %s566 = smul.u32 64, %s22
        %p567 = scmp.lt.s32.totalorder %s566, 127
        %s568 = scalar_select %p567, %s566, 127
        %s569 = smul.addr %s568, 8
        %s570 = scalar_lea.vmem %s5, %s569
        %p571 = pneg %p199
        %p572 = pneg %p196
        %s573 = smul.u32 64, %s22
        %p574 = scmp.lt.s32.totalorder %s573, 127
        %s575 = scalar_select %p574, %s573, 127
        %s576 = smul.addr %s575, 4
        %s577 = scalar_lea.vmem %s6, %s576
        %s578 = smul.u32 64, %s22
        %s579 = smul.u32 4, %s23
        %s580 = smul.u32 64, %s23
        %p581 = scmp.lt.s32.totalorder %s580, 127
        %s582 = scalar_select %p581, %s580, 127
        %s583 = smul.addr %s582, 4
        %s584 = scalar_lea.vmem %s1, %s583
        %s585 = smul.u32 64, %s23
        %s586 = smul.u32 64, %s22
        %p587 = scmp.lt.s32.totalorder %s586, 127
        %s588 = scalar_select %p587, %s586, 127
        %s589 = smul.addr %s588, 8
        %s590 = scalar_lea.vmem %s4, %s589
        %s591 = smul.u32 64, %s22
        %s592 = smul.u32 64, %s22
        %p593 = scmp.lt.s32.totalorder %s592, 127
        %s594 = scalar_select %p593, %s592, 127
        %s595 = smul.addr %s594, 8
        %s596 = scalar_lea.vmem %s5, %s595
        %s597 = smul.u32 64, %s22
        %s598 = smul.u32 64, %s22
        %p599 = scmp.lt.s32.totalorder %s598, 127
        %s600 = scalar_select %p599, %s598, 127
        %s601 = smul.addr %s600, 4
        %s602 = scalar_lea.vmem %s6, %s601
        %s603 = smul.u32 64, %s22
        %p605 = scmp.eq.s32.totalorder %s23, 0
        // Predicated region
        $region64: #{tdrumor_forward.4} parent=58 // pred_check
          %p606 = pneg %p605
        $region65: #{tdrumor_forward.4} parent=58 // pred_check_branch
          %608 = sbr.rel (%p606) target = $region67
        $region66: #{tdrumor_forward.4} parent=58 // pred_region
          %vm609 = vcmask 130048
          %610 = vst.msk [vmem:[#allocation2] sm:$0xff] %vm609, 0.0
          %611 = vst.msk [vmem:[#allocation2 + $0x8] sm:$0xff] %vm609, 0.0
          %612 = vst.msk [vmem:[#allocation2 + $0x10] sm:$0xff] %vm609, 0.0
          %613 = vst.msk [vmem:[#allocation2 + $0x18] sm:$0xff] %vm609, 0.0
          %614 = vst.msk [vmem:[#allocation2 + $0x20] sm:$0xff] %vm609, 0.0
          %615 = vst.msk [vmem:[#allocation2 + $0x28] sm:$0xff] %vm609, 0.0
          %616 = vst.msk [vmem:[#allocation2 + $0x30] sm:$0xff] %vm609, 0.0
          %617 = vst.msk [vmem:[#allocation2 + $0x38] sm:$0xff] %vm609, 0.0
          %618 = vst.msk [vmem:[#allocation2 + $0x40] sm:$0xff] %vm609, 0.0
          %619 = vst.msk [vmem:[#allocation2 + $0x48] sm:$0xff] %vm609, 0.0
          %620 = vst.msk [vmem:[#allocation2 + $0x50] sm:$0xff] %vm609, 0.0
          %621 = vst.msk [vmem:[#allocation2 + $0x58] sm:$0xff] %vm609, 0.0
          %622 = vst.msk [vmem:[#allocation2 + $0x60] sm:$0xff] %vm609, 0.0
          %623 = vst.msk [vmem:[#allocation2 + $0x68] sm:$0xff] %vm609, 0.0
          %624 = vst.msk [vmem:[#allocation2 + $0x70] sm:$0xff] %vm609, 0.0
          %625 = vst.msk [vmem:[#allocation2 + $0x78] sm:$0xff] %vm609, 0.0
          %626 = vst.msk [vmem:[#allocation2 + $0x80] sm:$0xff] %vm609, 0.0
          %627 = vst.msk [vmem:[#allocation2 + $0x88] sm:$0xff] %vm609, 0.0
          %628 = vst.msk [vmem:[#allocation2 + $0x90] sm:$0xff] %vm609, 0.0
          %629 = vst.msk [vmem:[#allocation2 + $0x98] sm:$0xff] %vm609, 0.0
          %630 = vst.msk [vmem:[#allocation2 + $0xa0] sm:$0xff] %vm609, 0.0
          %631 = vst.msk [vmem:[#allocation2 + $0xa8] sm:$0xff] %vm609, 0.0
          %632 = vst.msk [vmem:[#allocation2 + $0xb0] sm:$0xff] %vm609, 0.0
          %633 = vst.msk [vmem:[#allocation2 + $0xb8] sm:$0xff] %vm609, 0.0
          %634 = vst.msk [vmem:[#allocation2 + $0xc0] sm:$0xff] %vm609, 0.0
          %635 = vst.msk [vmem:[#allocation2 + $0xc8] sm:$0xff] %vm609, 0.0
          %636 = vst.msk [vmem:[#allocation2 + $0xd0] sm:$0xff] %vm609, 0.0
          %637 = vst.msk [vmem:[#allocation2 + $0xd8] sm:$0xff] %vm609, 0.0
          %638 = vst.msk [vmem:[#allocation2 + $0xe0] sm:$0xff] %vm609, 0.0
          %639 = vst.msk [vmem:[#allocation2 + $0xe8] sm:$0xff] %vm609, 0.0
          %640 = vst.msk [vmem:[#allocation2 + $0xf0] sm:$0xff] %vm609, 0.0
          %641 = vst.msk [vmem:[#allocation2 + $0xf8] sm:$0xff] %vm609, 0.0
          %642 = vst.msk [vmem:[#allocation2 + $0x100] sm:$0xff] %vm609, 0.0
          %643 = vst.msk [vmem:[#allocation2 + $0x108] sm:$0xff] %vm609, 0.0
          %644 = vst.msk [vmem:[#allocation2 + $0x110] sm:$0xff] %vm609, 0.0
          %645 = vst.msk [vmem:[#allocation2 + $0x118] sm:$0xff] %vm609, 0.0
          %646 = vst.msk [vmem:[#allocation2 + $0x120] sm:$0xff] %vm609, 0.0
          %647 = vst.msk [vmem:[#allocation2 + $0x128] sm:$0xff] %vm609, 0.0
          %648 = vst.msk [vmem:[#allocation2 + $0x130] sm:$0xff] %vm609, 0.0
          %649 = vst.msk [vmem:[#allocation2 + $0x138] sm:$0xff] %vm609, 0.0
          %650 = vst.msk [vmem:[#allocation2 + $0x140] sm:$0xff] %vm609, 0.0
          %651 = vst.msk [vmem:[#allocation2 + $0x148] sm:$0xff] %vm609, 0.0
          %652 = vst.msk [vmem:[#allocation2 + $0x150] sm:$0xff] %vm609, 0.0
          %653 = vst.msk [vmem:[#allocation2 + $0x158] sm:$0xff] %vm609, 0.0
          %654 = vst.msk [vmem:[#allocation2 + $0x160] sm:$0xff] %vm609, 0.0
          %655 = vst.msk [vmem:[#allocation2 + $0x168] sm:$0xff] %vm609, 0.0
          %656 = vst.msk [vmem:[#allocation2 + $0x170] sm:$0xff] %vm609, 0.0
          %657 = vst.msk [vmem:[#allocation2 + $0x178] sm:$0xff] %vm609, 0.0
          %658 = vst.msk [vmem:[#allocation2 + $0x180] sm:$0xff] %vm609, 0.0
          %659 = vst.msk [vmem:[#allocation2 + $0x188] sm:$0xff] %vm609, 0.0
          %660 = vst.msk [vmem:[#allocation2 + $0x190] sm:$0xff] %vm609, 0.0
          %661 = vst.msk [vmem:[#allocation2 + $0x198] sm:$0xff] %vm609, 0.0
          %662 = vst.msk [vmem:[#allocation2 + $0x1a0] sm:$0xff] %vm609, 0.0
          %663 = vst.msk [vmem:[#allocation2 + $0x1a8] sm:$0xff] %vm609, 0.0
          %664 = vst.msk [vmem:[#allocation2 + $0x1b0] sm:$0xff] %vm609, 0.0
          %665 = vst.msk [vmem:[#allocation2 + $0x1b8] sm:$0xff] %vm609, 0.0
          %666 = vst.msk [vmem:[#allocation2 + $0x1c0] sm:$0xff] %vm609, 0.0
          %667 = vst.msk [vmem:[#allocation2 + $0x1c8] sm:$0xff] %vm609, 0.0
          %668 = vst.msk [vmem:[#allocation2 + $0x1d0] sm:$0xff] %vm609, 0.0
          %669 = vst.msk [vmem:[#allocation2 + $0x1d8] sm:$0xff] %vm609, 0.0
          %670 = vst.msk [vmem:[#allocation2 + $0x1e0] sm:$0xff] %vm609, 0.0
          %671 = vst.msk [vmem:[#allocation2 + $0x1e8] sm:$0xff] %vm609, 0.0
          %672 = vst.msk [vmem:[#allocation2 + $0x1f0] sm:$0xff] %vm609, 0.0
          %673 = vst.msk [vmem:[#allocation2 + $0x1f8] sm:$0xff] %vm609, 0.0
        $region67: #{tdrumor_forward.4} parent=58 // pred_fallthru
          _
        %v674 = vld [vmem:[#allocation2] sm:$0xff]
        %v675 = vld [vmem:[#allocation2 + $0x8] sm:$0xff]
        %v676 = vld [vmem:[#allocation2 + $0x10] sm:$0xff]
        %v677 = vld [vmem:[#allocation2 + $0x18] sm:$0xff]
        %v678 = vld [vmem:[#allocation2 + $0x20] sm:$0xff]
        %v679 = vld [vmem:[#allocation2 + $0x28] sm:$0xff]
        %v680 = vld [vmem:[#allocation2 + $0x30] sm:$0xff]
        %v681 = vld [vmem:[#allocation2 + $0x38] sm:$0xff]
        %v682 = vld [vmem:[#allocation2 + $0x40] sm:$0xff]
        %v683 = vld [vmem:[#allocation2 + $0x48] sm:$0xff]
        %v684 = vld [vmem:[#allocation2 + $0x50] sm:$0xff]
        %v685 = vld [vmem:[#allocation2 + $0x58] sm:$0xff]
        %v686 = vld [vmem:[#allocation2 + $0x60] sm:$0xff]
        %v687 = vld [vmem:[#allocation2 + $0x68] sm:$0xff]
        %v688 = vld [vmem:[#allocation2 + $0x70] sm:$0xff]
        %v689 = vld [vmem:[#allocation2 + $0x78] sm:$0xff]
        %v690 = vld [vmem:[#allocation2 + $0x80] sm:$0xff]
        %v691 = vld [vmem:[#allocation2 + $0x88] sm:$0xff]
        %v692 = vld [vmem:[#allocation2 + $0x90] sm:$0xff]
        %v693 = vld [vmem:[#allocation2 + $0x98] sm:$0xff]
        %v694 = vld [vmem:[#allocation2 + $0xa0] sm:$0xff]
        %v695 = vld [vmem:[#allocation2 + $0xa8] sm:$0xff]
        %v696 = vld [vmem:[#allocation2 + $0xb0] sm:$0xff]
        %v697 = vld [vmem:[#allocation2 + $0xb8] sm:$0xff]
        %v698 = vld [vmem:[#allocation2 + $0xc0] sm:$0xff]
        %v699 = vld [vmem:[#allocation2 + $0xc8] sm:$0xff]
        %v700 = vld [vmem:[#allocation2 + $0xd0] sm:$0xff]
        %v701 = vld [vmem:[#allocation2 + $0xd8] sm:$0xff]
        %v702 = vld [vmem:[#allocation2 + $0xe0] sm:$0xff]
        %v703 = vld [vmem:[#allocation2 + $0xe8] sm:$0xff]
        %v704 = vld [vmem:[#allocation2 + $0xf0] sm:$0xff]
        %v705 = vld [vmem:[#allocation2 + $0xf8] sm:$0xff]
        %v706 = vld [vmem:[#allocation2 + $0x100] sm:$0xff]
        %v707 = vld [vmem:[#allocation2 + $0x108] sm:$0xff]
        %v708 = vld [vmem:[#allocation2 + $0x110] sm:$0xff]
        %v709 = vld [vmem:[#allocation2 + $0x118] sm:$0xff]
        %v710 = vld [vmem:[#allocation2 + $0x120] sm:$0xff]
        %v711 = vld [vmem:[#allocation2 + $0x128] sm:$0xff]
        %v712 = vld [vmem:[#allocation2 + $0x130] sm:$0xff]
        %v713 = vld [vmem:[#allocation2 + $0x138] sm:$0xff]
        %v714 = vld [vmem:[#allocation2 + $0x140] sm:$0xff]
        %v715 = vld [vmem:[#allocation2 + $0x148] sm:$0xff]
        %v716 = vld [vmem:[#allocation2 + $0x150] sm:$0xff]
        %v717 = vld [vmem:[#allocation2 + $0x158] sm:$0xff]
        %v718 = vld [vmem:[#allocation2 + $0x160] sm:$0xff]
        %v719 = vld [vmem:[#allocation2 + $0x168] sm:$0xff]
        %v720 = vld [vmem:[#allocation2 + $0x170] sm:$0xff]
        %v721 = vld [vmem:[#allocation2 + $0x178] sm:$0xff]
        %v722 = vld [vmem:[#allocation2 + $0x180] sm:$0xff]
        %v723 = vld [vmem:[#allocation2 + $0x188] sm:$0xff]
        %v724 = vld [vmem:[#allocation2 + $0x190] sm:$0xff]
        %v725 = vld [vmem:[#allocation2 + $0x198] sm:$0xff]
        %v726 = vld [vmem:[#allocation2 + $0x1a0] sm:$0xff]
        %v727 = vld [vmem:[#allocation2 + $0x1a8] sm:$0xff]
        %v728 = vld [vmem:[#allocation2 + $0x1b0] sm:$0xff]
        %v729 = vld [vmem:[#allocation2 + $0x1b8] sm:$0xff]
        %v730 = vld [vmem:[#allocation2 + $0x1c0] sm:$0xff]
        %v731 = vld [vmem:[#allocation2 + $0x1c8] sm:$0xff]
        %v732 = vld [vmem:[#allocation2 + $0x1d0] sm:$0xff]
        %v733 = vld [vmem:[#allocation2 + $0x1d8] sm:$0xff]
        %v734 = vld [vmem:[#allocation2 + $0x1e0] sm:$0xff]
        %v735 = vld [vmem:[#allocation2 + $0x1e8] sm:$0xff]
        %v736 = vld [vmem:[#allocation2 + $0x1f0] sm:$0xff]
        %v737 = vld [vmem:[#allocation2 + $0x1f8] sm:$0xff]
        %v738 = vld [vmem:[%s536] sm:$0xff]
        %v739 = vld [vmem:[%s536 + $0x8] sm:$0xff]
        %v740 = vld [vmem:[%s536 + $0x10] sm:$0xff]
        %v741 = vld [vmem:[%s536 + $0x18] sm:$0xff]
        %v742 = vld [vmem:[%s536 + $0x20] sm:$0xff]
        %v743 = vld [vmem:[%s536 + $0x28] sm:$0xff]
        %v744 = vld [vmem:[%s536 + $0x30] sm:$0xff]
        %v745 = vld [vmem:[%s536 + $0x38] sm:$0xff]
        %v746 = vld [vmem:[%s536 + $0x40] sm:$0xff]
        %v747 = vld [vmem:[%s536 + $0x48] sm:$0xff]
        %v748 = vld [vmem:[%s536 + $0x50] sm:$0xff]
        %v749 = vld [vmem:[%s536 + $0x58] sm:$0xff]
        %v750 = vld [vmem:[%s536 + $0x60] sm:$0xff]
        %v751 = vld [vmem:[%s536 + $0x68] sm:$0xff]
        %v752 = vld [vmem:[%s536 + $0x70] sm:$0xff]
        %v753 = vld [vmem:[%s536 + $0x78] sm:$0xff]
        %v754 = vld [vmem:[%s536 + $0x80] sm:$0xff]
        %v755 = vld [vmem:[%s536 + $0x88] sm:$0xff]
        %v756 = vld [vmem:[%s536 + $0x90] sm:$0xff]
        %v757 = vld [vmem:[%s536 + $0x98] sm:$0xff]
        %v758 = vld [vmem:[%s536 + $0xa0] sm:$0xff]
        %v759 = vld [vmem:[%s536 + $0xa8] sm:$0xff]
        %v760 = vld [vmem:[%s536 + $0xb0] sm:$0xff]
        %v761 = vld [vmem:[%s536 + $0xb8] sm:$0xff]
        %v762 = vld [vmem:[%s536 + $0xc0] sm:$0xff]
        %v763 = vld [vmem:[%s536 + $0xc8] sm:$0xff]
        %v764 = vld [vmem:[%s536 + $0xd0] sm:$0xff]
        %v765 = vld [vmem:[%s536 + $0xd8] sm:$0xff]
        %v766 = vld [vmem:[%s536 + $0xe0] sm:$0xff]
        %v767 = vld [vmem:[%s536 + $0xe8] sm:$0xff]
        %v768 = vld [vmem:[%s536 + $0xf0] sm:$0xff]
        %v769 = vld [vmem:[%s536 + $0xf8] sm:$0xff]
        %v770 = vld [vmem:[%s536 + $0x100] sm:$0xff]
        %v771 = vld [vmem:[%s536 + $0x108] sm:$0xff]
        %v772 = vld [vmem:[%s536 + $0x110] sm:$0xff]
        %v773 = vld [vmem:[%s536 + $0x118] sm:$0xff]
        %v774 = vld [vmem:[%s536 + $0x120] sm:$0xff]
        %v775 = vld [vmem:[%s536 + $0x128] sm:$0xff]
        %v776 = vld [vmem:[%s536 + $0x130] sm:$0xff]
        %v777 = vld [vmem:[%s536 + $0x138] sm:$0xff]
        %v778 = vld [vmem:[%s536 + $0x140] sm:$0xff]
        %v779 = vld [vmem:[%s536 + $0x148] sm:$0xff]
        %v780 = vld [vmem:[%s536 + $0x150] sm:$0xff]
        %v781 = vld [vmem:[%s536 + $0x158] sm:$0xff]
        %v782 = vld [vmem:[%s536 + $0x160] sm:$0xff]
        %v783 = vld [vmem:[%s536 + $0x168] sm:$0xff]
        %v784 = vld [vmem:[%s536 + $0x170] sm:$0xff]
        %v785 = vld [vmem:[%s536 + $0x178] sm:$0xff]
        %v786 = vld [vmem:[%s536 + $0x180] sm:$0xff]
        %v787 = vld [vmem:[%s536 + $0x188] sm:$0xff]
        %v788 = vld [vmem:[%s536 + $0x190] sm:$0xff]
        %v789 = vld [vmem:[%s536 + $0x198] sm:$0xff]
        %v790 = vld [vmem:[%s536 + $0x1a0] sm:$0xff]
        %v791 = vld [vmem:[%s536 + $0x1a8] sm:$0xff]
        %v792 = vld [vmem:[%s536 + $0x1b0] sm:$0xff]
        %v793 = vld [vmem:[%s536 + $0x1b8] sm:$0xff]
        %v794 = vld [vmem:[%s536 + $0x1c0] sm:$0xff]
        %v795 = vld [vmem:[%s536 + $0x1c8] sm:$0xff]
        %v796 = vld [vmem:[%s536 + $0x1d0] sm:$0xff]
        %v797 = vld [vmem:[%s536 + $0x1d8] sm:$0xff]
        %v798 = vld [vmem:[%s536 + $0x1e0] sm:$0xff]
        %v799 = vld [vmem:[%s536 + $0x1e8] sm:$0xff]
        %v800 = vld [vmem:[%s536 + $0x1f0] sm:$0xff]
        %v801 = vld [vmem:[%s536 + $0x1f8] sm:$0xff]
        %v802 = vld [vmem:[%s536 + $0x200] sm:$0xff]
        %v803 = vld [vmem:[%s536 + $0x208] sm:$0xff]
        %v804 = vld [vmem:[%s536 + $0x210] sm:$0xff]
        %v805 = vld [vmem:[%s536 + $0x218] sm:$0xff]
        %v806 = vld [vmem:[%s536 + $0x220] sm:$0xff]
        %v807 = vld [vmem:[%s536 + $0x228] sm:$0xff]
        %v808 = vld [vmem:[%s536 + $0x230] sm:$0xff]
        %v809 = vld [vmem:[%s536 + $0x238] sm:$0xff]
        %v810 = vld [vmem:[%s536 + $0x240] sm:$0xff]
        %v811 = vld [vmem:[%s536 + $0x248] sm:$0xff]
        %v812 = vld [vmem:[%s536 + $0x250] sm:$0xff]
        %v813 = vld [vmem:[%s536 + $0x258] sm:$0xff]
        %v814 = vld [vmem:[%s536 + $0x260] sm:$0xff]
        %v815 = vld [vmem:[%s536 + $0x268] sm:$0xff]
        %v816 = vld [vmem:[%s536 + $0x270] sm:$0xff]
        %v817 = vld [vmem:[%s536 + $0x278] sm:$0xff]
        %v818 = vld [vmem:[%s536 + $0x280] sm:$0xff]
        %v819 = vld [vmem:[%s536 + $0x288] sm:$0xff]
        %v820 = vld [vmem:[%s536 + $0x290] sm:$0xff]
        %v821 = vld [vmem:[%s536 + $0x298] sm:$0xff]
        %v822 = vld [vmem:[%s536 + $0x2a0] sm:$0xff]
        %v823 = vld [vmem:[%s536 + $0x2a8] sm:$0xff]
        %v824 = vld [vmem:[%s536 + $0x2b0] sm:$0xff]
        %v825 = vld [vmem:[%s536 + $0x2b8] sm:$0xff]
        %v826 = vld [vmem:[%s536 + $0x2c0] sm:$0xff]
        %v827 = vld [vmem:[%s536 + $0x2c8] sm:$0xff]
        %v828 = vld [vmem:[%s536 + $0x2d0] sm:$0xff]
        %v829 = vld [vmem:[%s536 + $0x2d8] sm:$0xff]
        %v830 = vld [vmem:[%s536 + $0x2e0] sm:$0xff]
        %v831 = vld [vmem:[%s536 + $0x2e8] sm:$0xff]
        %v832 = vld [vmem:[%s536 + $0x2f0] sm:$0xff]
        %v833 = vld [vmem:[%s536 + $0x2f8] sm:$0xff]
        %v834 = vld [vmem:[%s536 + $0x300] sm:$0xff]
        %v835 = vld [vmem:[%s536 + $0x308] sm:$0xff]
        %v836 = vld [vmem:[%s536 + $0x310] sm:$0xff]
        %v837 = vld [vmem:[%s536 + $0x318] sm:$0xff]
        %v838 = vld [vmem:[%s536 + $0x320] sm:$0xff]
        %v839 = vld [vmem:[%s536 + $0x328] sm:$0xff]
        %v840 = vld [vmem:[%s536 + $0x330] sm:$0xff]
        %v841 = vld [vmem:[%s536 + $0x338] sm:$0xff]
        %v842 = vld [vmem:[%s536 + $0x340] sm:$0xff]
        %v843 = vld [vmem:[%s536 + $0x348] sm:$0xff]
        %v844 = vld [vmem:[%s536 + $0x350] sm:$0xff]
        %v845 = vld [vmem:[%s536 + $0x358] sm:$0xff]
        %v846 = vld [vmem:[%s536 + $0x360] sm:$0xff]
        %v847 = vld [vmem:[%s536 + $0x368] sm:$0xff]
        %v848 = vld [vmem:[%s536 + $0x370] sm:$0xff]
        %v849 = vld [vmem:[%s536 + $0x378] sm:$0xff]
        %v850 = vld [vmem:[%s536 + $0x380] sm:$0xff]
        %v851 = vld [vmem:[%s536 + $0x388] sm:$0xff]
        %v852 = vld [vmem:[%s536 + $0x390] sm:$0xff]
        %v853 = vld [vmem:[%s536 + $0x398] sm:$0xff]
        %v854 = vld [vmem:[%s536 + $0x3a0] sm:$0xff]
        %v855 = vld [vmem:[%s536 + $0x3a8] sm:$0xff]
        %v856 = vld [vmem:[%s536 + $0x3b0] sm:$0xff]
        %v857 = vld [vmem:[%s536 + $0x3b8] sm:$0xff]
        %v858 = vld [vmem:[%s536 + $0x3c0] sm:$0xff]
        %v859 = vld [vmem:[%s536 + $0x3c8] sm:$0xff]
        %v860 = vld [vmem:[%s536 + $0x3d0] sm:$0xff]
        %v861 = vld [vmem:[%s536 + $0x3d8] sm:$0xff]
        %v862 = vld [vmem:[%s536 + $0x3e0] sm:$0xff]
        %v863 = vld [vmem:[%s536 + $0x3e8] sm:$0xff]
        %v864 = vld [vmem:[%s536 + $0x3f0] sm:$0xff]
        %v865 = vld [vmem:[%s536 + $0x3f8] sm:$0xff]
        %v866 = vld [vmem:[%s584] sm:$0xf]
        %v867 = vld [vmem:[%s584 + $0x4] sm:$0xf]
        %v868 = vld [vmem:[%s584 + $0x8] sm:$0xf]
        %v869 = vld [vmem:[%s584 + $0xc] sm:$0xf]
        %v870 = vld [vmem:[%s584 + $0x10] sm:$0xf]
        %v871 = vld [vmem:[%s584 + $0x14] sm:$0xf]
        %v872 = vld [vmem:[%s584 + $0x18] sm:$0xf]
        %v873 = vld [vmem:[%s584 + $0x1c] sm:$0xf]
        %v874 = vld [vmem:[%s584 + $0x20] sm:$0xf]
        %v875 = vld [vmem:[%s584 + $0x24] sm:$0xf]
        %v876 = vld [vmem:[%s584 + $0x28] sm:$0xf]
        %v877 = vld [vmem:[%s584 + $0x2c] sm:$0xf]
        %v878 = vld [vmem:[%s584 + $0x30] sm:$0xf]
        %v879 = vld [vmem:[%s584 + $0x34] sm:$0xf]
        %v880 = vld [vmem:[%s584 + $0x38] sm:$0xf]
        %v881 = vld [vmem:[%s584 + $0x3c] sm:$0xf]
        %v882 = vld [vmem:[%s584 + $0x40] sm:$0xf]
        %v883 = vld [vmem:[%s584 + $0x44] sm:$0xf]
        %v884 = vld [vmem:[%s584 + $0x48] sm:$0xf]
        %v885 = vld [vmem:[%s584 + $0x4c] sm:$0xf]
        %v886 = vld [vmem:[%s584 + $0x50] sm:$0xf]
        %v887 = vld [vmem:[%s584 + $0x54] sm:$0xf]
        %v888 = vld [vmem:[%s584 + $0x58] sm:$0xf]
        %v889 = vld [vmem:[%s584 + $0x5c] sm:$0xf]
        %v890 = vld [vmem:[%s584 + $0x60] sm:$0xf]
        %v891 = vld [vmem:[%s584 + $0x64] sm:$0xf]
        %v892 = vld [vmem:[%s584 + $0x68] sm:$0xf]
        %v893 = vld [vmem:[%s584 + $0x6c] sm:$0xf]
        %v894 = vld [vmem:[%s584 + $0x70] sm:$0xf]
        %v895 = vld [vmem:[%s584 + $0x74] sm:$0xf]
        %v896 = vld [vmem:[%s584 + $0x78] sm:$0xf]
        %v897 = vld [vmem:[%s584 + $0x7c] sm:$0xf]
        %v898 = vld [vmem:[%s584 + $0x80] sm:$0xf]
        %v899 = vld [vmem:[%s584 + $0x84] sm:$0xf]
        %v900 = vld [vmem:[%s584 + $0x88] sm:$0xf]
        %v901 = vld [vmem:[%s584 + $0x8c] sm:$0xf]
        %v902 = vld [vmem:[%s584 + $0x90] sm:$0xf]
        %v903 = vld [vmem:[%s584 + $0x94] sm:$0xf]
        %v904 = vld [vmem:[%s584 + $0x98] sm:$0xf]
        %v905 = vld [vmem:[%s584 + $0x9c] sm:$0xf]
        %v906 = vld [vmem:[%s584 + $0xa0] sm:$0xf]
        %v907 = vld [vmem:[%s584 + $0xa4] sm:$0xf]
        %v908 = vld [vmem:[%s584 + $0xa8] sm:$0xf]
        %v909 = vld [vmem:[%s584 + $0xac] sm:$0xf]
        %v910 = vld [vmem:[%s584 + $0xb0] sm:$0xf]
        %v911 = vld [vmem:[%s584 + $0xb4] sm:$0xf]
        %v912 = vld [vmem:[%s584 + $0xb8] sm:$0xf]
        %v913 = vld [vmem:[%s584 + $0xbc] sm:$0xf]
        %v914 = vld [vmem:[%s584 + $0xc0] sm:$0xf]
        %v915 = vld [vmem:[%s584 + $0xc4] sm:$0xf]
        %v916 = vld [vmem:[%s584 + $0xc8] sm:$0xf]
        %v917 = vld [vmem:[%s584 + $0xcc] sm:$0xf]
        %v918 = vld [vmem:[%s584 + $0xd0] sm:$0xf]
        %v919 = vld [vmem:[%s584 + $0xd4] sm:$0xf]
        %v920 = vld [vmem:[%s584 + $0xd8] sm:$0xf]
        %v921 = vld [vmem:[%s584 + $0xdc] sm:$0xf]
        %v922 = vld [vmem:[%s584 + $0xe0] sm:$0xf]
        %v923 = vld [vmem:[%s584 + $0xe4] sm:$0xf]
        %v924 = vld [vmem:[%s584 + $0xe8] sm:$0xf]
        %v925 = vld [vmem:[%s584 + $0xec] sm:$0xf]
        %v926 = vld [vmem:[%s584 + $0xf0] sm:$0xf]
        %v927 = vld [vmem:[%s584 + $0xf4] sm:$0xf]
        %v928 = vld [vmem:[%s584 + $0xf8] sm:$0xf]
        %v929 = vld [vmem:[%s584 + $0xfc] sm:$0xf]
        %v1058 = vunpack.c.l.b16 %v738
        %v1059 = vunpack.c.h.b16 %v738
        %v1060 = vunpack.c.l.b16 %v739
        %v1061 = vunpack.c.h.b16 %v739
        %v1062 = vunpack.c.l.b16 %v740
        %v1063 = vunpack.c.h.b16 %v740
        %v1064 = vunpack.c.l.b16 %v741
        %v1065 = vunpack.c.h.b16 %v741
        %v1066 = vunpack.c.l.b16 %v742
        %v1067 = vunpack.c.h.b16 %v742
        %v1068 = vunpack.c.l.b16 %v743
        %v1069 = vunpack.c.h.b16 %v743
        %v1070 = vunpack.c.l.b16 %v744
        %v1071 = vunpack.c.h.b16 %v744
        %v1072 = vunpack.c.l.b16 %v745
        %v1073 = vunpack.c.h.b16 %v745
        %v1074 = vunpack.c.l.b16 %v746
        %v1075 = vunpack.c.h.b16 %v746
        %v1076 = vunpack.c.l.b16 %v747
        %v1077 = vunpack.c.h.b16 %v747
        %v1078 = vunpack.c.l.b16 %v748
        %v1079 = vunpack.c.h.b16 %v748
        %v1080 = vunpack.c.l.b16 %v749
        %v1081 = vunpack.c.h.b16 %v749
        %v1082 = vunpack.c.l.b16 %v750
        %v1083 = vunpack.c.h.b16 %v750
        %v1084 = vunpack.c.l.b16 %v751
        %v1085 = vunpack.c.h.b16 %v751
        %v1086 = vunpack.c.l.b16 %v752
        %v1087 = vunpack.c.h.b16 %v752
        %v1088 = vunpack.c.l.b16 %v753
        %v1089 = vunpack.c.h.b16 %v753
        %v1090 = vunpack.c.l.b16 %v754
        %v1091 = vunpack.c.h.b16 %v754
        %v1092 = vunpack.c.l.b16 %v755
        %v1093 = vunpack.c.h.b16 %v755
        %v1094 = vunpack.c.l.b16 %v756
        %v1095 = vunpack.c.h.b16 %v756
        %v1096 = vunpack.c.l.b16 %v757
        %v1097 = vunpack.c.h.b16 %v757
        %v1098 = vunpack.c.l.b16 %v758
        %v1099 = vunpack.c.h.b16 %v758
        %v1100 = vunpack.c.l.b16 %v759
        %v1101 = vunpack.c.h.b16 %v759
        %v1102 = vunpack.c.l.b16 %v760
        %v1103 = vunpack.c.h.b16 %v760
        %v1104 = vunpack.c.l.b16 %v761
        %v1105 = vunpack.c.h.b16 %v761
        %v1106 = vunpack.c.l.b16 %v762
        %v1107 = vunpack.c.h.b16 %v762
        %v1108 = vunpack.c.l.b16 %v763
        %v1109 = vunpack.c.h.b16 %v763
        %v1110 = vunpack.c.l.b16 %v764
        %v1111 = vunpack.c.h.b16 %v764
        %v1112 = vunpack.c.l.b16 %v765
        %v1113 = vunpack.c.h.b16 %v765
        %v1114 = vunpack.c.l.b16 %v766
        %v1115 = vunpack.c.h.b16 %v766
        %v1116 = vunpack.c.l.b16 %v767
        %v1117 = vunpack.c.h.b16 %v767
        %v1118 = vunpack.c.l.b16 %v768
        %v1119 = vunpack.c.h.b16 %v768
        %v1120 = vunpack.c.l.b16 %v769
        %v1121 = vunpack.c.h.b16 %v769
        %v1122 = vunpack.c.l.b16 %v770
        %v1123 = vunpack.c.h.b16 %v770
        %v1124 = vunpack.c.l.b16 %v771
        %v1125 = vunpack.c.h.b16 %v771
        %v1126 = vunpack.c.l.b16 %v772
        %v1127 = vunpack.c.h.b16 %v772
        %v1128 = vunpack.c.l.b16 %v773
        %v1129 = vunpack.c.h.b16 %v773
        %v1130 = vunpack.c.l.b16 %v774
        %v1131 = vunpack.c.h.b16 %v774
        %v1132 = vunpack.c.l.b16 %v775
        %v1133 = vunpack.c.h.b16 %v775
        %v1134 = vunpack.c.l.b16 %v776
        %v1135 = vunpack.c.h.b16 %v776
        %v1136 = vunpack.c.l.b16 %v777
        %v1137 = vunpack.c.h.b16 %v777
        %v1138 = vunpack.c.l.b16 %v778
        %v1139 = vunpack.c.h.b16 %v778
        %v1140 = vunpack.c.l.b16 %v779
        %v1141 = vunpack.c.h.b16 %v779
        %v1142 = vunpack.c.l.b16 %v780
        %v1143 = vunpack.c.h.b16 %v780
        %v1144 = vunpack.c.l.b16 %v781
        %v1145 = vunpack.c.h.b16 %v781
        %v1146 = vunpack.c.l.b16 %v782
        %v1147 = vunpack.c.h.b16 %v782
        %v1148 = vunpack.c.l.b16 %v783
        %v1149 = vunpack.c.h.b16 %v783
        %v1150 = vunpack.c.l.b16 %v784
        %v1151 = vunpack.c.h.b16 %v784
        %v1152 = vunpack.c.l.b16 %v785
        %v1153 = vunpack.c.h.b16 %v785
        %v1154 = vunpack.c.l.b16 %v786
        %v1155 = vunpack.c.h.b16 %v786
        %v1156 = vunpack.c.l.b16 %v787
        %v1157 = vunpack.c.h.b16 %v787
        %v1158 = vunpack.c.l.b16 %v788
        %v1159 = vunpack.c.h.b16 %v788
        %v1160 = vunpack.c.l.b16 %v789
        %v1161 = vunpack.c.h.b16 %v789
        %v1162 = vunpack.c.l.b16 %v790
        %v1163 = vunpack.c.h.b16 %v790
        %v1164 = vunpack.c.l.b16 %v791
        %v1165 = vunpack.c.h.b16 %v791
        %v1166 = vunpack.c.l.b16 %v792
        %v1167 = vunpack.c.h.b16 %v792
        %v1168 = vunpack.c.l.b16 %v793
        %v1169 = vunpack.c.h.b16 %v793
        %v1170 = vunpack.c.l.b16 %v794
        %v1171 = vunpack.c.h.b16 %v794
        %v1172 = vunpack.c.l.b16 %v795
        %v1173 = vunpack.c.h.b16 %v795
        %v1174 = vunpack.c.l.b16 %v796
        %v1175 = vunpack.c.h.b16 %v796
        %v1176 = vunpack.c.l.b16 %v797
        %v1177 = vunpack.c.h.b16 %v797
        %v1178 = vunpack.c.l.b16 %v798
        %v1179 = vunpack.c.h.b16 %v798
        %v1180 = vunpack.c.l.b16 %v799
        %v1181 = vunpack.c.h.b16 %v799
        %v1182 = vunpack.c.l.b16 %v800
        %v1183 = vunpack.c.h.b16 %v800
        %v1184 = vunpack.c.l.b16 %v801
        %v1185 = vunpack.c.h.b16 %v801
        %v1186 = vunpack.c.l.b16 %v802
        %v1187 = vunpack.c.h.b16 %v802
        %v1188 = vunpack.c.l.b16 %v803
        %v1189 = vunpack.c.h.b16 %v803
        %v1190 = vunpack.c.l.b16 %v804
        %v1191 = vunpack.c.h.b16 %v804
        %v1192 = vunpack.c.l.b16 %v805
        %v1193 = vunpack.c.h.b16 %v805
        %v1194 = vunpack.c.l.b16 %v806
        %v1195 = vunpack.c.h.b16 %v806
        %v1196 = vunpack.c.l.b16 %v807
        %v1197 = vunpack.c.h.b16 %v807
        %v1198 = vunpack.c.l.b16 %v808
        %v1199 = vunpack.c.h.b16 %v808
        %v1200 = vunpack.c.l.b16 %v809
        %v1201 = vunpack.c.h.b16 %v809
        %v1202 = vunpack.c.l.b16 %v810
        %v1203 = vunpack.c.h.b16 %v810
        %v1204 = vunpack.c.l.b16 %v811
        %v1205 = vunpack.c.h.b16 %v811
        %v1206 = vunpack.c.l.b16 %v812
        %v1207 = vunpack.c.h.b16 %v812
        %v1208 = vunpack.c.l.b16 %v813
        %v1209 = vunpack.c.h.b16 %v813
        %v1210 = vunpack.c.l.b16 %v814
        %v1211 = vunpack.c.h.b16 %v814
        %v1212 = vunpack.c.l.b16 %v815
        %v1213 = vunpack.c.h.b16 %v815
        %v1214 = vunpack.c.l.b16 %v816
        %v1215 = vunpack.c.h.b16 %v816
        %v1216 = vunpack.c.l.b16 %v817
        %v1217 = vunpack.c.h.b16 %v817
        %v1218 = vunpack.c.l.b16 %v818
        %v1219 = vunpack.c.h.b16 %v818
        %v1220 = vunpack.c.l.b16 %v819
        %v1221 = vunpack.c.h.b16 %v819
        %v1222 = vunpack.c.l.b16 %v820
        %v1223 = vunpack.c.h.b16 %v820
        %v1224 = vunpack.c.l.b16 %v821
        %v1225 = vunpack.c.h.b16 %v821
        %v1226 = vunpack.c.l.b16 %v822
        %v1227 = vunpack.c.h.b16 %v822
        %v1228 = vunpack.c.l.b16 %v823
        %v1229 = vunpack.c.h.b16 %v823
        %v1230 = vunpack.c.l.b16 %v824
        %v1231 = vunpack.c.h.b16 %v824
        %v1232 = vunpack.c.l.b16 %v825
        %v1233 = vunpack.c.h.b16 %v825
        %v1234 = vunpack.c.l.b16 %v826
        %v1235 = vunpack.c.h.b16 %v826
        %v1236 = vunpack.c.l.b16 %v827
        %v1237 = vunpack.c.h.b16 %v827
        %v1238 = vunpack.c.l.b16 %v828
        %v1239 = vunpack.c.h.b16 %v828
        %v1240 = vunpack.c.l.b16 %v829
        %v1241 = vunpack.c.h.b16 %v829
        %v1242 = vunpack.c.l.b16 %v830
        %v1243 = vunpack.c.h.b16 %v830
        %v1244 = vunpack.c.l.b16 %v831
        %v1245 = vunpack.c.h.b16 %v831
        %v1246 = vunpack.c.l.b16 %v832
        %v1247 = vunpack.c.h.b16 %v832
        %v1248 = vunpack.c.l.b16 %v833
        %v1249 = vunpack.c.h.b16 %v833
        %v1250 = vunpack.c.l.b16 %v834
        %v1251 = vunpack.c.h.b16 %v834
        %v1252 = vunpack.c.l.b16 %v835
        %v1253 = vunpack.c.h.b16 %v835
        %v1254 = vunpack.c.l.b16 %v836
        %v1255 = vunpack.c.h.b16 %v836
        %v1256 = vunpack.c.l.b16 %v837
        %v1257 = vunpack.c.h.b16 %v837
        %v1258 = vunpack.c.l.b16 %v838
        %v1259 = vunpack.c.h.b16 %v838
        %v1260 = vunpack.c.l.b16 %v839
        %v1261 = vunpack.c.h.b16 %v839
        %v1262 = vunpack.c.l.b16 %v840
        %v1263 = vunpack.c.h.b16 %v840
        %v1264 = vunpack.c.l.b16 %v841
        %v1265 = vunpack.c.h.b16 %v841
        %v1266 = vunpack.c.l.b16 %v842
        %v1267 = vunpack.c.h.b16 %v842
        %v1268 = vunpack.c.l.b16 %v843
        %v1269 = vunpack.c.h.b16 %v843
        %v1270 = vunpack.c.l.b16 %v844
        %v1271 = vunpack.c.h.b16 %v844
        %v1272 = vunpack.c.l.b16 %v845
        %v1273 = vunpack.c.h.b16 %v845
        %v1274 = vunpack.c.l.b16 %v846
        %v1275 = vunpack.c.h.b16 %v846
        %v1276 = vunpack.c.l.b16 %v847
        %v1277 = vunpack.c.h.b16 %v847
        %v1278 = vunpack.c.l.b16 %v848
        %v1279 = vunpack.c.h.b16 %v848
        %v1280 = vunpack.c.l.b16 %v849
        %v1281 = vunpack.c.h.b16 %v849
        %v1282 = vunpack.c.l.b16 %v850
        %v1283 = vunpack.c.h.b16 %v850
        %v1284 = vunpack.c.l.b16 %v851
        %v1285 = vunpack.c.h.b16 %v851
        %v1286 = vunpack.c.l.b16 %v852
        %v1287 = vunpack.c.h.b16 %v852
        %v1288 = vunpack.c.l.b16 %v853
        %v1289 = vunpack.c.h.b16 %v853
        %v1290 = vunpack.c.l.b16 %v854
        %v1291 = vunpack.c.h.b16 %v854
        %v1292 = vunpack.c.l.b16 %v855
        %v1293 = vunpack.c.h.b16 %v855
        %v1294 = vunpack.c.l.b16 %v856
        %v1295 = vunpack.c.h.b16 %v856
        %v1296 = vunpack.c.l.b16 %v857
        %v1297 = vunpack.c.h.b16 %v857
        %v1298 = vunpack.c.l.b16 %v858
        %v1299 = vunpack.c.h.b16 %v858
        %v1300 = vunpack.c.l.b16 %v859
        %v1301 = vunpack.c.h.b16 %v859
        %v1302 = vunpack.c.l.b16 %v860
        %v1303 = vunpack.c.h.b16 %v860
        %v1304 = vunpack.c.l.b16 %v861
        %v1305 = vunpack.c.h.b16 %v861
        %v1306 = vunpack.c.l.b16 %v862
        %v1307 = vunpack.c.h.b16 %v862
        %v1308 = vunpack.c.l.b16 %v863
        %v1309 = vunpack.c.h.b16 %v863
        %v1310 = vunpack.c.l.b16 %v864
        %v1311 = vunpack.c.h.b16 %v864
        %v1312 = vunpack.c.l.b16 %v865
        %v1313 = vunpack.c.h.b16 %v865
        %v1314 = vpack.c.b16 %v1062, %v1058
        %v1315 = vpack.c.b16 %v1063, %v1059
        %v1316 = vpack.c.b16 %v1064, %v1060
        %v1317 = vpack.c.b16 %v1065, %v1061
        %v1318 = vpack.c.b16 %v1070, %v1066
        %v1319 = vpack.c.b16 %v1071, %v1067
        %v1320 = vpack.c.b16 %v1072, %v1068
        %v1321 = vpack.c.b16 %v1073, %v1069
        %v1322 = vpack.c.b16 %v1078, %v1074
        %v1323 = vpack.c.b16 %v1079, %v1075
        %v1324 = vpack.c.b16 %v1080, %v1076
        %v1325 = vpack.c.b16 %v1081, %v1077
        %v1326 = vpack.c.b16 %v1086, %v1082
        %v1327 = vpack.c.b16 %v1087, %v1083
        %v1328 = vpack.c.b16 %v1088, %v1084
        %v1329 = vpack.c.b16 %v1089, %v1085
        %v1330 = vpack.c.b16 %v1094, %v1090
        %v1331 = vpack.c.b16 %v1095, %v1091
        %v1332 = vpack.c.b16 %v1096, %v1092
        %v1333 = vpack.c.b16 %v1097, %v1093
        %v1334 = vpack.c.b16 %v1102, %v1098
        %v1335 = vpack.c.b16 %v1103, %v1099
        %v1336 = vpack.c.b16 %v1104, %v1100
        %v1337 = vpack.c.b16 %v1105, %v1101
        %v1338 = vpack.c.b16 %v1110, %v1106
        %v1339 = vpack.c.b16 %v1111, %v1107
        %v1340 = vpack.c.b16 %v1112, %v1108
        %v1341 = vpack.c.b16 %v1113, %v1109
        %v1342 = vpack.c.b16 %v1118, %v1114
        %v1343 = vpack.c.b16 %v1119, %v1115
        %v1344 = vpack.c.b16 %v1120, %v1116
        %v1345 = vpack.c.b16 %v1121, %v1117
        %v1346 = vpack.c.b16 %v1126, %v1122
        %v1347 = vpack.c.b16 %v1127, %v1123
        %v1348 = vpack.c.b16 %v1128, %v1124
        %v1349 = vpack.c.b16 %v1129, %v1125
        %v1350 = vpack.c.b16 %v1134, %v1130
        %v1351 = vpack.c.b16 %v1135, %v1131
        %v1352 = vpack.c.b16 %v1136, %v1132
        %v1353 = vpack.c.b16 %v1137, %v1133
        %v1354 = vpack.c.b16 %v1142, %v1138
        %v1355 = vpack.c.b16 %v1143, %v1139
        %v1356 = vpack.c.b16 %v1144, %v1140
        %v1357 = vpack.c.b16 %v1145, %v1141
        %v1358 = vpack.c.b16 %v1150, %v1146
        %v1359 = vpack.c.b16 %v1151, %v1147
        %v1360 = vpack.c.b16 %v1152, %v1148
        %v1361 = vpack.c.b16 %v1153, %v1149
        %v1362 = vpack.c.b16 %v1158, %v1154
        %v1363 = vpack.c.b16 %v1159, %v1155
        %v1364 = vpack.c.b16 %v1160, %v1156
        %v1365 = vpack.c.b16 %v1161, %v1157
        %v1366 = vpack.c.b16 %v1166, %v1162
        %v1367 = vpack.c.b16 %v1167, %v1163
        %v1368 = vpack.c.b16 %v1168, %v1164
        %v1369 = vpack.c.b16 %v1169, %v1165
        %v1370 = vpack.c.b16 %v1174, %v1170
        %v1371 = vpack.c.b16 %v1175, %v1171
        %v1372 = vpack.c.b16 %v1176, %v1172
        %v1373 = vpack.c.b16 %v1177, %v1173
        %v1374 = vpack.c.b16 %v1182, %v1178
        %v1375 = vpack.c.b16 %v1183, %v1179
        %v1376 = vpack.c.b16 %v1184, %v1180
        %v1377 = vpack.c.b16 %v1185, %v1181
        %v1378 = vpack.c.b16 %v1190, %v1186
        %v1379 = vpack.c.b16 %v1191, %v1187
        %v1380 = vpack.c.b16 %v1192, %v1188
        %v1381 = vpack.c.b16 %v1193, %v1189
        %v1382 = vpack.c.b16 %v1198, %v1194
        %v1383 = vpack.c.b16 %v1199, %v1195
        %v1384 = vpack.c.b16 %v1200, %v1196
        %v1385 = vpack.c.b16 %v1201, %v1197
        %v1386 = vpack.c.b16 %v1206, %v1202
        %v1387 = vpack.c.b16 %v1207, %v1203
        %v1388 = vpack.c.b16 %v1208, %v1204
        %v1389 = vpack.c.b16 %v1209, %v1205
        %v1390 = vpack.c.b16 %v1214, %v1210
        %v1391 = vpack.c.b16 %v1215, %v1211
        %v1392 = vpack.c.b16 %v1216, %v1212
        %v1393 = vpack.c.b16 %v1217, %v1213
        %v1394 = vpack.c.b16 %v1222, %v1218
        %v1395 = vpack.c.b16 %v1223, %v1219
        %v1396 = vpack.c.b16 %v1224, %v1220
        %v1397 = vpack.c.b16 %v1225, %v1221
        %v1398 = vpack.c.b16 %v1230, %v1226
        %v1399 = vpack.c.b16 %v1231, %v1227
        %v1400 = vpack.c.b16 %v1232, %v1228
        %v1401 = vpack.c.b16 %v1233, %v1229
        %v1402 = vpack.c.b16 %v1238, %v1234
        %v1403 = vpack.c.b16 %v1239, %v1235
        %v1404 = vpack.c.b16 %v1240, %v1236
        %v1405 = vpack.c.b16 %v1241, %v1237
        %v1406 = vpack.c.b16 %v1246, %v1242
        %v1407 = vpack.c.b16 %v1247, %v1243
        %v1408 = vpack.c.b16 %v1248, %v1244
        %v1409 = vpack.c.b16 %v1249, %v1245
        %v1410 = vpack.c.b16 %v1254, %v1250
        %v1411 = vpack.c.b16 %v1255, %v1251
        %v1412 = vpack.c.b16 %v1256, %v1252
        %v1413 = vpack.c.b16 %v1257, %v1253
        %v1414 = vpack.c.b16 %v1262, %v1258
        %v1415 = vpack.c.b16 %v1263, %v1259
        %v1416 = vpack.c.b16 %v1264, %v1260
        %v1417 = vpack.c.b16 %v1265, %v1261
        %v1418 = vpack.c.b16 %v1270, %v1266
        %v1419 = vpack.c.b16 %v1271, %v1267
        %v1420 = vpack.c.b16 %v1272, %v1268
        %v1421 = vpack.c.b16 %v1273, %v1269
        %v1422 = vpack.c.b16 %v1278, %v1274
        %v1423 = vpack.c.b16 %v1279, %v1275
        %v1424 = vpack.c.b16 %v1280, %v1276
        %v1425 = vpack.c.b16 %v1281, %v1277
        %v1426 = vpack.c.b16 %v1286, %v1282
        %v1427 = vpack.c.b16 %v1287, %v1283
        %v1428 = vpack.c.b16 %v1288, %v1284
        %v1429 = vpack.c.b16 %v1289, %v1285
        %v1430 = vpack.c.b16 %v1294, %v1290
        %v1431 = vpack.c.b16 %v1295, %v1291
        %v1432 = vpack.c.b16 %v1296, %v1292
        %v1433 = vpack.c.b16 %v1297, %v1293
        %v1434 = vpack.c.b16 %v1302, %v1298
        %v1435 = vpack.c.b16 %v1303, %v1299
        %v1436 = vpack.c.b16 %v1304, %v1300
        %v1437 = vpack.c.b16 %v1305, %v1301
        %v1438 = vpack.c.b16 %v1310, %v1306
        %v1439 = vpack.c.b16 %v1311, %v1307
        %v1440 = vpack.c.b16 %v1312, %v1308
        %v1441 = vpack.c.b16 %v1313, %v1309
        %v1634 = vunpack.c.l.b16 %v866
        %v1635 = vunpack.c.l.b16 %v867
        %v1636 = vunpack.c.l.b16 %v868
        %v1637 = vunpack.c.l.b16 %v869
        %v1638 = vunpack.c.l.b16 %v870
        %v1639 = vunpack.c.l.b16 %v871
        %v1640 = vunpack.c.l.b16 %v872
        %v1641 = vunpack.c.l.b16 %v873
        %v1642 = vunpack.c.l.b16 %v874
        %v1643 = vunpack.c.l.b16 %v875
        %v1644 = vunpack.c.l.b16 %v876
        %v1645 = vunpack.c.l.b16 %v877
        %v1646 = vunpack.c.l.b16 %v878
        %v1647 = vunpack.c.l.b16 %v879
        %v1648 = vunpack.c.l.b16 %v880
        %v1649 = vunpack.c.l.b16 %v881
        %v1650 = vunpack.c.l.b16 %v882
        %v1651 = vunpack.c.l.b16 %v883
        %v1652 = vunpack.c.l.b16 %v884
        %v1653 = vunpack.c.l.b16 %v885
        %v1654 = vunpack.c.l.b16 %v886
        %v1655 = vunpack.c.l.b16 %v887
        %v1656 = vunpack.c.l.b16 %v888
        %v1657 = vunpack.c.l.b16 %v889
        %v1658 = vunpack.c.l.b16 %v890
        %v1659 = vunpack.c.l.b16 %v891
        %v1660 = vunpack.c.l.b16 %v892
        %v1661 = vunpack.c.l.b16 %v893
        %v1662 = vunpack.c.l.b16 %v894
        %v1663 = vunpack.c.l.b16 %v895
        %v1664 = vunpack.c.l.b16 %v896
        %v1665 = vunpack.c.l.b16 %v897
        %v1666 = vunpack.c.l.b16 %v898
        %v1667 = vunpack.c.l.b16 %v899
        %v1668 = vunpack.c.l.b16 %v900
        %v1669 = vunpack.c.l.b16 %v901
        %v1670 = vunpack.c.l.b16 %v902
        %v1671 = vunpack.c.l.b16 %v903
        %v1672 = vunpack.c.l.b16 %v904
        %v1673 = vunpack.c.l.b16 %v905
        %v1674 = vunpack.c.l.b16 %v906
        %v1675 = vunpack.c.l.b16 %v907
        %v1676 = vunpack.c.l.b16 %v908
        %v1677 = vunpack.c.l.b16 %v909
        %v1678 = vunpack.c.l.b16 %v910
        %v1679 = vunpack.c.l.b16 %v911
        %v1680 = vunpack.c.l.b16 %v912
        %v1681 = vunpack.c.l.b16 %v913
        %v1682 = vunpack.c.l.b16 %v914
        %v1683 = vunpack.c.l.b16 %v915
        %v1684 = vunpack.c.l.b16 %v916
        %v1685 = vunpack.c.l.b16 %v917
        %v1686 = vunpack.c.l.b16 %v918
        %v1687 = vunpack.c.l.b16 %v919
        %v1688 = vunpack.c.l.b16 %v920
        %v1689 = vunpack.c.l.b16 %v921
        %v1690 = vunpack.c.l.b16 %v922
        %v1691 = vunpack.c.l.b16 %v923
        %v1692 = vunpack.c.l.b16 %v924
        %v1693 = vunpack.c.l.b16 %v925
        %v1694 = vunpack.c.l.b16 %v926
        %v1695 = vunpack.c.l.b16 %v927
        %v1696 = vunpack.c.l.b16 %v928
        %v1697 = vunpack.c.l.b16 %v929
        %v1698 = vpack.c.b16 %v1635, %v1634
        %v1699 = vpack.c.b16 %v1637, %v1636
        %v1700 = vpack.c.b16 %v1639, %v1638
        %v1701 = vpack.c.b16 %v1641, %v1640
        %v1702 = vpack.c.b16 %v1643, %v1642
        %v1703 = vpack.c.b16 %v1645, %v1644
        %v1704 = vpack.c.b16 %v1647, %v1646
        %v1705 = vpack.c.b16 %v1649, %v1648
        %v1706 = vpack.c.b16 %v1651, %v1650
        %v1707 = vpack.c.b16 %v1653, %v1652
        %v1708 = vpack.c.b16 %v1655, %v1654
        %v1709 = vpack.c.b16 %v1657, %v1656
        %v1710 = vpack.c.b16 %v1659, %v1658
        %v1711 = vpack.c.b16 %v1661, %v1660
        %v1712 = vpack.c.b16 %v1663, %v1662
        %v1713 = vpack.c.b16 %v1665, %v1664
        %v1714 = vpack.c.b16 %v1667, %v1666
        %v1715 = vpack.c.b16 %v1669, %v1668
        %v1716 = vpack.c.b16 %v1671, %v1670
        %v1717 = vpack.c.b16 %v1673, %v1672
        %v1718 = vpack.c.b16 %v1675, %v1674
        %v1719 = vpack.c.b16 %v1677, %v1676
        %v1720 = vpack.c.b16 %v1679, %v1678
        %v1721 = vpack.c.b16 %v1681, %v1680
        %v1722 = vpack.c.b16 %v1683, %v1682
        %v1723 = vpack.c.b16 %v1685, %v1684
        %v1724 = vpack.c.b16 %v1687, %v1686
        %v1725 = vpack.c.b16 %v1689, %v1688
        %v1726 = vpack.c.b16 %v1691, %v1690
        %v1727 = vpack.c.b16 %v1693, %v1692
        %v1728 = vpack.c.b16 %v1695, %v1694
        %v1729 = vpack.c.b16 %v1697, %v1696
        %1762 = vmatprep.subr.bf16.mxu0 0
        %1763 = vmatpush1.bf16.msra.mxu0 %v1705
        %1764 = vmatprep.subr.bf16.mxu0 0
        %1765 = vmatpush1.bf16.msra.mxu0 %v1704
        %1766 = vmatprep.subr.bf16.mxu0 0
        %1767 = vmatpush1.bf16.msra.mxu0 %v1703
        %1768 = vmatprep.subr.bf16.mxu0 0
        %1769 = vmatpush1.bf16.msra.mxu0 %v1702
        %1770 = vmatprep.subr.bf16.mxu0 0
        %1771 = vmatpush1.bf16.msra.mxu0 %v1701
        %1772 = vmatprep.subr.bf16.mxu0 0
        %1773 = vmatpush1.bf16.msra.mxu0 %v1700
        %1774 = vmatprep.subr.bf16.mxu0 0
        %1775 = vmatpush1.bf16.msra.mxu0 %v1699
        %1776 = vmatprep.subr.bf16.mxu0 0
        %1777 = vmatpush1.bf16.msra.mxu0 %v1698
        %1778 = vmatprep.subr.bf16.mxu0 0
        %1779 = vmatpush2.bf16.msra.mxu0 %v1713
        %1780 = vmatprep.subr.bf16.mxu0 0
        %1781 = vmatpush2.bf16.msra.mxu0 %v1712
        %1782 = vmatprep.subr.bf16.mxu0 0
        %1783 = vmatpush2.bf16.msra.mxu0 %v1711
        %1784 = vmatprep.subr.bf16.mxu0 0
        %1785 = vmatpush2.bf16.msra.mxu0 %v1710
        %1786 = vmatprep.subr.bf16.mxu0 0
        %1787 = vmatpush2.bf16.msra.mxu0 %v1709
        %1788 = vmatprep.subr.bf16.mxu0 0
        %1789 = vmatpush2.bf16.msra.mxu0 %v1708
        %1790 = vmatprep.subr.bf16.mxu0 0
        %1791 = vmatpush2.bf16.msra.mxu0 %v1707
        %1792 = vmatprep.subr.bf16.mxu0 0
        %1793 = vmatpush2.bf16.msra.mxu0 %v1706
        %1794 = vmatprep.mubr.bf16.mxu0 %v1315
        %1795 = vmatmul.mubr.bf16.gmra.mxu0 %v1314
        %v1796 = vpop.f32.mrf.mxu0
        %v1797 = vadd.f32 0.0, %v1796
        %v1798 = vpop.f32.mrf.mxu0
        %v1799 = vpop.f32.mrf.mxu0
        %v1800 = vadd.f32 0.0, %v1799
        %v1801 = vpop.f32.mrf.mxu0
        %1802 = vmatprep.mubr.bf16.mxu0 %v1319
        %1803 = vmatmul.mubr.bf16.gmra.mxu0 %v1318
        %v1804 = vpop.f32.mrf.mxu0
        %v1805 = vadd.f32 0.0, %v1804
        %v1806 = vpop.f32.mrf.mxu0
        %v1807 = vpop.f32.mrf.mxu0
        %v1808 = vadd.f32 0.0, %v1807
        %v1809 = vpop.f32.mrf.mxu0
        %1810 = vmatprep.mubr.bf16.mxu0 %v1323
        %1811 = vmatmul.mubr.bf16.gmra.mxu0 %v1322
        %v1812 = vpop.f32.mrf.mxu0
        %v1813 = vadd.f32 0.0, %v1812
        %v1814 = vpop.f32.mrf.mxu0
        %v1815 = vpop.f32.mrf.mxu0
        %v1816 = vadd.f32 0.0, %v1815
        %v1817 = vpop.f32.mrf.mxu0
        %1818 = vmatprep.mubr.bf16.mxu0 %v1327
        %1819 = vmatmul.mubr.bf16.gmra.mxu0 %v1326
        %v1820 = vpop.f32.mrf.mxu0
        %v1821 = vadd.f32 0.0, %v1820
        %v1822 = vpop.f32.mrf.mxu0
        %v1823 = vpop.f32.mrf.mxu0
        %v1824 = vadd.f32 0.0, %v1823
        %v1825 = vpop.f32.mrf.mxu0
        %1826 = vmatprep.mubr.bf16.mxu0 %v1331
        %1827 = vmatmul.mubr.bf16.gmra.mxu0 %v1330
        %v1828 = vpop.f32.mrf.mxu0
        %v1829 = vadd.f32 0.0, %v1828
        %v1830 = vpop.f32.mrf.mxu0
        %v1831 = vpop.f32.mrf.mxu0
        %v1832 = vadd.f32 0.0, %v1831
        %v1833 = vpop.f32.mrf.mxu0
        %1834 = vmatprep.mubr.bf16.mxu0 %v1335
        %1835 = vmatmul.mubr.bf16.gmra.mxu0 %v1334
        %v1836 = vpop.f32.mrf.mxu0
        %v1837 = vadd.f32 0.0, %v1836
        %v1838 = vpop.f32.mrf.mxu0
        %v1839 = vpop.f32.mrf.mxu0
        %v1840 = vadd.f32 0.0, %v1839
        %v1841 = vpop.f32.mrf.mxu0
        %1842 = vmatprep.mubr.bf16.mxu0 %v1339
        %1843 = vmatmul.mubr.bf16.gmra.mxu0 %v1338
        %v1844 = vpop.f32.mrf.mxu0
        %v1845 = vadd.f32 0.0, %v1844
        %v1846 = vpop.f32.mrf.mxu0
        %v1847 = vpop.f32.mrf.mxu0
        %v1848 = vadd.f32 0.0, %v1847
        %v1849 = vpop.f32.mrf.mxu0
        %1850 = vmatprep.mubr.bf16.mxu0 %v1343
        %1851 = vmatmul.mubr.bf16.gmra.mxu0 %v1342
        %v1852 = vpop.f32.mrf.mxu0
        %v1853 = vadd.f32 0.0, %v1852
        %v1854 = vpop.f32.mrf.mxu0
        %v1855 = vpop.f32.mrf.mxu0
        %v1856 = vadd.f32 0.0, %v1855
        %v1857 = vpop.f32.mrf.mxu0
        %1858 = vmatprep.mubr.bf16.mxu0 %v1347
        %1859 = vmatmul.mubr.bf16.gmra.mxu0 %v1346
        %v1860 = vpop.f32.mrf.mxu0
        %v1861 = vadd.f32 0.0, %v1860
        %v1862 = vpop.f32.mrf.mxu0
        %v1863 = vpop.f32.mrf.mxu0
        %v1864 = vadd.f32 0.0, %v1863
        %v1865 = vpop.f32.mrf.mxu0
        %1866 = vmatprep.mubr.bf16.mxu0 %v1351
        %1867 = vmatmul.mubr.bf16.gmra.mxu0 %v1350
        %v1868 = vpop.f32.mrf.mxu0
        %v1869 = vadd.f32 0.0, %v1868
        %v1870 = vpop.f32.mrf.mxu0
        %v1871 = vpop.f32.mrf.mxu0
        %v1872 = vadd.f32 0.0, %v1871
        %v1873 = vpop.f32.mrf.mxu0
        %1874 = vmatprep.mubr.bf16.mxu0 %v1355
        %1875 = vmatmul.mubr.bf16.gmra.mxu0 %v1354
        %v1876 = vpop.f32.mrf.mxu0
        %v1877 = vadd.f32 0.0, %v1876
        %v1878 = vpop.f32.mrf.mxu0
        %v1879 = vpop.f32.mrf.mxu0
        %v1880 = vadd.f32 0.0, %v1879
        %v1881 = vpop.f32.mrf.mxu0
        %1882 = vmatprep.mubr.bf16.mxu0 %v1359
        %1883 = vmatmul.mubr.bf16.gmra.mxu0 %v1358
        %v1884 = vpop.f32.mrf.mxu0
        %v1885 = vadd.f32 0.0, %v1884
        %v1886 = vpop.f32.mrf.mxu0
        %v1887 = vpop.f32.mrf.mxu0
        %v1888 = vadd.f32 0.0, %v1887
        %v1889 = vpop.f32.mrf.mxu0
        %1890 = vmatprep.mubr.bf16.mxu0 %v1363
        %1891 = vmatmul.mubr.bf16.gmra.mxu0 %v1362
        %v1892 = vpop.f32.mrf.mxu0
        %v1893 = vadd.f32 0.0, %v1892
        %v1894 = vpop.f32.mrf.mxu0
        %v1895 = vpop.f32.mrf.mxu0
        %v1896 = vadd.f32 0.0, %v1895
        %v1897 = vpop.f32.mrf.mxu0
        %1898 = vmatprep.mubr.bf16.mxu0 %v1367
        %1899 = vmatmul.mubr.bf16.gmra.mxu0 %v1366
        %v1900 = vpop.f32.mrf.mxu0
        %v1901 = vadd.f32 0.0, %v1900
        %v1902 = vpop.f32.mrf.mxu0
        %v1903 = vpop.f32.mrf.mxu0
        %v1904 = vadd.f32 0.0, %v1903
        %v1905 = vpop.f32.mrf.mxu0
        %1906 = vmatprep.mubr.bf16.mxu0 %v1371
        %1907 = vmatmul.mubr.bf16.gmra.mxu0 %v1370
        %v1908 = vpop.f32.mrf.mxu0
        %v1909 = vadd.f32 0.0, %v1908
        %v1910 = vpop.f32.mrf.mxu0
        %v1911 = vpop.f32.mrf.mxu0
        %v1912 = vadd.f32 0.0, %v1911
        %v1913 = vpop.f32.mrf.mxu0
        %1914 = vmatprep.mubr.bf16.mxu0 %v1375
        %1915 = vmatmul.mubr.bf16.gmra.mxu0 %v1374
        %v1916 = vpop.f32.mrf.mxu0
        %v1917 = vadd.f32 0.0, %v1916
        %v1918 = vpop.f32.mrf.mxu0
        %v1919 = vpop.f32.mrf.mxu0
        %v1920 = vadd.f32 0.0, %v1919
        %v1921 = vpop.f32.mrf.mxu0
        %1922 = vmatprep.mubr.bf16.mxu0 %v1379
        %1923 = vmatmul.mubr.bf16.gmra.mxu0 %v1378
        %v1924 = vpop.f32.mrf.mxu0
        %v1925 = vadd.f32 0.0, %v1924
        %v1926 = vpop.f32.mrf.mxu0
        %v1927 = vpop.f32.mrf.mxu0
        %v1928 = vadd.f32 0.0, %v1927
        %v1929 = vpop.f32.mrf.mxu0
        %1930 = vmatprep.mubr.bf16.mxu0 %v1383
        %1931 = vmatmul.mubr.bf16.gmra.mxu0 %v1382
        %v1932 = vpop.f32.mrf.mxu0
        %v1933 = vadd.f32 0.0, %v1932
        %v1934 = vpop.f32.mrf.mxu0
        %v1935 = vpop.f32.mrf.mxu0
        %v1936 = vadd.f32 0.0, %v1935
        %v1937 = vpop.f32.mrf.mxu0
        %1938 = vmatprep.mubr.bf16.mxu0 %v1387
        %1939 = vmatmul.mubr.bf16.gmra.mxu0 %v1386
        %v1940 = vpop.f32.mrf.mxu0
        %v1941 = vadd.f32 0.0, %v1940
        %v1942 = vpop.f32.mrf.mxu0
        %v1943 = vpop.f32.mrf.mxu0
        %v1944 = vadd.f32 0.0, %v1943
        %v1945 = vpop.f32.mrf.mxu0
        %1946 = vmatprep.mubr.bf16.mxu0 %v1391
        %1947 = vmatmul.mubr.bf16.gmra.mxu0 %v1390
        %v1948 = vpop.f32.mrf.mxu0
        %v1949 = vadd.f32 0.0, %v1948
        %v1950 = vpop.f32.mrf.mxu0
        %v1951 = vpop.f32.mrf.mxu0
        %v1952 = vadd.f32 0.0, %v1951
        %v1953 = vpop.f32.mrf.mxu0
        %1954 = vmatprep.mubr.bf16.mxu0 %v1395
        %1955 = vmatmul.mubr.bf16.gmra.mxu0 %v1394
        %v1956 = vpop.f32.mrf.mxu0
        %v1957 = vadd.f32 0.0, %v1956
        %v1958 = vpop.f32.mrf.mxu0
        %v1959 = vpop.f32.mrf.mxu0
        %v1960 = vadd.f32 0.0, %v1959
        %v1961 = vpop.f32.mrf.mxu0
        %1962 = vmatprep.mubr.bf16.mxu0 %v1399
        %1963 = vmatmul.mubr.bf16.gmra.mxu0 %v1398
        %v1964 = vpop.f32.mrf.mxu0
        %v1965 = vadd.f32 0.0, %v1964
        %v1966 = vpop.f32.mrf.mxu0
        %v1967 = vpop.f32.mrf.mxu0
        %v1968 = vadd.f32 0.0, %v1967
        %v1969 = vpop.f32.mrf.mxu0
        %1970 = vmatprep.mubr.bf16.mxu0 %v1403
        %1971 = vmatmul.mubr.bf16.gmra.mxu0 %v1402
        %v1972 = vpop.f32.mrf.mxu0
        %v1973 = vadd.f32 0.0, %v1972
        %v1974 = vpop.f32.mrf.mxu0
        %v1975 = vpop.f32.mrf.mxu0
        %v1976 = vadd.f32 0.0, %v1975
        %v1977 = vpop.f32.mrf.mxu0
        %1978 = vmatprep.mubr.bf16.mxu0 %v1407
        %1979 = vmatmul.mubr.bf16.gmra.mxu0 %v1406
        %v1980 = vpop.f32.mrf.mxu0
        %v1981 = vadd.f32 0.0, %v1980
        %v1982 = vpop.f32.mrf.mxu0
        %v1983 = vpop.f32.mrf.mxu0
        %v1984 = vadd.f32 0.0, %v1983
        %v1985 = vpop.f32.mrf.mxu0
        %1986 = vmatprep.mubr.bf16.mxu0 %v1411
        %1987 = vmatmul.mubr.bf16.gmra.mxu0 %v1410
        %v1988 = vpop.f32.mrf.mxu0
        %v1989 = vadd.f32 0.0, %v1988
        %v1990 = vpop.f32.mrf.mxu0
        %v1991 = vpop.f32.mrf.mxu0
        %v1992 = vadd.f32 0.0, %v1991
        %v1993 = vpop.f32.mrf.mxu0
        %1994 = vmatprep.mubr.bf16.mxu0 %v1415
        %1995 = vmatmul.mubr.bf16.gmra.mxu0 %v1414
        %v1996 = vpop.f32.mrf.mxu0
        %v1997 = vadd.f32 0.0, %v1996
        %v1998 = vpop.f32.mrf.mxu0
        %v1999 = vpop.f32.mrf.mxu0
        %v2000 = vadd.f32 0.0, %v1999
        %v2001 = vpop.f32.mrf.mxu0
        %2002 = vmatprep.mubr.bf16.mxu0 %v1419
        %2003 = vmatmul.mubr.bf16.gmra.mxu0 %v1418
        %v2004 = vpop.f32.mrf.mxu0
        %v2005 = vadd.f32 0.0, %v2004
        %v2006 = vpop.f32.mrf.mxu0
        %v2007 = vpop.f32.mrf.mxu0
        %v2008 = vadd.f32 0.0, %v2007
        %v2009 = vpop.f32.mrf.mxu0
        %2010 = vmatprep.mubr.bf16.mxu0 %v1423
        %2011 = vmatmul.mubr.bf16.gmra.mxu0 %v1422
        %v2012 = vpop.f32.mrf.mxu0
        %v2013 = vadd.f32 0.0, %v2012
        %v2014 = vpop.f32.mrf.mxu0
        %v2015 = vpop.f32.mrf.mxu0
        %v2016 = vadd.f32 0.0, %v2015
        %v2017 = vpop.f32.mrf.mxu0
        %2018 = vmatprep.mubr.bf16.mxu0 %v1427
        %2019 = vmatmul.mubr.bf16.gmra.mxu0 %v1426
        %v2020 = vpop.f32.mrf.mxu0
        %v2021 = vadd.f32 0.0, %v2020
        %v2022 = vpop.f32.mrf.mxu0
        %v2023 = vpop.f32.mrf.mxu0
        %v2024 = vadd.f32 0.0, %v2023
        %v2025 = vpop.f32.mrf.mxu0
        %2026 = vmatprep.mubr.bf16.mxu0 %v1431
        %2027 = vmatmul.mubr.bf16.gmra.mxu0 %v1430
        %v2028 = vpop.f32.mrf.mxu0
        %v2029 = vadd.f32 0.0, %v2028
        %v2030 = vpop.f32.mrf.mxu0
        %v2031 = vpop.f32.mrf.mxu0
        %v2032 = vadd.f32 0.0, %v2031
        %v2033 = vpop.f32.mrf.mxu0
        %2034 = vmatprep.mubr.bf16.mxu0 %v1435
        %2035 = vmatmul.mubr.bf16.gmra.mxu0 %v1434
        %v2036 = vpop.f32.mrf.mxu0
        %v2037 = vadd.f32 0.0, %v2036
        %v2038 = vpop.f32.mrf.mxu0
        %v2039 = vpop.f32.mrf.mxu0
        %v2040 = vadd.f32 0.0, %v2039
        %v2041 = vpop.f32.mrf.mxu0
        %2042 = vmatprep.mubr.bf16.mxu0 %v1439
        %2043 = vmatmul.mubr.bf16.gmra.mxu0 %v1438
        %v2044 = vpop.f32.mrf.mxu0
        %v2045 = vadd.f32 0.0, %v2044
        %v2046 = vpop.f32.mrf.mxu0
        %v2047 = vpop.f32.mrf.mxu0
        %v2048 = vadd.f32 0.0, %v2047
        %v2049 = vpop.f32.mrf.mxu0
        %2050 = vdwg.mxu0
        %2051 = vmatprep.subr.bf16.mxu0 0
        %2052 = vmatpush1.bf16.msra.mxu0 %v1721
        %2053 = vmatprep.subr.bf16.mxu0 0
        %2054 = vmatpush1.bf16.msra.mxu0 %v1720
        %2055 = vmatprep.subr.bf16.mxu0 0
        %2056 = vmatpush1.bf16.msra.mxu0 %v1719
        %2057 = vmatprep.subr.bf16.mxu0 0
        %2058 = vmatpush1.bf16.msra.mxu0 %v1718
        %2059 = vmatprep.subr.bf16.mxu0 0
        %2060 = vmatpush1.bf16.msra.mxu0 %v1717
        %2061 = vmatprep.subr.bf16.mxu0 0
        %2062 = vmatpush1.bf16.msra.mxu0 %v1716
        %2063 = vmatprep.subr.bf16.mxu0 0
        %2064 = vmatpush1.bf16.msra.mxu0 %v1715
        %2065 = vmatprep.subr.bf16.mxu0 0
        %2066 = vmatpush1.bf16.msra.mxu0 %v1714
        %2067 = vmatprep.subr.bf16.mxu0 0
        %2068 = vmatpush2.bf16.msra.mxu0 %v1729
        %2069 = vmatprep.subr.bf16.mxu0 0
        %2070 = vmatpush2.bf16.msra.mxu0 %v1728
        %2071 = vmatprep.subr.bf16.mxu0 0
        %2072 = vmatpush2.bf16.msra.mxu0 %v1727
        %2073 = vmatprep.subr.bf16.mxu0 0
        %2074 = vmatpush2.bf16.msra.mxu0 %v1726
        %2075 = vmatprep.subr.bf16.mxu0 0
        %2076 = vmatpush2.bf16.msra.mxu0 %v1725
        %2077 = vmatprep.subr.bf16.mxu0 0
        %2078 = vmatpush2.bf16.msra.mxu0 %v1724
        %2079 = vmatprep.subr.bf16.mxu0 0
        %2080 = vmatpush2.bf16.msra.mxu0 %v1723
        %2081 = vmatprep.subr.bf16.mxu0 0
        %2082 = vmatpush2.bf16.msra.mxu0 %v1722
        %2083 = vmatprep.mubr.bf16.mxu0 %v1317
        %2084 = vmatmul.mubr.bf16.gmra.mxu0 %v1316
        %v2085 = vpop.f32.mrf.mxu0
        %v2086 = vadd.f32 %v1797, %v2085
        %v2087 = vpop.f32.mrf.mxu0
        %v2088 = vpop.f32.mrf.mxu0
        %v2089 = vadd.f32 %v1800, %v2088
        %v2090 = vpop.f32.mrf.mxu0
        %2091 = vmatprep.mubr.bf16.mxu0 %v1321
        %2092 = vmatmul.mubr.bf16.gmra.mxu0 %v1320
        %v2093 = vpop.f32.mrf.mxu0
        %v2094 = vadd.f32 %v1805, %v2093
        %v2095 = vpop.f32.mrf.mxu0
        %v2096 = vpop.f32.mrf.mxu0
        %v2097 = vadd.f32 %v1808, %v2096
        %v2098 = vpop.f32.mrf.mxu0
        %2099 = vmatprep.mubr.bf16.mxu0 %v1325
        %2100 = vmatmul.mubr.bf16.gmra.mxu0 %v1324
        %v2101 = vpop.f32.mrf.mxu0
        %v2102 = vadd.f32 %v1813, %v2101
        %v2103 = vpop.f32.mrf.mxu0
        %v2104 = vpop.f32.mrf.mxu0
        %v2105 = vadd.f32 %v1816, %v2104
        %v2106 = vpop.f32.mrf.mxu0
        %2107 = vmatprep.mubr.bf16.mxu0 %v1329
        %2108 = vmatmul.mubr.bf16.gmra.mxu0 %v1328
        %v2109 = vpop.f32.mrf.mxu0
        %v2110 = vadd.f32 %v1821, %v2109
        %v2111 = vpop.f32.mrf.mxu0
        %v2112 = vpop.f32.mrf.mxu0
        %v2113 = vadd.f32 %v1824, %v2112
        %v2114 = vpop.f32.mrf.mxu0
        %2115 = vmatprep.mubr.bf16.mxu0 %v1333
        %2116 = vmatmul.mubr.bf16.gmra.mxu0 %v1332
        %v2117 = vpop.f32.mrf.mxu0
        %v2118 = vadd.f32 %v1829, %v2117
        %v2119 = vpop.f32.mrf.mxu0
        %v2120 = vpop.f32.mrf.mxu0
        %v2121 = vadd.f32 %v1832, %v2120
        %v2122 = vpop.f32.mrf.mxu0
        %2123 = vmatprep.mubr.bf16.mxu0 %v1337
        %2124 = vmatmul.mubr.bf16.gmra.mxu0 %v1336
        %v2125 = vpop.f32.mrf.mxu0
        %v2126 = vadd.f32 %v1837, %v2125
        %v2127 = vpop.f32.mrf.mxu0
        %v2128 = vpop.f32.mrf.mxu0
        %v2129 = vadd.f32 %v1840, %v2128
        %v2130 = vpop.f32.mrf.mxu0
        %2131 = vmatprep.mubr.bf16.mxu0 %v1341
        %2132 = vmatmul.mubr.bf16.gmra.mxu0 %v1340
        %v2133 = vpop.f32.mrf.mxu0
        %v2134 = vadd.f32 %v1845, %v2133
        %v2135 = vpop.f32.mrf.mxu0
        %v2136 = vpop.f32.mrf.mxu0
        %v2137 = vadd.f32 %v1848, %v2136
        %v2138 = vpop.f32.mrf.mxu0
        %2139 = vmatprep.mubr.bf16.mxu0 %v1345
        %2140 = vmatmul.mubr.bf16.gmra.mxu0 %v1344
        %v2141 = vpop.f32.mrf.mxu0
        %v2142 = vadd.f32 %v1853, %v2141
        %v2143 = vpop.f32.mrf.mxu0
        %v2144 = vpop.f32.mrf.mxu0
        %v2145 = vadd.f32 %v1856, %v2144
        %v2146 = vpop.f32.mrf.mxu0
        %2147 = vmatprep.mubr.bf16.mxu0 %v1349
        %2148 = vmatmul.mubr.bf16.gmra.mxu0 %v1348
        %v2149 = vpop.f32.mrf.mxu0
        %v2150 = vadd.f32 %v1861, %v2149
        %v2151 = vpop.f32.mrf.mxu0
        %v2152 = vpop.f32.mrf.mxu0
        %v2153 = vadd.f32 %v1864, %v2152
        %v2154 = vpop.f32.mrf.mxu0
        %2155 = vmatprep.mubr.bf16.mxu0 %v1353
        %2156 = vmatmul.mubr.bf16.gmra.mxu0 %v1352
        %v2157 = vpop.f32.mrf.mxu0
        %v2158 = vadd.f32 %v1869, %v2157
        %v2159 = vpop.f32.mrf.mxu0
        %v2160 = vpop.f32.mrf.mxu0
        %v2161 = vadd.f32 %v1872, %v2160
        %v2162 = vpop.f32.mrf.mxu0
        %2163 = vmatprep.mubr.bf16.mxu0 %v1357
        %2164 = vmatmul.mubr.bf16.gmra.mxu0 %v1356
        %v2165 = vpop.f32.mrf.mxu0
        %v2166 = vadd.f32 %v1877, %v2165
        %v2167 = vpop.f32.mrf.mxu0
        %v2168 = vpop.f32.mrf.mxu0
        %v2169 = vadd.f32 %v1880, %v2168
        %v2170 = vpop.f32.mrf.mxu0
        %2171 = vmatprep.mubr.bf16.mxu0 %v1361
        %2172 = vmatmul.mubr.bf16.gmra.mxu0 %v1360
        %v2173 = vpop.f32.mrf.mxu0
        %v2174 = vadd.f32 %v1885, %v2173
        %v2175 = vpop.f32.mrf.mxu0
        %v2176 = vpop.f32.mrf.mxu0
        %v2177 = vadd.f32 %v1888, %v2176
        %v2178 = vpop.f32.mrf.mxu0
        %2179 = vmatprep.mubr.bf16.mxu0 %v1365
        %2180 = vmatmul.mubr.bf16.gmra.mxu0 %v1364
        %v2181 = vpop.f32.mrf.mxu0
        %v2182 = vadd.f32 %v1893, %v2181
        %v2183 = vpop.f32.mrf.mxu0
        %v2184 = vpop.f32.mrf.mxu0
        %v2185 = vadd.f32 %v1896, %v2184
        %v2186 = vpop.f32.mrf.mxu0
        %2187 = vmatprep.mubr.bf16.mxu0 %v1369
        %2188 = vmatmul.mubr.bf16.gmra.mxu0 %v1368
        %v2189 = vpop.f32.mrf.mxu0
        %v2190 = vadd.f32 %v1901, %v2189
        %v2191 = vpop.f32.mrf.mxu0
        %v2192 = vpop.f32.mrf.mxu0
        %v2193 = vadd.f32 %v1904, %v2192
        %v2194 = vpop.f32.mrf.mxu0
        %2195 = vmatprep.mubr.bf16.mxu0 %v1373
        %2196 = vmatmul.mubr.bf16.gmra.mxu0 %v1372
        %v2197 = vpop.f32.mrf.mxu0
        %v2198 = vadd.f32 %v1909, %v2197
        %v2199 = vpop.f32.mrf.mxu0
        %v2200 = vpop.f32.mrf.mxu0
        %v2201 = vadd.f32 %v1912, %v2200
        %v2202 = vpop.f32.mrf.mxu0
        %2203 = vmatprep.mubr.bf16.mxu0 %v1377
        %2204 = vmatmul.mubr.bf16.gmra.mxu0 %v1376
        %v2205 = vpop.f32.mrf.mxu0
        %v2206 = vadd.f32 %v1917, %v2205
        %v2207 = vpop.f32.mrf.mxu0
        %v2208 = vpop.f32.mrf.mxu0
        %v2209 = vadd.f32 %v1920, %v2208
        %v2210 = vpop.f32.mrf.mxu0
        %2211 = vmatprep.mubr.bf16.mxu0 %v1381
        %2212 = vmatmul.mubr.bf16.gmra.mxu0 %v1380
        %v2213 = vpop.f32.mrf.mxu0
        %v2214 = vadd.f32 %v1925, %v2213
        %v2215 = vpop.f32.mrf.mxu0
        %v2216 = vpop.f32.mrf.mxu0
        %v2217 = vadd.f32 %v1928, %v2216
        %v2218 = vpop.f32.mrf.mxu0
        %2219 = vmatprep.mubr.bf16.mxu0 %v1385
        %2220 = vmatmul.mubr.bf16.gmra.mxu0 %v1384
        %v2221 = vpop.f32.mrf.mxu0
        %v2222 = vadd.f32 %v1933, %v2221
        %v2223 = vpop.f32.mrf.mxu0
        %v2224 = vpop.f32.mrf.mxu0
        %v2225 = vadd.f32 %v1936, %v2224
        %v2226 = vpop.f32.mrf.mxu0
        %2227 = vmatprep.mubr.bf16.mxu0 %v1389
        %2228 = vmatmul.mubr.bf16.gmra.mxu0 %v1388
        %v2229 = vpop.f32.mrf.mxu0
        %v2230 = vadd.f32 %v1941, %v2229
        %v2231 = vpop.f32.mrf.mxu0
        %v2232 = vpop.f32.mrf.mxu0
        %v2233 = vadd.f32 %v1944, %v2232
        %v2234 = vpop.f32.mrf.mxu0
        %2235 = vmatprep.mubr.bf16.mxu0 %v1393
        %2236 = vmatmul.mubr.bf16.gmra.mxu0 %v1392
        %v2237 = vpop.f32.mrf.mxu0
        %v2238 = vadd.f32 %v1949, %v2237
        %v2239 = vpop.f32.mrf.mxu0
        %v2240 = vpop.f32.mrf.mxu0
        %v2241 = vadd.f32 %v1952, %v2240
        %v2242 = vpop.f32.mrf.mxu0
        %2243 = vmatprep.mubr.bf16.mxu0 %v1397
        %2244 = vmatmul.mubr.bf16.gmra.mxu0 %v1396
        %v2245 = vpop.f32.mrf.mxu0
        %v2246 = vadd.f32 %v1957, %v2245
        %v2247 = vpop.f32.mrf.mxu0
        %v2248 = vpop.f32.mrf.mxu0
        %v2249 = vadd.f32 %v1960, %v2248
        %v2250 = vpop.f32.mrf.mxu0
        %2251 = vmatprep.mubr.bf16.mxu0 %v1401
        %2252 = vmatmul.mubr.bf16.gmra.mxu0 %v1400
        %v2253 = vpop.f32.mrf.mxu0
        %v2254 = vadd.f32 %v1965, %v2253
        %v2255 = vpop.f32.mrf.mxu0
        %v2256 = vpop.f32.mrf.mxu0
        %v2257 = vadd.f32 %v1968, %v2256
        %v2258 = vpop.f32.mrf.mxu0
        %2259 = vmatprep.mubr.bf16.mxu0 %v1405
        %2260 = vmatmul.mubr.bf16.gmra.mxu0 %v1404
        %v2261 = vpop.f32.mrf.mxu0
        %v2262 = vadd.f32 %v1973, %v2261
        %v2263 = vpop.f32.mrf.mxu0
        %v2264 = vpop.f32.mrf.mxu0
        %v2265 = vadd.f32 %v1976, %v2264
        %v2266 = vpop.f32.mrf.mxu0
        %2267 = vmatprep.mubr.bf16.mxu0 %v1409
        %2268 = vmatmul.mubr.bf16.gmra.mxu0 %v1408
        %v2269 = vpop.f32.mrf.mxu0
        %v2270 = vadd.f32 %v1981, %v2269
        %v2271 = vpop.f32.mrf.mxu0
        %v2272 = vpop.f32.mrf.mxu0
        %v2273 = vadd.f32 %v1984, %v2272
        %v2274 = vpop.f32.mrf.mxu0
        %2275 = vmatprep.mubr.bf16.mxu0 %v1413
        %2276 = vmatmul.mubr.bf16.gmra.mxu0 %v1412
        %v2277 = vpop.f32.mrf.mxu0
        %v2278 = vadd.f32 %v1989, %v2277
        %v2279 = vpop.f32.mrf.mxu0
        %v2280 = vpop.f32.mrf.mxu0
        %v2281 = vadd.f32 %v1992, %v2280
        %v2282 = vpop.f32.mrf.mxu0
        %2283 = vmatprep.mubr.bf16.mxu0 %v1417
        %2284 = vmatmul.mubr.bf16.gmra.mxu0 %v1416
        %v2285 = vpop.f32.mrf.mxu0
        %v2286 = vadd.f32 %v1997, %v2285
        %v2287 = vpop.f32.mrf.mxu0
        %v2288 = vpop.f32.mrf.mxu0
        %v2289 = vadd.f32 %v2000, %v2288
        %v2290 = vpop.f32.mrf.mxu0
        %2291 = vmatprep.mubr.bf16.mxu0 %v1421
        %2292 = vmatmul.mubr.bf16.gmra.mxu0 %v1420
        %v2293 = vpop.f32.mrf.mxu0
        %v2294 = vadd.f32 %v2005, %v2293
        %v2295 = vpop.f32.mrf.mxu0
        %v2296 = vpop.f32.mrf.mxu0
        %v2297 = vadd.f32 %v2008, %v2296
        %v2298 = vpop.f32.mrf.mxu0
        %2299 = vmatprep.mubr.bf16.mxu0 %v1425
        %2300 = vmatmul.mubr.bf16.gmra.mxu0 %v1424
        %v2301 = vpop.f32.mrf.mxu0
        %v2302 = vadd.f32 %v2013, %v2301
        %v2303 = vpop.f32.mrf.mxu0
        %v2304 = vpop.f32.mrf.mxu0
        %v2305 = vadd.f32 %v2016, %v2304
        %v2306 = vpop.f32.mrf.mxu0
        %2307 = vmatprep.mubr.bf16.mxu0 %v1429
        %2308 = vmatmul.mubr.bf16.gmra.mxu0 %v1428
        %v2309 = vpop.f32.mrf.mxu0
        %v2310 = vadd.f32 %v2021, %v2309
        %v2311 = vpop.f32.mrf.mxu0
        %v2312 = vpop.f32.mrf.mxu0
        %v2313 = vadd.f32 %v2024, %v2312
        %v2314 = vpop.f32.mrf.mxu0
        %2315 = vmatprep.mubr.bf16.mxu0 %v1433
        %2316 = vmatmul.mubr.bf16.gmra.mxu0 %v1432
        %v2317 = vpop.f32.mrf.mxu0
        %v2318 = vadd.f32 %v2029, %v2317
        %v2319 = vpop.f32.mrf.mxu0
        %v2320 = vpop.f32.mrf.mxu0
        %v2321 = vadd.f32 %v2032, %v2320
        %v2322 = vpop.f32.mrf.mxu0
        %2323 = vmatprep.mubr.bf16.mxu0 %v1437
        %2324 = vmatmul.mubr.bf16.gmra.mxu0 %v1436
        %v2325 = vpop.f32.mrf.mxu0
        %v2326 = vadd.f32 %v2037, %v2325
        %v2327 = vpop.f32.mrf.mxu0
        %v2328 = vpop.f32.mrf.mxu0
        %v2329 = vadd.f32 %v2040, %v2328
        %v2330 = vpop.f32.mrf.mxu0
        %2331 = vmatprep.mubr.bf16.mxu0 %v1441
        %2332 = vmatmul.mubr.bf16.gmra.mxu0 %v1440
        %v2333 = vpop.f32.mrf.mxu0
        %v2334 = vadd.f32 %v2045, %v2333
        %v2335 = vpop.f32.mrf.mxu0
        %v2336 = vpop.f32.mrf.mxu0
        %v2337 = vadd.f32 %v2048, %v2336
        %v2338 = vpop.f32.mrf.mxu0
        %2339 = vdwg.mxu0
        %v2340 = vadd.f32 %v674, %v2086
        %v2341 = vadd.f32 %v675, %v2089
        %v2342 = vadd.f32 %v676, %v2094
        %v2343 = vadd.f32 %v677, %v2097
        %v2344 = vadd.f32 %v678, %v2102
        %v2345 = vadd.f32 %v679, %v2105
        %v2346 = vadd.f32 %v680, %v2110
        %v2347 = vadd.f32 %v681, %v2113
        %v2348 = vadd.f32 %v682, %v2118
        %v2349 = vadd.f32 %v683, %v2121
        %v2350 = vadd.f32 %v684, %v2126
        %v2351 = vadd.f32 %v685, %v2129
        %v2352 = vadd.f32 %v686, %v2134
        %v2353 = vadd.f32 %v687, %v2137
        %v2354 = vadd.f32 %v688, %v2142
        %v2355 = vadd.f32 %v689, %v2145
        %v2356 = vadd.f32 %v690, %v2150
        %v2357 = vadd.f32 %v691, %v2153
        %v2358 = vadd.f32 %v692, %v2158
        %v2359 = vadd.f32 %v693, %v2161
        %v2360 = vadd.f32 %v694, %v2166
        %v2361 = vadd.f32 %v695, %v2169
        %v2362 = vadd.f32 %v696, %v2174
        %v2363 = vadd.f32 %v697, %v2177
        %v2364 = vadd.f32 %v698, %v2182
        %v2365 = vadd.f32 %v699, %v2185
        %v2366 = vadd.f32 %v700, %v2190
        %v2367 = vadd.f32 %v701, %v2193
        %v2368 = vadd.f32 %v702, %v2198
        %v2369 = vadd.f32 %v703, %v2201
        %v2370 = vadd.f32 %v704, %v2206
        %v2371 = vadd.f32 %v705, %v2209
        %v2372 = vadd.f32 %v706, %v2214
        %v2373 = vadd.f32 %v707, %v2217
        %v2374 = vadd.f32 %v708, %v2222
        %v2375 = vadd.f32 %v709, %v2225
        %v2376 = vadd.f32 %v710, %v2230
        %v2377 = vadd.f32 %v711, %v2233
        %v2378 = vadd.f32 %v712, %v2238
        %v2379 = vadd.f32 %v713, %v2241
        %v2380 = vadd.f32 %v714, %v2246
        %v2381 = vadd.f32 %v715, %v2249
        %v2382 = vadd.f32 %v716, %v2254
        %v2383 = vadd.f32 %v717, %v2257
        %v2384 = vadd.f32 %v718, %v2262
        %v2385 = vadd.f32 %v719, %v2265
        %v2386 = vadd.f32 %v720, %v2270
        %v2387 = vadd.f32 %v721, %v2273
        %v2388 = vadd.f32 %v722, %v2278
        %v2389 = vadd.f32 %v723, %v2281
        %v2390 = vadd.f32 %v724, %v2286
        %v2391 = vadd.f32 %v725, %v2289
        %v2392 = vadd.f32 %v726, %v2294
        %v2393 = vadd.f32 %v727, %v2297
        %v2394 = vadd.f32 %v728, %v2302
        %v2395 = vadd.f32 %v729, %v2305
        %v2396 = vadd.f32 %v730, %v2310
        %v2397 = vadd.f32 %v731, %v2313
        %v2398 = vadd.f32 %v732, %v2318
        %v2399 = vadd.f32 %v733, %v2321
        %v2400 = vadd.f32 %v734, %v2326
        %v2401 = vadd.f32 %v735, %v2329
        %v2402 = vadd.f32 %v736, %v2334
        %v2403 = vadd.f32 %v737, %v2337
        %vm2404 = vcmask 130048
        %2405 = vst.msk [vmem:[#allocation2] sm:$0xff] %vm2404, %v2340
        %2406 = vst.msk [vmem:[#allocation2 + $0x8] sm:$0xff] %vm2404, %v2341
        %2407 = vst.msk [vmem:[#allocation2 + $0x10] sm:$0xff] %vm2404, %v2342
        %2408 = vst.msk [vmem:[#allocation2 + $0x18] sm:$0xff] %vm2404, %v2343
        %2409 = vst.msk [vmem:[#allocation2 + $0x20] sm:$0xff] %vm2404, %v2344
        %2410 = vst.msk [vmem:[#allocation2 + $0x28] sm:$0xff] %vm2404, %v2345
        %2411 = vst.msk [vmem:[#allocation2 + $0x30] sm:$0xff] %vm2404, %v2346
        %2412 = vst.msk [vmem:[#allocation2 + $0x38] sm:$0xff] %vm2404, %v2347
        %2413 = vst.msk [vmem:[#allocation2 + $0x40] sm:$0xff] %vm2404, %v2348
        %2414 = vst.msk [vmem:[#allocation2 + $0x48] sm:$0xff] %vm2404, %v2349
        %2415 = vst.msk [vmem:[#allocation2 + $0x50] sm:$0xff] %vm2404, %v2350
        %2416 = vst.msk [vmem:[#allocation2 + $0x58] sm:$0xff] %vm2404, %v2351
        %2417 = vst.msk [vmem:[#allocation2 + $0x60] sm:$0xff] %vm2404, %v2352
        %2418 = vst.msk [vmem:[#allocation2 + $0x68] sm:$0xff] %vm2404, %v2353
        %2419 = vst.msk [vmem:[#allocation2 + $0x70] sm:$0xff] %vm2404, %v2354
        %2420 = vst.msk [vmem:[#allocation2 + $0x78] sm:$0xff] %vm2404, %v2355
        %2421 = vst.msk [vmem:[#allocation2 + $0x80] sm:$0xff] %vm2404, %v2356
        %2422 = vst.msk [vmem:[#allocation2 + $0x88] sm:$0xff] %vm2404, %v2357
        %2423 = vst.msk [vmem:[#allocation2 + $0x90] sm:$0xff] %vm2404, %v2358
        %2424 = vst.msk [vmem:[#allocation2 + $0x98] sm:$0xff] %vm2404, %v2359
        %2425 = vst.msk [vmem:[#allocation2 + $0xa0] sm:$0xff] %vm2404, %v2360
        %2426 = vst.msk [vmem:[#allocation2 + $0xa8] sm:$0xff] %vm2404, %v2361
        %2427 = vst.msk [vmem:[#allocation2 + $0xb0] sm:$0xff] %vm2404, %v2362
        %2428 = vst.msk [vmem:[#allocation2 + $0xb8] sm:$0xff] %vm2404, %v2363
        %2429 = vst.msk [vmem:[#allocation2 + $0xc0] sm:$0xff] %vm2404, %v2364
        %2430 = vst.msk [vmem:[#allocation2 + $0xc8] sm:$0xff] %vm2404, %v2365
        %2431 = vst.msk [vmem:[#allocation2 + $0xd0] sm:$0xff] %vm2404, %v2366
        %2432 = vst.msk [vmem:[#allocation2 + $0xd8] sm:$0xff] %vm2404, %v2367
        %2433 = vst.msk [vmem:[#allocation2 + $0xe0] sm:$0xff] %vm2404, %v2368
        %2434 = vst.msk [vmem:[#allocation2 + $0xe8] sm:$0xff] %vm2404, %v2369
        %2435 = vst.msk [vmem:[#allocation2 + $0xf0] sm:$0xff] %vm2404, %v2370
        %2436 = vst.msk [vmem:[#allocation2 + $0xf8] sm:$0xff] %vm2404, %v2371
        %2437 = vst.msk [vmem:[#allocation2 + $0x100] sm:$0xff] %vm2404, %v2372
        %2438 = vst.msk [vmem:[#allocation2 + $0x108] sm:$0xff] %vm2404, %v2373
        %2439 = vst.msk [vmem:[#allocation2 + $0x110] sm:$0xff] %vm2404, %v2374
        %2440 = vst.msk [vmem:[#allocation2 + $0x118] sm:$0xff] %vm2404, %v2375
        %2441 = vst.msk [vmem:[#allocation2 + $0x120] sm:$0xff] %vm2404, %v2376
        %2442 = vst.msk [vmem:[#allocation2 + $0x128] sm:$0xff] %vm2404, %v2377
        %2443 = vst.msk [vmem:[#allocation2 + $0x130] sm:$0xff] %vm2404, %v2378
        %2444 = vst.msk [vmem:[#allocation2 + $0x138] sm:$0xff] %vm2404, %v2379
        %2445 = vst.msk [vmem:[#allocation2 + $0x140] sm:$0xff] %vm2404, %v2380
        %2446 = vst.msk [vmem:[#allocation2 + $0x148] sm:$0xff] %vm2404, %v2381
        %2447 = vst.msk [vmem:[#allocation2 + $0x150] sm:$0xff] %vm2404, %v2382
        %2448 = vst.msk [vmem:[#allocation2 + $0x158] sm:$0xff] %vm2404, %v2383
        %2449 = vst.msk [vmem:[#allocation2 + $0x160] sm:$0xff] %vm2404, %v2384
        %2450 = vst.msk [vmem:[#allocation2 + $0x168] sm:$0xff] %vm2404, %v2385
        %2451 = vst.msk [vmem:[#allocation2 + $0x170] sm:$0xff] %vm2404, %v2386
        %2452 = vst.msk [vmem:[#allocation2 + $0x178] sm:$0xff] %vm2404, %v2387
        %2453 = vst.msk [vmem:[#allocation2 + $0x180] sm:$0xff] %vm2404, %v2388
        %2454 = vst.msk [vmem:[#allocation2 + $0x188] sm:$0xff] %vm2404, %v2389
        %2455 = vst.msk [vmem:[#allocation2 + $0x190] sm:$0xff] %vm2404, %v2390
        %2456 = vst.msk [vmem:[#allocation2 + $0x198] sm:$0xff] %vm2404, %v2391
        %2457 = vst.msk [vmem:[#allocation2 + $0x1a0] sm:$0xff] %vm2404, %v2392
        %2458 = vst.msk [vmem:[#allocation2 + $0x1a8] sm:$0xff] %vm2404, %v2393
        %2459 = vst.msk [vmem:[#allocation2 + $0x1b0] sm:$0xff] %vm2404, %v2394
        %2460 = vst.msk [vmem:[#allocation2 + $0x1b8] sm:$0xff] %vm2404, %v2395
        %2461 = vst.msk [vmem:[#allocation2 + $0x1c0] sm:$0xff] %vm2404, %v2396
        %2462 = vst.msk [vmem:[#allocation2 + $0x1c8] sm:$0xff] %vm2404, %v2397
        %2463 = vst.msk [vmem:[#allocation2 + $0x1d0] sm:$0xff] %vm2404, %v2398
        %2464 = vst.msk [vmem:[#allocation2 + $0x1d8] sm:$0xff] %vm2404, %v2399
        %2465 = vst.msk [vmem:[#allocation2 + $0x1e0] sm:$0xff] %vm2404, %v2400
        %2466 = vst.msk [vmem:[#allocation2 + $0x1e8] sm:$0xff] %vm2404, %v2401
        %2467 = vst.msk [vmem:[#allocation2 + $0x1f0] sm:$0xff] %vm2404, %v2402
        %2468 = vst.msk [vmem:[#allocation2 + $0x1f8] sm:$0xff] %vm2404, %v2403
        %p2469 = scmp.eq.s32.totalorder %s23, 1
        // Predicated region
        $region68: #{tdrumor_forward.4} parent=58 // pred_check
          %p2470 = pneg %p2469
        $region69: #{tdrumor_forward.4} parent=58 // pred_check_branch
          %2472 = sbr.rel (%p2470) target = $region71
        $region70: #{tdrumor_forward.4} parent=58 // pred_region
          %v2473 = vld [vmem:[#allocation2] sm:$0xff]
          %v2474 = vld [vmem:[#allocation2 + $0x8] sm:$0xff]
          %v2475 = vld [vmem:[#allocation2 + $0x10] sm:$0xff]
          %v2476 = vld [vmem:[#allocation2 + $0x18] sm:$0xff]
          %v2477 = vld [vmem:[#allocation2 + $0x20] sm:$0xff]
          %v2478 = vld [vmem:[#allocation2 + $0x28] sm:$0xff]
          %v2479 = vld [vmem:[#allocation2 + $0x30] sm:$0xff]
          %v2480 = vld [vmem:[#allocation2 + $0x38] sm:$0xff]
          %v2481 = vld [vmem:[#allocation2 + $0x40] sm:$0xff]
          %v2482 = vld [vmem:[#allocation2 + $0x48] sm:$0xff]
          %v2483 = vld [vmem:[#allocation2 + $0x50] sm:$0xff]
          %v2484 = vld [vmem:[#allocation2 + $0x58] sm:$0xff]
          %v2485 = vld [vmem:[#allocation2 + $0x60] sm:$0xff]
          %v2486 = vld [vmem:[#allocation2 + $0x68] sm:$0xff]
          %v2487 = vld [vmem:[#allocation2 + $0x70] sm:$0xff]
          %v2488 = vld [vmem:[#allocation2 + $0x78] sm:$0xff]
          %v2489 = vld [vmem:[#allocation2 + $0x80] sm:$0xff]
          %v2490 = vld [vmem:[#allocation2 + $0x88] sm:$0xff]
          %v2491 = vld [vmem:[#allocation2 + $0x90] sm:$0xff]
          %v2492 = vld [vmem:[#allocation2 + $0x98] sm:$0xff]
          %v2493 = vld [vmem:[#allocation2 + $0xa0] sm:$0xff]
          %v2494 = vld [vmem:[#allocation2 + $0xa8] sm:$0xff]
          %v2495 = vld [vmem:[#allocation2 + $0xb0] sm:$0xff]
          %v2496 = vld [vmem:[#allocation2 + $0xb8] sm:$0xff]
          %v2497 = vld [vmem:[#allocation2 + $0xc0] sm:$0xff]
          %v2498 = vld [vmem:[#allocation2 + $0xc8] sm:$0xff]
          %v2499 = vld [vmem:[#allocation2 + $0xd0] sm:$0xff]
          %v2500 = vld [vmem:[#allocation2 + $0xd8] sm:$0xff]
          %v2501 = vld [vmem:[#allocation2 + $0xe0] sm:$0xff]
          %v2502 = vld [vmem:[#allocation2 + $0xe8] sm:$0xff]
          %v2503 = vld [vmem:[#allocation2 + $0xf0] sm:$0xff]
          %v2504 = vld [vmem:[#allocation2 + $0xf8] sm:$0xff]
          %v2505 = vld [vmem:[#allocation2 + $0x100] sm:$0xff]
          %v2506 = vld [vmem:[#allocation2 + $0x108] sm:$0xff]
          %v2507 = vld [vmem:[#allocation2 + $0x110] sm:$0xff]
          %v2508 = vld [vmem:[#allocation2 + $0x118] sm:$0xff]
          %v2509 = vld [vmem:[#allocation2 + $0x120] sm:$0xff]
          %v2510 = vld [vmem:[#allocation2 + $0x128] sm:$0xff]
          %v2511 = vld [vmem:[#allocation2 + $0x130] sm:$0xff]
          %v2512 = vld [vmem:[#allocation2 + $0x138] sm:$0xff]
          %v2513 = vld [vmem:[#allocation2 + $0x140] sm:$0xff]
          %v2514 = vld [vmem:[#allocation2 + $0x148] sm:$0xff]
          %v2515 = vld [vmem:[#allocation2 + $0x150] sm:$0xff]
          %v2516 = vld [vmem:[#allocation2 + $0x158] sm:$0xff]
          %v2517 = vld [vmem:[#allocation2 + $0x160] sm:$0xff]
          %v2518 = vld [vmem:[#allocation2 + $0x168] sm:$0xff]
          %v2519 = vld [vmem:[#allocation2 + $0x170] sm:$0xff]
          %v2520 = vld [vmem:[#allocation2 + $0x178] sm:$0xff]
          %v2521 = vld [vmem:[#allocation2 + $0x180] sm:$0xff]
          %v2522 = vld [vmem:[#allocation2 + $0x188] sm:$0xff]
          %v2523 = vld [vmem:[#allocation2 + $0x190] sm:$0xff]
          %v2524 = vld [vmem:[#allocation2 + $0x198] sm:$0xff]
          %v2525 = vld [vmem:[#allocation2 + $0x1a0] sm:$0xff]
          %v2526 = vld [vmem:[#allocation2 + $0x1a8] sm:$0xff]
          %v2527 = vld [vmem:[#allocation2 + $0x1b0] sm:$0xff]
          %v2528 = vld [vmem:[#allocation2 + $0x1b8] sm:$0xff]
          %v2529 = vld [vmem:[#allocation2 + $0x1c0] sm:$0xff]
          %v2530 = vld [vmem:[#allocation2 + $0x1c8] sm:$0xff]
          %v2531 = vld [vmem:[#allocation2 + $0x1d0] sm:$0xff]
          %v2532 = vld [vmem:[#allocation2 + $0x1d8] sm:$0xff]
          %v2533 = vld [vmem:[#allocation2 + $0x1e0] sm:$0xff]
          %v2534 = vld [vmem:[#allocation2 + $0x1e8] sm:$0xff]
          %v2535 = vld [vmem:[#allocation2 + $0x1f0] sm:$0xff]
          %v2536 = vld [vmem:[#allocation2 + $0x1f8] sm:$0xff]
          %v2537 = vld [vmem:[%s2] sm:$0x1]
          %v2539 = vlaneseq
          %v2540 = vshrl.u32 %v2539, 7
          %v2541 = vsub.s32 0, %v2540
          %v2542 = vrot.slane %v2537, %v2541
          %v2544 = vadd.f32 %v2473, %v2542
          %v2545 = vadd.f32 %v2474, %v2542
          %v2546 = vadd.f32 %v2475, %v2542
          %v2547 = vadd.f32 %v2476, %v2542
          %v2548 = vadd.f32 %v2477, %v2542
          %v2549 = vadd.f32 %v2478, %v2542
          %v2550 = vadd.f32 %v2479, %v2542
          %v2551 = vadd.f32 %v2480, %v2542
          %v2552 = vadd.f32 %v2481, %v2542
          %v2553 = vadd.f32 %v2482, %v2542
          %v2554 = vadd.f32 %v2483, %v2542
          %v2555 = vadd.f32 %v2484, %v2542
          %v2556 = vadd.f32 %v2485, %v2542
          %v2557 = vadd.f32 %v2486, %v2542
          %v2558 = vadd.f32 %v2487, %v2542
          %v2559 = vadd.f32 %v2488, %v2542
          %v2560 = vadd.f32 %v2489, %v2542
          %v2561 = vadd.f32 %v2490, %v2542
          %v2562 = vadd.f32 %v2491, %v2542
          %v2563 = vadd.f32 %v2492, %v2542
          %v2564 = vadd.f32 %v2493, %v2542
          %v2565 = vadd.f32 %v2494, %v2542
          %v2566 = vadd.f32 %v2495, %v2542
          %v2567 = vadd.f32 %v2496, %v2542
          %v2568 = vadd.f32 %v2497, %v2542
          %v2569 = vadd.f32 %v2498, %v2542
          %v2570 = vadd.f32 %v2499, %v2542
          %v2571 = vadd.f32 %v2500, %v2542
          %v2572 = vadd.f32 %v2501, %v2542
          %v2573 = vadd.f32 %v2502, %v2542
          %v2574 = vadd.f32 %v2503, %v2542
          %v2575 = vadd.f32 %v2504, %v2542
          %v2576 = vadd.f32 %v2505, %v2542
          %v2577 = vadd.f32 %v2506, %v2542
          %v2578 = vadd.f32 %v2507, %v2542
          %v2579 = vadd.f32 %v2508, %v2542
          %v2580 = vadd.f32 %v2509, %v2542
          %v2581 = vadd.f32 %v2510, %v2542
          %v2582 = vadd.f32 %v2511, %v2542
          %v2583 = vadd.f32 %v2512, %v2542
          %v2584 = vadd.f32 %v2513, %v2542
          %v2585 = vadd.f32 %v2514, %v2542
          %v2586 = vadd.f32 %v2515, %v2542
          %v2587 = vadd.f32 %v2516, %v2542
          %v2588 = vadd.f32 %v2517, %v2542
          %v2589 = vadd.f32 %v2518, %v2542
          %v2590 = vadd.f32 %v2519, %v2542
          %v2591 = vadd.f32 %v2520, %v2542
          %v2592 = vadd.f32 %v2521, %v2542
          %v2593 = vadd.f32 %v2522, %v2542
          %v2594 = vadd.f32 %v2523, %v2542
          %v2595 = vadd.f32 %v2524, %v2542
          %v2596 = vadd.f32 %v2525, %v2542
          %v2597 = vadd.f32 %v2526, %v2542
          %v2598 = vadd.f32 %v2527, %v2542
          %v2599 = vadd.f32 %v2528, %v2542
          %v2600 = vadd.f32 %v2529, %v2542
          %v2601 = vadd.f32 %v2530, %v2542
          %v2602 = vadd.f32 %v2531, %v2542
          %v2603 = vadd.f32 %v2532, %v2542
          %v2604 = vadd.f32 %v2533, %v2542
          %v2605 = vadd.f32 %v2534, %v2542
          %v2606 = vadd.f32 %v2535, %v2542
          %v2607 = vadd.f32 %v2536, %v2542
          %2608 = vst.msk [vmem:[%s596] sm:$0xff] %vm2404, %v2544
          %2609 = vst.msk [vmem:[%s596 + $0x8] sm:$0xff] %vm2404, %v2545
          %2610 = vst.msk [vmem:[%s596 + $0x10] sm:$0xff] %vm2404, %v2546
          %2611 = vst.msk [vmem:[%s596 + $0x18] sm:$0xff] %vm2404, %v2547
          %2612 = vst.msk [vmem:[%s596 + $0x20] sm:$0xff] %vm2404, %v2548
          %2613 = vst.msk [vmem:[%s596 + $0x28] sm:$0xff] %vm2404, %v2549
          %2614 = vst.msk [vmem:[%s596 + $0x30] sm:$0xff] %vm2404, %v2550
          %2615 = vst.msk [vmem:[%s596 + $0x38] sm:$0xff] %vm2404, %v2551
          %2616 = vst.msk [vmem:[%s596 + $0x40] sm:$0xff] %vm2404, %v2552
          %2617 = vst.msk [vmem:[%s596 + $0x48] sm:$0xff] %vm2404, %v2553
          %2618 = vst.msk [vmem:[%s596 + $0x50] sm:$0xff] %vm2404, %v2554
          %2619 = vst.msk [vmem:[%s596 + $0x58] sm:$0xff] %vm2404, %v2555
          %2620 = vst.msk [vmem:[%s596 + $0x60] sm:$0xff] %vm2404, %v2556
          %2621 = vst.msk [vmem:[%s596 + $0x68] sm:$0xff] %vm2404, %v2557
          %2622 = vst.msk [vmem:[%s596 + $0x70] sm:$0xff] %vm2404, %v2558
          %2623 = vst.msk [vmem:[%s596 + $0x78] sm:$0xff] %vm2404, %v2559
          %2624 = vst.msk [vmem:[%s596 + $0x80] sm:$0xff] %vm2404, %v2560
          %2625 = vst.msk [vmem:[%s596 + $0x88] sm:$0xff] %vm2404, %v2561
          %2626 = vst.msk [vmem:[%s596 + $0x90] sm:$0xff] %vm2404, %v2562
          %2627 = vst.msk [vmem:[%s596 + $0x98] sm:$0xff] %vm2404, %v2563
          %2628 = vst.msk [vmem:[%s596 + $0xa0] sm:$0xff] %vm2404, %v2564
          %2629 = vst.msk [vmem:[%s596 + $0xa8] sm:$0xff] %vm2404, %v2565
          %2630 = vst.msk [vmem:[%s596 + $0xb0] sm:$0xff] %vm2404, %v2566
          %2631 = vst.msk [vmem:[%s596 + $0xb8] sm:$0xff] %vm2404, %v2567
          %2632 = vst.msk [vmem:[%s596 + $0xc0] sm:$0xff] %vm2404, %v2568
          %2633 = vst.msk [vmem:[%s596 + $0xc8] sm:$0xff] %vm2404, %v2569
          %2634 = vst.msk [vmem:[%s596 + $0xd0] sm:$0xff] %vm2404, %v2570
          %2635 = vst.msk [vmem:[%s596 + $0xd8] sm:$0xff] %vm2404, %v2571
          %2636 = vst.msk [vmem:[%s596 + $0xe0] sm:$0xff] %vm2404, %v2572
          %2637 = vst.msk [vmem:[%s596 + $0xe8] sm:$0xff] %vm2404, %v2573
          %2638 = vst.msk [vmem:[%s596 + $0xf0] sm:$0xff] %vm2404, %v2574
          %2639 = vst.msk [vmem:[%s596 + $0xf8] sm:$0xff] %vm2404, %v2575
          %2640 = vst.msk [vmem:[%s596 + $0x100] sm:$0xff] %vm2404, %v2576
          %2641 = vst.msk [vmem:[%s596 + $0x108] sm:$0xff] %vm2404, %v2577
          %2642 = vst.msk [vmem:[%s596 + $0x110] sm:$0xff] %vm2404, %v2578
          %2643 = vst.msk [vmem:[%s596 + $0x118] sm:$0xff] %vm2404, %v2579
          %2644 = vst.msk [vmem:[%s596 + $0x120] sm:$0xff] %vm2404, %v2580
          %2645 = vst.msk [vmem:[%s596 + $0x128] sm:$0xff] %vm2404, %v2581
          %2646 = vst.msk [vmem:[%s596 + $0x130] sm:$0xff] %vm2404, %v2582
          %2647 = vst.msk [vmem:[%s596 + $0x138] sm:$0xff] %vm2404, %v2583
          %2648 = vst.msk [vmem:[%s596 + $0x140] sm:$0xff] %vm2404, %v2584
          %2649 = vst.msk [vmem:[%s596 + $0x148] sm:$0xff] %vm2404, %v2585
          %2650 = vst.msk [vmem:[%s596 + $0x150] sm:$0xff] %vm2404, %v2586
          %2651 = vst.msk [vmem:[%s596 + $0x158] sm:$0xff] %vm2404, %v2587
          %2652 = vst.msk [vmem:[%s596 + $0x160] sm:$0xff] %vm2404, %v2588
          %2653 = vst.msk [vmem:[%s596 + $0x168] sm:$0xff] %vm2404, %v2589
          %2654 = vst.msk [vmem:[%s596 + $0x170] sm:$0xff] %vm2404, %v2590
          %2655 = vst.msk [vmem:[%s596 + $0x178] sm:$0xff] %vm2404, %v2591
          %2656 = vst.msk [vmem:[%s596 + $0x180] sm:$0xff] %vm2404, %v2592
          %2657 = vst.msk [vmem:[%s596 + $0x188] sm:$0xff] %vm2404, %v2593
          %2658 = vst.msk [vmem:[%s596 + $0x190] sm:$0xff] %vm2404, %v2594
          %2659 = vst.msk [vmem:[%s596 + $0x198] sm:$0xff] %vm2404, %v2595
          %2660 = vst.msk [vmem:[%s596 + $0x1a0] sm:$0xff] %vm2404, %v2596
          %2661 = vst.msk [vmem:[%s596 + $0x1a8] sm:$0xff] %vm2404, %v2597
          %2662 = vst.msk [vmem:[%s596 + $0x1b0] sm:$0xff] %vm2404, %v2598
          %2663 = vst.msk [vmem:[%s596 + $0x1b8] sm:$0xff] %vm2404, %v2599
          %2664 = vst.msk [vmem:[%s596 + $0x1c0] sm:$0xff] %vm2404, %v2600
          %2665 = vst.msk [vmem:[%s596 + $0x1c8] sm:$0xff] %vm2404, %v2601
          %2666 = vst.msk [vmem:[%s596 + $0x1d0] sm:$0xff] %vm2404, %v2602
          %2667 = vst.msk [vmem:[%s596 + $0x1d8] sm:$0xff] %vm2404, %v2603
          %2668 = vst.msk [vmem:[%s596 + $0x1e0] sm:$0xff] %vm2404, %v2604
          %2669 = vst.msk [vmem:[%s596 + $0x1e8] sm:$0xff] %vm2404, %v2605
          %2670 = vst.msk [vmem:[%s596 + $0x1f0] sm:$0xff] %vm2404, %v2606
          %2671 = vst.msk [vmem:[%s596 + $0x1f8] sm:$0xff] %vm2404, %v2607
          %v2672 = vmax.f32 %v2544, 0.0
          %v2673 = vmax.f32 %v2545, 0.0
          %v2674 = vmax.f32 %v2546, 0.0
          %v2675 = vmax.f32 %v2547, 0.0
          %v2676 = vmax.f32 %v2548, 0.0
          %v2677 = vmax.f32 %v2549, 0.0
          %v2678 = vmax.f32 %v2550, 0.0
          %v2679 = vmax.f32 %v2551, 0.0
          %v2680 = vmax.f32 %v2552, 0.0
          %v2681 = vmax.f32 %v2553, 0.0
          %v2682 = vmax.f32 %v2554, 0.0
          %v2683 = vmax.f32 %v2555, 0.0
          %v2684 = vmax.f32 %v2556, 0.0
          %v2685 = vmax.f32 %v2557, 0.0
          %v2686 = vmax.f32 %v2558, 0.0
          %v2687 = vmax.f32 %v2559, 0.0
          %v2688 = vmax.f32 %v2560, 0.0
          %v2689 = vmax.f32 %v2561, 0.0
          %v2690 = vmax.f32 %v2562, 0.0
          %v2691 = vmax.f32 %v2563, 0.0
          %v2692 = vmax.f32 %v2564, 0.0
          %v2693 = vmax.f32 %v2565, 0.0
          %v2694 = vmax.f32 %v2566, 0.0
          %v2695 = vmax.f32 %v2567, 0.0
          %v2696 = vmax.f32 %v2568, 0.0
          %v2697 = vmax.f32 %v2569, 0.0
          %v2698 = vmax.f32 %v2570, 0.0
          %v2699 = vmax.f32 %v2571, 0.0
          %v2700 = vmax.f32 %v2572, 0.0
          %v2701 = vmax.f32 %v2573, 0.0
          %v2702 = vmax.f32 %v2574, 0.0
          %v2703 = vmax.f32 %v2575, 0.0
          %v2704 = vmax.f32 %v2576, 0.0
          %v2705 = vmax.f32 %v2577, 0.0
          %v2706 = vmax.f32 %v2578, 0.0
          %v2707 = vmax.f32 %v2579, 0.0
          %v2708 = vmax.f32 %v2580, 0.0
          %v2709 = vmax.f32 %v2581, 0.0
          %v2710 = vmax.f32 %v2582, 0.0
          %v2711 = vmax.f32 %v2583, 0.0
          %v2712 = vmax.f32 %v2584, 0.0
          %v2713 = vmax.f32 %v2585, 0.0
          %v2714 = vmax.f32 %v2586, 0.0
          %v2715 = vmax.f32 %v2587, 0.0
          %v2716 = vmax.f32 %v2588, 0.0
          %v2717 = vmax.f32 %v2589, 0.0
          %v2718 = vmax.f32 %v2590, 0.0
          %v2719 = vmax.f32 %v2591, 0.0
          %v2720 = vmax.f32 %v2592, 0.0
          %v2721 = vmax.f32 %v2593, 0.0
          %v2722 = vmax.f32 %v2594, 0.0
          %v2723 = vmax.f32 %v2595, 0.0
          %v2724 = vmax.f32 %v2596, 0.0
          %v2725 = vmax.f32 %v2597, 0.0
          %v2726 = vmax.f32 %v2598, 0.0
          %v2727 = vmax.f32 %v2599, 0.0
          %v2728 = vmax.f32 %v2600, 0.0
          %v2729 = vmax.f32 %v2601, 0.0
          %v2730 = vmax.f32 %v2602, 0.0
          %v2731 = vmax.f32 %v2603, 0.0
          %v2732 = vmax.f32 %v2604, 0.0
          %v2733 = vmax.f32 %v2605, 0.0
          %v2734 = vmax.f32 %v2606, 0.0
          %v2735 = vmax.f32 %v2607, 0.0
          %v2736 = vpack.c.bf16 %v2673, %v2672
          %v2737 = vpack.c.bf16 %v2675, %v2674
          %v2738 = vpack.c.bf16 %v2677, %v2676
          %v2739 = vpack.c.bf16 %v2679, %v2678
          %v2740 = vpack.c.bf16 %v2681, %v2680
          %v2741 = vpack.c.bf16 %v2683, %v2682
          %v2742 = vpack.c.bf16 %v2685, %v2684
          %v2743 = vpack.c.bf16 %v2687, %v2686
          %v2744 = vpack.c.bf16 %v2689, %v2688
          %v2745 = vpack.c.bf16 %v2691, %v2690
          %v2746 = vpack.c.bf16 %v2693, %v2692
          %v2747 = vpack.c.bf16 %v2695, %v2694
          %v2748 = vpack.c.bf16 %v2697, %v2696
          %v2749 = vpack.c.bf16 %v2699, %v2698
          %v2750 = vpack.c.bf16 %v2701, %v2700
          %v2751 = vpack.c.bf16 %v2703, %v2702
          %v2752 = vpack.c.bf16 %v2705, %v2704
          %v2753 = vpack.c.bf16 %v2707, %v2706
          %v2754 = vpack.c.bf16 %v2709, %v2708
          %v2755 = vpack.c.bf16 %v2711, %v2710
          %v2756 = vpack.c.bf16 %v2713, %v2712
          %v2757 = vpack.c.bf16 %v2715, %v2714
          %v2758 = vpack.c.bf16 %v2717, %v2716
          %v2759 = vpack.c.bf16 %v2719, %v2718
          %v2760 = vpack.c.bf16 %v2721, %v2720
          %v2761 = vpack.c.bf16 %v2723, %v2722
          %v2762 = vpack.c.bf16 %v2725, %v2724
          %v2763 = vpack.c.bf16 %v2727, %v2726
          %v2764 = vpack.c.bf16 %v2729, %v2728
          %v2765 = vpack.c.bf16 %v2731, %v2730
          %v2766 = vpack.c.bf16 %v2733, %v2732
          %v2767 = vpack.c.bf16 %v2735, %v2734
          %v2768 = vld [vmem:[%s3] sm:$0xf]
          %v2769 = vld [vmem:[%s3 + $0x4] sm:$0xf]
          %v2770 = vld [vmem:[%s590] sm:$0xff]
          %v2771 = vld [vmem:[%s590 + $0x8] sm:$0xff]
          %v2772 = vld [vmem:[%s590 + $0x10] sm:$0xff]
          %v2773 = vld [vmem:[%s590 + $0x18] sm:$0xff]
          %v2774 = vld [vmem:[%s590 + $0x20] sm:$0xff]
          %v2775 = vld [vmem:[%s590 + $0x28] sm:$0xff]
          %v2776 = vld [vmem:[%s590 + $0x30] sm:$0xff]
          %v2777 = vld [vmem:[%s590 + $0x38] sm:$0xff]
          %v2778 = vld [vmem:[%s590 + $0x40] sm:$0xff]
          %v2779 = vld [vmem:[%s590 + $0x48] sm:$0xff]
          %v2780 = vld [vmem:[%s590 + $0x50] sm:$0xff]
          %v2781 = vld [vmem:[%s590 + $0x58] sm:$0xff]
          %v2782 = vld [vmem:[%s590 + $0x60] sm:$0xff]
          %v2783 = vld [vmem:[%s590 + $0x68] sm:$0xff]
          %v2784 = vld [vmem:[%s590 + $0x70] sm:$0xff]
          %v2785 = vld [vmem:[%s590 + $0x78] sm:$0xff]
          %v2786 = vld [vmem:[%s590 + $0x80] sm:$0xff]
          %v2787 = vld [vmem:[%s590 + $0x88] sm:$0xff]
          %v2788 = vld [vmem:[%s590 + $0x90] sm:$0xff]
          %v2789 = vld [vmem:[%s590 + $0x98] sm:$0xff]
          %v2790 = vld [vmem:[%s590 + $0xa0] sm:$0xff]
          %v2791 = vld [vmem:[%s590 + $0xa8] sm:$0xff]
          %v2792 = vld [vmem:[%s590 + $0xb0] sm:$0xff]
          %v2793 = vld [vmem:[%s590 + $0xb8] sm:$0xff]
          %v2794 = vld [vmem:[%s590 + $0xc0] sm:$0xff]
          %v2795 = vld [vmem:[%s590 + $0xc8] sm:$0xff]
          %v2796 = vld [vmem:[%s590 + $0xd0] sm:$0xff]
          %v2797 = vld [vmem:[%s590 + $0xd8] sm:$0xff]
          %v2798 = vld [vmem:[%s590 + $0xe0] sm:$0xff]
          %v2799 = vld [vmem:[%s590 + $0xe8] sm:$0xff]
          %v2800 = vld [vmem:[%s590 + $0xf0] sm:$0xff]
          %v2801 = vld [vmem:[%s590 + $0xf8] sm:$0xff]
          %v2802 = vld [vmem:[%s590 + $0x100] sm:$0xff]
          %v2803 = vld [vmem:[%s590 + $0x108] sm:$0xff]
          %v2804 = vld [vmem:[%s590 + $0x110] sm:$0xff]
          %v2805 = vld [vmem:[%s590 + $0x118] sm:$0xff]
          %v2806 = vld [vmem:[%s590 + $0x120] sm:$0xff]
          %v2807 = vld [vmem:[%s590 + $0x128] sm:$0xff]
          %v2808 = vld [vmem:[%s590 + $0x130] sm:$0xff]
          %v2809 = vld [vmem:[%s590 + $0x138] sm:$0xff]
          %v2810 = vld [vmem:[%s590 + $0x140] sm:$0xff]
          %v2811 = vld [vmem:[%s590 + $0x148] sm:$0xff]
          %v2812 = vld [vmem:[%s590 + $0x150] sm:$0xff]
          %v2813 = vld [vmem:[%s590 + $0x158] sm:$0xff]
          %v2814 = vld [vmem:[%s590 + $0x160] sm:$0xff]
          %v2815 = vld [vmem:[%s590 + $0x168] sm:$0xff]
          %v2816 = vld [vmem:[%s590 + $0x170] sm:$0xff]
          %v2817 = vld [vmem:[%s590 + $0x178] sm:$0xff]
          %v2818 = vld [vmem:[%s590 + $0x180] sm:$0xff]
          %v2819 = vld [vmem:[%s590 + $0x188] sm:$0xff]
          %v2820 = vld [vmem:[%s590 + $0x190] sm:$0xff]
          %v2821 = vld [vmem:[%s590 + $0x198] sm:$0xff]
          %v2822 = vld [vmem:[%s590 + $0x1a0] sm:$0xff]
          %v2823 = vld [vmem:[%s590 + $0x1a8] sm:$0xff]
          %v2824 = vld [vmem:[%s590 + $0x1b0] sm:$0xff]
          %v2825 = vld [vmem:[%s590 + $0x1b8] sm:$0xff]
          %v2826 = vld [vmem:[%s590 + $0x1c0] sm:$0xff]
          %v2827 = vld [vmem:[%s590 + $0x1c8] sm:$0xff]
          %v2828 = vld [vmem:[%s590 + $0x1d0] sm:$0xff]
          %v2829 = vld [vmem:[%s590 + $0x1d8] sm:$0xff]
          %v2830 = vld [vmem:[%s590 + $0x1e0] sm:$0xff]
          %v2831 = vld [vmem:[%s590 + $0x1e8] sm:$0xff]
          %v2832 = vld [vmem:[%s590 + $0x1f0] sm:$0xff]
          %v2833 = vld [vmem:[%s590 + $0x1f8] sm:$0xff]
          %v2836 = vunpack.c.l.b16 %v2768
          %v2837 = vunpack.c.l.b16 %v2769
          %v2838 = vpack.c.b16 %v2837, %v2836
          %v2841 = vsel %vm2404, %v2736, 0
          %v2844 = vsel %vm2404, %v2737, 0
          %v2847 = vsel %vm2404, %v2738, 0
          %v2850 = vsel %vm2404, %v2739, 0
          %v2853 = vsel %vm2404, %v2740, 0
          %v2856 = vsel %vm2404, %v2741, 0
          %v2859 = vsel %vm2404, %v2742, 0
          %v2862 = vsel %vm2404, %v2743, 0
          %v2865 = vsel %vm2404, %v2744, 0
          %v2868 = vsel %vm2404, %v2745, 0
          %v2871 = vsel %vm2404, %v2746, 0
          %v2874 = vsel %vm2404, %v2747, 0
          %v2877 = vsel %vm2404, %v2748, 0
          %v2880 = vsel %vm2404, %v2749, 0
          %v2883 = vsel %vm2404, %v2750, 0
          %v2886 = vsel %vm2404, %v2751, 0
          %v2889 = vsel %vm2404, %v2752, 0
          %v2892 = vsel %vm2404, %v2753, 0
          %v2895 = vsel %vm2404, %v2754, 0
          %v2898 = vsel %vm2404, %v2755, 0
          %v2901 = vsel %vm2404, %v2756, 0
          %v2904 = vsel %vm2404, %v2757, 0
          %v2907 = vsel %vm2404, %v2758, 0
          %v2910 = vsel %vm2404, %v2759, 0
          %v2913 = vsel %vm2404, %v2760, 0
          %v2916 = vsel %vm2404, %v2761, 0
          %v2919 = vsel %vm2404, %v2762, 0
          %v2922 = vsel %vm2404, %v2763, 0
          %v2925 = vsel %vm2404, %v2764, 0
          %v2928 = vsel %vm2404, %v2765, 0
          %v2931 = vsel %vm2404, %v2766, 0
          %v2934 = vsel %vm2404, %v2767, 0
          %2936 = vmatprep.subr.bf16.mxu0 0
          %2937 = vmatpush1.bf16.msra.mxu0 0
          %2938 = vmatprep.subr.bf16.mxu0 0
          %2939 = vmatpush1.bf16.msra.mxu0 0
          %2940 = vmatprep.subr.bf16.mxu0 0
          %2941 = vmatpush1.bf16.msra.mxu0 0
          %2942 = vmatprep.subr.bf16.mxu0 0
          %2943 = vmatpush1.bf16.msra.mxu0 0
          %2944 = vmatprep.subr.bf16.mxu0 0
          %2945 = vmatpush1.bf16.msra.mxu0 0
          %2946 = vmatprep.subr.bf16.mxu0 0
          %2947 = vmatpush1.bf16.msra.mxu0 0
          %2948 = vmatprep.subr.bf16.mxu0 0
          %2949 = vmatpush1.bf16.msra.mxu0 0
          %2950 = vmatprep.subr.bf16.mxu0 0
          %2951 = vmatpush1.bf16.msra.mxu0 %v2838
          %2952 = vmatprep.subr.bf16.mxu0 0
          %2953 = vmatpush2.bf16.msra.mxu0 0
          %2954 = vmatprep.subr.bf16.mxu0 0
          %2955 = vmatpush2.bf16.msra.mxu0 0
          %2956 = vmatprep.subr.bf16.mxu0 0
          %2957 = vmatpush2.bf16.msra.mxu0 0
          %2958 = vmatprep.subr.bf16.mxu0 0
          %2959 = vmatpush2.bf16.msra.mxu0 0
          %2960 = vmatprep.subr.bf16.mxu0 0
          %2961 = vmatpush2.bf16.msra.mxu0 0
          %2962 = vmatprep.subr.bf16.mxu0 0
          %2963 = vmatpush2.bf16.msra.mxu0 0
          %2964 = vmatprep.subr.bf16.mxu0 0
          %2965 = vmatpush2.bf16.msra.mxu0 0
          %2966 = vmatprep.subr.bf16.mxu0 0
          %2967 = vmatpush2.bf16.msra.mxu0 0
          %2968 = vmatprep.mubr.bf16.mxu0 0
          %2969 = vmatmul.mubr.bf16.gmra.mxu0 %v2841
          %v2970 = vpop.f32.mrf.mxu0
          %v2971 = vadd.f32 %v2770, %v2970
          %v2972 = vpop.f32.mrf.mxu0
          %v2973 = vpop.f32.mrf.mxu0
          %v2974 = vadd.f32 %v2771, %v2973
          %v2975 = vpop.f32.mrf.mxu0
          %2976 = vmatprep.mubr.bf16.mxu0 0
          %2977 = vmatmul.mubr.bf16.gmra.mxu0 %v2844
          %v2978 = vpop.f32.mrf.mxu0
          %v2979 = vadd.f32 %v2772, %v2978
          %v2980 = vpop.f32.mrf.mxu0
          %v2981 = vpop.f32.mrf.mxu0
          %v2982 = vadd.f32 %v2773, %v2981
          %v2983 = vpop.f32.mrf.mxu0
          %2984 = vmatprep.mubr.bf16.mxu0 0
          %2985 = vmatmul.mubr.bf16.gmra.mxu0 %v2847
          %v2986 = vpop.f32.mrf.mxu0
          %v2987 = vadd.f32 %v2774, %v2986
          %v2988 = vpop.f32.mrf.mxu0
          %v2989 = vpop.f32.mrf.mxu0
          %v2990 = vadd.f32 %v2775, %v2989
          %v2991 = vpop.f32.mrf.mxu0
          %2992 = vmatprep.mubr.bf16.mxu0 0
          %2993 = vmatmul.mubr.bf16.gmra.mxu0 %v2850
          %v2994 = vpop.f32.mrf.mxu0
          %v2995 = vadd.f32 %v2776, %v2994
          %v2996 = vpop.f32.mrf.mxu0
          %v2997 = vpop.f32.mrf.mxu0
          %v2998 = vadd.f32 %v2777, %v2997
          %v2999 = vpop.f32.mrf.mxu0
          %3000 = vmatprep.mubr.bf16.mxu0 0
          %3001 = vmatmul.mubr.bf16.gmra.mxu0 %v2853
          %v3002 = vpop.f32.mrf.mxu0
          %v3003 = vadd.f32 %v2778, %v3002
          %v3004 = vpop.f32.mrf.mxu0
          %v3005 = vpop.f32.mrf.mxu0
          %v3006 = vadd.f32 %v2779, %v3005
          %v3007 = vpop.f32.mrf.mxu0
          %3008 = vmatprep.mubr.bf16.mxu0 0
          %3009 = vmatmul.mubr.bf16.gmra.mxu0 %v2856
          %v3010 = vpop.f32.mrf.mxu0
          %v3011 = vadd.f32 %v2780, %v3010
          %v3012 = vpop.f32.mrf.mxu0
          %v3013 = vpop.f32.mrf.mxu0
          %v3014 = vadd.f32 %v2781, %v3013
          %v3015 = vpop.f32.mrf.mxu0
          %3016 = vmatprep.mubr.bf16.mxu0 0
          %3017 = vmatmul.mubr.bf16.gmra.mxu0 %v2859
          %v3018 = vpop.f32.mrf.mxu0
          %v3019 = vadd.f32 %v2782, %v3018
          %v3020 = vpop.f32.mrf.mxu0
          %v3021 = vpop.f32.mrf.mxu0
          %v3022 = vadd.f32 %v2783, %v3021
          %v3023 = vpop.f32.mrf.mxu0
          %3024 = vmatprep.mubr.bf16.mxu0 0
          %3025 = vmatmul.mubr.bf16.gmra.mxu0 %v2862
          %v3026 = vpop.f32.mrf.mxu0
          %v3027 = vadd.f32 %v2784, %v3026
          %v3028 = vpop.f32.mrf.mxu0
          %v3029 = vpop.f32.mrf.mxu0
          %v3030 = vadd.f32 %v2785, %v3029
          %v3031 = vpop.f32.mrf.mxu0
          %3032 = vmatprep.mubr.bf16.mxu0 0
          %3033 = vmatmul.mubr.bf16.gmra.mxu0 %v2865
          %v3034 = vpop.f32.mrf.mxu0
          %v3035 = vadd.f32 %v2786, %v3034
          %v3036 = vpop.f32.mrf.mxu0
          %v3037 = vpop.f32.mrf.mxu0
          %v3038 = vadd.f32 %v2787, %v3037
          %v3039 = vpop.f32.mrf.mxu0
          %3040 = vmatprep.mubr.bf16.mxu0 0
          %3041 = vmatmul.mubr.bf16.gmra.mxu0 %v2868
          %v3042 = vpop.f32.mrf.mxu0
          %v3043 = vadd.f32 %v2788, %v3042
          %v3044 = vpop.f32.mrf.mxu0
          %v3045 = vpop.f32.mrf.mxu0
          %v3046 = vadd.f32 %v2789, %v3045
          %v3047 = vpop.f32.mrf.mxu0
          %3048 = vmatprep.mubr.bf16.mxu0 0
          %3049 = vmatmul.mubr.bf16.gmra.mxu0 %v2871
          %v3050 = vpop.f32.mrf.mxu0
          %v3051 = vadd.f32 %v2790, %v3050
          %v3052 = vpop.f32.mrf.mxu0
          %v3053 = vpop.f32.mrf.mxu0
          %v3054 = vadd.f32 %v2791, %v3053
          %v3055 = vpop.f32.mrf.mxu0
          %3056 = vmatprep.mubr.bf16.mxu0 0
          %3057 = vmatmul.mubr.bf16.gmra.mxu0 %v2874
          %v3058 = vpop.f32.mrf.mxu0
          %v3059 = vadd.f32 %v2792, %v3058
          %v3060 = vpop.f32.mrf.mxu0
          %v3061 = vpop.f32.mrf.mxu0
          %v3062 = vadd.f32 %v2793, %v3061
          %v3063 = vpop.f32.mrf.mxu0
          %3064 = vmatprep.mubr.bf16.mxu0 0
          %3065 = vmatmul.mubr.bf16.gmra.mxu0 %v2877
          %v3066 = vpop.f32.mrf.mxu0
          %v3067 = vadd.f32 %v2794, %v3066
          %v3068 = vpop.f32.mrf.mxu0
          %v3069 = vpop.f32.mrf.mxu0
          %v3070 = vadd.f32 %v2795, %v3069
          %v3071 = vpop.f32.mrf.mxu0
          %3072 = vmatprep.mubr.bf16.mxu0 0
          %3073 = vmatmul.mubr.bf16.gmra.mxu0 %v2880
          %v3074 = vpop.f32.mrf.mxu0
          %v3075 = vadd.f32 %v2796, %v3074
          %v3076 = vpop.f32.mrf.mxu0
          %v3077 = vpop.f32.mrf.mxu0
          %v3078 = vadd.f32 %v2797, %v3077
          %v3079 = vpop.f32.mrf.mxu0
          %3080 = vmatprep.mubr.bf16.mxu0 0
          %3081 = vmatmul.mubr.bf16.gmra.mxu0 %v2883
          %v3082 = vpop.f32.mrf.mxu0
          %v3083 = vadd.f32 %v2798, %v3082
          %v3084 = vpop.f32.mrf.mxu0
          %v3085 = vpop.f32.mrf.mxu0
          %v3086 = vadd.f32 %v2799, %v3085
          %v3087 = vpop.f32.mrf.mxu0
          %3088 = vmatprep.mubr.bf16.mxu0 0
          %3089 = vmatmul.mubr.bf16.gmra.mxu0 %v2886
          %v3090 = vpop.f32.mrf.mxu0
          %v3091 = vadd.f32 %v2800, %v3090
          %v3092 = vpop.f32.mrf.mxu0
          %v3093 = vpop.f32.mrf.mxu0
          %v3094 = vadd.f32 %v2801, %v3093
          %v3095 = vpop.f32.mrf.mxu0
          %3096 = vmatprep.mubr.bf16.mxu0 0
          %3097 = vmatmul.mubr.bf16.gmra.mxu0 %v2889
          %v3098 = vpop.f32.mrf.mxu0
          %v3099 = vadd.f32 %v2802, %v3098
          %v3100 = vpop.f32.mrf.mxu0
          %v3101 = vpop.f32.mrf.mxu0
          %v3102 = vadd.f32 %v2803, %v3101
          %v3103 = vpop.f32.mrf.mxu0
          %3104 = vmatprep.mubr.bf16.mxu0 0
          %3105 = vmatmul.mubr.bf16.gmra.mxu0 %v2892
          %v3106 = vpop.f32.mrf.mxu0
          %v3107 = vadd.f32 %v2804, %v3106
          %v3108 = vpop.f32.mrf.mxu0
          %v3109 = vpop.f32.mrf.mxu0
          %v3110 = vadd.f32 %v2805, %v3109
          %v3111 = vpop.f32.mrf.mxu0
          %3112 = vmatprep.mubr.bf16.mxu0 0
          %3113 = vmatmul.mubr.bf16.gmra.mxu0 %v2895
          %v3114 = vpop.f32.mrf.mxu0
          %v3115 = vadd.f32 %v2806, %v3114
          %v3116 = vpop.f32.mrf.mxu0
          %v3117 = vpop.f32.mrf.mxu0
          %v3118 = vadd.f32 %v2807, %v3117
          %v3119 = vpop.f32.mrf.mxu0
          %3120 = vmatprep.mubr.bf16.mxu0 0
          %3121 = vmatmul.mubr.bf16.gmra.mxu0 %v2898
          %v3122 = vpop.f32.mrf.mxu0
          %v3123 = vadd.f32 %v2808, %v3122
          %v3124 = vpop.f32.mrf.mxu0
          %v3125 = vpop.f32.mrf.mxu0
          %v3126 = vadd.f32 %v2809, %v3125
          %v3127 = vpop.f32.mrf.mxu0
          %3128 = vmatprep.mubr.bf16.mxu0 0
          %3129 = vmatmul.mubr.bf16.gmra.mxu0 %v2901
          %v3130 = vpop.f32.mrf.mxu0
          %v3131 = vadd.f32 %v2810, %v3130
          %v3132 = vpop.f32.mrf.mxu0
          %v3133 = vpop.f32.mrf.mxu0
          %v3134 = vadd.f32 %v2811, %v3133
          %v3135 = vpop.f32.mrf.mxu0
          %3136 = vmatprep.mubr.bf16.mxu0 0
          %3137 = vmatmul.mubr.bf16.gmra.mxu0 %v2904
          %v3138 = vpop.f32.mrf.mxu0
          %v3139 = vadd.f32 %v2812, %v3138
          %v3140 = vpop.f32.mrf.mxu0
          %v3141 = vpop.f32.mrf.mxu0
          %v3142 = vadd.f32 %v2813, %v3141
          %v3143 = vpop.f32.mrf.mxu0
          %3144 = vmatprep.mubr.bf16.mxu0 0
          %3145 = vmatmul.mubr.bf16.gmra.mxu0 %v2907
          %v3146 = vpop.f32.mrf.mxu0
          %v3147 = vadd.f32 %v2814, %v3146
          %v3148 = vpop.f32.mrf.mxu0
          %v3149 = vpop.f32.mrf.mxu0
          %v3150 = vadd.f32 %v2815, %v3149
          %v3151 = vpop.f32.mrf.mxu0
          %3152 = vmatprep.mubr.bf16.mxu0 0
          %3153 = vmatmul.mubr.bf16.gmra.mxu0 %v2910
          %v3154 = vpop.f32.mrf.mxu0
          %v3155 = vadd.f32 %v2816, %v3154
          %v3156 = vpop.f32.mrf.mxu0
          %v3157 = vpop.f32.mrf.mxu0
          %v3158 = vadd.f32 %v2817, %v3157
          %v3159 = vpop.f32.mrf.mxu0
          %3160 = vmatprep.mubr.bf16.mxu0 0
          %3161 = vmatmul.mubr.bf16.gmra.mxu0 %v2913
          %v3162 = vpop.f32.mrf.mxu0
          %v3163 = vadd.f32 %v2818, %v3162
          %v3164 = vpop.f32.mrf.mxu0
          %v3165 = vpop.f32.mrf.mxu0
          %v3166 = vadd.f32 %v2819, %v3165
          %v3167 = vpop.f32.mrf.mxu0
          %3168 = vmatprep.mubr.bf16.mxu0 0
          %3169 = vmatmul.mubr.bf16.gmra.mxu0 %v2916
          %v3170 = vpop.f32.mrf.mxu0
          %v3171 = vadd.f32 %v2820, %v3170
          %v3172 = vpop.f32.mrf.mxu0
          %v3173 = vpop.f32.mrf.mxu0
          %v3174 = vadd.f32 %v2821, %v3173
          %v3175 = vpop.f32.mrf.mxu0
          %3176 = vmatprep.mubr.bf16.mxu0 0
          %3177 = vmatmul.mubr.bf16.gmra.mxu0 %v2919
          %v3178 = vpop.f32.mrf.mxu0
          %v3179 = vadd.f32 %v2822, %v3178
          %v3180 = vpop.f32.mrf.mxu0
          %v3181 = vpop.f32.mrf.mxu0
          %v3182 = vadd.f32 %v2823, %v3181
          %v3183 = vpop.f32.mrf.mxu0
          %3184 = vmatprep.mubr.bf16.mxu0 0
          %3185 = vmatmul.mubr.bf16.gmra.mxu0 %v2922
          %v3186 = vpop.f32.mrf.mxu0
          %v3187 = vadd.f32 %v2824, %v3186
          %v3188 = vpop.f32.mrf.mxu0
          %v3189 = vpop.f32.mrf.mxu0
          %v3190 = vadd.f32 %v2825, %v3189
          %v3191 = vpop.f32.mrf.mxu0
          %3192 = vmatprep.mubr.bf16.mxu0 0
          %3193 = vmatmul.mubr.bf16.gmra.mxu0 %v2925
          %v3194 = vpop.f32.mrf.mxu0
          %v3195 = vadd.f32 %v2826, %v3194
          %v3196 = vpop.f32.mrf.mxu0
          %v3197 = vpop.f32.mrf.mxu0
          %v3198 = vadd.f32 %v2827, %v3197
          %v3199 = vpop.f32.mrf.mxu0
          %3200 = vmatprep.mubr.bf16.mxu0 0
          %3201 = vmatmul.mubr.bf16.gmra.mxu0 %v2928
          %v3202 = vpop.f32.mrf.mxu0
          %v3203 = vadd.f32 %v2828, %v3202
          %v3204 = vpop.f32.mrf.mxu0
          %v3205 = vpop.f32.mrf.mxu0
          %v3206 = vadd.f32 %v2829, %v3205
          %v3207 = vpop.f32.mrf.mxu0
          %3208 = vmatprep.mubr.bf16.mxu0 0
          %3209 = vmatmul.mubr.bf16.gmra.mxu0 %v2931
          %v3210 = vpop.f32.mrf.mxu0
          %v3211 = vadd.f32 %v2830, %v3210
          %v3212 = vpop.f32.mrf.mxu0
          %v3213 = vpop.f32.mrf.mxu0
          %v3214 = vadd.f32 %v2831, %v3213
          %v3215 = vpop.f32.mrf.mxu0
          %3216 = vmatprep.mubr.bf16.mxu0 0
          %3217 = vmatmul.mubr.bf16.gmra.mxu0 %v2934
          %v3218 = vpop.f32.mrf.mxu0
          %v3219 = vadd.f32 %v2832, %v3218
          %v3220 = vpop.f32.mrf.mxu0
          %v3221 = vpop.f32.mrf.mxu0
          %v3222 = vadd.f32 %v2833, %v3221
          %v3223 = vpop.f32.mrf.mxu0
          %3224 = vdwg.mxu0
          %v3225 = vpack.c.bf16 %v2974, %v2971
          %v3226 = vpack.c.bf16 %v2982, %v2979
          %v3227 = vpack.c.bf16 %v2990, %v2987
          %v3228 = vpack.c.bf16 %v2998, %v2995
          %v3229 = vpack.c.bf16 %v3006, %v3003
          %v3230 = vpack.c.bf16 %v3014, %v3011
          %v3231 = vpack.c.bf16 %v3022, %v3019
          %v3232 = vpack.c.bf16 %v3030, %v3027
          %v3233 = vpack.c.bf16 %v3038, %v3035
          %v3234 = vpack.c.bf16 %v3046, %v3043
          %v3235 = vpack.c.bf16 %v3054, %v3051
          %v3236 = vpack.c.bf16 %v3062, %v3059
          %v3237 = vpack.c.bf16 %v3070, %v3067
          %v3238 = vpack.c.bf16 %v3078, %v3075
          %v3239 = vpack.c.bf16 %v3086, %v3083
          %v3240 = vpack.c.bf16 %v3094, %v3091
          %v3241 = vpack.c.bf16 %v3102, %v3099
          %v3242 = vpack.c.bf16 %v3110, %v3107
          %v3243 = vpack.c.bf16 %v3118, %v3115
          %v3244 = vpack.c.bf16 %v3126, %v3123
          %v3245 = vpack.c.bf16 %v3134, %v3131
          %v3246 = vpack.c.bf16 %v3142, %v3139
          %v3247 = vpack.c.bf16 %v3150, %v3147
          %v3248 = vpack.c.bf16 %v3158, %v3155
          %v3249 = vpack.c.bf16 %v3166, %v3163
          %v3250 = vpack.c.bf16 %v3174, %v3171
          %v3251 = vpack.c.bf16 %v3182, %v3179
          %v3252 = vpack.c.bf16 %v3190, %v3187
          %v3253 = vpack.c.bf16 %v3198, %v3195
          %v3254 = vpack.c.bf16 %v3206, %v3203
          %v3255 = vpack.c.bf16 %v3214, %v3211
          %v3256 = vpack.c.bf16 %v3222, %v3219
          %v3289 = vunpack.c.l.b16 %v3225
          %v3290 = vunpack.c.h.b16 %v3225
          %v3291 = vunpack.c.l.b16 %v3226
          %v3292 = vunpack.c.h.b16 %v3226
          %v3293 = vunpack.c.l.b16 %v3227
          %v3294 = vunpack.c.h.b16 %v3227
          %v3295 = vunpack.c.l.b16 %v3228
          %v3296 = vunpack.c.h.b16 %v3228
          %v3297 = vunpack.c.l.b16 %v3229
          %v3298 = vunpack.c.h.b16 %v3229
          %v3299 = vunpack.c.l.b16 %v3230
          %v3300 = vunpack.c.h.b16 %v3230
          %v3301 = vunpack.c.l.b16 %v3231
          %v3302 = vunpack.c.h.b16 %v3231
          %v3303 = vunpack.c.l.b16 %v3232
          %v3304 = vunpack.c.h.b16 %v3232
          %v3305 = vunpack.c.l.b16 %v3233
          %v3306 = vunpack.c.h.b16 %v3233
          %v3307 = vunpack.c.l.b16 %v3234
          %v3308 = vunpack.c.h.b16 %v3234
          %v3309 = vunpack.c.l.b16 %v3235
          %v3310 = vunpack.c.h.b16 %v3235
          %v3311 = vunpack.c.l.b16 %v3236
          %v3312 = vunpack.c.h.b16 %v3236
          %v3313 = vunpack.c.l.b16 %v3237
          %v3314 = vunpack.c.h.b16 %v3237
          %v3315 = vunpack.c.l.b16 %v3238
          %v3316 = vunpack.c.h.b16 %v3238
          %v3317 = vunpack.c.l.b16 %v3239
          %v3318 = vunpack.c.h.b16 %v3239
          %v3319 = vunpack.c.l.b16 %v3240
          %v3320 = vunpack.c.h.b16 %v3240
          %v3321 = vunpack.c.l.b16 %v3241
          %v3322 = vunpack.c.h.b16 %v3241
          %v3323 = vunpack.c.l.b16 %v3242
          %v3324 = vunpack.c.h.b16 %v3242
          %v3325 = vunpack.c.l.b16 %v3243
          %v3326 = vunpack.c.h.b16 %v3243
          %v3327 = vunpack.c.l.b16 %v3244
          %v3328 = vunpack.c.h.b16 %v3244
          %v3329 = vunpack.c.l.b16 %v3245
          %v3330 = vunpack.c.h.b16 %v3245
          %v3331 = vunpack.c.l.b16 %v3246
          %v3332 = vunpack.c.h.b16 %v3246
          %v3333 = vunpack.c.l.b16 %v3247
          %v3334 = vunpack.c.h.b16 %v3247
          %v3335 = vunpack.c.l.b16 %v3248
          %v3336 = vunpack.c.h.b16 %v3248
          %v3337 = vunpack.c.l.b16 %v3249
          %v3338 = vunpack.c.h.b16 %v3249
          %v3339 = vunpack.c.l.b16 %v3250
          %v3340 = vunpack.c.h.b16 %v3250
          %v3341 = vunpack.c.l.b16 %v3251
          %v3342 = vunpack.c.h.b16 %v3251
          %v3343 = vunpack.c.l.b16 %v3252
          %v3344 = vunpack.c.h.b16 %v3252
          %v3345 = vunpack.c.l.b16 %v3253
          %v3346 = vunpack.c.h.b16 %v3253
          %v3347 = vunpack.c.l.b16 %v3254
          %v3348 = vunpack.c.h.b16 %v3254
          %v3349 = vunpack.c.l.b16 %v3255
          %v3350 = vunpack.c.h.b16 %v3255
          %v3351 = vunpack.c.l.b16 %v3256
          %v3352 = vunpack.c.h.b16 %v3256
          %v3353 = vpack.c.b16 %v3289, %v3289
          %v3354 = vpack.c.b16 %v3290, %v3290
          %v3355 = vpack.c.b16 %v3291, %v3291
          %v3356 = vpack.c.b16 %v3292, %v3292
          %v3357 = vpack.c.b16 %v3293, %v3293
          %v3358 = vpack.c.b16 %v3294, %v3294
          %v3359 = vpack.c.b16 %v3295, %v3295
          %v3360 = vpack.c.b16 %v3296, %v3296
          %v3361 = vpack.c.b16 %v3297, %v3297
          %v3362 = vpack.c.b16 %v3298, %v3298
          %v3363 = vpack.c.b16 %v3299, %v3299
          %v3364 = vpack.c.b16 %v3300, %v3300
          %v3365 = vpack.c.b16 %v3301, %v3301
          %v3366 = vpack.c.b16 %v3302, %v3302
          %v3367 = vpack.c.b16 %v3303, %v3303
          %v3368 = vpack.c.b16 %v3304, %v3304
          %v3369 = vpack.c.b16 %v3305, %v3305
          %v3370 = vpack.c.b16 %v3306, %v3306
          %v3371 = vpack.c.b16 %v3307, %v3307
          %v3372 = vpack.c.b16 %v3308, %v3308
          %v3373 = vpack.c.b16 %v3309, %v3309
          %v3374 = vpack.c.b16 %v3310, %v3310
          %v3375 = vpack.c.b16 %v3311, %v3311
          %v3376 = vpack.c.b16 %v3312, %v3312
          %v3377 = vpack.c.b16 %v3313, %v3313
          %v3378 = vpack.c.b16 %v3314, %v3314
          %v3379 = vpack.c.b16 %v3315, %v3315
          %v3380 = vpack.c.b16 %v3316, %v3316
          %v3381 = vpack.c.b16 %v3317, %v3317
          %v3382 = vpack.c.b16 %v3318, %v3318
          %v3383 = vpack.c.b16 %v3319, %v3319
          %v3384 = vpack.c.b16 %v3320, %v3320
          %v3385 = vpack.c.b16 %v3321, %v3321
          %v3386 = vpack.c.b16 %v3322, %v3322
          %v3387 = vpack.c.b16 %v3323, %v3323
          %v3388 = vpack.c.b16 %v3324, %v3324
          %v3389 = vpack.c.b16 %v3325, %v3325
          %v3390 = vpack.c.b16 %v3326, %v3326
          %v3391 = vpack.c.b16 %v3327, %v3327
          %v3392 = vpack.c.b16 %v3328, %v3328
          %v3393 = vpack.c.b16 %v3329, %v3329
          %v3394 = vpack.c.b16 %v3330, %v3330
          %v3395 = vpack.c.b16 %v3331, %v3331
          %v3396 = vpack.c.b16 %v3332, %v3332
          %v3397 = vpack.c.b16 %v3333, %v3333
          %v3398 = vpack.c.b16 %v3334, %v3334
          %v3399 = vpack.c.b16 %v3335, %v3335
          %v3400 = vpack.c.b16 %v3336, %v3336
          %v3401 = vpack.c.b16 %v3337, %v3337
          %v3402 = vpack.c.b16 %v3338, %v3338
          %v3403 = vpack.c.b16 %v3339, %v3339
          %v3404 = vpack.c.b16 %v3340, %v3340
          %v3405 = vpack.c.b16 %v3341, %v3341
          %v3406 = vpack.c.b16 %v3342, %v3342
          %v3407 = vpack.c.b16 %v3343, %v3343
          %v3408 = vpack.c.b16 %v3344, %v3344
          %v3409 = vpack.c.b16 %v3345, %v3345
          %v3410 = vpack.c.b16 %v3346, %v3346
          %v3411 = vpack.c.b16 %v3347, %v3347
          %v3412 = vpack.c.b16 %v3348, %v3348
          %v3413 = vpack.c.b16 %v3349, %v3349
          %v3414 = vpack.c.b16 %v3350, %v3350
          %v3415 = vpack.c.b16 %v3351, %v3351
          %v3416 = vpack.c.b16 %v3352, %v3352
          %vm3481 = vcmask 60416
          %3482 = vst.msk [vmem:[%s602] sm:$0xf] %vm3481, %v3353
          %3483 = vst.msk [vmem:[%s602 + $0x4] sm:$0xf] %vm3481, %v3354
          %3484 = vst.msk [vmem:[%s602 + $0x8] sm:$0xf] %vm3481, %v3355
          %3485 = vst.msk [vmem:[%s602 + $0xc] sm:$0xf] %vm3481, %v3356
          %3486 = vst.msk [vmem:[%s602 + $0x10] sm:$0xf] %vm3481, %v3357
          %3487 = vst.msk [vmem:[%s602 + $0x14] sm:$0xf] %vm3481, %v3358
          %3488 = vst.msk [vmem:[%s602 + $0x18] sm:$0xf] %vm3481, %v3359
          %3489 = vst.msk [vmem:[%s602 + $0x1c] sm:$0xf] %vm3481, %v3360
          %3490 = vst.msk [vmem:[%s602 + $0x20] sm:$0xf] %vm3481, %v3361
          %3491 = vst.msk [vmem:[%s602 + $0x24] sm:$0xf] %vm3481, %v3362
          %3492 = vst.msk [vmem:[%s602 + $0x28] sm:$0xf] %vm3481, %v3363
          %3493 = vst.msk [vmem:[%s602 + $0x2c] sm:$0xf] %vm3481, %v3364
          %3494 = vst.msk [vmem:[%s602 + $0x30] sm:$0xf] %vm3481, %v3365
          %3495 = vst.msk [vmem:[%s602 + $0x34] sm:$0xf] %vm3481, %v3366
          %3496 = vst.msk [vmem:[%s602 + $0x38] sm:$0xf] %vm3481, %v3367
          %3497 = vst.msk [vmem:[%s602 + $0x3c] sm:$0xf] %vm3481, %v3368
          %3498 = vst.msk [vmem:[%s602 + $0x40] sm:$0xf] %vm3481, %v3369
          %3499 = vst.msk [vmem:[%s602 + $0x44] sm:$0xf] %vm3481, %v3370
          %3500 = vst.msk [vmem:[%s602 + $0x48] sm:$0xf] %vm3481, %v3371
          %3501 = vst.msk [vmem:[%s602 + $0x4c] sm:$0xf] %vm3481, %v3372
          %3502 = vst.msk [vmem:[%s602 + $0x50] sm:$0xf] %vm3481, %v3373
          %3503 = vst.msk [vmem:[%s602 + $0x54] sm:$0xf] %vm3481, %v3374
          %3504 = vst.msk [vmem:[%s602 + $0x58] sm:$0xf] %vm3481, %v3375
          %3505 = vst.msk [vmem:[%s602 + $0x5c] sm:$0xf] %vm3481, %v3376
          %3506 = vst.msk [vmem:[%s602 + $0x60] sm:$0xf] %vm3481, %v3377
          %3507 = vst.msk [vmem:[%s602 + $0x64] sm:$0xf] %vm3481, %v3378
          %3508 = vst.msk [vmem:[%s602 + $0x68] sm:$0xf] %vm3481, %v3379
          %3509 = vst.msk [vmem:[%s602 + $0x6c] sm:$0xf] %vm3481, %v3380
          %3510 = vst.msk [vmem:[%s602 + $0x70] sm:$0xf] %vm3481, %v3381
          %3511 = vst.msk [vmem:[%s602 + $0x74] sm:$0xf] %vm3481, %v3382
          %3512 = vst.msk [vmem:[%s602 + $0x78] sm:$0xf] %vm3481, %v3383
          %3513 = vst.msk [vmem:[%s602 + $0x7c] sm:$0xf] %vm3481, %v3384
          %3514 = vst.msk [vmem:[%s602 + $0x80] sm:$0xf] %vm3481, %v3385
          %3515 = vst.msk [vmem:[%s602 + $0x84] sm:$0xf] %vm3481, %v3386
          %3516 = vst.msk [vmem:[%s602 + $0x88] sm:$0xf] %vm3481, %v3387
          %3517 = vst.msk [vmem:[%s602 + $0x8c] sm:$0xf] %vm3481, %v3388
          %3518 = vst.msk [vmem:[%s602 + $0x90] sm:$0xf] %vm3481, %v3389
          %3519 = vst.msk [vmem:[%s602 + $0x94] sm:$0xf] %vm3481, %v3390
          %3520 = vst.msk [vmem:[%s602 + $0x98] sm:$0xf] %vm3481, %v3391
          %3521 = vst.msk [vmem:[%s602 + $0x9c] sm:$0xf] %vm3481, %v3392
          %3522 = vst.msk [vmem:[%s602 + $0xa0] sm:$0xf] %vm3481, %v3393
          %3523 = vst.msk [vmem:[%s602 + $0xa4] sm:$0xf] %vm3481, %v3394
          %3524 = vst.msk [vmem:[%s602 + $0xa8] sm:$0xf] %vm3481, %v3395
          %3525 = vst.msk [vmem:[%s602 + $0xac] sm:$0xf] %vm3481, %v3396
          %3526 = vst.msk [vmem:[%s602 + $0xb0] sm:$0xf] %vm3481, %v3397
          %3527 = vst.msk [vmem:[%s602 + $0xb4] sm:$0xf] %vm3481, %v3398
          %3528 = vst.msk [vmem:[%s602 + $0xb8] sm:$0xf] %vm3481, %v3399
          %3529 = vst.msk [vmem:[%s602 + $0xbc] sm:$0xf] %vm3481, %v3400
          %3530 = vst.msk [vmem:[%s602 + $0xc0] sm:$0xf] %vm3481, %v3401
          %3531 = vst.msk [vmem:[%s602 + $0xc4] sm:$0xf] %vm3481, %v3402
          %3532 = vst.msk [vmem:[%s602 + $0xc8] sm:$0xf] %vm3481, %v3403
          %3533 = vst.msk [vmem:[%s602 + $0xcc] sm:$0xf] %vm3481, %v3404
          %3534 = vst.msk [vmem:[%s602 + $0xd0] sm:$0xf] %vm3481, %v3405
          %3535 = vst.msk [vmem:[%s602 + $0xd4] sm:$0xf] %vm3481, %v3406
          %3536 = vst.msk [vmem:[%s602 + $0xd8] sm:$0xf] %vm3481, %v3407
          %3537 = vst.msk [vmem:[%s602 + $0xdc] sm:$0xf] %vm3481, %v3408
          %3538 = vst.msk [vmem:[%s602 + $0xe0] sm:$0xf] %vm3481, %v3409
          %3539 = vst.msk [vmem:[%s602 + $0xe4] sm:$0xf] %vm3481, %v3410
          %3540 = vst.msk [vmem:[%s602 + $0xe8] sm:$0xf] %vm3481, %v3411
          %3541 = vst.msk [vmem:[%s602 + $0xec] sm:$0xf] %vm3481, %v3412
          %3542 = vst.msk [vmem:[%s602 + $0xf0] sm:$0xf] %vm3481, %v3413
          %3543 = vst.msk [vmem:[%s602 + $0xf4] sm:$0xf] %vm3481, %v3414
          %3544 = vst.msk [vmem:[%s602 + $0xf8] sm:$0xf] %vm3481, %v3415
          %3545 = vst.msk [vmem:[%s602 + $0xfc] sm:$0xf] %vm3481, %v3416
        $region71: #{tdrumor_forward.4} parent=58 // pred_fallthru
          _
        %s3546 = smul.u32 64, %s22
        %p3547 = scmp.lt.s32.totalorder %s3546, 127
        %s3548 = scalar_select %p3547, %s3546, 127
        %s3549 = smul.addr %s3548, 8
        %s3550 = scalar_lea.vmem %s5, %s3549
        %s3551 = smul.u32 64, %s22
        %p3552 = scmp.lt.s32.totalorder %s3551, 127
        %s3553 = scalar_select %p3552, %s3551, 127
        %s3554 = smul.addr %s3553, 4
        %s3555 = scalar_lea.vmem %s6, %s3554
        // Predicated region
        $region72: #{tdrumor_forward.4} parent=58 // pred_check
          %p3556 = pneg %p170
        $region73: #{tdrumor_forward.4} parent=58 // pred_check_branch
          %3558 = sbr.rel (%p3556) target = $region75
        $region74: #{tdrumor_forward.4} parent=58 // pred_region
          %s3559 = smul.u32 64, %s22
        $region75: #{tdrumor_forward.4} parent=58 // pred_fallthru
          _
        // Predicated region
        $region76: #{tdrumor_forward.4} parent=58 // pred_check
          %p3560 = pneg %p196
        $region77: #{tdrumor_forward.4} parent=58 // pred_check_branch
          %3562 = sbr.rel (%p3560) target = $region79
        $region78: #{tdrumor_forward.4} parent=58 // pred_region
          %s3563 = smul.u32 64, %s22
        $region79: #{tdrumor_forward.4} parent=58 // pred_fallthru
          _
      $region59: #{tdrumor_forward.4} parent=5 // pred_fallthru
        _
      %p3564 = scmp.le.s32.totalorder 2, %s13
      // Predicated region
      $region80: #{tdrumor_forward.4} parent=5 // pred_check
        %p3565 = pneg %p3564
      $region81: #{tdrumor_forward.4} parent=5 // pred_check_branch
        %3567 = sbr.rel (%p3565) target = $region83
      $region82: #{tdrumor_forward.4} parent=5 // pred_region
        %s3568 = ssub.s32 %s13, 2
        // Predicated region
        $region84: #{tdrumor_forward.4} parent=82 // pred_check
          %p3569 = pneg %p176
        $region85: #{tdrumor_forward.4} parent=82 // pred_check_branch
          %3571 = sbr.rel (%p3569) target = $region87
        $region86: #{tdrumor_forward.4} parent=82 // pred_region
          %s3572 = smul.u32 64, %s24
          %p3573 = scmp.lt.s32.totalorder %s3572, 127
          %s3574 = scalar_select %p3573, %s3572, 127
          %s3575 = smul.addr %s3574, 8
          %s3576 = scalar_lea.vmem %s5, %s3575
        $region87: #{tdrumor_forward.4} parent=82 // pred_fallthru
          _
        // Predicated region
        $region88: #{tdrumor_forward.4} parent=82 // pred_check
          %p3577 = pneg %p202
        $region89: #{tdrumor_forward.4} parent=82 // pred_check_branch
          %3579 = sbr.rel (%p3577) target = $region91
        $region90: #{tdrumor_forward.4} parent=82 // pred_region
          %s3580 = smul.u32 64, %s24
          %p3581 = scmp.lt.s32.totalorder %s3580, 127
          %s3582 = scalar_select %p3581, %s3580, 127
          %s3583 = smul.addr %s3582, 4
          %s3584 = scalar_lea.vmem %s6, %s3583
        $region91: #{tdrumor_forward.4} parent=82 // pred_fallthru
          _
      $region83: #{tdrumor_forward.4} parent=5 // pred_fallthru
        _
    $region6: #{tdrumor_forward.4} parent=1 // loop_footer
      %s17 = sadd.s32 1, %s13
    $region7: #{tdrumor_forward.4} parent=1 // loop_footer_branch
      %12 = sbr.rel target = $region3
    $region8: #{tdrumor_forward.4} parent=1 // loop_exit
      _

</llo_original>
